<compile_context>
chip_gen: v6e
topology: v6e:2x2x1
jax: 0.10.0
libtpu: 0.0.40
codegen_flags: <defaults>
</compile_context>

<pallas_src>
import functools

import jax
import jax.numpy as jnp
from jax import lax
from jax.experimental import pallas as pl
from jax.experimental.pallas import tpu as pltpu

MATMUL_DTYPE = jnp.bfloat16     # matmul operand dtype (accumulation always f32)
GX_DTYPE = jnp.bfloat16         # hoisted input-projection storage dtype
H_DTYPE = jnp.bfloat16          # per-timestep hidden output storage dtype
LANE = 128
SUBLANE = 8
VMEM_LIMIT_BYTES = 48 * 1024 * 1024   # safe on v5e/v6e (128 MiB) and v7x (64 MiB)


# ----------------------------------------------------------------------------
# helpers
# ----------------------------------------------------------------------------
def _round_up(x, m):
    return (x + m - 1) // m * m


def _choose_mb(M, target=256):
    """Row-block for the big projection / head matmuls (M is 8-divisible)."""
    for mb in range(min(M, target), SUBLANE - 1, -1):
        if M % mb == 0 and mb % SUBLANE == 0:
            return mb
    return M


def _choose_tb(T, Np, Hp, target=128, vmem_budget=8 << 20):
    """Timesteps per grid iteration of the recurrent kernel (VMEM-budgeted)."""
    # bytes per timestep: 2 directions of gx (bf16, 3Hp) + 2 hidden outs (bf16, Hp),
    # times 2 for double buffering.
    per_step = Np * (2 * 3 * Hp * 2 + 2 * Hp * 2) * 2
    cap = max(1, vmem_budget // max(per_step, 1))
    best = 1
    for tb in range(1, min(T, target, cap) + 1):
        if T % tb == 0:
            best = tb
    return best


# ----------------------------------------------------------------------------
# Hoisted input projection kernels (one big matmul over all timesteps)
# ----------------------------------------------------------------------------
def _proj1_kernel(x_ref, wf_ref, wb_ref, bf_ref, bb_ref, of_ref, ob_ref):
    """Layer-0 projection: gx_fwd / gx_bwd from the raw features."""
    x = x_ref[...].astype(MATMUL_DTYPE)                       # (MB, C)
    gf = jnp.dot(x, wf_ref[...], preferred_element_type=jnp.float32) + bf_ref[...]
    gb = jnp.dot(x, wb_ref[...], preferred_element_type=jnp.float32) + bb_ref[...]
    of_ref[...] = gf.astype(of_ref.dtype)
    ob_ref[...] = gb.astype(ob_ref.dtype)


def _proj2_kernel(ha_ref, hb_ref, wfa_ref, wfb_ref, wba_ref, wbb_ref,
                  bf_ref, bb_ref, of_ref, ob_ref):
    """Layer>0 projection: consumes fwd/bwd halves separately (no concat)."""
    ha = ha_ref[...].astype(MATMUL_DTYPE)                     # (MB, Hp)
    hb = hb_ref[...].astype(MATMUL_DTYPE)                     # (MB, Hp)
    gf = (jnp.dot(ha, wfa_ref[...], preferred_element_type=jnp.float32)
          + jnp.dot(hb, wfb_ref[...], preferred_element_type=jnp.float32)
          + bf_ref[...])
    gb = (jnp.dot(ha, wba_ref[...], preferred_element_type=jnp.float32)
          + jnp.dot(hb, wbb_ref[...], preferred_element_type=jnp.float32)
          + bb_ref[...])
    of_ref[...] = gf.astype(of_ref.dtype)
    ob_ref[...] = gb.astype(ob_ref.dtype)


def proj_layer0(x2d, wf, wb, bf, bb, m_target=256):
    """x2d: (T*Np, C) -> (gx_fwd, gx_bwd) each (T*Np, 3Hp) bf16."""
    M, C = x2d.shape
    G = wf.shape[1]
    MB = _choose_mb(M, m_target)
    return pl.pallas_call(
        _proj1_kernel,
        out_shape=(jax.ShapeDtypeStruct((M, G), GX_DTYPE),
                   jax.ShapeDtypeStruct((M, G), GX_DTYPE)),
        grid_spec=pltpu.PrefetchScalarGridSpec(
            num_scalar_prefetch=0,
            grid=(M // MB,),
            in_specs=[
                pl.BlockSpec((MB, C), lambda i: (i, 0)),
                pl.BlockSpec((C, G), lambda i: (0, 0)),
                pl.BlockSpec((C, G), lambda i: (0, 0)),
                pl.BlockSpec((1, G), lambda i: (0, 0)),
                pl.BlockSpec((1, G), lambda i: (0, 0)),
            ],
            out_specs=[
                pl.BlockSpec((MB, G), lambda i: (i, 0)),
                pl.BlockSpec((MB, G), lambda i: (i, 0)),
            ],
        ),
        compiler_params=pltpu.CompilerParams(
            dimension_semantics=("parallel",),
            vmem_limit_bytes=VMEM_LIMIT_BYTES),
    )(x2d, wf, wb, bf, bb)


def proj_hidden(hf2d, hb2d, wfa, wfb, wba, wbb, bf, bb, m_target=256):
    """hf2d/hb2d: (T*Np, Hp) -> (gx_fwd, gx_bwd) each (T*Np, 3Hp) bf16."""
    M, Hp = hf2d.shape
    G = wfa.shape[1]
    MB = _choose_mb(M, m_target)
    return pl.pallas_call(
        _proj2_kernel,
        out_shape=(jax.ShapeDtypeStruct((M, G), GX_DTYPE),
                   jax.ShapeDtypeStruct((M, G), GX_DTYPE)),
        grid_spec=pltpu.PrefetchScalarGridSpec(
            num_scalar_prefetch=0,
            grid=(M // MB,),
            in_specs=[
                pl.BlockSpec((MB, Hp), lambda i: (i, 0)),
                pl.BlockSpec((MB, Hp), lambda i: (i, 0)),
                pl.BlockSpec((Hp, G), lambda i: (0, 0)),
                pl.BlockSpec((Hp, G), lambda i: (0, 0)),
                pl.BlockSpec((Hp, G), lambda i: (0, 0)),
                pl.BlockSpec((Hp, G), lambda i: (0, 0)),
                pl.BlockSpec((1, G), lambda i: (0, 0)),
                pl.BlockSpec((1, G), lambda i: (0, 0)),
            ],
            out_specs=[
                pl.BlockSpec((MB, G), lambda i: (i, 0)),
                pl.BlockSpec((MB, G), lambda i: (i, 0)),
            ],
        ),
        compiler_params=pltpu.CompilerParams(
            dimension_semantics=("parallel",),
            vmem_limit_bytes=VMEM_LIMIT_BYTES),
    )(hf2d, hb2d, wfa, wfb, wba, wbb, bf, bb)


# ----------------------------------------------------------------------------
# Fused bidirectional GRU recurrence (hidden-to-hidden only, TB steps / iter)
# ----------------------------------------------------------------------------
def _bigru_kernel(gxf_ref, gxb_ref, whhbd_ref, bhcf_ref, bhcb_ref,
                  hf_ref, hb_ref, h_st, *, tb, n, hp):
    """Grid axis 0 = time block (sequential, 'arbitrary').

    gxf/gxb : (tb*n, 3Hp) bf16 hoisted input projections (bwd block is the
              mirrored time block via index_map).  r/z portions of bhh are
              already folded into these.
    whhbd   : (2Hp, 6Hp) bf16 block-diagonal [Whh_f ; Whh_b]
    bhcf/b  : (1, Hp) f32 candidate-gate hidden bias per direction
    hf/hb   : (tb*n, Hp) bf16 per-timestep hidden outputs (bwd mirrored)
    h_st    : (n, 2Hp) f32 carried hidden states [fwd | bwd]
    """
    s = pl.program_id(0)

    @pl.when(s == 0)
    def _():
        h_st[...] = jnp.zeros_like(h_st)

    whh_bd = whhbd_ref[...]                                    # (2Hp, 6Hp) bf16
    # Hoisted broadcasts (JAX does not CSE broadcast_in_dim inside the loop).
    bhcf = jnp.broadcast_to(bhcf_ref[...], (n, hp))
    bhcb = jnp.broadcast_to(bhcb_ref[...], (n, hp))

    def gate(gx, gh, h_prev, bhc):
        r = jax.nn.sigmoid(gx[:, 0 * hp:1 * hp] + gh[:, 0 * hp:1 * hp])
        z = jax.nn.sigmoid(gx[:, 1 * hp:2 * hp] + gh[:, 1 * hp:2 * hp])
        c = jnp.tanh(gx[:, 2 * hp:3 * hp] + r * (gh[:, 2 * hp:3 * hp] + bhc))
        return c + z * (h_prev - c)            # == (1-z)*c + z*h_prev

    def body(i, h_cat):
        rf = pl.ds(pl.multiple_of(i * n, n), n)                  # fwd rows
        rb = pl.ds(pl.multiple_of((tb - 1 - i) * n, n), n)       # bwd rows (mirrored)
        gxf = gxf_ref[rf, :].astype(jnp.float32)
        gxb = gxb_ref[rb, :].astype(jnp.float32)
        # one fused block-diagonal h2h matmul for both directions
        gh = jnp.dot(h_cat.astype(MATMUL_DTYPE), whh_bd,
                     preferred_element_type=jnp.float32)         # (n, 6Hp)
        hf_new = gate(gxf, gh[:, :3 * hp], h_cat[:, :hp], bhcf)
        hb_new = gate(gxb, gh[:, 3 * hp:], h_cat[:, hp:], bhcb)
        hf_ref[rf, :] = hf_new.astype(hf_ref.dtype)
        hb_ref[rb, :] = hb_new.astype(hb_ref.dtype)
        return jnp.concatenate([hf_new, hb_new], axis=1)

    h_st[...] = lax.fori_loop(0, tb, body, h_st[...], unroll=min(tb, 8))


def bigru_recurrence(gxf, gxb, whh_bd, bhcf, bhcb, T, Np, Hp):
    """gxf/gxb: (T*Np, 3Hp) bf16 -> (h_fwd, h_bwd) each (T*Np, Hp) bf16."""
    M, G = gxf.shape
    TB = _choose_tb(T, Np, Hp)
    nblk = T // TB
    MB = TB * Np
    kernel = functools.partial(_bigru_kernel, tb=TB, n=Np, hp=Hp)
    return pl.pallas_call(
        kernel,
        out_shape=(jax.ShapeDtypeStruct((M, Hp), H_DTYPE),
                   jax.ShapeDtypeStruct((M, Hp), H_DTYPE)),
        grid_spec=pltpu.PrefetchScalarGridSpec(
            num_scalar_prefetch=0,
            grid=(nblk,),
            in_specs=[
                pl.BlockSpec((MB, G), lambda s: (s, 0)),               # fwd gx
                pl.BlockSpec((MB, G), lambda s: (nblk - 1 - s, 0)),    # bwd gx (reversed)
                pl.BlockSpec((2 * Hp, 6 * Hp), lambda s: (0, 0)),      # block-diag Whh
                pl.BlockSpec((1, Hp), lambda s: (0, 0)),
                pl.BlockSpec((1, Hp), lambda s: (0, 0)),
            ],
            out_specs=[
                pl.BlockSpec((MB, Hp), lambda s: (s, 0)),              # fwd h
                pl.BlockSpec((MB, Hp), lambda s: (nblk - 1 - s, 0)),   # bwd h (reversed)
            ],
            scratch_shapes=[pltpu.VMEM((Np, 2 * Hp), jnp.float32)],
        ),
        # Time must stay sequential: hidden state is carried in scratch.
        compiler_params=pltpu.CompilerParams(
            dimension_semantics=("arbitrary",),
            vmem_limit_bytes=VMEM_LIMIT_BYTES),
    )(gxf, gxb, whh_bd, bhcf, bhcb)


# ----------------------------------------------------------------------------
# Final linear head (consumes fwd/bwd halves separately -> no concat)
# ----------------------------------------------------------------------------
def _head_kernel(hf_ref, hb_ref, wf_ref, wb_ref, b_ref, o_ref):
    hf = hf_ref[...].astype(MATMUL_DTYPE)
    hb = hb_ref[...].astype(MATMUL_DTYPE)
    o_ref[...] = (jnp.dot(hf, wf_ref[...], preferred_element_type=jnp.float32)
                  + jnp.dot(hb, wb_ref[...], preferred_element_type=jnp.float32)
                  + b_ref[...])


def head_linear(hf2d, hb2d, wf, wb, b, m_target=256):
    M, Hp = hf2d.shape
    Op = wf.shape[1]
    MB = _choose_mb(M, m_target)
    return pl.pallas_call(
        _head_kernel,
        out_shape=jax.ShapeDtypeStruct((M, Op), jnp.float32),
        grid_spec=pltpu.PrefetchScalarGridSpec(
            num_scalar_prefetch=0,
            grid=(M // MB,),
            in_specs=[
                pl.BlockSpec((MB, Hp), lambda i: (i, 0)),
                pl.BlockSpec((MB, Hp), lambda i: (i, 0)),
                pl.BlockSpec((Hp, Op), lambda i: (0, 0)),
                pl.BlockSpec((Hp, Op), lambda i: (0, 0)),
                pl.BlockSpec((1, Op), lambda i: (0, 0)),
            ],
            out_specs=pl.BlockSpec((MB, Op), lambda i: (i, 0)),
        ),
        compiler_params=pltpu.CompilerParams(
            dimension_semantics=("parallel",),
            vmem_limit_bytes=VMEM_LIMIT_BYTES),
    )(hf2d, hb2d, wf, wb, b)


# ----------------------------------------------------------------------------
# Full CTCtopR forward (padded / lane-dense kernel params)
# ----------------------------------------------------------------------------
def ctctop_r_forward(x, kparams, *, nclasses):
    """x: (N, C, H, W) NCHW feature maps. Returns (W, N, nclasses) f32."""
    N, C, _, W = x.shape
    T = W
    Np = _round_up(max(N, 1), SUBLANE)
    # Slice the single height row FIRST, then transpose (avoids moving H x data).
    y = jnp.transpose(x[:, :, 0, :], (2, 0, 1)).astype(jnp.float32)   # (T, N, C)
    if Np != N:
        y = jnp.pad(y, ((0, 0), (0, Np - N), (0, 0)))                 # sublane-pad batch
    y2d = y.reshape(T * Np, C)

    hf2d = hb2d = None
    for li, lp in enumerate(kparams["layers"]):
        if li == 0:
            gxf, gxb = proj_layer0(
                y2d, lp["fwd"]["wih_t"], lp["bwd"]["wih_t"],
                lp["fwd"]["bih"], lp["bwd"]["bih"])
        else:
            gxf, gxb = proj_hidden(
                hf2d, hb2d,
                lp["fwd"]["w_from_f"], lp["fwd"]["w_from_b"],
                lp["bwd"]["w_from_f"], lp["bwd"]["w_from_b"],
                lp["fwd"]["bih"], lp["bwd"]["bih"])
        # Inter-layer dropout(0.2) is identity at inference.
        Hp = lp["whh_bd"].shape[0] // 2
        hf2d, hb2d = bigru_recurrence(
            gxf, gxb, lp["whh_bd"], lp["fwd"]["bhc"], lp["bwd"]["bhc"], T, Np, Hp)

    out2d = head_linear(hf2d, hb2d, kparams["head"]["wf"], kparams["head"]["wb"],
                        kparams["head"]["b"])
    Op = kparams["head"]["wf"].shape[1]
    out = out2d.reshape(T, Np, Op)
    return out[:, :N, :nclasses]          # drop batch / class padding


# ----------------------------------------------------------------------------
# Raw (PyTorch-layout) parameter init + padded kernel-parameter preparation
# ----------------------------------------------------------------------------
def init_params(key, input_size, hidden, num_layers, nclasses):
    """Raw f32 params in PyTorch GRU layout; uniform(-1/sqrt(H), +1/sqrt(H))."""
    bound = 1.0 / (hidden ** 0.5)
    params = {"gru_layers": []}
    keys = jax.random.split(key, num_layers * 2 * 4 + 2)
    ki = 0
    for layer in range(num_layers):
        d_in = input_size if layer == 0 else 2 * hidden
        layer_p = {}
        for direction in ("fwd", "bwd"):
            wih = jax.random.uniform(keys[ki], (3 * hidden, d_in),
                                     minval=-bound, maxval=bound); ki += 1
            whh = jax.random.uniform(keys[ki], (3 * hidden, hidden),
                                     minval=-bound, maxval=bound); ki += 1
            bih = jax.random.uniform(keys[ki], (3 * hidden,),
                                     minval=-bound, maxval=bound); ki += 1
            bhh = jax.random.uniform(keys[ki], (3 * hidden,),
                                     minval=-bound, maxval=bound); ki += 1
            layer_p[direction] = {"wih": wih, "whh": whh, "bih": bih, "bhh": bhh}
        params["gru_layers"].append(layer_p)
    w = jax.random.uniform(keys[ki], (nclasses, 2 * hidden),
                           minval=-bound, maxval=bound); ki += 1
    b = jax.random.uniform(keys[ki], (nclasses,),
                           minval=-bound, maxval=bound); ki += 1
    params["fnl"] = {"w": w, "b": b}
    return params


def _pad_gates_cols(w_t, H, Hp):
    """w_t: (d_in, 3H) -> (d_in, 3Hp) with every gate zero-padded to Hp lanes."""
    parts = [jnp.pad(w_t[:, k * H:(k + 1) * H], ((0, 0), (0, Hp - H)))
             for k in range(3)]
    return jnp.concatenate(parts, axis=1)


def _pad_gate_bias(b, H, Hp):
    parts = [jnp.pad(b[k * H:(k + 1) * H], (0, Hp - H)) for k in range(3)]
    return jnp.concatenate(parts).reshape(1, 3 * Hp).astype(jnp.float32)


def prepare_params(raw):
    """Pad to lane-dense shapes, transpose, fold biases, cast matmul weights to bf16."""
    layers = raw["gru_layers"]
    H = layers[0]["fwd"]["whh"].shape[1]
    ncls = raw["fnl"]["b"].shape[0]
    Hp = _round_up(H, LANE)
    Op = _round_up(ncls, LANE)

    kp = {"layers": []}
    for li, lp in enumerate(layers):
        out_layer = {"fwd": {}, "bwd": {}}
        for direction in ("fwd", "bwd"):
            d = lp[direction]
            bih, bhh = d["bih"], d["bhh"]
            # fold r/z-gate hidden bias into the input bias (candidate stays in-loop)
            bih_fold = jnp.concatenate([bih[:2 * H] + bhh[:2 * H], bih[2 * H:]])
            out_layer[direction]["bih"] = _pad_gate_bias(bih_fold, H, Hp)
            out_layer[direction]["bhc"] = jnp.pad(
                bhh[2 * H:], (0, Hp - H)).reshape(1, Hp).astype(jnp.float32)
            wih_t = d["wih"].T                                   # (d_in, 3H)
            if li == 0:
                out_layer[direction]["wih_t"] = _pad_gates_cols(
                    wih_t, H, Hp).astype(MATMUL_DTYPE)           # (C, 3Hp)
            else:
                wf = _pad_gates_cols(wih_t[:H], H, Hp)           # from fwd half
                wb = _pad_gates_cols(wih_t[H:], H, Hp)           # from bwd half
                out_layer[direction]["w_from_f"] = jnp.pad(
                    wf, ((0, Hp - H), (0, 0))).astype(MATMUL_DTYPE)
                out_layer[direction]["w_from_b"] = jnp.pad(
                    wb, ((0, Hp - H), (0, 0))).astype(MATMUL_DTYPE)
        # fused block-diagonal hidden-to-hidden weight [Whh_f ; Whh_b]
        whf = jnp.pad(_pad_gates_cols(lp["fwd"]["whh"].T, H, Hp), ((0, Hp - H), (0, 0)))
        whb = jnp.pad(_pad_gates_cols(lp["bwd"]["whh"].T, H, Hp), ((0, Hp - H), (0, 0)))
        whh_bd = jnp.zeros((2 * Hp, 6 * Hp), jnp.float32)
        whh_bd = whh_bd.at[:Hp, :3 * Hp].set(whf)
        whh_bd = whh_bd.at[Hp:, 3 * Hp:].set(whb)
        out_layer["whh_bd"] = whh_bd.astype(MATMUL_DTYPE)
        kp["layers"].append(out_layer)

    w_t = raw["fnl"]["w"].T                                      # (2H, ncls)
    kp["head"] = {
        "wf": jnp.pad(w_t[:H], ((0, Hp - H), (0, Op - ncls))).astype(MATMUL_DTYPE),
        "wb": jnp.pad(w_t[H:], ((0, Hp - H), (0, Op - ncls))).astype(MATMUL_DTYPE),
        "b": jnp.pad(raw["fnl"]["b"], (0, Op - ncls)).reshape(1, Op).astype(jnp.float32),
    }
    return kp


# ----------------------------------------------------------------------------
# Pure-JAX reference (bf16 matmul operands, f32 accumulation, f32 gx)
# ----------------------------------------------------------------------------
def _ref_gru_dir(x, p):
    H = p["whh"].shape[1]
    wih_t = p["wih"].T.astype(MATMUL_DTYPE)
    whh_t = p["whh"].T.astype(MATMUL_DTYPE)

    def step(h, x_t):
        gx = jnp.dot(x_t.astype(MATMUL_DTYPE), wih_t,
                     preferred_element_type=jnp.float32) + p["bih"]
        gh = jnp.dot(h.astype(MATMUL_DTYPE), whh_t,
                     preferred_element_type=jnp.float32) + p["bhh"]
        r = jax.nn.sigmoid(gx[:, :H] + gh[:, :H])
        z = jax.nn.sigmoid(gx[:, H:2 * H] + gh[:, H:2 * H])
        c = jnp.tanh(gx[:, 2 * H:] + r * gh[:, 2 * H:])
        h_new = (1.0 - z) * c + z * h
        return h_new, h_new

    h0 = jnp.zeros((x.shape[1], H), jnp.float32)
    _, hs = lax.scan(step, h0, x)
    return hs


def ctctop_r_reference(x, raw):
    y = jnp.transpose(x[:, :, 0, :], (2, 0, 1)).astype(jnp.float32)   # (T, N, C)
    T, N, _ = y.shape
    for lp in raw["gru_layers"]:
        fwd = _ref_gru_dir(y, lp["fwd"])
        bwd = jnp.flip(_ref_gru_dir(jnp.flip(y, 0), lp["bwd"]), 0)
        y = jnp.concatenate([fwd, bwd], axis=-1)
    w_t = raw["fnl"]["w"].T.astype(MATMUL_DTYPE)
    out = (jnp.dot(y.reshape(T * N, -1).astype(MATMUL_DTYPE), w_t,
                   preferred_element_type=jnp.float32) + raw["fnl"]["b"])
    return out.reshape(T, N, -1)


# ----------------------------------------------------------------------------
if __name__ == "__main__":
    # Shapes consistent with the module's forward:
    #   x: (batch=2, channels=input_size=16, H=4, W=seq=8)
    batch, input_size, height, width = 2, 16, 4, 8
    hidden, num_layers, nclasses = 32, 2, 11

    key = jax.random.PRNGKey(0)
    k_x, k_p = jax.random.split(key)
    x = jax.random.normal(k_x, (batch, input_size, height, width), jnp.float32)
    raw_params = init_params(k_p, input_size, hidden, num_layers, nclasses)
    kparams = prepare_params(raw_params)

    fwd_fn = jax.jit(functools.partial(ctctop_r_forward, nclasses=nclasses))
    out = jax.block_until_ready(fwd_fn(x, kparams))

    ref = jax.block_until_ready(ctctop_r_reference(x, raw_params))
    assert out.shape == (width, batch, nclasses), out.shape
    # kernel stores gx / per-step h in bf16 (f32 accumulation) -> slightly wider tol
    max_err = float(jnp.max(jnp.abs(out - ref)))
    assert jnp.allclose(out, ref, atol=3e-2, rtol=3e-2), max_err

    print("KERNEL_OK")
</pallas_src>

<mosaic_0001>
module attributes {stable_mosaic.version = 11 : i64} {
  func.func @_proj1_kernel(%arg0: i32, %arg1: memref<64x16xf32, #tpu.memory_space<vmem>>, %arg2: memref<16x384xbf16, #tpu.memory_space<vmem>>, %arg3: memref<16x384xbf16, #tpu.memory_space<vmem>>, %arg4: memref<1x384xf32, #tpu.memory_space<vmem>>, %arg5: memref<1x384xf32, #tpu.memory_space<vmem>>, %arg6: memref<64x384xbf16, #tpu.memory_space<vmem>>, %arg7: memref<64x384xbf16, #tpu.memory_space<vmem>>) attributes {dimension_semantics = [#tpu.dimension_semantics<parallel>], iteration_bounds = array<i64: 1>, scalar_prefetch = 0 : i64, scratch_operands = 0 : i64, tpu.core_type = #tpu.core_type<tc>, window_params = [{transform_indices = @transform_0, window_bounds = array<i64: 64, 16>}, {pipeline_mode = #tpu.pipeline_mode<synchronous>, transform_indices = @transform_1, window_bounds = array<i64: 16, 384>}, {pipeline_mode = #tpu.pipeline_mode<synchronous>, transform_indices = @transform_2, window_bounds = array<i64: 16, 384>}, {pipeline_mode = #tpu.pipeline_mode<synchronous>, transform_indices = @transform_3, window_bounds = array<i64: 1, 384>}, {pipeline_mode = #tpu.pipeline_mode<synchronous>, transform_indices = @transform_4, window_bounds = array<i64: 1, 384>}, {transform_indices = @transform_5, window_bounds = array<i64: 64, 384>}, {transform_indices = @transform_6, window_bounds = array<i64: 64, 384>}]} {
    %c0 = arith.constant 0 : index
    %c0_0 = arith.constant 0 : index
    %0 = vector.load %arg1[%c0, %c0_0] : memref<64x16xf32, #tpu.memory_space<vmem>>, vector<64x16xf32>
    %1 = arith.truncf %0 : vector<64x16xf32> to vector<64x16xbf16>
    %c0_1 = arith.constant 0 : index
    %c0_2 = arith.constant 0 : index
    %2 = vector.load %arg2[%c0_1, %c0_2] : memref<16x384xbf16, #tpu.memory_space<vmem>>, vector<16x384xbf16>
    %cst = arith.constant dense<0.000000e+00> : vector<64x384xf32>
    %3 = tpu.matmul %1, %2, %cst {dimension_numbers = #tpu.dot_dimension_numbers<[1], [0], [0], [1], [0, 0, 1, 1], [], []>} : vector<64x16xbf16>, vector<16x384xbf16>, vector<64x384xf32> -> vector<64x384xf32>
    %c0_3 = arith.constant 0 : index
    %c0_4 = arith.constant 0 : index
    %4 = vector.load %arg4[%c0_3, %c0_4] : memref<1x384xf32, #tpu.memory_space<vmem>>, vector<1x384xf32>
    %5 = vector.broadcast %4 : vector<1x384xf32> to vector<64x384xf32>
    %6 = arith.addf %3, %5 : vector<64x384xf32>
    %c0_5 = arith.constant 0 : index
    %c0_6 = arith.constant 0 : index
    %7 = vector.load %arg3[%c0_5, %c0_6] : memref<16x384xbf16, #tpu.memory_space<vmem>>, vector<16x384xbf16>
    %cst_7 = arith.constant dense<0.000000e+00> : vector<64x384xf32>
    %8 = tpu.matmul %1, %7, %cst_7 {dimension_numbers = #tpu.dot_dimension_numbers<[1], [0], [0], [1], [0, 0, 1, 1], [], []>} : vector<64x16xbf16>, vector<16x384xbf16>, vector<64x384xf32> -> vector<64x384xf32>
    %c0_8 = arith.constant 0 : index
    %c0_9 = arith.constant 0 : index
    %9 = vector.load %arg5[%c0_8, %c0_9] : memref<1x384xf32, #tpu.memory_space<vmem>>, vector<1x384xf32>
    %10 = vector.broadcast %9 : vector<1x384xf32> to vector<64x384xf32>
    %11 = arith.addf %8, %10 : vector<64x384xf32>
    %12 = arith.truncf %6 : vector<64x384xf32> to vector<64x384xbf16>
    %c0_10 = arith.constant 0 : index
    %c0_11 = arith.constant 0 : index
    %13 = vector.load %arg6[%c0_10, %c0_11] : memref<64x384xbf16, #tpu.memory_space<vmem>>, vector<64x384xbf16>
    tpu.vector_store %arg6[%c0_10, %c0_11], %12 {strides = array<i32>} : memref<64x384xbf16, #tpu.memory_space<vmem>>, vector<64x384xbf16>,
    %14 = arith.truncf %11 : vector<64x384xf32> to vector<64x384xbf16>
    %c0_12 = arith.constant 0 : index
    %c0_13 = arith.constant 0 : index
    %15 = vector.load %arg7[%c0_12, %c0_13] : memref<64x384xbf16, #tpu.memory_space<vmem>>, vector<64x384xbf16>
    tpu.vector_store %arg7[%c0_12, %c0_13], %14 {strides = array<i32>} : memref<64x384xbf16, #tpu.memory_space<vmem>>, vector<64x384xbf16>,
    return
  }
  func.func @transform_0(%arg0: i32) -> (i32, i32) {
    %c0_i32 = arith.constant 0 : i32
    %c0_i32_0 = arith.constant 0 : i32
    return %arg0, %c0_i32 : i32, i32
  }
  func.func @transform_1(%arg0: i32) -> (i32, i32) {
    %c0_i32 = arith.constant 0 : i32
    %c0_i32_0 = arith.constant 0 : i32
    %c0_i32_1 = arith.constant 0 : i32
    return %c0_i32, %c0_i32_0 : i32, i32
  }
  func.func @transform_2(%arg0: i32) -> (i32, i32) {
    %c0_i32 = arith.constant 0 : i32
    %c0_i32_0 = arith.constant 0 : i32
    %c0_i32_1 = arith.constant 0 : i32
    return %c0_i32, %c0_i32_0 : i32, i32
  }
  func.func @transform_3(%arg0: i32) -> (i32, i32) {
    %c0_i32 = arith.constant 0 : i32
    %c0_i32_0 = arith.constant 0 : i32
    %c0_i32_1 = arith.constant 0 : i32
    return %c0_i32, %c0_i32_0 : i32, i32
  }
  func.func @transform_4(%arg0: i32) -> (i32, i32) {
    %c0_i32 = arith.constant 0 : i32
    %c0_i32_0 = arith.constant 0 : i32
    %c0_i32_1 = arith.constant 0 : i32
    return %c0_i32, %c0_i32_0 : i32, i32
  }
  func.func @transform_5(%arg0: i32) -> (i32, i32) {
    %c0_i32 = arith.constant 0 : i32
    %c0_i32_0 = arith.constant 0 : i32
    return %arg0, %c0_i32 : i32, i32
  }
  func.func @transform_6(%arg0: i32) -> (i32, i32) {
    %c0_i32 = arith.constant 0 : i32
    %c0_i32_0 = arith.constant 0 : i32
    return %arg0, %c0_i32 : i32, i32
  }
}

module attributes {stable_mosaic.version = 11 : i64} {
  func.func @_bigru_kernel(%arg0: i32, %arg1: memref<64x384xbf16, #tpu.memory_space<vmem>>, %arg2: memref<64x384xbf16, #tpu.memory_space<vmem>>, %arg3: memref<256x768xbf16, #tpu.memory_space<vmem>>, %arg4: memref<1x128xf32, #tpu.memory_space<vmem>>, %arg5: memref<1x128xf32, #tpu.memory_space<vmem>>, %arg6: memref<64x128xbf16, #tpu.memory_space<vmem>>, %arg7: memref<64x128xbf16, #tpu.memory_space<vmem>>, %arg8: memref<8x256xf32, #tpu.memory_space<vmem>>) attributes {dimension_semantics = [#tpu.dimension_semantics<arbitrary>], iteration_bounds = array<i64: 1>, scalar_prefetch = 0 : i64, scratch_operands = 1 : i64, tpu.core_type = #tpu.core_type<tc>, window_params = [{transform_indices = @transform_0, window_bounds = array<i64: 64, 384>}, {transform_indices = @transform_1, window_bounds = array<i64: 64, 384>}, {pipeline_mode = #tpu.pipeline_mode<synchronous>, transform_indices = @transform_2, window_bounds = array<i64: 256, 768>}, {pipeline_mode = #tpu.pipeline_mode<synchronous>, transform_indices = @transform_3, window_bounds = array<i64: 1, 128>}, {pipeline_mode = #tpu.pipeline_mode<synchronous>, transform_indices = @transform_4, window_bounds = array<i64: 1, 128>}, {transform_indices = @transform_5, window_bounds = array<i64: 64, 128>}, {transform_indices = @transform_6, window_bounds = array<i64: 64, 128>}]} {
    %c0_i32 = arith.constant 0 : i32
    %0 = arith.cmpi eq, %arg0, %c0_i32 : i32
    %1 = arith.extui %0 : i1 to i32
    %c0_i32_0 = arith.constant 0 : i32
    %2 = arith.cmpi ne, %1, %c0_i32_0 : i32
    scf.if %2 {
      %cst_106 = arith.constant 0.000000e+00 : f32
      %604 = vector.broadcast %cst_106 : f32 to vector<8x256xf32>
      %c0_107 = arith.constant 0 : index
      %c0_108 = arith.constant 0 : index
      %605 = vector.load %arg8[%c0_107, %c0_108] : memref<8x256xf32, #tpu.memory_space<vmem>>, vector<8x256xf32>
      tpu.vector_store %arg8[%c0_107, %c0_108], %604 {strides = array<i32>} : memref<8x256xf32, #tpu.memory_space<vmem>>, vector<8x256xf32>,
    } else {
    }
    %c0 = arith.constant 0 : index
    %c0_1 = arith.constant 0 : index
    %3 = vector.load %arg3[%c0, %c0_1] : memref<256x768xbf16, #tpu.memory_space<vmem>>, vector<256x768xbf16>
    %c0_2 = arith.constant 0 : index
    %c0_3 = arith.constant 0 : index
    %4 = vector.load %arg4[%c0_2, %c0_3] : memref<1x128xf32, #tpu.memory_space<vmem>>, vector<1x128xf32>
    %5 = vector.shape_cast %4 : vector<1x128xf32> to vector<1x128xf32>
    %6 = vector.broadcast %5 : vector<1x128xf32> to vector<8x128xf32>
    %c0_4 = arith.constant 0 : index
    %c0_5 = arith.constant 0 : index
    %7 = vector.load %arg5[%c0_4, %c0_5] : memref<1x128xf32, #tpu.memory_space<vmem>>, vector<1x128xf32>
    %8 = vector.shape_cast %7 : vector<1x128xf32> to vector<1x128xf32>
    %9 = vector.broadcast %8 : vector<1x128xf32> to vector<8x128xf32>
    %c0_6 = arith.constant 0 : index
    %c0_7 = arith.constant 0 : index
    %10 = vector.load %arg8[%c0_6, %c0_7] : memref<8x256xf32, #tpu.memory_space<vmem>>, vector<8x256xf32>
    %c0_i32_8 = arith.constant 0 : i32
    %c8_i32 = arith.constant 8 : i32
    %11 = arith.muli %c0_i32_8, %c8_i32 : i32
    %12 = tpu.assume_multiple %11, 8 : i32
    %c7_i32 = arith.constant 7 : i32
    %13 = arith.subi %c7_i32, %c0_i32_8 : i32
    %c8_i32_9 = arith.constant 8 : i32
    %14 = arith.muli %13, %c8_i32_9 : i32
    %15 = tpu.assume_multiple %14, 8 : i32
    %16 = arith.index_cast %12 : i32 to index
    %c0_10 = arith.constant 0 : index
    %17 = vector.load %arg1[%16, %c0_10] : memref<64x384xbf16, #tpu.memory_space<vmem>>, vector<8x384xbf16>
    %18 = arith.extf %17 : vector<8x384xbf16> to vector<8x384xf32>
    %19 = arith.index_cast %15 : i32 to index
    %c0_11 = arith.constant 0 : index
    %20 = vector.load %arg2[%19, %c0_11] : memref<64x384xbf16, #tpu.memory_space<vmem>>, vector<8x384xbf16>
    %21 = arith.extf %20 : vector<8x384xbf16> to vector<8x384xf32>
    %22 = arith.truncf %10 : vector<8x256xf32> to vector<8x256xbf16>
    %cst = arith.constant dense<0.000000e+00> : vector<8x768xf32>
    %23 = tpu.matmul %22, %3, %cst {dimension_numbers = #tpu.dot_dimension_numbers<[1], [0], [0], [1], [0, 0, 1, 1], [], []>} : vector<8x256xbf16>, vector<256x768xbf16>, vector<8x768xf32> -> vector<8x768xf32>
    %24 = vector.extract_strided_slice %23 {offsets = [0, 0], sizes = [8, 384], strides = [1, 1]} : vector<8x768xf32> to vector<8x384xf32>
    %25 = vector.extract_strided_slice %10 {offsets = [0, 0], sizes = [8, 128], strides = [1, 1]} : vector<8x256xf32> to vector<8x128xf32>
    %26 = vector.extract_strided_slice %18 {offsets = [0, 0], sizes = [8, 128], strides = [1, 1]} : vector<8x384xf32> to vector<8x128xf32>
    %27 = vector.extract_strided_slice %24 {offsets = [0, 0], sizes = [8, 128], strides = [1, 1]} : vector<8x384xf32> to vector<8x128xf32>
    %28 = arith.addf %26, %27 : vector<8x128xf32>
    %29 = arith.negf %28 : vector<8x128xf32>
    %30 = math.exp %29 : vector<8x128xf32>
    %cst_12 = arith.constant 1.000000e+00 : f32
    %31 = vector.broadcast %cst_12 : f32 to vector<8x128xf32>
    %32 = arith.addf %31, %30 : vector<8x128xf32>
    %33 = arith.divf %31, %32 : vector<8x128xf32>
    %34 = vector.extract_strided_slice %18 {offsets = [0, 128], sizes = [8, 128], strides = [1, 1]} : vector<8x384xf32> to vector<8x128xf32>
    %35 = vector.extract_strided_slice %24 {offsets = [0, 128], sizes = [8, 128], strides = [1, 1]} : vector<8x384xf32> to vector<8x128xf32>
    %36 = arith.addf %34, %35 : vector<8x128xf32>
    %37 = arith.negf %36 : vector<8x128xf32>
    %38 = math.exp %37 : vector<8x128xf32>
    %cst_13 = arith.constant 1.000000e+00 : f32
    %39 = vector.broadcast %cst_13 : f32 to vector<8x128xf32>
    %40 = arith.addf %39, %38 : vector<8x128xf32>
    %41 = arith.divf %39, %40 : vector<8x128xf32>
    %42 = vector.extract_strided_slice %18 {offsets = [0, 256], sizes = [8, 128], strides = [1, 1]} : vector<8x384xf32> to vector<8x128xf32>
    %43 = vector.extract_strided_slice %24 {offsets = [0, 256], sizes = [8, 128], strides = [1, 1]} : vector<8x384xf32> to vector<8x128xf32>
    %44 = arith.addf %43, %6 : vector<8x128xf32>
    %45 = arith.mulf %33, %44 : vector<8x128xf32>
    %46 = arith.addf %42, %45 : vector<8x128xf32>
    %47 = math.tanh %46 : vector<8x128xf32>
    %48 = arith.subf %25, %47 : vector<8x128xf32>
    %49 = arith.mulf %41, %48 : vector<8x128xf32>
    %50 = arith.addf %47, %49 : vector<8x128xf32>
    %51 = vector.extract_strided_slice %23 {offsets = [0, 384], sizes = [8, 384], strides = [1, 1]} : vector<8x768xf32> to vector<8x384xf32>
    %52 = vector.extract_strided_slice %10 {offsets = [0, 128], sizes = [8, 128], strides = [1, 1]} : vector<8x256xf32> to vector<8x128xf32>
    %53 = vector.extract_strided_slice %21 {offsets = [0, 0], sizes = [8, 128], strides = [1, 1]} : vector<8x384xf32> to vector<8x128xf32>
    %54 = vector.extract_strided_slice %51 {offsets = [0, 0], sizes = [8, 128], strides = [1, 1]} : vector<8x384xf32> to vector<8x128xf32>
    %55 = arith.addf %53, %54 : vector<8x128xf32>
    %56 = arith.negf %55 : vector<8x128xf32>
    %57 = math.exp %56 : vector<8x128xf32>
    %cst_14 = arith.constant 1.000000e+00 : f32
    %58 = vector.broadcast %cst_14 : f32 to vector<8x128xf32>
    %59 = arith.addf %58, %57 : vector<8x128xf32>
    %60 = arith.divf %58, %59 : vector<8x128xf32>
    %61 = vector.extract_strided_slice %21 {offsets = [0, 128], sizes = [8, 128], strides = [1, 1]} : vector<8x384xf32> to vector<8x128xf32>
    %62 = vector.extract_strided_slice %51 {offsets = [0, 128], sizes = [8, 128], strides = [1, 1]} : vector<8x384xf32> to vector<8x128xf32>
    %63 = arith.addf %61, %62 : vector<8x128xf32>
    %64 = arith.negf %63 : vector<8x128xf32>
    %65 = math.exp %64 : vector<8x128xf32>
    %cst_15 = arith.constant 1.000000e+00 : f32
    %66 = vector.broadcast %cst_15 : f32 to vector<8x128xf32>
    %67 = arith.addf %66, %65 : vector<8x128xf32>
    %68 = arith.divf %66, %67 : vector<8x128xf32>
    %69 = vector.extract_strided_slice %21 {offsets = [0, 256], sizes = [8, 128], strides = [1, 1]} : vector<8x384xf32> to vector<8x128xf32>
    %70 = vector.extract_strided_slice %51 {offsets = [0, 256], sizes = [8, 128], strides = [1, 1]} : vector<8x384xf32> to vector<8x128xf32>
    %71 = arith.addf %70, %9 : vector<8x128xf32>
    %72 = arith.mulf %60, %71 : vector<8x128xf32>
    %73 = arith.addf %69, %72 : vector<8x128xf32>
    %74 = math.tanh %73 : vector<8x128xf32>
    %75 = arith.subf %52, %74 : vector<8x128xf32>
    %76 = arith.mulf %68, %75 : vector<8x128xf32>
    %77 = arith.addf %74, %76 : vector<8x128xf32>
    %78 = arith.truncf %50 : vector<8x128xf32> to vector<8x128xbf16>
    %79 = arith.index_cast %12 : i32 to index
    %c0_16 = arith.constant 0 : index
    %80 = vector.load %arg6[%79, %c0_16] : memref<64x128xbf16, #tpu.memory_space<vmem>>, vector<8x128xbf16>
    tpu.vector_store %arg6[%79, %c0_16], %78 {strides = array<i32>} : memref<64x128xbf16, #tpu.memory_space<vmem>>, vector<8x128xbf16>,
    %81 = arith.truncf %77 : vector<8x128xf32> to vector<8x128xbf16>
    %82 = arith.index_cast %15 : i32 to index
    %c0_17 = arith.constant 0 : index
    %83 = vector.load %arg7[%82, %c0_17] : memref<64x128xbf16, #tpu.memory_space<vmem>>, vector<8x128xbf16>
    tpu.vector_store %arg7[%82, %c0_17], %81 {strides = array<i32>} : memref<64x128xbf16, #tpu.memory_space<vmem>>, vector<8x128xbf16>,
    %84 = tpu.concatenate %50, %77 in 1 : vector<8x128xf32>, vector<8x128xf32> -> vector<8x256xf32>
    %c1_i32 = arith.constant 1 : i32
    %c8_i32_18 = arith.constant 8 : i32
    %85 = arith.muli %c1_i32, %c8_i32_18 : i32
    %86 = tpu.assume_multiple %85, 8 : i32
    %c7_i32_19 = arith.constant 7 : i32
    %87 = arith.subi %c7_i32_19, %c1_i32 : i32
    %c8_i32_20 = arith.constant 8 : i32
    %88 = arith.muli %87, %c8_i32_20 : i32
    %89 = tpu.assume_multiple %88, 8 : i32
    %90 = arith.index_cast %86 : i32 to index
    %c0_21 = arith.constant 0 : index
    %91 = vector.load %arg1[%90, %c0_21] : memref<64x384xbf16, #tpu.memory_space<vmem>>, vector<8x384xbf16>
    %92 = arith.extf %91 : vector<8x384xbf16> to vector<8x384xf32>
    %93 = arith.index_cast %89 : i32 to index
    %c0_22 = arith.constant 0 : index
    %94 = vector.load %arg2[%93, %c0_22] : memref<64x384xbf16, #tpu.memory_space<vmem>>, vector<8x384xbf16>
    %95 = arith.extf %94 : vector<8x384xbf16> to vector<8x384xf32>
    %96 = arith.truncf %84 : vector<8x256xf32> to vector<8x256xbf16>
    %cst_23 = arith.constant dense<0.000000e+00> : vector<8x768xf32>
    %97 = tpu.matmul %96, %3, %cst_23 {dimension_numbers = #tpu.dot_dimension_numbers<[1], [0], [0], [1], [0, 0, 1, 1], [], []>} : vector<8x256xbf16>, vector<256x768xbf16>, vector<8x768xf32> -> vector<8x768xf32>
    %98 = vector.extract_strided_slice %97 {offsets = [0, 0], sizes = [8, 384], strides = [1, 1]} : vector<8x768xf32> to vector<8x384xf32>
    %99 = vector.extract_strided_slice %84 {offsets = [0, 0], sizes = [8, 128], strides = [1, 1]} : vector<8x256xf32> to vector<8x128xf32>
    %100 = vector.extract_strided_slice %92 {offsets = [0, 0], sizes = [8, 128], strides = [1, 1]} : vector<8x384xf32> to vector<8x128xf32>
    %101 = vector.extract_strided_slice %98 {offsets = [0, 0], sizes = [8, 128], strides = [1, 1]} : vector<8x384xf32> to vector<8x128xf32>
    %102 = arith.addf %100, %101 : vector<8x128xf32>
    %103 = arith.negf %102 : vector<8x128xf32>
    %104 = math.exp %103 : vector<8x128xf32>
    %cst_24 = arith.constant 1.000000e+00 : f32
    %105 = vector.broadcast %cst_24 : f32 to vector<8x128xf32>
    %106 = arith.addf %105, %104 : vector<8x128xf32>
    %107 = arith.divf %105, %106 : vector<8x128xf32>
    %108 = vector.extract_strided_slice %92 {offsets = [0, 128], sizes = [8, 128], strides = [1, 1]} : vector<8x384xf32> to vector<8x128xf32>
    %109 = vector.extract_strided_slice %98 {offsets = [0, 128], sizes = [8, 128], strides = [1, 1]} : vector<8x384xf32> to vector<8x128xf32>
    %110 = arith.addf %108, %109 : vector<8x128xf32>
    %111 = arith.negf %110 : vector<8x128xf32>
    %112 = math.exp %111 : vector<8x128xf32>
    %cst_25 = arith.constant 1.000000e+00 : f32
    %113 = vector.broadcast %cst_25 : f32 to vector<8x128xf32>
    %114 = arith.addf %113, %112 : vector<8x128xf32>
    %115 = arith.divf %113, %114 : vector<8x128xf32>
    %116 = vector.extract_strided_slice %92 {offsets = [0, 256], sizes = [8, 128], strides = [1, 1]} : vector<8x384xf32> to vector<8x128xf32>
    %117 = vector.extract_strided_slice %98 {offsets = [0, 256], sizes = [8, 128], strides = [1, 1]} : vector<8x384xf32> to vector<8x128xf32>
    %118 = arith.addf %117, %6 : vector<8x128xf32>
    %119 = arith.mulf %107, %118 : vector<8x128xf32>
    %120 = arith.addf %116, %119 : vector<8x128xf32>
    %121 = math.tanh %120 : vector<8x128xf32>
    %122 = arith.subf %99, %121 : vector<8x128xf32>
    %123 = arith.mulf %115, %122 : vector<8x128xf32>
    %124 = arith.addf %121, %123 : vector<8x128xf32>
    %125 = vector.extract_strided_slice %97 {offsets = [0, 384], sizes = [8, 384], strides = [1, 1]} : vector<8x768xf32> to vector<8x384xf32>
    %126 = vector.extract_strided_slice %84 {offsets = [0, 128], sizes = [8, 128], strides = [1, 1]} : vector<8x256xf32> to vector<8x128xf32>
    %127 = vector.extract_strided_slice %95 {offsets = [0, 0], sizes = [8, 128], strides = [1, 1]} : vector<8x384xf32> to vector<8x128xf32>
    %128 = vector.extract_strided_slice %125 {offsets = [0, 0], sizes = [8, 128], strides = [1, 1]} : vector<8x384xf32> to vector<8x128xf32>
    %129 = arith.addf %127, %128 : vector<8x128xf32>
    %130 = arith.negf %129 : vector<8x128xf32>
    %131 = math.exp %130 : vector<8x128xf32>
    %cst_26 = arith.constant 1.000000e+00 : f32
    %132 = vector.broadcast %cst_26 : f32 to vector<8x128xf32>
    %133 = arith.addf %132, %131 : vector<8x128xf32>
    %134 = arith.divf %132, %133 : vector<8x128xf32>
    %135 = vector.extract_strided_slice %95 {offsets = [0, 128], sizes = [8, 128], strides = [1, 1]} : vector<8x384xf32> to vector<8x128xf32>
    %136 = vector.extract_strided_slice %125 {offsets = [0, 128], sizes = [8, 128], strides = [1, 1]} : vector<8x384xf32> to vector<8x128xf32>
    %137 = arith.addf %135, %136 : vector<8x128xf32>
    %138 = arith.negf %137 : vector<8x128xf32>
    %139 = math.exp %138 : vector<8x128xf32>
    %cst_27 = arith.constant 1.000000e+00 : f32
    %140 = vector.broadcast %cst_27 : f32 to vector<8x128xf32>
    %141 = arith.addf %140, %139 : vector<8x128xf32>
    %142 = arith.divf %140, %141 : vector<8x128xf32>
    %143 = vector.extract_strided_slice %95 {offsets = [0, 256], sizes = [8, 128], strides = [1, 1]} : vector<8x384xf32> to vector<8x128xf32>
    %144 = vector.extract_strided_slice %125 {offsets = [0, 256], sizes = [8, 128], strides = [1, 1]} : vector<8x384xf32> to vector<8x128xf32>
    %145 = arith.addf %144, %9 : vector<8x128xf32>
    %146 = arith.mulf %134, %145 : vector<8x128xf32>
    %147 = arith.addf %143, %146 : vector<8x128xf32>
    %148 = math.tanh %147 : vector<8x128xf32>
    %149 = arith.subf %126, %148 : vector<8x128xf32>
    %150 = arith.mulf %142, %149 : vector<8x128xf32>
    %151 = arith.addf %148, %150 : vector<8x128xf32>
    %152 = arith.truncf %124 : vector<8x128xf32> to vector<8x128xbf16>
    %153 = arith.index_cast %86 : i32 to index
    %c0_28 = arith.constant 0 : index
    %154 = vector.load %arg6[%153, %c0_28] : memref<64x128xbf16, #tpu.memory_space<vmem>>, vector<8x128xbf16>
    tpu.vector_store %arg6[%153, %c0_28], %152 {strides = array<i32>} : memref<64x128xbf16, #tpu.memory_space<vmem>>, vector<8x128xbf16>,
    %155 = arith.truncf %151 : vector<8x128xf32> to vector<8x128xbf16>
    %156 = arith.index_cast %89 : i32 to index
    %c0_29 = arith.constant 0 : index
    %157 = vector.load %arg7[%156, %c0_29] : memref<64x128xbf16, #tpu.memory_space<vmem>>, vector<8x128xbf16>
    tpu.vector_store %arg7[%156, %c0_29], %155 {strides = array<i32>} : memref<64x128xbf16, #tpu.memory_space<vmem>>, vector<8x128xbf16>,
    %158 = tpu.concatenate %124, %151 in 1 : vector<8x128xf32>, vector<8x128xf32> -> vector<8x256xf32>
    %c2_i32 = arith.constant 2 : i32
    %c8_i32_30 = arith.constant 8 : i32
    %159 = arith.muli %c2_i32, %c8_i32_30 : i32
    %160 = tpu.assume_multiple %159, 8 : i32
    %c7_i32_31 = arith.constant 7 : i32
    %161 = arith.subi %c7_i32_31, %c2_i32 : i32
    %c8_i32_32 = arith.constant 8 : i32
    %162 = arith.muli %161, %c8_i32_32 : i32
    %163 = tpu.assume_multiple %162, 8 : i32
    %164 = arith.index_cast %160 : i32 to index
    %c0_33 = arith.constant 0 : index
    %165 = vector.load %arg1[%164, %c0_33] : memref<64x384xbf16, #tpu.memory_space<vmem>>, vector<8x384xbf16>
    %166 = arith.extf %165 : vector<8x384xbf16> to vector<8x384xf32>
    %167 = arith.index_cast %163 : i32 to index
    %c0_34 = arith.constant 0 : index
    %168 = vector.load %arg2[%167, %c0_34] : memref<64x384xbf16, #tpu.memory_space<vmem>>, vector<8x384xbf16>
    %169 = arith.extf %168 : vector<8x384xbf16> to vector<8x384xf32>
    %170 = arith.truncf %158 : vector<8x256xf32> to vector<8x256xbf16>
    %cst_35 = arith.constant dense<0.000000e+00> : vector<8x768xf32>
    %171 = tpu.matmul %170, %3, %cst_35 {dimension_numbers = #tpu.dot_dimension_numbers<[1], [0], [0], [1], [0, 0, 1, 1], [], []>} : vector<8x256xbf16>, vector<256x768xbf16>, vector<8x768xf32> -> vector<8x768xf32>
    %172 = vector.extract_strided_slice %171 {offsets = [0, 0], sizes = [8, 384], strides = [1, 1]} : vector<8x768xf32> to vector<8x384xf32>
    %173 = vector.extract_strided_slice %158 {offsets = [0, 0], sizes = [8, 128], strides = [1, 1]} : vector<8x256xf32> to vector<8x128xf32>
    %174 = vector.extract_strided_slice %166 {offsets = [0, 0], sizes = [8, 128], strides = [1, 1]} : vector<8x384xf32> to vector<8x128xf32>
    %175 = vector.extract_strided_slice %172 {offsets = [0, 0], sizes = [8, 128], strides = [1, 1]} : vector<8x384xf32> to vector<8x128xf32>
    %176 = arith.addf %174, %175 : vector<8x128xf32>
    %177 = arith.negf %176 : vector<8x128xf32>
    %178 = math.exp %177 : vector<8x128xf32>
    %cst_36 = arith.constant 1.000000e+00 : f32
    %179 = vector.broadcast %cst_36 : f32 to vector<8x128xf32>
    %180 = arith.addf %179, %178 : vector<8x128xf32>
    %181 = arith.divf %179, %180 : vector<8x128xf32>
    %182 = vector.extract_strided_slice %166 {offsets = [0, 128], sizes = [8, 128], strides = [1, 1]} : vector<8x384xf32> to vector<8x128xf32>
    %183 = vector.extract_strided_slice %172 {offsets = [0, 128], sizes = [8, 128], strides = [1, 1]} : vector<8x384xf32> to vector<8x128xf32>
    %184 = arith.addf %182, %183 : vector<8x128xf32>
    %185 = arith.negf %184 : vector<8x128xf32>
    %186 = math.exp %185 : vector<8x128xf32>
    %cst_37 = arith.constant 1.000000e+00 : f32
    %187 = vector.broadcast %cst_37 : f32 to vector<8x128xf32>
    %188 = arith.addf %187, %186 : vector<8x128xf32>
    %189 = arith.divf %187, %188 : vector<8x128xf32>
    %190 = vector.extract_strided_slice %166 {offsets = [0, 256], sizes = [8, 128], strides = [1, 1]} : vector<8x384xf32> to vector<8x128xf32>
    %191 = vector.extract_strided_slice %172 {offsets = [0, 256], sizes = [8, 128], strides = [1, 1]} : vector<8x384xf32> to vector<8x128xf32>
    %192 = arith.addf %191, %6 : vector<8x128xf32>
    %193 = arith.mulf %181, %192 : vector<8x128xf32>
    %194 = arith.addf %190, %193 : vector<8x128xf32>
    %195 = math.tanh %194 : vector<8x128xf32>
    %196 = arith.subf %173, %195 : vector<8x128xf32>
    %197 = arith.mulf %189, %196 : vector<8x128xf32>
    %198 = arith.addf %195, %197 : vector<8x128xf32>
    %199 = vector.extract_strided_slice %171 {offsets = [0, 384], sizes = [8, 384], strides = [1, 1]} : vector<8x768xf32> to vector<8x384xf32>
    %200 = vector.extract_strided_slice %158 {offsets = [0, 128], sizes = [8, 128], strides = [1, 1]} : vector<8x256xf32> to vector<8x128xf32>
    %201 = vector.extract_strided_slice %169 {offsets = [0, 0], sizes = [8, 128], strides = [1, 1]} : vector<8x384xf32> to vector<8x128xf32>
    %202 = vector.extract_strided_slice %199 {offsets = [0, 0], sizes = [8, 128], strides = [1, 1]} : vector<8x384xf32> to vector<8x128xf32>
    %203 = arith.addf %201, %202 : vector<8x128xf32>
    %204 = arith.negf %203 : vector<8x128xf32>
    %205 = math.exp %204 : vector<8x128xf32>
    %cst_38 = arith.constant 1.000000e+00 : f32
    %206 = vector.broadcast %cst_38 : f32 to vector<8x128xf32>
    %207 = arith.addf %206, %205 : vector<8x128xf32>
    %208 = arith.divf %206, %207 : vector<8x128xf32>
    %209 = vector.extract_strided_slice %169 {offsets = [0, 128], sizes = [8, 128], strides = [1, 1]} : vector<8x384xf32> to vector<8x128xf32>
    %210 = vector.extract_strided_slice %199 {offsets = [0, 128], sizes = [8, 128], strides = [1, 1]} : vector<8x384xf32> to vector<8x128xf32>
    %211 = arith.addf %209, %210 : vector<8x128xf32>
    %212 = arith.negf %211 : vector<8x128xf32>
    %213 = math.exp %212 : vector<8x128xf32>
    %cst_39 = arith.constant 1.000000e+00 : f32
    %214 = vector.broadcast %cst_39 : f32 to vector<8x128xf32>
    %215 = arith.addf %214, %213 : vector<8x128xf32>
    %216 = arith.divf %214, %215 : vector<8x128xf32>
    %217 = vector.extract_strided_slice %169 {offsets = [0, 256], sizes = [8, 128], strides = [1, 1]} : vector<8x384xf32> to vector<8x128xf32>
    %218 = vector.extract_strided_slice %199 {offsets = [0, 256], sizes = [8, 128], strides = [1, 1]} : vector<8x384xf32> to vector<8x128xf32>
    %219 = arith.addf %218, %9 : vector<8x128xf32>
    %220 = arith.mulf %208, %219 : vector<8x128xf32>
    %221 = arith.addf %217, %220 : vector<8x128xf32>
    %222 = math.tanh %221 : vector<8x128xf32>
    %223 = arith.subf %200, %222 : vector<8x128xf32>
    %224 = arith.mulf %216, %223 : vector<8x128xf32>
    %225 = arith.addf %222, %224 : vector<8x128xf32>
    %226 = arith.truncf %198 : vector<8x128xf32> to vector<8x128xbf16>
    %227 = arith.index_cast %160 : i32 to index
    %c0_40 = arith.constant 0 : index
    %228 = vector.load %arg6[%227, %c0_40] : memref<64x128xbf16, #tpu.memory_space<vmem>>, vector<8x128xbf16>
    tpu.vector_store %arg6[%227, %c0_40], %226 {strides = array<i32>} : memref<64x128xbf16, #tpu.memory_space<vmem>>, vector<8x128xbf16>,
    %229 = arith.truncf %225 : vector<8x128xf32> to vector<8x128xbf16>
    %230 = arith.index_cast %163 : i32 to index
    %c0_41 = arith.constant 0 : index
    %231 = vector.load %arg7[%230, %c0_41] : memref<64x128xbf16, #tpu.memory_space<vmem>>, vector<8x128xbf16>
    tpu.vector_store %arg7[%230, %c0_41], %229 {strides = array<i32>} : memref<64x128xbf16, #tpu.memory_space<vmem>>, vector<8x128xbf16>,
    %232 = tpu.concatenate %198, %225 in 1 : vector<8x128xf32>, vector<8x128xf32> -> vector<8x256xf32>
    %c3_i32 = arith.constant 3 : i32
    %c8_i32_42 = arith.constant 8 : i32
    %233 = arith.muli %c3_i32, %c8_i32_42 : i32
    %234 = tpu.assume_multiple %233, 8 : i32
    %c7_i32_43 = arith.constant 7 : i32
    %235 = arith.subi %c7_i32_43, %c3_i32 : i32
    %c8_i32_44 = arith.constant 8 : i32
    %236 = arith.muli %235, %c8_i32_44 : i32
    %237 = tpu.assume_multiple %236, 8 : i32
    %238 = arith.index_cast %234 : i32 to index
    %c0_45 = arith.constant 0 : index
    %239 = vector.load %arg1[%238, %c0_45] : memref<64x384xbf16, #tpu.memory_space<vmem>>, vector<8x384xbf16>
    %240 = arith.extf %239 : vector<8x384xbf16> to vector<8x384xf32>
    %241 = arith.index_cast %237 : i32 to index
    %c0_46 = arith.constant 0 : index
    %242 = vector.load %arg2[%241, %c0_46] : memref<64x384xbf16, #tpu.memory_space<vmem>>, vector<8x384xbf16>
    %243 = arith.extf %242 : vector<8x384xbf16> to vector<8x384xf32>
    %244 = arith.truncf %232 : vector<8x256xf32> to vector<8x256xbf16>
    %cst_47 = arith.constant dense<0.000000e+00> : vector<8x768xf32>
    %245 = tpu.matmul %244, %3, %cst_47 {dimension_numbers = #tpu.dot_dimension_numbers<[1], [0], [0], [1], [0, 0, 1, 1], [], []>} : vector<8x256xbf16>, vector<256x768xbf16>, vector<8x768xf32> -> vector<8x768xf32>
    %246 = vector.extract_strided_slice %245 {offsets = [0, 0], sizes = [8, 384], strides = [1, 1]} : vector<8x768xf32> to vector<8x384xf32>
    %247 = vector.extract_strided_slice %232 {offsets = [0, 0], sizes = [8, 128], strides = [1, 1]} : vector<8x256xf32> to vector<8x128xf32>
    %248 = vector.extract_strided_slice %240 {offsets = [0, 0], sizes = [8, 128], strides = [1, 1]} : vector<8x384xf32> to vector<8x128xf32>
    %249 = vector.extract_strided_slice %246 {offsets = [0, 0], sizes = [8, 128], strides = [1, 1]} : vector<8x384xf32> to vector<8x128xf32>
    %250 = arith.addf %248, %249 : vector<8x128xf32>
    %251 = arith.negf %250 : vector<8x128xf32>
    %252 = math.exp %251 : vector<8x128xf32>
    %cst_48 = arith.constant 1.000000e+00 : f32
    %253 = vector.broadcast %cst_48 : f32 to vector<8x128xf32>
    %254 = arith.addf %253, %252 : vector<8x128xf32>
    %255 = arith.divf %253, %254 : vector<8x128xf32>
    %256 = vector.extract_strided_slice %240 {offsets = [0, 128], sizes = [8, 128], strides = [1, 1]} : vector<8x384xf32> to vector<8x128xf32>
    %257 = vector.extract_strided_slice %246 {offsets = [0, 128], sizes = [8, 128], strides = [1, 1]} : vector<8x384xf32> to vector<8x128xf32>
    %258 = arith.addf %256, %257 : vector<8x128xf32>
    %259 = arith.negf %258 : vector<8x128xf32>
    %260 = math.exp %259 : vector<8x128xf32>
    %cst_49 = arith.constant 1.000000e+00 : f32
    %261 = vector.broadcast %cst_49 : f32 to vector<8x128xf32>
    %262 = arith.addf %261, %260 : vector<8x128xf32>
    %263 = arith.divf %261, %262 : vector<8x128xf32>
    %264 = vector.extract_strided_slice %240 {offsets = [0, 256], sizes = [8, 128], strides = [1, 1]} : vector<8x384xf32> to vector<8x128xf32>
    %265 = vector.extract_strided_slice %246 {offsets = [0, 256], sizes = [8, 128], strides = [1, 1]} : vector<8x384xf32> to vector<8x128xf32>
    %266 = arith.addf %265, %6 : vector<8x128xf32>
    %267 = arith.mulf %255, %266 : vector<8x128xf32>
    %268 = arith.addf %264, %267 : vector<8x128xf32>
    %269 = math.tanh %268 : vector<8x128xf32>
    %270 = arith.subf %247, %269 : vector<8x128xf32>
    %271 = arith.mulf %263, %270 : vector<8x128xf32>
    %272 = arith.addf %269, %271 : vector<8x128xf32>
    %273 = vector.extract_strided_slice %245 {offsets = [0, 384], sizes = [8, 384], strides = [1, 1]} : vector<8x768xf32> to vector<8x384xf32>
    %274 = vector.extract_strided_slice %232 {offsets = [0, 128], sizes = [8, 128], strides = [1, 1]} : vector<8x256xf32> to vector<8x128xf32>
    %275 = vector.extract_strided_slice %243 {offsets = [0, 0], sizes = [8, 128], strides = [1, 1]} : vector<8x384xf32> to vector<8x128xf32>
    %276 = vector.extract_strided_slice %273 {offsets = [0, 0], sizes = [8, 128], strides = [1, 1]} : vector<8x384xf32> to vector<8x128xf32>
    %277 = arith.addf %275, %276 : vector<8x128xf32>
    %278 = arith.negf %277 : vector<8x128xf32>
    %279 = math.exp %278 : vector<8x128xf32>
    %cst_50 = arith.constant 1.000000e+00 : f32
    %280 = vector.broadcast %cst_50 : f32 to vector<8x128xf32>
    %281 = arith.addf %280, %279 : vector<8x128xf32>
    %282 = arith.divf %280, %281 : vector<8x128xf32>
    %283 = vector.extract_strided_slice %243 {offsets = [0, 128], sizes = [8, 128], strides = [1, 1]} : vector<8x384xf32> to vector<8x128xf32>
    %284 = vector.extract_strided_slice %273 {offsets = [0, 128], sizes = [8, 128], strides = [1, 1]} : vector<8x384xf32> to vector<8x128xf32>
    %285 = arith.addf %283, %284 : vector<8x128xf32>
    %286 = arith.negf %285 : vector<8x128xf32>
    %287 = math.exp %286 : vector<8x128xf32>
    %cst_51 = arith.constant 1.000000e+00 : f32
    %288 = vector.broadcast %cst_51 : f32 to vector<8x128xf32>
    %289 = arith.addf %288, %287 : vector<8x128xf32>
    %290 = arith.divf %288, %289 : vector<8x128xf32>
    %291 = vector.extract_strided_slice %243 {offsets = [0, 256], sizes = [8, 128], strides = [1, 1]} : vector<8x384xf32> to vector<8x128xf32>
    %292 = vector.extract_strided_slice %273 {offsets = [0, 256], sizes = [8, 128], strides = [1, 1]} : vector<8x384xf32> to vector<8x128xf32>
    %293 = arith.addf %292, %9 : vector<8x128xf32>
    %294 = arith.mulf %282, %293 : vector<8x128xf32>
    %295 = arith.addf %291, %294 : vector<8x128xf32>
    %296 = math.tanh %295 : vector<8x128xf32>
    %297 = arith.subf %274, %296 : vector<8x128xf32>
    %298 = arith.mulf %290, %297 : vector<8x128xf32>
    %299 = arith.addf %296, %298 : vector<8x128xf32>
    %300 = arith.truncf %272 : vector<8x128xf32> to vector<8x128xbf16>
    %301 = arith.index_cast %234 : i32 to index
    %c0_52 = arith.constant 0 : index
    %302 = vector.load %arg6[%301, %c0_52] : memref<64x128xbf16, #tpu.memory_space<vmem>>, vector<8x128xbf16>
    tpu.vector_store %arg6[%301, %c0_52], %300 {strides = array<i32>} : memref<64x128xbf16, #tpu.memory_space<vmem>>, vector<8x128xbf16>,
    %303 = arith.truncf %299 : vector<8x128xf32> to vector<8x128xbf16>
    %304 = arith.index_cast %237 : i32 to index
    %c0_53 = arith.constant 0 : index
    %305 = vector.load %arg7[%304, %c0_53] : memref<64x128xbf16, #tpu.memory_space<vmem>>, vector<8x128xbf16>
    tpu.vector_store %arg7[%304, %c0_53], %303 {strides = array<i32>} : memref<64x128xbf16, #tpu.memory_space<vmem>>, vector<8x128xbf16>,
    %306 = tpu.concatenate %272, %299 in 1 : vector<8x128xf32>, vector<8x128xf32> -> vector<8x256xf32>
    %c4_i32 = arith.constant 4 : i32
    %c8_i32_54 = arith.constant 8 : i32
    %307 = arith.muli %c4_i32, %c8_i32_54 : i32
    %308 = tpu.assume_multiple %307, 8 : i32
    %c7_i32_55 = arith.constant 7 : i32
    %309 = arith.subi %c7_i32_55, %c4_i32 : i32
    %c8_i32_56 = arith.constant 8 : i32
    %310 = arith.muli %309, %c8_i32_56 : i32
    %311 = tpu.assume_multiple %310, 8 : i32
    %312 = arith.index_cast %308 : i32 to index
    %c0_57 = arith.constant 0 : index
    %313 = vector.load %arg1[%312, %c0_57] : memref<64x384xbf16, #tpu.memory_space<vmem>>, vector<8x384xbf16>
    %314 = arith.extf %313 : vector<8x384xbf16> to vector<8x384xf32>
    %315 = arith.index_cast %311 : i32 to index
    %c0_58 = arith.constant 0 : index
    %316 = vector.load %arg2[%315, %c0_58] : memref<64x384xbf16, #tpu.memory_space<vmem>>, vector<8x384xbf16>
    %317 = arith.extf %316 : vector<8x384xbf16> to vector<8x384xf32>
    %318 = arith.truncf %306 : vector<8x256xf32> to vector<8x256xbf16>
    %cst_59 = arith.constant dense<0.000000e+00> : vector<8x768xf32>
    %319 = tpu.matmul %318, %3, %cst_59 {dimension_numbers = #tpu.dot_dimension_numbers<[1], [0], [0], [1], [0, 0, 1, 1], [], []>} : vector<8x256xbf16>, vector<256x768xbf16>, vector<8x768xf32> -> vector<8x768xf32>
    %320 = vector.extract_strided_slice %319 {offsets = [0, 0], sizes = [8, 384], strides = [1, 1]} : vector<8x768xf32> to vector<8x384xf32>
    %321 = vector.extract_strided_slice %306 {offsets = [0, 0], sizes = [8, 128], strides = [1, 1]} : vector<8x256xf32> to vector<8x128xf32>
    %322 = vector.extract_strided_slice %314 {offsets = [0, 0], sizes = [8, 128], strides = [1, 1]} : vector<8x384xf32> to vector<8x128xf32>
    %323 = vector.extract_strided_slice %320 {offsets = [0, 0], sizes = [8, 128], strides = [1, 1]} : vector<8x384xf32> to vector<8x128xf32>
    %324 = arith.addf %322, %323 : vector<8x128xf32>
    %325 = arith.negf %324 : vector<8x128xf32>
    %326 = math.exp %325 : vector<8x128xf32>
    %cst_60 = arith.constant 1.000000e+00 : f32
    %327 = vector.broadcast %cst_60 : f32 to vector<8x128xf32>
    %328 = arith.addf %327, %326 : vector<8x128xf32>
    %329 = arith.divf %327, %328 : vector<8x128xf32>
    %330 = vector.extract_strided_slice %314 {offsets = [0, 128], sizes = [8, 128], strides = [1, 1]} : vector<8x384xf32> to vector<8x128xf32>
    %331 = vector.extract_strided_slice %320 {offsets = [0, 128], sizes = [8, 128], strides = [1, 1]} : vector<8x384xf32> to vector<8x128xf32>
    %332 = arith.addf %330, %331 : vector<8x128xf32>
    %333 = arith.negf %332 : vector<8x128xf32>
    %334 = math.exp %333 : vector<8x128xf32>
    %cst_61 = arith.constant 1.000000e+00 : f32
    %335 = vector.broadcast %cst_61 : f32 to vector<8x128xf32>
    %336 = arith.addf %335, %334 : vector<8x128xf32>
    %337 = arith.divf %335, %336 : vector<8x128xf32>
    %338 = vector.extract_strided_slice %314 {offsets = [0, 256], sizes = [8, 128], strides = [1, 1]} : vector<8x384xf32> to vector<8x128xf32>
    %339 = vector.extract_strided_slice %320 {offsets = [0, 256], sizes = [8, 128], strides = [1, 1]} : vector<8x384xf32> to vector<8x128xf32>
    %340 = arith.addf %339, %6 : vector<8x128xf32>
    %341 = arith.mulf %329, %340 : vector<8x128xf32>
    %342 = arith.addf %338, %341 : vector<8x128xf32>
    %343 = math.tanh %342 : vector<8x128xf32>
    %344 = arith.subf %321, %343 : vector<8x128xf32>
    %345 = arith.mulf %337, %344 : vector<8x128xf32>
    %346 = arith.addf %343, %345 : vector<8x128xf32>
    %347 = vector.extract_strided_slice %319 {offsets = [0, 384], sizes = [8, 384], strides = [1, 1]} : vector<8x768xf32> to vector<8x384xf32>
    %348 = vector.extract_strided_slice %306 {offsets = [0, 128], sizes = [8, 128], strides = [1, 1]} : vector<8x256xf32> to vector<8x128xf32>
    %349 = vector.extract_strided_slice %317 {offsets = [0, 0], sizes = [8, 128], strides = [1, 1]} : vector<8x384xf32> to vector<8x128xf32>
    %350 = vector.extract_strided_slice %347 {offsets = [0, 0], sizes = [8, 128], strides = [1, 1]} : vector<8x384xf32> to vector<8x128xf32>
    %351 = arith.addf %349, %350 : vector<8x128xf32>
    %352 = arith.negf %351 : vector<8x128xf32>
    %353 = math.exp %352 : vector<8x128xf32>
    %cst_62 = arith.constant 1.000000e+00 : f32
    %354 = vector.broadcast %cst_62 : f32 to vector<8x128xf32>
    %355 = arith.addf %354, %353 : vector<8x128xf32>
    %356 = arith.divf %354, %355 : vector<8x128xf32>
    %357 = vector.extract_strided_slice %317 {offsets = [0, 128], sizes = [8, 128], strides = [1, 1]} : vector<8x384xf32> to vector<8x128xf32>
    %358 = vector.extract_strided_slice %347 {offsets = [0, 128], sizes = [8, 128], strides = [1, 1]} : vector<8x384xf32> to vector<8x128xf32>
    %359 = arith.addf %357, %358 : vector<8x128xf32>
    %360 = arith.negf %359 : vector<8x128xf32>
    %361 = math.exp %360 : vector<8x128xf32>
    %cst_63 = arith.constant 1.000000e+00 : f32
    %362 = vector.broadcast %cst_63 : f32 to vector<8x128xf32>
    %363 = arith.addf %362, %361 : vector<8x128xf32>
    %364 = arith.divf %362, %363 : vector<8x128xf32>
    %365 = vector.extract_strided_slice %317 {offsets = [0, 256], sizes = [8, 128], strides = [1, 1]} : vector<8x384xf32> to vector<8x128xf32>
    %366 = vector.extract_strided_slice %347 {offsets = [0, 256], sizes = [8, 128], strides = [1, 1]} : vector<8x384xf32> to vector<8x128xf32>
    %367 = arith.addf %366, %9 : vector<8x128xf32>
    %368 = arith.mulf %356, %367 : vector<8x128xf32>
    %369 = arith.addf %365, %368 : vector<8x128xf32>
    %370 = math.tanh %369 : vector<8x128xf32>
    %371 = arith.subf %348, %370 : vector<8x128xf32>
    %372 = arith.mulf %364, %371 : vector<8x128xf32>
    %373 = arith.addf %370, %372 : vector<8x128xf32>
    %374 = arith.truncf %346 : vector<8x128xf32> to vector<8x128xbf16>
    %375 = arith.index_cast %308 : i32 to index
    %c0_64 = arith.constant 0 : index
    %376 = vector.load %arg6[%375, %c0_64] : memref<64x128xbf16, #tpu.memory_space<vmem>>, vector<8x128xbf16>
    tpu.vector_store %arg6[%375, %c0_64], %374 {strides = array<i32>} : memref<64x128xbf16, #tpu.memory_space<vmem>>, vector<8x128xbf16>,
    %377 = arith.truncf %373 : vector<8x128xf32> to vector<8x128xbf16>
    %378 = arith.index_cast %311 : i32 to index
    %c0_65 = arith.constant 0 : index
    %379 = vector.load %arg7[%378, %c0_65] : memref<64x128xbf16, #tpu.memory_space<vmem>>, vector<8x128xbf16>
    tpu.vector_store %arg7[%378, %c0_65], %377 {strides = array<i32>} : memref<64x128xbf16, #tpu.memory_space<vmem>>, vector<8x128xbf16>,
    %380 = tpu.concatenate %346, %373 in 1 : vector<8x128xf32>, vector<8x128xf32> -> vector<8x256xf32>
    %c5_i32 = arith.constant 5 : i32
    %c8_i32_66 = arith.constant 8 : i32
    %381 = arith.muli %c5_i32, %c8_i32_66 : i32
    %382 = tpu.assume_multiple %381, 8 : i32
    %c7_i32_67 = arith.constant 7 : i32
    %383 = arith.subi %c7_i32_67, %c5_i32 : i32
    %c8_i32_68 = arith.constant 8 : i32
    %384 = arith.muli %383, %c8_i32_68 : i32
    %385 = tpu.assume_multiple %384, 8 : i32
    %386 = arith.index_cast %382 : i32 to index
    %c0_69 = arith.constant 0 : index
    %387 = vector.load %arg1[%386, %c0_69] : memref<64x384xbf16, #tpu.memory_space<vmem>>, vector<8x384xbf16>
    %388 = arith.extf %387 : vector<8x384xbf16> to vector<8x384xf32>
    %389 = arith.index_cast %385 : i32 to index
    %c0_70 = arith.constant 0 : index
    %390 = vector.load %arg2[%389, %c0_70] : memref<64x384xbf16, #tpu.memory_space<vmem>>, vector<8x384xbf16>
    %391 = arith.extf %390 : vector<8x384xbf16> to vector<8x384xf32>
    %392 = arith.truncf %380 : vector<8x256xf32> to vector<8x256xbf16>
    %cst_71 = arith.constant dense<0.000000e+00> : vector<8x768xf32>
    %393 = tpu.matmul %392, %3, %cst_71 {dimension_numbers = #tpu.dot_dimension_numbers<[1], [0], [0], [1], [0, 0, 1, 1], [], []>} : vector<8x256xbf16>, vector<256x768xbf16>, vector<8x768xf32> -> vector<8x768xf32>
    %394 = vector.extract_strided_slice %393 {offsets = [0, 0], sizes = [8, 384], strides = [1, 1]} : vector<8x768xf32> to vector<8x384xf32>
    %395 = vector.extract_strided_slice %380 {offsets = [0, 0], sizes = [8, 128], strides = [1, 1]} : vector<8x256xf32> to vector<8x128xf32>
    %396 = vector.extract_strided_slice %388 {offsets = [0, 0], sizes = [8, 128], strides = [1, 1]} : vector<8x384xf32> to vector<8x128xf32>
    %397 = vector.extract_strided_slice %394 {offsets = [0, 0], sizes = [8, 128], strides = [1, 1]} : vector<8x384xf32> to vector<8x128xf32>
    %398 = arith.addf %396, %397 : vector<8x128xf32>
    %399 = arith.negf %398 : vector<8x128xf32>
    %400 = math.exp %399 : vector<8x128xf32>
    %cst_72 = arith.constant 1.000000e+00 : f32
    %401 = vector.broadcast %cst_72 : f32 to vector<8x128xf32>
    %402 = arith.addf %401, %400 : vector<8x128xf32>
    %403 = arith.divf %401, %402 : vector<8x128xf32>
    %404 = vector.extract_strided_slice %388 {offsets = [0, 128], sizes = [8, 128], strides = [1, 1]} : vector<8x384xf32> to vector<8x128xf32>
    %405 = vector.extract_strided_slice %394 {offsets = [0, 128], sizes = [8, 128], strides = [1, 1]} : vector<8x384xf32> to vector<8x128xf32>
    %406 = arith.addf %404, %405 : vector<8x128xf32>
    %407 = arith.negf %406 : vector<8x128xf32>
    %408 = math.exp %407 : vector<8x128xf32>
    %cst_73 = arith.constant 1.000000e+00 : f32
    %409 = vector.broadcast %cst_73 : f32 to vector<8x128xf32>
    %410 = arith.addf %409, %408 : vector<8x128xf32>
    %411 = arith.divf %409, %410 : vector<8x128xf32>
    %412 = vector.extract_strided_slice %388 {offsets = [0, 256], sizes = [8, 128], strides = [1, 1]} : vector<8x384xf32> to vector<8x128xf32>
    %413 = vector.extract_strided_slice %394 {offsets = [0, 256], sizes = [8, 128], strides = [1, 1]} : vector<8x384xf32> to vector<8x128xf32>
    %414 = arith.addf %413, %6 : vector<8x128xf32>
    %415 = arith.mulf %403, %414 : vector<8x128xf32>
    %416 = arith.addf %412, %415 : vector<8x128xf32>
    %417 = math.tanh %416 : vector<8x128xf32>
    %418 = arith.subf %395, %417 : vector<8x128xf32>
    %419 = arith.mulf %411, %418 : vector<8x128xf32>
    %420 = arith.addf %417, %419 : vector<8x128xf32>
    %421 = vector.extract_strided_slice %393 {offsets = [0, 384], sizes = [8, 384], strides = [1, 1]} : vector<8x768xf32> to vector<8x384xf32>
    %422 = vector.extract_strided_slice %380 {offsets = [0, 128], sizes = [8, 128], strides = [1, 1]} : vector<8x256xf32> to vector<8x128xf32>
    %423 = vector.extract_strided_slice %391 {offsets = [0, 0], sizes = [8, 128], strides = [1, 1]} : vector<8x384xf32> to vector<8x128xf32>
    %424 = vector.extract_strided_slice %421 {offsets = [0, 0], sizes = [8, 128], strides = [1, 1]} : vector<8x384xf32> to vector<8x128xf32>
    %425 = arith.addf %423, %424 : vector<8x128xf32>
    %426 = arith.negf %425 : vector<8x128xf32>
    %427 = math.exp %426 : vector<8x128xf32>
    %cst_74 = arith.constant 1.000000e+00 : f32
    %428 = vector.broadcast %cst_74 : f32 to vector<8x128xf32>
    %429 = arith.addf %428, %427 : vector<8x128xf32>
    %430 = arith.divf %428, %429 : vector<8x128xf32>
    %431 = vector.extract_strided_slice %391 {offsets = [0, 128], sizes = [8, 128], strides = [1, 1]} : vector<8x384xf32> to vector<8x128xf32>
    %432 = vector.extract_strided_slice %421 {offsets = [0, 128], sizes = [8, 128], strides = [1, 1]} : vector<8x384xf32> to vector<8x128xf32>
    %433 = arith.addf %431, %432 : vector<8x128xf32>
    %434 = arith.negf %433 : vector<8x128xf32>
    %435 = math.exp %434 : vector<8x128xf32>
    %cst_75 = arith.constant 1.000000e+00 : f32
    %436 = vector.broadcast %cst_75 : f32 to vector<8x128xf32>
    %437 = arith.addf %436, %435 : vector<8x128xf32>
    %438 = arith.divf %436, %437 : vector<8x128xf32>
    %439 = vector.extract_strided_slice %391 {offsets = [0, 256], sizes = [8, 128], strides = [1, 1]} : vector<8x384xf32> to vector<8x128xf32>
    %440 = vector.extract_strided_slice %421 {offsets = [0, 256], sizes = [8, 128], strides = [1, 1]} : vector<8x384xf32> to vector<8x128xf32>
    %441 = arith.addf %440, %9 : vector<8x128xf32>
    %442 = arith.mulf %430, %441 : vector<8x128xf32>
    %443 = arith.addf %439, %442 : vector<8x128xf32>
    %444 = math.tanh %443 : vector<8x128xf32>
    %445 = arith.subf %422, %444 : vector<8x128xf32>
    %446 = arith.mulf %438, %445 : vector<8x128xf32>
    %447 = arith.addf %444, %446 : vector<8x128xf32>
    %448 = arith.truncf %420 : vector<8x128xf32> to vector<8x128xbf16>
    %449 = arith.index_cast %382 : i32 to index
    %c0_76 = arith.constant 0 : index
    %450 = vector.load %arg6[%449, %c0_76] : memref<64x128xbf16, #tpu.memory_space<vmem>>, vector<8x128xbf16>
    tpu.vector_store %arg6[%449, %c0_76], %448 {strides = array<i32>} : memref<64x128xbf16, #tpu.memory_space<vmem>>, vector<8x128xbf16>,
    %451 = arith.truncf %447 : vector<8x128xf32> to vector<8x128xbf16>
    %452 = arith.index_cast %385 : i32 to index
    %c0_77 = arith.constant 0 : index
    %453 = vector.load %arg7[%452, %c0_77] : memref<64x128xbf16, #tpu.memory_space<vmem>>, vector<8x128xbf16>
    tpu.vector_store %arg7[%452, %c0_77], %451 {strides = array<i32>} : memref<64x128xbf16, #tpu.memory_space<vmem>>, vector<8x128xbf16>,
    %454 = tpu.concatenate %420, %447 in 1 : vector<8x128xf32>, vector<8x128xf32> -> vector<8x256xf32>
    %c6_i32 = arith.constant 6 : i32
    %c8_i32_78 = arith.constant 8 : i32
    %455 = arith.muli %c6_i32, %c8_i32_78 : i32
    %456 = tpu.assume_multiple %455, 8 : i32
    %c7_i32_79 = arith.constant 7 : i32
    %457 = arith.subi %c7_i32_79, %c6_i32 : i32
    %c8_i32_80 = arith.constant 8 : i32
    %458 = arith.muli %457, %c8_i32_80 : i32
    %459 = tpu.assume_multiple %458, 8 : i32
    %460 = arith.index_cast %456 : i32 to index
    %c0_81 = arith.constant 0 : index
    %461 = vector.load %arg1[%460, %c0_81] : memref<64x384xbf16, #tpu.memory_space<vmem>>, vector<8x384xbf16>
    %462 = arith.extf %461 : vector<8x384xbf16> to vector<8x384xf32>
    %463 = arith.index_cast %459 : i32 to index
    %c0_82 = arith.constant 0 : index
    %464 = vector.load %arg2[%463, %c0_82] : memref<64x384xbf16, #tpu.memory_space<vmem>>, vector<8x384xbf16>
    %465 = arith.extf %464 : vector<8x384xbf16> to vector<8x384xf32>
    %466 = arith.truncf %454 : vector<8x256xf32> to vector<8x256xbf16>
    %cst_83 = arith.constant dense<0.000000e+00> : vector<8x768xf32>
    %467 = tpu.matmul %466, %3, %cst_83 {dimension_numbers = #tpu.dot_dimension_numbers<[1], [0], [0], [1], [0, 0, 1, 1], [], []>} : vector<8x256xbf16>, vector<256x768xbf16>, vector<8x768xf32> -> vector<8x768xf32>
    %468 = vector.extract_strided_slice %467 {offsets = [0, 0], sizes = [8, 384], strides = [1, 1]} : vector<8x768xf32> to vector<8x384xf32>
    %469 = vector.extract_strided_slice %454 {offsets = [0, 0], sizes = [8, 128], strides = [1, 1]} : vector<8x256xf32> to vector<8x128xf32>
    %470 = vector.extract_strided_slice %462 {offsets = [0, 0], sizes = [8, 128], strides = [1, 1]} : vector<8x384xf32> to vector<8x128xf32>
    %471 = vector.extract_strided_slice %468 {offsets = [0, 0], sizes = [8, 128], strides = [1, 1]} : vector<8x384xf32> to vector<8x128xf32>
    %472 = arith.addf %470, %471 : vector<8x128xf32>
    %473 = arith.negf %472 : vector<8x128xf32>
    %474 = math.exp %473 : vector<8x128xf32>
    %cst_84 = arith.constant 1.000000e+00 : f32
    %475 = vector.broadcast %cst_84 : f32 to vector<8x128xf32>
    %476 = arith.addf %475, %474 : vector<8x128xf32>
    %477 = arith.divf %475, %476 : vector<8x128xf32>
    %478 = vector.extract_strided_slice %462 {offsets = [0, 128], sizes = [8, 128], strides = [1, 1]} : vector<8x384xf32> to vector<8x128xf32>
    %479 = vector.extract_strided_slice %468 {offsets = [0, 128], sizes = [8, 128], strides = [1, 1]} : vector<8x384xf32> to vector<8x128xf32>
    %480 = arith.addf %478, %479 : vector<8x128xf32>
    %481 = arith.negf %480 : vector<8x128xf32>
    %482 = math.exp %481 : vector<8x128xf32>
    %cst_85 = arith.constant 1.000000e+00 : f32
    %483 = vector.broadcast %cst_85 : f32 to vector<8x128xf32>
    %484 = arith.addf %483, %482 : vector<8x128xf32>
    %485 = arith.divf %483, %484 : vector<8x128xf32>
    %486 = vector.extract_strided_slice %462 {offsets = [0, 256], sizes = [8, 128], strides = [1, 1]} : vector<8x384xf32> to vector<8x128xf32>
    %487 = vector.extract_strided_slice %468 {offsets = [0, 256], sizes = [8, 128], strides = [1, 1]} : vector<8x384xf32> to vector<8x128xf32>
    %488 = arith.addf %487, %6 : vector<8x128xf32>
    %489 = arith.mulf %477, %488 : vector<8x128xf32>
    %490 = arith.addf %486, %489 : vector<8x128xf32>
    %491 = math.tanh %490 : vector<8x128xf32>
    %492 = arith.subf %469, %491 : vector<8x128xf32>
    %493 = arith.mulf %485, %492 : vector<8x128xf32>
    %494 = arith.addf %491, %493 : vector<8x128xf32>
    %495 = vector.extract_strided_slice %467 {offsets = [0, 384], sizes = [8, 384], strides = [1, 1]} : vector<8x768xf32> to vector<8x384xf32>
    %496 = vector.extract_strided_slice %454 {offsets = [0, 128], sizes = [8, 128], strides = [1, 1]} : vector<8x256xf32> to vector<8x128xf32>
    %497 = vector.extract_strided_slice %465 {offsets = [0, 0], sizes = [8, 128], strides = [1, 1]} : vector<8x384xf32> to vector<8x128xf32>
    %498 = vector.extract_strided_slice %495 {offsets = [0, 0], sizes = [8, 128], strides = [1, 1]} : vector<8x384xf32> to vector<8x128xf32>
    %499 = arith.addf %497, %498 : vector<8x128xf32>
    %500 = arith.negf %499 : vector<8x128xf32>
    %501 = math.exp %500 : vector<8x128xf32>
    %cst_86 = arith.constant 1.000000e+00 : f32
    %502 = vector.broadcast %cst_86 : f32 to vector<8x128xf32>
    %503 = arith.addf %502, %501 : vector<8x128xf32>
    %504 = arith.divf %502, %503 : vector<8x128xf32>
    %505 = vector.extract_strided_slice %465 {offsets = [0, 128], sizes = [8, 128], strides = [1, 1]} : vector<8x384xf32> to vector<8x128xf32>
    %506 = vector.extract_strided_slice %495 {offsets = [0, 128], sizes = [8, 128], strides = [1, 1]} : vector<8x384xf32> to vector<8x128xf32>
    %507 = arith.addf %505, %506 : vector<8x128xf32>
    %508 = arith.negf %507 : vector<8x128xf32>
    %509 = math.exp %508 : vector<8x128xf32>
    %cst_87 = arith.constant 1.000000e+00 : f32
    %510 = vector.broadcast %cst_87 : f32 to vector<8x128xf32>
    %511 = arith.addf %510, %509 : vector<8x128xf32>
    %512 = arith.divf %510, %511 : vector<8x128xf32>
    %513 = vector.extract_strided_slice %465 {offsets = [0, 256], sizes = [8, 128], strides = [1, 1]} : vector<8x384xf32> to vector<8x128xf32>
    %514 = vector.extract_strided_slice %495 {offsets = [0, 256], sizes = [8, 128], strides = [1, 1]} : vector<8x384xf32> to vector<8x128xf32>
    %515 = arith.addf %514, %9 : vector<8x128xf32>
    %516 = arith.mulf %504, %515 : vector<8x128xf32>
    %517 = arith.addf %513, %516 : vector<8x128xf32>
    %518 = math.tanh %517 : vector<8x128xf32>
    %519 = arith.subf %496, %518 : vector<8x128xf32>
    %520 = arith.mulf %512, %519 : vector<8x128xf32>
    %521 = arith.addf %518, %520 : vector<8x128xf32>
    %522 = arith.truncf %494 : vector<8x128xf32> to vector<8x128xbf16>
    %523 = arith.index_cast %456 : i32 to index
    %c0_88 = arith.constant 0 : index
    %524 = vector.load %arg6[%523, %c0_88] : memref<64x128xbf16, #tpu.memory_space<vmem>>, vector<8x128xbf16>
    tpu.vector_store %arg6[%523, %c0_88], %522 {strides = array<i32>} : memref<64x128xbf16, #tpu.memory_space<vmem>>, vector<8x128xbf16>,
    %525 = arith.truncf %521 : vector<8x128xf32> to vector<8x128xbf16>
    %526 = arith.index_cast %459 : i32 to index
    %c0_89 = arith.constant 0 : index
    %527 = vector.load %arg7[%526, %c0_89] : memref<64x128xbf16, #tpu.memory_space<vmem>>, vector<8x128xbf16>
    tpu.vector_store %arg7[%526, %c0_89], %525 {strides = array<i32>} : memref<64x128xbf16, #tpu.memory_space<vmem>>, vector<8x128xbf16>,
    %528 = tpu.concatenate %494, %521 in 1 : vector<8x128xf32>, vector<8x128xf32> -> vector<8x256xf32>
    %c7_i32_90 = arith.constant 7 : i32
    %c8_i32_91 = arith.constant 8 : i32
    %529 = arith.muli %c7_i32_90, %c8_i32_91 : i32
    %530 = tpu.assume_multiple %529, 8 : i32
    %c7_i32_92 = arith.constant 7 : i32
    %531 = arith.subi %c7_i32_92, %c7_i32_90 : i32
    %c8_i32_93 = arith.constant 8 : i32
    %532 = arith.muli %531, %c8_i32_93 : i32
    %533 = tpu.assume_multiple %532, 8 : i32
    %534 = arith.index_cast %530 : i32 to index
    %c0_94 = arith.constant 0 : index
    %535 = vector.load %arg1[%534, %c0_94] : memref<64x384xbf16, #tpu.memory_space<vmem>>, vector<8x384xbf16>
    %536 = arith.extf %535 : vector<8x384xbf16> to vector<8x384xf32>
    %537 = arith.index_cast %533 : i32 to index
    %c0_95 = arith.constant 0 : index
    %538 = vector.load %arg2[%537, %c0_95] : memref<64x384xbf16, #tpu.memory_space<vmem>>, vector<8x384xbf16>
    %539 = arith.extf %538 : vector<8x384xbf16> to vector<8x384xf32>
    %540 = arith.truncf %528 : vector<8x256xf32> to vector<8x256xbf16>
    %cst_96 = arith.constant dense<0.000000e+00> : vector<8x768xf32>
    %541 = tpu.matmul %540, %3, %cst_96 {dimension_numbers = #tpu.dot_dimension_numbers<[1], [0], [0], [1], [0, 0, 1, 1], [], []>} : vector<8x256xbf16>, vector<256x768xbf16>, vector<8x768xf32> -> vector<8x768xf32>
    %542 = vector.extract_strided_slice %541 {offsets = [0, 0], sizes = [8, 384], strides = [1, 1]} : vector<8x768xf32> to vector<8x384xf32>
    %543 = vector.extract_strided_slice %528 {offsets = [0, 0], sizes = [8, 128], strides = [1, 1]} : vector<8x256xf32> to vector<8x128xf32>
    %544 = vector.extract_strided_slice %536 {offsets = [0, 0], sizes = [8, 128], strides = [1, 1]} : vector<8x384xf32> to vector<8x128xf32>
    %545 = vector.extract_strided_slice %542 {offsets = [0, 0], sizes = [8, 128], strides = [1, 1]} : vector<8x384xf32> to vector<8x128xf32>
    %546 = arith.addf %544, %545 : vector<8x128xf32>
    %547 = arith.negf %546 : vector<8x128xf32>
    %548 = math.exp %547 : vector<8x128xf32>
    %cst_97 = arith.constant 1.000000e+00 : f32
    %549 = vector.broadcast %cst_97 : f32 to vector<8x128xf32>
    %550 = arith.addf %549, %548 : vector<8x128xf32>
    %551 = arith.divf %549, %550 : vector<8x128xf32>
    %552 = vector.extract_strided_slice %536 {offsets = [0, 128], sizes = [8, 128], strides = [1, 1]} : vector<8x384xf32> to vector<8x128xf32>
    %553 = vector.extract_strided_slice %542 {offsets = [0, 128], sizes = [8, 128], strides = [1, 1]} : vector<8x384xf32> to vector<8x128xf32>
    %554 = arith.addf %552, %553 : vector<8x128xf32>
    %555 = arith.negf %554 : vector<8x128xf32>
    %556 = math.exp %555 : vector<8x128xf32>
    %cst_98 = arith.constant 1.000000e+00 : f32
    %557 = vector.broadcast %cst_98 : f32 to vector<8x128xf32>
    %558 = arith.addf %557, %556 : vector<8x128xf32>
    %559 = arith.divf %557, %558 : vector<8x128xf32>
    %560 = vector.extract_strided_slice %536 {offsets = [0, 256], sizes = [8, 128], strides = [1, 1]} : vector<8x384xf32> to vector<8x128xf32>
    %561 = vector.extract_strided_slice %542 {offsets = [0, 256], sizes = [8, 128], strides = [1, 1]} : vector<8x384xf32> to vector<8x128xf32>
    %562 = arith.addf %561, %6 : vector<8x128xf32>
    %563 = arith.mulf %551, %562 : vector<8x128xf32>
    %564 = arith.addf %560, %563 : vector<8x128xf32>
    %565 = math.tanh %564 : vector<8x128xf32>
    %566 = arith.subf %543, %565 : vector<8x128xf32>
    %567 = arith.mulf %559, %566 : vector<8x128xf32>
    %568 = arith.addf %565, %567 : vector<8x128xf32>
    %569 = vector.extract_strided_slice %541 {offsets = [0, 384], sizes = [8, 384], strides = [1, 1]} : vector<8x768xf32> to vector<8x384xf32>
    %570 = vector.extract_strided_slice %528 {offsets = [0, 128], sizes = [8, 128], strides = [1, 1]} : vector<8x256xf32> to vector<8x128xf32>
    %571 = vector.extract_strided_slice %539 {offsets = [0, 0], sizes = [8, 128], strides = [1, 1]} : vector<8x384xf32> to vector<8x128xf32>
    %572 = vector.extract_strided_slice %569 {offsets = [0, 0], sizes = [8, 128], strides = [1, 1]} : vector<8x384xf32> to vector<8x128xf32>
    %573 = arith.addf %571, %572 : vector<8x128xf32>
    %574 = arith.negf %573 : vector<8x128xf32>
    %575 = math.exp %574 : vector<8x128xf32>
    %cst_99 = arith.constant 1.000000e+00 : f32
    %576 = vector.broadcast %cst_99 : f32 to vector<8x128xf32>
    %577 = arith.addf %576, %575 : vector<8x128xf32>
    %578 = arith.divf %576, %577 : vector<8x128xf32>
    %579 = vector.extract_strided_slice %539 {offsets = [0, 128], sizes = [8, 128], strides = [1, 1]} : vector<8x384xf32> to vector<8x128xf32>
    %580 = vector.extract_strided_slice %569 {offsets = [0, 128], sizes = [8, 128], strides = [1, 1]} : vector<8x384xf32> to vector<8x128xf32>
    %581 = arith.addf %579, %580 : vector<8x128xf32>
    %582 = arith.negf %581 : vector<8x128xf32>
    %583 = math.exp %582 : vector<8x128xf32>
    %cst_100 = arith.constant 1.000000e+00 : f32
    %584 = vector.broadcast %cst_100 : f32 to vector<8x128xf32>
    %585 = arith.addf %584, %583 : vector<8x128xf32>
    %586 = arith.divf %584, %585 : vector<8x128xf32>
    %587 = vector.extract_strided_slice %539 {offsets = [0, 256], sizes = [8, 128], strides = [1, 1]} : vector<8x384xf32> to vector<8x128xf32>
    %588 = vector.extract_strided_slice %569 {offsets = [0, 256], sizes = [8, 128], strides = [1, 1]} : vector<8x384xf32> to vector<8x128xf32>
    %589 = arith.addf %588, %9 : vector<8x128xf32>
    %590 = arith.mulf %578, %589 : vector<8x128xf32>
    %591 = arith.addf %587, %590 : vector<8x128xf32>
    %592 = math.tanh %591 : vector<8x128xf32>
    %593 = arith.subf %570, %592 : vector<8x128xf32>
    %594 = arith.mulf %586, %593 : vector<8x128xf32>
    %595 = arith.addf %592, %594 : vector<8x128xf32>
    %596 = arith.truncf %568 : vector<8x128xf32> to vector<8x128xbf16>
    %597 = arith.index_cast %530 : i32 to index
    %c0_101 = arith.constant 0 : index
    %598 = vector.load %arg6[%597, %c0_101] : memref<64x128xbf16, #tpu.memory_space<vmem>>, vector<8x128xbf16>
    tpu.vector_store %arg6[%597, %c0_101], %596 {strides = array<i32>} : memref<64x128xbf16, #tpu.memory_space<vmem>>, vector<8x128xbf16>,
    %599 = arith.truncf %595 : vector<8x128xf32> to vector<8x128xbf16>
    %600 = arith.index_cast %533 : i32 to index
    %c0_102 = arith.constant 0 : index
    %601 = vector.load %arg7[%600, %c0_102] : memref<64x128xbf16, #tpu.memory_space<vmem>>, vector<8x128xbf16>
    tpu.vector_store %arg7[%600, %c0_102], %599 {strides = array<i32>} : memref<64x128xbf16, #tpu.memory_space<vmem>>, vector<8x128xbf16>,
    %602 = tpu.concatenate %568, %595 in 1 : vector<8x128xf32>, vector<8x128xf32> -> vector<8x256xf32>
    %c8_i32_103 = arith.constant 8 : i32
    %c0_104 = arith.constant 0 : index
    %c0_105 = arith.constant 0 : index
    %603 = vector.load %arg8[%c0_104, %c0_105] : memref<8x256xf32, #tpu.memory_space<vmem>>, vector<8x256xf32>
    tpu.vector_store %arg8[%c0_104, %c0_105], %602 {strides = array<i32>} : memref<8x256xf32, #tpu.memory_space<vmem>>, vector<8x256xf32>,
    return
  }
  func.func @transform_0(%arg0: i32) -> (i32, i32) {
    %c0_i32 = arith.constant 0 : i32
    %c0_i32_0 = arith.constant 0 : i32
    return %arg0, %c0_i32 : i32, i32
  }
  func.func @transform_1(%arg0: i32) -> (i32, i32) {
    %c0_i32 = arith.constant 0 : i32
    %0 = arith.subi %c0_i32, %arg0 : i32
    %c0_i32_0 = arith.constant 0 : i32
    %c0_i32_1 = arith.constant 0 : i32
    return %0, %c0_i32_0 : i32, i32
  }
  func.func @transform_2(%arg0: i32) -> (i32, i32) {
    %c0_i32 = arith.constant 0 : i32
    %c0_i32_0 = arith.constant 0 : i32
    %c0_i32_1 = arith.constant 0 : i32
    return %c0_i32, %c0_i32_0 : i32, i32
  }
  func.func @transform_3(%arg0: i32) -> (i32, i32) {
    %c0_i32 = arith.constant 0 : i32
    %c0_i32_0 = arith.constant 0 : i32
    %c0_i32_1 = arith.constant 0 : i32
    return %c0_i32, %c0_i32_0 : i32, i32
  }
  func.func @transform_4(%arg0: i32) -> (i32, i32) {
    %c0_i32 = arith.constant 0 : i32
    %c0_i32_0 = arith.constant 0 : i32
    %c0_i32_1 = arith.constant 0 : i32
    return %c0_i32, %c0_i32_0 : i32, i32
  }
  func.func @transform_5(%arg0: i32) -> (i32, i32) {
    %c0_i32 = arith.constant 0 : i32
    %c0_i32_0 = arith.constant 0 : i32
    return %arg0, %c0_i32 : i32, i32
  }
  func.func @transform_6(%arg0: i32) -> (i32, i32) {
    %c0_i32 = arith.constant 0 : i32
    %0 = arith.subi %c0_i32, %arg0 : i32
    %c0_i32_0 = arith.constant 0 : i32
    %c0_i32_1 = arith.constant 0 : i32
    return %0, %c0_i32_0 : i32, i32
  }
}

module attributes {stable_mosaic.version = 11 : i64} {
  func.func @_proj2_kernel(%arg0: i32, %arg1: memref<64x128xbf16, #tpu.memory_space<vmem>>, %arg2: memref<64x128xbf16, #tpu.memory_space<vmem>>, %arg3: memref<128x384xbf16, #tpu.memory_space<vmem>>, %arg4: memref<128x384xbf16, #tpu.memory_space<vmem>>, %arg5: memref<128x384xbf16, #tpu.memory_space<vmem>>, %arg6: memref<128x384xbf16, #tpu.memory_space<vmem>>, %arg7: memref<1x384xf32, #tpu.memory_space<vmem>>, %arg8: memref<1x384xf32, #tpu.memory_space<vmem>>, %arg9: memref<64x384xbf16, #tpu.memory_space<vmem>>, %arg10: memref<64x384xbf16, #tpu.memory_space<vmem>>) attributes {dimension_semantics = [#tpu.dimension_semantics<parallel>], iteration_bounds = array<i64: 1>, scalar_prefetch = 0 : i64, scratch_operands = 0 : i64, tpu.core_type = #tpu.core_type<tc>, window_params = [{transform_indices = @transform_0, window_bounds = array<i64: 64, 128>}, {transform_indices = @transform_1, window_bounds = array<i64: 64, 128>}, {pipeline_mode = #tpu.pipeline_mode<synchronous>, transform_indices = @transform_2, window_bounds = array<i64: 128, 384>}, {pipeline_mode = #tpu.pipeline_mode<synchronous>, transform_indices = @transform_3, window_bounds = array<i64: 128, 384>}, {pipeline_mode = #tpu.pipeline_mode<synchronous>, transform_indices = @transform_4, window_bounds = array<i64: 128, 384>}, {pipeline_mode = #tpu.pipeline_mode<synchronous>, transform_indices = @transform_5, window_bounds = array<i64: 128, 384>}, {pipeline_mode = #tpu.pipeline_mode<synchronous>, transform_indices = @transform_6, window_bounds = array<i64: 1, 384>}, {pipeline_mode = #tpu.pipeline_mode<synchronous>, transform_indices = @transform_7, window_bounds = array<i64: 1, 384>}, {transform_indices = @transform_8, window_bounds = array<i64: 64, 384>}, {transform_indices = @transform_9, window_bounds = array<i64: 64, 384>}]} {
    %c0 = arith.constant 0 : index
    %c0_0 = arith.constant 0 : index
    %0 = vector.load %arg1[%c0, %c0_0] : memref<64x128xbf16, #tpu.memory_space<vmem>>, vector<64x128xbf16>
    %c0_1 = arith.constant 0 : index
    %c0_2 = arith.constant 0 : index
    %1 = vector.load %arg2[%c0_1, %c0_2] : memref<64x128xbf16, #tpu.memory_space<vmem>>, vector<64x128xbf16>
    %c0_3 = arith.constant 0 : index
    %c0_4 = arith.constant 0 : index
    %2 = vector.load %arg3[%c0_3, %c0_4] : memref<128x384xbf16, #tpu.memory_space<vmem>>, vector<128x384xbf16>
    %cst = arith.constant dense<0.000000e+00> : vector<64x384xf32>
    %3 = tpu.matmul %0, %2, %cst {dimension_numbers = #tpu.dot_dimension_numbers<[1], [0], [0], [1], [0, 0, 1, 1], [], []>} : vector<64x128xbf16>, vector<128x384xbf16>, vector<64x384xf32> -> vector<64x384xf32>
    %c0_5 = arith.constant 0 : index
    %c0_6 = arith.constant 0 : index
    %4 = vector.load %arg4[%c0_5, %c0_6] : memref<128x384xbf16, #tpu.memory_space<vmem>>, vector<128x384xbf16>
    %cst_7 = arith.constant dense<0.000000e+00> : vector<64x384xf32>
    %5 = tpu.matmul %1, %4, %cst_7 {dimension_numbers = #tpu.dot_dimension_numbers<[1], [0], [0], [1], [0, 0, 1, 1], [], []>} : vector<64x128xbf16>, vector<128x384xbf16>, vector<64x384xf32> -> vector<64x384xf32>
    %6 = arith.addf %3, %5 : vector<64x384xf32>
    %c0_8 = arith.constant 0 : index
    %c0_9 = arith.constant 0 : index
    %7 = vector.load %arg7[%c0_8, %c0_9] : memref<1x384xf32, #tpu.memory_space<vmem>>, vector<1x384xf32>
    %8 = vector.broadcast %7 : vector<1x384xf32> to vector<64x384xf32>
    %9 = arith.addf %6, %8 : vector<64x384xf32>
    %c0_10 = arith.constant 0 : index
    %c0_11 = arith.constant 0 : index
    %10 = vector.load %arg5[%c0_10, %c0_11] : memref<128x384xbf16, #tpu.memory_space<vmem>>, vector<128x384xbf16>
    %cst_12 = arith.constant dense<0.000000e+00> : vector<64x384xf32>
    %11 = tpu.matmul %0, %10, %cst_12 {dimension_numbers = #tpu.dot_dimension_numbers<[1], [0], [0], [1], [0, 0, 1, 1], [], []>} : vector<64x128xbf16>, vector<128x384xbf16>, vector<64x384xf32> -> vector<64x384xf32>
    %c0_13 = arith.constant 0 : index
    %c0_14 = arith.constant 0 : index
    %12 = vector.load %arg6[%c0_13, %c0_14] : memref<128x384xbf16, #tpu.memory_space<vmem>>, vector<128x384xbf16>
    %cst_15 = arith.constant dense<0.000000e+00> : vector<64x384xf32>
    %13 = tpu.matmul %1, %12, %cst_15 {dimension_numbers = #tpu.dot_dimension_numbers<[1], [0], [0], [1], [0, 0, 1, 1], [], []>} : vector<64x128xbf16>, vector<128x384xbf16>, vector<64x384xf32> -> vector<64x384xf32>
    %14 = arith.addf %11, %13 : vector<64x384xf32>
    %c0_16 = arith.constant 0 : index
    %c0_17 = arith.constant 0 : index
    %15 = vector.load %arg8[%c0_16, %c0_17] : memref<1x384xf32, #tpu.memory_space<vmem>>, vector<1x384xf32>
    %16 = vector.broadcast %15 : vector<1x384xf32> to vector<64x384xf32>
    %17 = arith.addf %14, %16 : vector<64x384xf32>
    %18 = arith.truncf %9 : vector<64x384xf32> to vector<64x384xbf16>
    %c0_18 = arith.constant 0 : index
    %c0_19 = arith.constant 0 : index
    %19 = vector.load %arg9[%c0_18, %c0_19] : memref<64x384xbf16, #tpu.memory_space<vmem>>, vector<64x384xbf16>
    tpu.vector_store %arg9[%c0_18, %c0_19], %18 {strides = array<i32>} : memref<64x384xbf16, #tpu.memory_space<vmem>>, vector<64x384xbf16>,
    %20 = arith.truncf %17 : vector<64x384xf32> to vector<64x384xbf16>
    %c0_20 = arith.constant 0 : index
    %c0_21 = arith.constant 0 : index
    %21 = vector.load %arg10[%c0_20, %c0_21] : memref<64x384xbf16, #tpu.memory_space<vmem>>, vector<64x384xbf16>
    tpu.vector_store %arg10[%c0_20, %c0_21], %20 {strides = array<i32>} : memref<64x384xbf16, #tpu.memory_space<vmem>>, vector<64x384xbf16>,
    return
  }
  func.func @transform_0(%arg0: i32) -> (i32, i32) {
    %c0_i32 = arith.constant 0 : i32
    %c0_i32_0 = arith.constant 0 : i32
    return %arg0, %c0_i32 : i32, i32
  }
  func.func @transform_1(%arg0: i32) -> (i32, i32) {
    %c0_i32 = arith.constant 0 : i32
    %c0_i32_0 = arith.constant 0 : i32
    return %arg0, %c0_i32 : i32, i32
  }
  func.func @transform_2(%arg0: i32) -> (i32, i32) {
    %c0_i32 = arith.constant 0 : i32
    %c0_i32_0 = arith.constant 0 : i32
    %c0_i32_1 = arith.constant 0 : i32
    return %c0_i32, %c0_i32_0 : i32, i32
  }
  func.func @transform_3(%arg0: i32) -> (i32, i32) {
    %c0_i32 = arith.constant 0 : i32
    %c0_i32_0 = arith.constant 0 : i32
    %c0_i32_1 = arith.constant 0 : i32
    return %c0_i32, %c0_i32_0 : i32, i32
  }
  func.func @transform_4(%arg0: i32) -> (i32, i32) {
    %c0_i32 = arith.constant 0 : i32
    %c0_i32_0 = arith.constant 0 : i32
    %c0_i32_1 = arith.constant 0 : i32
    return %c0_i32, %c0_i32_0 : i32, i32
  }
  func.func @transform_5(%arg0: i32) -> (i32, i32) {
    %c0_i32 = arith.constant 0 : i32
    %c0_i32_0 = arith.constant 0 : i32
    %c0_i32_1 = arith.constant 0 : i32
    return %c0_i32, %c0_i32_0 : i32, i32
  }
  func.func @transform_6(%arg0: i32) -> (i32, i32) {
    %c0_i32 = arith.constant 0 : i32
    %c0_i32_0 = arith.constant 0 : i32
    %c0_i32_1 = arith.constant 0 : i32
    return %c0_i32, %c0_i32_0 : i32, i32
  }
  func.func @transform_7(%arg0: i32) -> (i32, i32) {
    %c0_i32 = arith.constant 0 : i32
    %c0_i32_0 = arith.constant 0 : i32
    %c0_i32_1 = arith.constant 0 : i32
    return %c0_i32, %c0_i32_0 : i32, i32
  }
  func.func @transform_8(%arg0: i32) -> (i32, i32) {
    %c0_i32 = arith.constant 0 : i32
    %c0_i32_0 = arith.constant 0 : i32
    return %arg0, %c0_i32 : i32, i32
  }
  func.func @transform_9(%arg0: i32) -> (i32, i32) {
    %c0_i32 = arith.constant 0 : i32
    %c0_i32_0 = arith.constant 0 : i32
    return %arg0, %c0_i32 : i32, i32
  }
}

module attributes {stable_mosaic.version = 11 : i64} {
  func.func @_bigru_kernel(%arg0: i32, %arg1: memref<64x384xbf16, #tpu.memory_space<vmem>>, %arg2: memref<64x384xbf16, #tpu.memory_space<vmem>>, %arg3: memref<256x768xbf16, #tpu.memory_space<vmem>>, %arg4: memref<1x128xf32, #tpu.memory_space<vmem>>, %arg5: memref<1x128xf32, #tpu.memory_space<vmem>>, %arg6: memref<64x128xbf16, #tpu.memory_space<vmem>>, %arg7: memref<64x128xbf16, #tpu.memory_space<vmem>>, %arg8: memref<8x256xf32, #tpu.memory_space<vmem>>) attributes {dimension_semantics = [#tpu.dimension_semantics<arbitrary>], iteration_bounds = array<i64: 1>, scalar_prefetch = 0 : i64, scratch_operands = 1 : i64, tpu.core_type = #tpu.core_type<tc>, window_params = [{transform_indices = @transform_0, window_bounds = array<i64: 64, 384>}, {transform_indices = @transform_1, window_bounds = array<i64: 64, 384>}, {pipeline_mode = #tpu.pipeline_mode<synchronous>, transform_indices = @transform_2, window_bounds = array<i64: 256, 768>}, {pipeline_mode = #tpu.pipeline_mode<synchronous>, transform_indices = @transform_3, window_bounds = array<i64: 1, 128>}, {pipeline_mode = #tpu.pipeline_mode<synchronous>, transform_indices = @transform_4, window_bounds = array<i64: 1, 128>}, {transform_indices = @transform_5, window_bounds = array<i64: 64, 128>}, {transform_indices = @transform_6, window_bounds = array<i64: 64, 128>}]} {
    %c0_i32 = arith.constant 0 : i32
    %0 = arith.cmpi eq, %arg0, %c0_i32 : i32
    %1 = arith.extui %0 : i1 to i32
    %c0_i32_0 = arith.constant 0 : i32
    %2 = arith.cmpi ne, %1, %c0_i32_0 : i32
    scf.if %2 {
      %cst_106 = arith.constant 0.000000e+00 : f32
      %604 = vector.broadcast %cst_106 : f32 to vector<8x256xf32>
      %c0_107 = arith.constant 0 : index
      %c0_108 = arith.constant 0 : index
      %605 = vector.load %arg8[%c0_107, %c0_108] : memref<8x256xf32, #tpu.memory_space<vmem>>, vector<8x256xf32>
      tpu.vector_store %arg8[%c0_107, %c0_108], %604 {strides = array<i32>} : memref<8x256xf32, #tpu.memory_space<vmem>>, vector<8x256xf32>,
    } else {
    }
    %c0 = arith.constant 0 : index
    %c0_1 = arith.constant 0 : index
    %3 = vector.load %arg3[%c0, %c0_1] : memref<256x768xbf16, #tpu.memory_space<vmem>>, vector<256x768xbf16>
    %c0_2 = arith.constant 0 : index
    %c0_3 = arith.constant 0 : index
    %4 = vector.load %arg4[%c0_2, %c0_3] : memref<1x128xf32, #tpu.memory_space<vmem>>, vector<1x128xf32>
    %5 = vector.shape_cast %4 : vector<1x128xf32> to vector<1x128xf32>
    %6 = vector.broadcast %5 : vector<1x128xf32> to vector<8x128xf32>
    %c0_4 = arith.constant 0 : index
    %c0_5 = arith.constant 0 : index
    %7 = vector.load %arg5[%c0_4, %c0_5] : memref<1x128xf32, #tpu.memory_space<vmem>>, vector<1x128xf32>
    %8 = vector.shape_cast %7 : vector<1x128xf32> to vector<1x128xf32>
    %9 = vector.broadcast %8 : vector<1x128xf32> to vector<8x128xf32>
    %c0_6 = arith.constant 0 : index
    %c0_7 = arith.constant 0 : index
    %10 = vector.load %arg8[%c0_6, %c0_7] : memref<8x256xf32, #tpu.memory_space<vmem>>, vector<8x256xf32>
    %c0_i32_8 = arith.constant 0 : i32
    %c8_i32 = arith.constant 8 : i32
    %11 = arith.muli %c0_i32_8, %c8_i32 : i32
    %12 = tpu.assume_multiple %11, 8 : i32
    %c7_i32 = arith.constant 7 : i32
    %13 = arith.subi %c7_i32, %c0_i32_8 : i32
    %c8_i32_9 = arith.constant 8 : i32
    %14 = arith.muli %13, %c8_i32_9 : i32
    %15 = tpu.assume_multiple %14, 8 : i32
    %16 = arith.index_cast %12 : i32 to index
    %c0_10 = arith.constant 0 : index
    %17 = vector.load %arg1[%16, %c0_10] : memref<64x384xbf16, #tpu.memory_space<vmem>>, vector<8x384xbf16>
    %18 = arith.extf %17 : vector<8x384xbf16> to vector<8x384xf32>
    %19 = arith.index_cast %15 : i32 to index
    %c0_11 = arith.constant 0 : index
    %20 = vector.load %arg2[%19, %c0_11] : memref<64x384xbf16, #tpu.memory_space<vmem>>, vector<8x384xbf16>
    %21 = arith.extf %20 : vector<8x384xbf16> to vector<8x384xf32>
    %22 = arith.truncf %10 : vector<8x256xf32> to vector<8x256xbf16>
    %cst = arith.constant dense<0.000000e+00> : vector<8x768xf32>
    %23 = tpu.matmul %22, %3, %cst {dimension_numbers = #tpu.dot_dimension_numbers<[1], [0], [0], [1], [0, 0, 1, 1], [], []>} : vector<8x256xbf16>, vector<256x768xbf16>, vector<8x768xf32> -> vector<8x768xf32>
    %24 = vector.extract_strided_slice %23 {offsets = [0, 0], sizes = [8, 384], strides = [1, 1]} : vector<8x768xf32> to vector<8x384xf32>
    %25 = vector.extract_strided_slice %10 {offsets = [0, 0], sizes = [8, 128], strides = [1, 1]} : vector<8x256xf32> to vector<8x128xf32>
    %26 = vector.extract_strided_slice %18 {offsets = [0, 0], sizes = [8, 128], strides = [1, 1]} : vector<8x384xf32> to vector<8x128xf32>
    %27 = vector.extract_strided_slice %24 {offsets = [0, 0], sizes = [8, 128], strides = [1, 1]} : vector<8x384xf32> to vector<8x128xf32>
    %28 = arith.addf %26, %27 : vector<8x128xf32>
    %29 = arith.negf %28 : vector<8x128xf32>
    %30 = math.exp %29 : vector<8x128xf32>
    %cst_12 = arith.constant 1.000000e+00 : f32
    %31 = vector.broadcast %cst_12 : f32 to vector<8x128xf32>
    %32 = arith.addf %31, %30 : vector<8x128xf32>
    %33 = arith.divf %31, %32 : vector<8x128xf32>
    %34 = vector.extract_strided_slice %18 {offsets = [0, 128], sizes = [8, 128], strides = [1, 1]} : vector<8x384xf32> to vector<8x128xf32>
    %35 = vector.extract_strided_slice %24 {offsets = [0, 128], sizes = [8, 128], strides = [1, 1]} : vector<8x384xf32> to vector<8x128xf32>
    %36 = arith.addf %34, %35 : vector<8x128xf32>
    %37 = arith.negf %36 : vector<8x128xf32>
    %38 = math.exp %37 : vector<8x128xf32>
    %cst_13 = arith.constant 1.000000e+00 : f32
    %39 = vector.broadcast %cst_13 : f32 to vector<8x128xf32>
    %40 = arith.addf %39, %38 : vector<8x128xf32>
    %41 = arith.divf %39, %40 : vector<8x128xf32>
    %42 = vector.extract_strided_slice %18 {offsets = [0, 256], sizes = [8, 128], strides = [1, 1]} : vector<8x384xf32> to vector<8x128xf32>
    %43 = vector.extract_strided_slice %24 {offsets = [0, 256], sizes = [8, 128], strides = [1, 1]} : vector<8x384xf32> to vector<8x128xf32>
    %44 = arith.addf %43, %6 : vector<8x128xf32>
    %45 = arith.mulf %33, %44 : vector<8x128xf32>
    %46 = arith.addf %42, %45 : vector<8x128xf32>
    %47 = math.tanh %46 : vector<8x128xf32>
    %48 = arith.subf %25, %47 : vector<8x128xf32>
    %49 = arith.mulf %41, %48 : vector<8x128xf32>
    %50 = arith.addf %47, %49 : vector<8x128xf32>
    %51 = vector.extract_strided_slice %23 {offsets = [0, 384], sizes = [8, 384], strides = [1, 1]} : vector<8x768xf32> to vector<8x384xf32>
    %52 = vector.extract_strided_slice %10 {offsets = [0, 128], sizes = [8, 128], strides = [1, 1]} : vector<8x256xf32> to vector<8x128xf32>
    %53 = vector.extract_strided_slice %21 {offsets = [0, 0], sizes = [8, 128], strides = [1, 1]} : vector<8x384xf32> to vector<8x128xf32>
    %54 = vector.extract_strided_slice %51 {offsets = [0, 0], sizes = [8, 128], strides = [1, 1]} : vector<8x384xf32> to vector<8x128xf32>
    %55 = arith.addf %53, %54 : vector<8x128xf32>
    %56 = arith.negf %55 : vector<8x128xf32>
    %57 = math.exp %56 : vector<8x128xf32>
    %cst_14 = arith.constant 1.000000e+00 : f32
    %58 = vector.broadcast %cst_14 : f32 to vector<8x128xf32>
    %59 = arith.addf %58, %57 : vector<8x128xf32>
    %60 = arith.divf %58, %59 : vector<8x128xf32>
    %61 = vector.extract_strided_slice %21 {offsets = [0, 128], sizes = [8, 128], strides = [1, 1]} : vector<8x384xf32> to vector<8x128xf32>
    %62 = vector.extract_strided_slice %51 {offsets = [0, 128], sizes = [8, 128], strides = [1, 1]} : vector<8x384xf32> to vector<8x128xf32>
    %63 = arith.addf %61, %62 : vector<8x128xf32>
    %64 = arith.negf %63 : vector<8x128xf32>
    %65 = math.exp %64 : vector<8x128xf32>
    %cst_15 = arith.constant 1.000000e+00 : f32
    %66 = vector.broadcast %cst_15 : f32 to vector<8x128xf32>
    %67 = arith.addf %66, %65 : vector<8x128xf32>
    %68 = arith.divf %66, %67 : vector<8x128xf32>
    %69 = vector.extract_strided_slice %21 {offsets = [0, 256], sizes = [8, 128], strides = [1, 1]} : vector<8x384xf32> to vector<8x128xf32>
    %70 = vector.extract_strided_slice %51 {offsets = [0, 256], sizes = [8, 128], strides = [1, 1]} : vector<8x384xf32> to vector<8x128xf32>
    %71 = arith.addf %70, %9 : vector<8x128xf32>
    %72 = arith.mulf %60, %71 : vector<8x128xf32>
    %73 = arith.addf %69, %72 : vector<8x128xf32>
    %74 = math.tanh %73 : vector<8x128xf32>
    %75 = arith.subf %52, %74 : vector<8x128xf32>
    %76 = arith.mulf %68, %75 : vector<8x128xf32>
    %77 = arith.addf %74, %76 : vector<8x128xf32>
    %78 = arith.truncf %50 : vector<8x128xf32> to vector<8x128xbf16>
    %79 = arith.index_cast %12 : i32 to index
    %c0_16 = arith.constant 0 : index
    %80 = vector.load %arg6[%79, %c0_16] : memref<64x128xbf16, #tpu.memory_space<vmem>>, vector<8x128xbf16>
    tpu.vector_store %arg6[%79, %c0_16], %78 {strides = array<i32>} : memref<64x128xbf16, #tpu.memory_space<vmem>>, vector<8x128xbf16>,
    %81 = arith.truncf %77 : vector<8x128xf32> to vector<8x128xbf16>
    %82 = arith.index_cast %15 : i32 to index
    %c0_17 = arith.constant 0 : index
    %83 = vector.load %arg7[%82, %c0_17] : memref<64x128xbf16, #tpu.memory_space<vmem>>, vector<8x128xbf16>
    tpu.vector_store %arg7[%82, %c0_17], %81 {strides = array<i32>} : memref<64x128xbf16, #tpu.memory_space<vmem>>, vector<8x128xbf16>,
    %84 = tpu.concatenate %50, %77 in 1 : vector<8x128xf32>, vector<8x128xf32> -> vector<8x256xf32>
    %c1_i32 = arith.constant 1 : i32
    %c8_i32_18 = arith.constant 8 : i32
    %85 = arith.muli %c1_i32, %c8_i32_18 : i32
    %86 = tpu.assume_multiple %85, 8 : i32
    %c7_i32_19 = arith.constant 7 : i32
    %87 = arith.subi %c7_i32_19, %c1_i32 : i32
    %c8_i32_20 = arith.constant 8 : i32
    %88 = arith.muli %87, %c8_i32_20 : i32
    %89 = tpu.assume_multiple %88, 8 : i32
    %90 = arith.index_cast %86 : i32 to index
    %c0_21 = arith.constant 0 : index
    %91 = vector.load %arg1[%90, %c0_21] : memref<64x384xbf16, #tpu.memory_space<vmem>>, vector<8x384xbf16>
    %92 = arith.extf %91 : vector<8x384xbf16> to vector<8x384xf32>
    %93 = arith.index_cast %89 : i32 to index
    %c0_22 = arith.constant 0 : index
    %94 = vector.load %arg2[%93, %c0_22] : memref<64x384xbf16, #tpu.memory_space<vmem>>, vector<8x384xbf16>
    %95 = arith.extf %94 : vector<8x384xbf16> to vector<8x384xf32>
    %96 = arith.truncf %84 : vector<8x256xf32> to vector<8x256xbf16>
    %cst_23 = arith.constant dense<0.000000e+00> : vector<8x768xf32>
    %97 = tpu.matmul %96, %3, %cst_23 {dimension_numbers = #tpu.dot_dimension_numbers<[1], [0], [0], [1], [0, 0, 1, 1], [], []>} : vector<8x256xbf16>, vector<256x768xbf16>, vector<8x768xf32> -> vector<8x768xf32>
    %98 = vector.extract_strided_slice %97 {offsets = [0, 0], sizes = [8, 384], strides = [1, 1]} : vector<8x768xf32> to vector<8x384xf32>
    %99 = vector.extract_strided_slice %84 {offsets = [0, 0], sizes = [8, 128], strides = [1, 1]} : vector<8x256xf32> to vector<8x128xf32>
    %100 = vector.extract_strided_slice %92 {offsets = [0, 0], sizes = [8, 128], strides = [1, 1]} : vector<8x384xf32> to vector<8x128xf32>
    %101 = vector.extract_strided_slice %98 {offsets = [0, 0], sizes = [8, 128], strides = [1, 1]} : vector<8x384xf32> to vector<8x128xf32>
    %102 = arith.addf %100, %101 : vector<8x128xf32>
    %103 = arith.negf %102 : vector<8x128xf32>
    %104 = math.exp %103 : vector<8x128xf32>
    %cst_24 = arith.constant 1.000000e+00 : f32
    %105 = vector.broadcast %cst_24 : f32 to vector<8x128xf32>
    %106 = arith.addf %105, %104 : vector<8x128xf32>
    %107 = arith.divf %105, %106 : vector<8x128xf32>
    %108 = vector.extract_strided_slice %92 {offsets = [0, 128], sizes = [8, 128], strides = [1, 1]} : vector<8x384xf32> to vector<8x128xf32>
    %109 = vector.extract_strided_slice %98 {offsets = [0, 128], sizes = [8, 128], strides = [1, 1]} : vector<8x384xf32> to vector<8x128xf32>
    %110 = arith.addf %108, %109 : vector<8x128xf32>
    %111 = arith.negf %110 : vector<8x128xf32>
    %112 = math.exp %111 : vector<8x128xf32>
    %cst_25 = arith.constant 1.000000e+00 : f32
    %113 = vector.broadcast %cst_25 : f32 to vector<8x128xf32>
    %114 = arith.addf %113, %112 : vector<8x128xf32>
    %115 = arith.divf %113, %114 : vector<8x128xf32>
    %116 = vector.extract_strided_slice %92 {offsets = [0, 256], sizes = [8, 128], strides = [1, 1]} : vector<8x384xf32> to vector<8x128xf32>
    %117 = vector.extract_strided_slice %98 {offsets = [0, 256], sizes = [8, 128], strides = [1, 1]} : vector<8x384xf32> to vector<8x128xf32>
    %118 = arith.addf %117, %6 : vector<8x128xf32>
    %119 = arith.mulf %107, %118 : vector<8x128xf32>
    %120 = arith.addf %116, %119 : vector<8x128xf32>
    %121 = math.tanh %120 : vector<8x128xf32>
    %122 = arith.subf %99, %121 : vector<8x128xf32>
    %123 = arith.mulf %115, %122 : vector<8x128xf32>
    %124 = arith.addf %121, %123 : vector<8x128xf32>
    %125 = vector.extract_strided_slice %97 {offsets = [0, 384], sizes = [8, 384], strides = [1, 1]} : vector<8x768xf32> to vector<8x384xf32>
    %126 = vector.extract_strided_slice %84 {offsets = [0, 128], sizes = [8, 128], strides = [1, 1]} : vector<8x256xf32> to vector<8x128xf32>
    %127 = vector.extract_strided_slice %95 {offsets = [0, 0], sizes = [8, 128], strides = [1, 1]} : vector<8x384xf32> to vector<8x128xf32>
    %128 = vector.extract_strided_slice %125 {offsets = [0, 0], sizes = [8, 128], strides = [1, 1]} : vector<8x384xf32> to vector<8x128xf32>
    %129 = arith.addf %127, %128 : vector<8x128xf32>
    %130 = arith.negf %129 : vector<8x128xf32>
    %131 = math.exp %130 : vector<8x128xf32>
    %cst_26 = arith.constant 1.000000e+00 : f32
    %132 = vector.broadcast %cst_26 : f32 to vector<8x128xf32>
    %133 = arith.addf %132, %131 : vector<8x128xf32>
    %134 = arith.divf %132, %133 : vector<8x128xf32>
    %135 = vector.extract_strided_slice %95 {offsets = [0, 128], sizes = [8, 128], strides = [1, 1]} : vector<8x384xf32> to vector<8x128xf32>
    %136 = vector.extract_strided_slice %125 {offsets = [0, 128], sizes = [8, 128], strides = [1, 1]} : vector<8x384xf32> to vector<8x128xf32>
    %137 = arith.addf %135, %136 : vector<8x128xf32>
    %138 = arith.negf %137 : vector<8x128xf32>
    %139 = math.exp %138 : vector<8x128xf32>
    %cst_27 = arith.constant 1.000000e+00 : f32
    %140 = vector.broadcast %cst_27 : f32 to vector<8x128xf32>
    %141 = arith.addf %140, %139 : vector<8x128xf32>
    %142 = arith.divf %140, %141 : vector<8x128xf32>
    %143 = vector.extract_strided_slice %95 {offsets = [0, 256], sizes = [8, 128], strides = [1, 1]} : vector<8x384xf32> to vector<8x128xf32>
    %144 = vector.extract_strided_slice %125 {offsets = [0, 256], sizes = [8, 128], strides = [1, 1]} : vector<8x384xf32> to vector<8x128xf32>
    %145 = arith.addf %144, %9 : vector<8x128xf32>
    %146 = arith.mulf %134, %145 : vector<8x128xf32>
    %147 = arith.addf %143, %146 : vector<8x128xf32>
    %148 = math.tanh %147 : vector<8x128xf32>
    %149 = arith.subf %126, %148 : vector<8x128xf32>
    %150 = arith.mulf %142, %149 : vector<8x128xf32>
    %151 = arith.addf %148, %150 : vector<8x128xf32>
    %152 = arith.truncf %124 : vector<8x128xf32> to vector<8x128xbf16>
    %153 = arith.index_cast %86 : i32 to index
    %c0_28 = arith.constant 0 : index
    %154 = vector.load %arg6[%153, %c0_28] : memref<64x128xbf16, #tpu.memory_space<vmem>>, vector<8x128xbf16>
    tpu.vector_store %arg6[%153, %c0_28], %152 {strides = array<i32>} : memref<64x128xbf16, #tpu.memory_space<vmem>>, vector<8x128xbf16>,
    %155 = arith.truncf %151 : vector<8x128xf32> to vector<8x128xbf16>
    %156 = arith.index_cast %89 : i32 to index
    %c0_29 = arith.constant 0 : index
    %157 = vector.load %arg7[%156, %c0_29] : memref<64x128xbf16, #tpu.memory_space<vmem>>, vector<8x128xbf16>
    tpu.vector_store %arg7[%156, %c0_29], %155 {strides = array<i32>} : memref<64x128xbf16, #tpu.memory_space<vmem>>, vector<8x128xbf16>,
    %158 = tpu.concatenate %124, %151 in 1 : vector<8x128xf32>, vector<8x128xf32> -> vector<8x256xf32>
    %c2_i32 = arith.constant 2 : i32
    %c8_i32_30 = arith.constant 8 : i32
    %159 = arith.muli %c2_i32, %c8_i32_30 : i32
    %160 = tpu.assume_multiple %159, 8 : i32
    %c7_i32_31 = arith.constant 7 : i32
    %161 = arith.subi %c7_i32_31, %c2_i32 : i32
    %c8_i32_32 = arith.constant 8 : i32
    %162 = arith.muli %161, %c8_i32_32 : i32
    %163 = tpu.assume_multiple %162, 8 : i32
    %164 = arith.index_cast %160 : i32 to index
    %c0_33 = arith.constant 0 : index
    %165 = vector.load %arg1[%164, %c0_33] : memref<64x384xbf16, #tpu.memory_space<vmem>>, vector<8x384xbf16>
    %166 = arith.extf %165 : vector<8x384xbf16> to vector<8x384xf32>
    %167 = arith.index_cast %163 : i32 to index
    %c0_34 = arith.constant 0 : index
    %168 = vector.load %arg2[%167, %c0_34] : memref<64x384xbf16, #tpu.memory_space<vmem>>, vector<8x384xbf16>
    %169 = arith.extf %168 : vector<8x384xbf16> to vector<8x384xf32>
    %170 = arith.truncf %158 : vector<8x256xf32> to vector<8x256xbf16>
    %cst_35 = arith.constant dense<0.000000e+00> : vector<8x768xf32>
    %171 = tpu.matmul %170, %3, %cst_35 {dimension_numbers = #tpu.dot_dimension_numbers<[1], [0], [0], [1], [0, 0, 1, 1], [], []>} : vector<8x256xbf16>, vector<256x768xbf16>, vector<8x768xf32> -> vector<8x768xf32>
    %172 = vector.extract_strided_slice %171 {offsets = [0, 0], sizes = [8, 384], strides = [1, 1]} : vector<8x768xf32> to vector<8x384xf32>
    %173 = vector.extract_strided_slice %158 {offsets = [0, 0], sizes = [8, 128], strides = [1, 1]} : vector<8x256xf32> to vector<8x128xf32>
    %174 = vector.extract_strided_slice %166 {offsets = [0, 0], sizes = [8, 128], strides = [1, 1]} : vector<8x384xf32> to vector<8x128xf32>
    %175 = vector.extract_strided_slice %172 {offsets = [0, 0], sizes = [8, 128], strides = [1, 1]} : vector<8x384xf32> to vector<8x128xf32>
    %176 = arith.addf %174, %175 : vector<8x128xf32>
    %177 = arith.negf %176 : vector<8x128xf32>
    %178 = math.exp %177 : vector<8x128xf32>
    %cst_36 = arith.constant 1.000000e+00 : f32
    %179 = vector.broadcast %cst_36 : f32 to vector<8x128xf32>
    %180 = arith.addf %179, %178 : vector<8x128xf32>
    %181 = arith.divf %179, %180 : vector<8x128xf32>
    %182 = vector.extract_strided_slice %166 {offsets = [0, 128], sizes = [8, 128], strides = [1, 1]} : vector<8x384xf32> to vector<8x128xf32>
    %183 = vector.extract_strided_slice %172 {offsets = [0, 128], sizes = [8, 128], strides = [1, 1]} : vector<8x384xf32> to vector<8x128xf32>
    %184 = arith.addf %182, %183 : vector<8x128xf32>
    %185 = arith.negf %184 : vector<8x128xf32>
    %186 = math.exp %185 : vector<8x128xf32>
    %cst_37 = arith.constant 1.000000e+00 : f32
    %187 = vector.broadcast %cst_37 : f32 to vector<8x128xf32>
    %188 = arith.addf %187, %186 : vector<8x128xf32>
    %189 = arith.divf %187, %188 : vector<8x128xf32>
    %190 = vector.extract_strided_slice %166 {offsets = [0, 256], sizes = [8, 128], strides = [1, 1]} : vector<8x384xf32> to vector<8x128xf32>
    %191 = vector.extract_strided_slice %172 {offsets = [0, 256], sizes = [8, 128], strides = [1, 1]} : vector<8x384xf32> to vector<8x128xf32>
    %192 = arith.addf %191, %6 : vector<8x128xf32>
    %193 = arith.mulf %181, %192 : vector<8x128xf32>
    %194 = arith.addf %190, %193 : vector<8x128xf32>
    %195 = math.tanh %194 : vector<8x128xf32>
    %196 = arith.subf %173, %195 : vector<8x128xf32>
    %197 = arith.mulf %189, %196 : vector<8x128xf32>
    %198 = arith.addf %195, %197 : vector<8x128xf32>
    %199 = vector.extract_strided_slice %171 {offsets = [0, 384], sizes = [8, 384], strides = [1, 1]} : vector<8x768xf32> to vector<8x384xf32>
    %200 = vector.extract_strided_slice %158 {offsets = [0, 128], sizes = [8, 128], strides = [1, 1]} : vector<8x256xf32> to vector<8x128xf32>
    %201 = vector.extract_strided_slice %169 {offsets = [0, 0], sizes = [8, 128], strides = [1, 1]} : vector<8x384xf32> to vector<8x128xf32>
    %202 = vector.extract_strided_slice %199 {offsets = [0, 0], sizes = [8, 128], strides = [1, 1]} : vector<8x384xf32> to vector<8x128xf32>
    %203 = arith.addf %201, %202 : vector<8x128xf32>
    %204 = arith.negf %203 : vector<8x128xf32>
    %205 = math.exp %204 : vector<8x128xf32>
    %cst_38 = arith.constant 1.000000e+00 : f32
    %206 = vector.broadcast %cst_38 : f32 to vector<8x128xf32>
    %207 = arith.addf %206, %205 : vector<8x128xf32>
    %208 = arith.divf %206, %207 : vector<8x128xf32>
    %209 = vector.extract_strided_slice %169 {offsets = [0, 128], sizes = [8, 128], strides = [1, 1]} : vector<8x384xf32> to vector<8x128xf32>
    %210 = vector.extract_strided_slice %199 {offsets = [0, 128], sizes = [8, 128], strides = [1, 1]} : vector<8x384xf32> to vector<8x128xf32>
    %211 = arith.addf %209, %210 : vector<8x128xf32>
    %212 = arith.negf %211 : vector<8x128xf32>
    %213 = math.exp %212 : vector<8x128xf32>
    %cst_39 = arith.constant 1.000000e+00 : f32
    %214 = vector.broadcast %cst_39 : f32 to vector<8x128xf32>
    %215 = arith.addf %214, %213 : vector<8x128xf32>
    %216 = arith.divf %214, %215 : vector<8x128xf32>
    %217 = vector.extract_strided_slice %169 {offsets = [0, 256], sizes = [8, 128], strides = [1, 1]} : vector<8x384xf32> to vector<8x128xf32>
    %218 = vector.extract_strided_slice %199 {offsets = [0, 256], sizes = [8, 128], strides = [1, 1]} : vector<8x384xf32> to vector<8x128xf32>
    %219 = arith.addf %218, %9 : vector<8x128xf32>
    %220 = arith.mulf %208, %219 : vector<8x128xf32>
    %221 = arith.addf %217, %220 : vector<8x128xf32>
    %222 = math.tanh %221 : vector<8x128xf32>
    %223 = arith.subf %200, %222 : vector<8x128xf32>
    %224 = arith.mulf %216, %223 : vector<8x128xf32>
    %225 = arith.addf %222, %224 : vector<8x128xf32>
    %226 = arith.truncf %198 : vector<8x128xf32> to vector<8x128xbf16>
    %227 = arith.index_cast %160 : i32 to index
    %c0_40 = arith.constant 0 : index
    %228 = vector.load %arg6[%227, %c0_40] : memref<64x128xbf16, #tpu.memory_space<vmem>>, vector<8x128xbf16>
    tpu.vector_store %arg6[%227, %c0_40], %226 {strides = array<i32>} : memref<64x128xbf16, #tpu.memory_space<vmem>>, vector<8x128xbf16>,
    %229 = arith.truncf %225 : vector<8x128xf32> to vector<8x128xbf16>
    %230 = arith.index_cast %163 : i32 to index
    %c0_41 = arith.constant 0 : index
    %231 = vector.load %arg7[%230, %c0_41] : memref<64x128xbf16, #tpu.memory_space<vmem>>, vector<8x128xbf16>
    tpu.vector_store %arg7[%230, %c0_41], %229 {strides = array<i32>} : memref<64x128xbf16, #tpu.memory_space<vmem>>, vector<8x128xbf16>,
    %232 = tpu.concatenate %198, %225 in 1 : vector<8x128xf32>, vector<8x128xf32> -> vector<8x256xf32>
    %c3_i32 = arith.constant 3 : i32
    %c8_i32_42 = arith.constant 8 : i32
    %233 = arith.muli %c3_i32, %c8_i32_42 : i32
    %234 = tpu.assume_multiple %233, 8 : i32
    %c7_i32_43 = arith.constant 7 : i32
    %235 = arith.subi %c7_i32_43, %c3_i32 : i32
    %c8_i32_44 = arith.constant 8 : i32
    %236 = arith.muli %235, %c8_i32_44 : i32
    %237 = tpu.assume_multiple %236, 8 : i32
    %238 = arith.index_cast %234 : i32 to index
    %c0_45 = arith.constant 0 : index
    %239 = vector.load %arg1[%238, %c0_45] : memref<64x384xbf16, #tpu.memory_space<vmem>>, vector<8x384xbf16>
    %240 = arith.extf %239 : vector<8x384xbf16> to vector<8x384xf32>
    %241 = arith.index_cast %237 : i32 to index
    %c0_46 = arith.constant 0 : index
    %242 = vector.load %arg2[%241, %c0_46] : memref<64x384xbf16, #tpu.memory_space<vmem>>, vector<8x384xbf16>
    %243 = arith.extf %242 : vector<8x384xbf16> to vector<8x384xf32>
    %244 = arith.truncf %232 : vector<8x256xf32> to vector<8x256xbf16>
    %cst_47 = arith.constant dense<0.000000e+00> : vector<8x768xf32>
    %245 = tpu.matmul %244, %3, %cst_47 {dimension_numbers = #tpu.dot_dimension_numbers<[1], [0], [0], [1], [0, 0, 1, 1], [], []>} : vector<8x256xbf16>, vector<256x768xbf16>, vector<8x768xf32> -> vector<8x768xf32>
    %246 = vector.extract_strided_slice %245 {offsets = [0, 0], sizes = [8, 384], strides = [1, 1]} : vector<8x768xf32> to vector<8x384xf32>
    %247 = vector.extract_strided_slice %232 {offsets = [0, 0], sizes = [8, 128], strides = [1, 1]} : vector<8x256xf32> to vector<8x128xf32>
    %248 = vector.extract_strided_slice %240 {offsets = [0, 0], sizes = [8, 128], strides = [1, 1]} : vector<8x384xf32> to vector<8x128xf32>
    %249 = vector.extract_strided_slice %246 {offsets = [0, 0], sizes = [8, 128], strides = [1, 1]} : vector<8x384xf32> to vector<8x128xf32>
    %250 = arith.addf %248, %249 : vector<8x128xf32>
    %251 = arith.negf %250 : vector<8x128xf32>
    %252 = math.exp %251 : vector<8x128xf32>
    %cst_48 = arith.constant 1.000000e+00 : f32
    %253 = vector.broadcast %cst_48 : f32 to vector<8x128xf32>
    %254 = arith.addf %253, %252 : vector<8x128xf32>
    %255 = arith.divf %253, %254 : vector<8x128xf32>
    %256 = vector.extract_strided_slice %240 {offsets = [0, 128], sizes = [8, 128], strides = [1, 1]} : vector<8x384xf32> to vector<8x128xf32>
    %257 = vector.extract_strided_slice %246 {offsets = [0, 128], sizes = [8, 128], strides = [1, 1]} : vector<8x384xf32> to vector<8x128xf32>
    %258 = arith.addf %256, %257 : vector<8x128xf32>
    %259 = arith.negf %258 : vector<8x128xf32>
    %260 = math.exp %259 : vector<8x128xf32>
    %cst_49 = arith.constant 1.000000e+00 : f32
    %261 = vector.broadcast %cst_49 : f32 to vector<8x128xf32>
    %262 = arith.addf %261, %260 : vector<8x128xf32>
    %263 = arith.divf %261, %262 : vector<8x128xf32>
    %264 = vector.extract_strided_slice %240 {offsets = [0, 256], sizes = [8, 128], strides = [1, 1]} : vector<8x384xf32> to vector<8x128xf32>
    %265 = vector.extract_strided_slice %246 {offsets = [0, 256], sizes = [8, 128], strides = [1, 1]} : vector<8x384xf32> to vector<8x128xf32>
    %266 = arith.addf %265, %6 : vector<8x128xf32>
    %267 = arith.mulf %255, %266 : vector<8x128xf32>
    %268 = arith.addf %264, %267 : vector<8x128xf32>
    %269 = math.tanh %268 : vector<8x128xf32>
    %270 = arith.subf %247, %269 : vector<8x128xf32>
    %271 = arith.mulf %263, %270 : vector<8x128xf32>
    %272 = arith.addf %269, %271 : vector<8x128xf32>
    %273 = vector.extract_strided_slice %245 {offsets = [0, 384], sizes = [8, 384], strides = [1, 1]} : vector<8x768xf32> to vector<8x384xf32>
    %274 = vector.extract_strided_slice %232 {offsets = [0, 128], sizes = [8, 128], strides = [1, 1]} : vector<8x256xf32> to vector<8x128xf32>
    %275 = vector.extract_strided_slice %243 {offsets = [0, 0], sizes = [8, 128], strides = [1, 1]} : vector<8x384xf32> to vector<8x128xf32>
    %276 = vector.extract_strided_slice %273 {offsets = [0, 0], sizes = [8, 128], strides = [1, 1]} : vector<8x384xf32> to vector<8x128xf32>
    %277 = arith.addf %275, %276 : vector<8x128xf32>
    %278 = arith.negf %277 : vector<8x128xf32>
    %279 = math.exp %278 : vector<8x128xf32>
    %cst_50 = arith.constant 1.000000e+00 : f32
    %280 = vector.broadcast %cst_50 : f32 to vector<8x128xf32>
    %281 = arith.addf %280, %279 : vector<8x128xf32>
    %282 = arith.divf %280, %281 : vector<8x128xf32>
    %283 = vector.extract_strided_slice %243 {offsets = [0, 128], sizes = [8, 128], strides = [1, 1]} : vector<8x384xf32> to vector<8x128xf32>
    %284 = vector.extract_strided_slice %273 {offsets = [0, 128], sizes = [8, 128], strides = [1, 1]} : vector<8x384xf32> to vector<8x128xf32>
    %285 = arith.addf %283, %284 : vector<8x128xf32>
    %286 = arith.negf %285 : vector<8x128xf32>
    %287 = math.exp %286 : vector<8x128xf32>
    %cst_51 = arith.constant 1.000000e+00 : f32
    %288 = vector.broadcast %cst_51 : f32 to vector<8x128xf32>
    %289 = arith.addf %288, %287 : vector<8x128xf32>
    %290 = arith.divf %288, %289 : vector<8x128xf32>
    %291 = vector.extract_strided_slice %243 {offsets = [0, 256], sizes = [8, 128], strides = [1, 1]} : vector<8x384xf32> to vector<8x128xf32>
    %292 = vector.extract_strided_slice %273 {offsets = [0, 256], sizes = [8, 128], strides = [1, 1]} : vector<8x384xf32> to vector<8x128xf32>
    %293 = arith.addf %292, %9 : vector<8x128xf32>
    %294 = arith.mulf %282, %293 : vector<8x128xf32>
    %295 = arith.addf %291, %294 : vector<8x128xf32>
    %296 = math.tanh %295 : vector<8x128xf32>
    %297 = arith.subf %274, %296 : vector<8x128xf32>
    %298 = arith.mulf %290, %297 : vector<8x128xf32>
    %299 = arith.addf %296, %298 : vector<8x128xf32>
    %300 = arith.truncf %272 : vector<8x128xf32> to vector<8x128xbf16>
    %301 = arith.index_cast %234 : i32 to index
    %c0_52 = arith.constant 0 : index
    %302 = vector.load %arg6[%301, %c0_52] : memref<64x128xbf16, #tpu.memory_space<vmem>>, vector<8x128xbf16>
    tpu.vector_store %arg6[%301, %c0_52], %300 {strides = array<i32>} : memref<64x128xbf16, #tpu.memory_space<vmem>>, vector<8x128xbf16>,
    %303 = arith.truncf %299 : vector<8x128xf32> to vector<8x128xbf16>
    %304 = arith.index_cast %237 : i32 to index
    %c0_53 = arith.constant 0 : index
    %305 = vector.load %arg7[%304, %c0_53] : memref<64x128xbf16, #tpu.memory_space<vmem>>, vector<8x128xbf16>
    tpu.vector_store %arg7[%304, %c0_53], %303 {strides = array<i32>} : memref<64x128xbf16, #tpu.memory_space<vmem>>, vector<8x128xbf16>,
    %306 = tpu.concatenate %272, %299 in 1 : vector<8x128xf32>, vector<8x128xf32> -> vector<8x256xf32>
    %c4_i32 = arith.constant 4 : i32
    %c8_i32_54 = arith.constant 8 : i32
    %307 = arith.muli %c4_i32, %c8_i32_54 : i32
    %308 = tpu.assume_multiple %307, 8 : i32
    %c7_i32_55 = arith.constant 7 : i32
    %309 = arith.subi %c7_i32_55, %c4_i32 : i32
    %c8_i32_56 = arith.constant 8 : i32
    %310 = arith.muli %309, %c8_i32_56 : i32
    %311 = tpu.assume_multiple %310, 8 : i32
    %312 = arith.index_cast %308 : i32 to index
    %c0_57 = arith.constant 0 : index
    %313 = vector.load %arg1[%312, %c0_57] : memref<64x384xbf16, #tpu.memory_space<vmem>>, vector<8x384xbf16>
    %314 = arith.extf %313 : vector<8x384xbf16> to vector<8x384xf32>
    %315 = arith.index_cast %311 : i32 to index
    %c0_58 = arith.constant 0 : index
    %316 = vector.load %arg2[%315, %c0_58] : memref<64x384xbf16, #tpu.memory_space<vmem>>, vector<8x384xbf16>
    %317 = arith.extf %316 : vector<8x384xbf16> to vector<8x384xf32>
    %318 = arith.truncf %306 : vector<8x256xf32> to vector<8x256xbf16>
    %cst_59 = arith.constant dense<0.000000e+00> : vector<8x768xf32>
    %319 = tpu.matmul %318, %3, %cst_59 {dimension_numbers = #tpu.dot_dimension_numbers<[1], [0], [0], [1], [0, 0, 1, 1], [], []>} : vector<8x256xbf16>, vector<256x768xbf16>, vector<8x768xf32> -> vector<8x768xf32>
    %320 = vector.extract_strided_slice %319 {offsets = [0, 0], sizes = [8, 384], strides = [1, 1]} : vector<8x768xf32> to vector<8x384xf32>
    %321 = vector.extract_strided_slice %306 {offsets = [0, 0], sizes = [8, 128], strides = [1, 1]} : vector<8x256xf32> to vector<8x128xf32>
    %322 = vector.extract_strided_slice %314 {offsets = [0, 0], sizes = [8, 128], strides = [1, 1]} : vector<8x384xf32> to vector<8x128xf32>
    %323 = vector.extract_strided_slice %320 {offsets = [0, 0], sizes = [8, 128], strides = [1, 1]} : vector<8x384xf32> to vector<8x128xf32>
    %324 = arith.addf %322, %323 : vector<8x128xf32>
    %325 = arith.negf %324 : vector<8x128xf32>
    %326 = math.exp %325 : vector<8x128xf32>
    %cst_60 = arith.constant 1.000000e+00 : f32
    %327 = vector.broadcast %cst_60 : f32 to vector<8x128xf32>
    %328 = arith.addf %327, %326 : vector<8x128xf32>
    %329 = arith.divf %327, %328 : vector<8x128xf32>
    %330 = vector.extract_strided_slice %314 {offsets = [0, 128], sizes = [8, 128], strides = [1, 1]} : vector<8x384xf32> to vector<8x128xf32>
    %331 = vector.extract_strided_slice %320 {offsets = [0, 128], sizes = [8, 128], strides = [1, 1]} : vector<8x384xf32> to vector<8x128xf32>
    %332 = arith.addf %330, %331 : vector<8x128xf32>
    %333 = arith.negf %332 : vector<8x128xf32>
    %334 = math.exp %333 : vector<8x128xf32>
    %cst_61 = arith.constant 1.000000e+00 : f32
    %335 = vector.broadcast %cst_61 : f32 to vector<8x128xf32>
    %336 = arith.addf %335, %334 : vector<8x128xf32>
    %337 = arith.divf %335, %336 : vector<8x128xf32>
    %338 = vector.extract_strided_slice %314 {offsets = [0, 256], sizes = [8, 128], strides = [1, 1]} : vector<8x384xf32> to vector<8x128xf32>
    %339 = vector.extract_strided_slice %320 {offsets = [0, 256], sizes = [8, 128], strides = [1, 1]} : vector<8x384xf32> to vector<8x128xf32>
    %340 = arith.addf %339, %6 : vector<8x128xf32>
    %341 = arith.mulf %329, %340 : vector<8x128xf32>
    %342 = arith.addf %338, %341 : vector<8x128xf32>
    %343 = math.tanh %342 : vector<8x128xf32>
    %344 = arith.subf %321, %343 : vector<8x128xf32>
    %345 = arith.mulf %337, %344 : vector<8x128xf32>
    %346 = arith.addf %343, %345 : vector<8x128xf32>
    %347 = vector.extract_strided_slice %319 {offsets = [0, 384], sizes = [8, 384], strides = [1, 1]} : vector<8x768xf32> to vector<8x384xf32>
    %348 = vector.extract_strided_slice %306 {offsets = [0, 128], sizes = [8, 128], strides = [1, 1]} : vector<8x256xf32> to vector<8x128xf32>
    %349 = vector.extract_strided_slice %317 {offsets = [0, 0], sizes = [8, 128], strides = [1, 1]} : vector<8x384xf32> to vector<8x128xf32>
    %350 = vector.extract_strided_slice %347 {offsets = [0, 0], sizes = [8, 128], strides = [1, 1]} : vector<8x384xf32> to vector<8x128xf32>
    %351 = arith.addf %349, %350 : vector<8x128xf32>
    %352 = arith.negf %351 : vector<8x128xf32>
    %353 = math.exp %352 : vector<8x128xf32>
    %cst_62 = arith.constant 1.000000e+00 : f32
    %354 = vector.broadcast %cst_62 : f32 to vector<8x128xf32>
    %355 = arith.addf %354, %353 : vector<8x128xf32>
    %356 = arith.divf %354, %355 : vector<8x128xf32>
    %357 = vector.extract_strided_slice %317 {offsets = [0, 128], sizes = [8, 128], strides = [1, 1]} : vector<8x384xf32> to vector<8x128xf32>
    %358 = vector.extract_strided_slice %347 {offsets = [0, 128], sizes = [8, 128], strides = [1, 1]} : vector<8x384xf32> to vector<8x128xf32>
    %359 = arith.addf %357, %358 : vector<8x128xf32>
    %360 = arith.negf %359 : vector<8x128xf32>
    %361 = math.exp %360 : vector<8x128xf32>
    %cst_63 = arith.constant 1.000000e+00 : f32
    %362 = vector.broadcast %cst_63 : f32 to vector<8x128xf32>
    %363 = arith.addf %362, %361 : vector<8x128xf32>
    %364 = arith.divf %362, %363 : vector<8x128xf32>
    %365 = vector.extract_strided_slice %317 {offsets = [0, 256], sizes = [8, 128], strides = [1, 1]} : vector<8x384xf32> to vector<8x128xf32>
    %366 = vector.extract_strided_slice %347 {offsets = [0, 256], sizes = [8, 128], strides = [1, 1]} : vector<8x384xf32> to vector<8x128xf32>
    %367 = arith.addf %366, %9 : vector<8x128xf32>
    %368 = arith.mulf %356, %367 : vector<8x128xf32>
    %369 = arith.addf %365, %368 : vector<8x128xf32>
    %370 = math.tanh %369 : vector<8x128xf32>
    %371 = arith.subf %348, %370 : vector<8x128xf32>
    %372 = arith.mulf %364, %371 : vector<8x128xf32>
    %373 = arith.addf %370, %372 : vector<8x128xf32>
    %374 = arith.truncf %346 : vector<8x128xf32> to vector<8x128xbf16>
    %375 = arith.index_cast %308 : i32 to index
    %c0_64 = arith.constant 0 : index
    %376 = vector.load %arg6[%375, %c0_64] : memref<64x128xbf16, #tpu.memory_space<vmem>>, vector<8x128xbf16>
    tpu.vector_store %arg6[%375, %c0_64], %374 {strides = array<i32>} : memref<64x128xbf16, #tpu.memory_space<vmem>>, vector<8x128xbf16>,
    %377 = arith.truncf %373 : vector<8x128xf32> to vector<8x128xbf16>
    %378 = arith.index_cast %311 : i32 to index
    %c0_65 = arith.constant 0 : index
    %379 = vector.load %arg7[%378, %c0_65] : memref<64x128xbf16, #tpu.memory_space<vmem>>, vector<8x128xbf16>
    tpu.vector_store %arg7[%378, %c0_65], %377 {strides = array<i32>} : memref<64x128xbf16, #tpu.memory_space<vmem>>, vector<8x128xbf16>,
    %380 = tpu.concatenate %346, %373 in 1 : vector<8x128xf32>, vector<8x128xf32> -> vector<8x256xf32>
    %c5_i32 = arith.constant 5 : i32
    %c8_i32_66 = arith.constant 8 : i32
    %381 = arith.muli %c5_i32, %c8_i32_66 : i32
    %382 = tpu.assume_multiple %381, 8 : i32
    %c7_i32_67 = arith.constant 7 : i32
    %383 = arith.subi %c7_i32_67, %c5_i32 : i32
    %c8_i32_68 = arith.constant 8 : i32
    %384 = arith.muli %383, %c8_i32_68 : i32
    %385 = tpu.assume_multiple %384, 8 : i32
    %386 = arith.index_cast %382 : i32 to index
    %c0_69 = arith.constant 0 : index
    %387 = vector.load %arg1[%386, %c0_69] : memref<64x384xbf16, #tpu.memory_space<vmem>>, vector<8x384xbf16>
    %388 = arith.extf %387 : vector<8x384xbf16> to vector<8x384xf32>
    %389 = arith.index_cast %385 : i32 to index
    %c0_70 = arith.constant 0 : index
    %390 = vector.load %arg2[%389, %c0_70] : memref<64x384xbf16, #tpu.memory_space<vmem>>, vector<8x384xbf16>
    %391 = arith.extf %390 : vector<8x384xbf16> to vector<8x384xf32>
    %392 = arith.truncf %380 : vector<8x256xf32> to vector<8x256xbf16>
    %cst_71 = arith.constant dense<0.000000e+00> : vector<8x768xf32>
    %393 = tpu.matmul %392, %3, %cst_71 {dimension_numbers = #tpu.dot_dimension_numbers<[1], [0], [0], [1], [0, 0, 1, 1], [], []>} : vector<8x256xbf16>, vector<256x768xbf16>, vector<8x768xf32> -> vector<8x768xf32>
    %394 = vector.extract_strided_slice %393 {offsets = [0, 0], sizes = [8, 384], strides = [1, 1]} : vector<8x768xf32> to vector<8x384xf32>
    %395 = vector.extract_strided_slice %380 {offsets = [0, 0], sizes = [8, 128], strides = [1, 1]} : vector<8x256xf32> to vector<8x128xf32>
    %396 = vector.extract_strided_slice %388 {offsets = [0, 0], sizes = [8, 128], strides = [1, 1]} : vector<8x384xf32> to vector<8x128xf32>
    %397 = vector.extract_strided_slice %394 {offsets = [0, 0], sizes = [8, 128], strides = [1, 1]} : vector<8x384xf32> to vector<8x128xf32>
    %398 = arith.addf %396, %397 : vector<8x128xf32>
    %399 = arith.negf %398 : vector<8x128xf32>
    %400 = math.exp %399 : vector<8x128xf32>
    %cst_72 = arith.constant 1.000000e+00 : f32
    %401 = vector.broadcast %cst_72 : f32 to vector<8x128xf32>
    %402 = arith.addf %401, %400 : vector<8x128xf32>
    %403 = arith.divf %401, %402 : vector<8x128xf32>
    %404 = vector.extract_strided_slice %388 {offsets = [0, 128], sizes = [8, 128], strides = [1, 1]} : vector<8x384xf32> to vector<8x128xf32>
    %405 = vector.extract_strided_slice %394 {offsets = [0, 128], sizes = [8, 128], strides = [1, 1]} : vector<8x384xf32> to vector<8x128xf32>
    %406 = arith.addf %404, %405 : vector<8x128xf32>
    %407 = arith.negf %406 : vector<8x128xf32>
    %408 = math.exp %407 : vector<8x128xf32>
    %cst_73 = arith.constant 1.000000e+00 : f32
    %409 = vector.broadcast %cst_73 : f32 to vector<8x128xf32>
    %410 = arith.addf %409, %408 : vector<8x128xf32>
    %411 = arith.divf %409, %410 : vector<8x128xf32>
    %412 = vector.extract_strided_slice %388 {offsets = [0, 256], sizes = [8, 128], strides = [1, 1]} : vector<8x384xf32> to vector<8x128xf32>
    %413 = vector.extract_strided_slice %394 {offsets = [0, 256], sizes = [8, 128], strides = [1, 1]} : vector<8x384xf32> to vector<8x128xf32>
    %414 = arith.addf %413, %6 : vector<8x128xf32>
    %415 = arith.mulf %403, %414 : vector<8x128xf32>
    %416 = arith.addf %412, %415 : vector<8x128xf32>
    %417 = math.tanh %416 : vector<8x128xf32>
    %418 = arith.subf %395, %417 : vector<8x128xf32>
    %419 = arith.mulf %411, %418 : vector<8x128xf32>
    %420 = arith.addf %417, %419 : vector<8x128xf32>
    %421 = vector.extract_strided_slice %393 {offsets = [0, 384], sizes = [8, 384], strides = [1, 1]} : vector<8x768xf32> to vector<8x384xf32>
    %422 = vector.extract_strided_slice %380 {offsets = [0, 128], sizes = [8, 128], strides = [1, 1]} : vector<8x256xf32> to vector<8x128xf32>
    %423 = vector.extract_strided_slice %391 {offsets = [0, 0], sizes = [8, 128], strides = [1, 1]} : vector<8x384xf32> to vector<8x128xf32>
    %424 = vector.extract_strided_slice %421 {offsets = [0, 0], sizes = [8, 128], strides = [1, 1]} : vector<8x384xf32> to vector<8x128xf32>
    %425 = arith.addf %423, %424 : vector<8x128xf32>
    %426 = arith.negf %425 : vector<8x128xf32>
    %427 = math.exp %426 : vector<8x128xf32>
    %cst_74 = arith.constant 1.000000e+00 : f32
    %428 = vector.broadcast %cst_74 : f32 to vector<8x128xf32>
    %429 = arith.addf %428, %427 : vector<8x128xf32>
    %430 = arith.divf %428, %429 : vector<8x128xf32>
    %431 = vector.extract_strided_slice %391 {offsets = [0, 128], sizes = [8, 128], strides = [1, 1]} : vector<8x384xf32> to vector<8x128xf32>
    %432 = vector.extract_strided_slice %421 {offsets = [0, 128], sizes = [8, 128], strides = [1, 1]} : vector<8x384xf32> to vector<8x128xf32>
    %433 = arith.addf %431, %432 : vector<8x128xf32>
    %434 = arith.negf %433 : vector<8x128xf32>
    %435 = math.exp %434 : vector<8x128xf32>
    %cst_75 = arith.constant 1.000000e+00 : f32
    %436 = vector.broadcast %cst_75 : f32 to vector<8x128xf32>
    %437 = arith.addf %436, %435 : vector<8x128xf32>
    %438 = arith.divf %436, %437 : vector<8x128xf32>
    %439 = vector.extract_strided_slice %391 {offsets = [0, 256], sizes = [8, 128], strides = [1, 1]} : vector<8x384xf32> to vector<8x128xf32>
    %440 = vector.extract_strided_slice %421 {offsets = [0, 256], sizes = [8, 128], strides = [1, 1]} : vector<8x384xf32> to vector<8x128xf32>
    %441 = arith.addf %440, %9 : vector<8x128xf32>
    %442 = arith.mulf %430, %441 : vector<8x128xf32>
    %443 = arith.addf %439, %442 : vector<8x128xf32>
    %444 = math.tanh %443 : vector<8x128xf32>
    %445 = arith.subf %422, %444 : vector<8x128xf32>
    %446 = arith.mulf %438, %445 : vector<8x128xf32>
    %447 = arith.addf %444, %446 : vector<8x128xf32>
    %448 = arith.truncf %420 : vector<8x128xf32> to vector<8x128xbf16>
    %449 = arith.index_cast %382 : i32 to index
    %c0_76 = arith.constant 0 : index
    %450 = vector.load %arg6[%449, %c0_76] : memref<64x128xbf16, #tpu.memory_space<vmem>>, vector<8x128xbf16>
    tpu.vector_store %arg6[%449, %c0_76], %448 {strides = array<i32>} : memref<64x128xbf16, #tpu.memory_space<vmem>>, vector<8x128xbf16>,
    %451 = arith.truncf %447 : vector<8x128xf32> to vector<8x128xbf16>
    %452 = arith.index_cast %385 : i32 to index
    %c0_77 = arith.constant 0 : index
    %453 = vector.load %arg7[%452, %c0_77] : memref<64x128xbf16, #tpu.memory_space<vmem>>, vector<8x128xbf16>
    tpu.vector_store %arg7[%452, %c0_77], %451 {strides = array<i32>} : memref<64x128xbf16, #tpu.memory_space<vmem>>, vector<8x128xbf16>,
    %454 = tpu.concatenate %420, %447 in 1 : vector<8x128xf32>, vector<8x128xf32> -> vector<8x256xf32>
    %c6_i32 = arith.constant 6 : i32
    %c8_i32_78 = arith.constant 8 : i32
    %455 = arith.muli %c6_i32, %c8_i32_78 : i32
    %456 = tpu.assume_multiple %455, 8 : i32
    %c7_i32_79 = arith.constant 7 : i32
    %457 = arith.subi %c7_i32_79, %c6_i32 : i32
    %c8_i32_80 = arith.constant 8 : i32
    %458 = arith.muli %457, %c8_i32_80 : i32
    %459 = tpu.assume_multiple %458, 8 : i32
    %460 = arith.index_cast %456 : i32 to index
    %c0_81 = arith.constant 0 : index
    %461 = vector.load %arg1[%460, %c0_81] : memref<64x384xbf16, #tpu.memory_space<vmem>>, vector<8x384xbf16>
    %462 = arith.extf %461 : vector<8x384xbf16> to vector<8x384xf32>
    %463 = arith.index_cast %459 : i32 to index
    %c0_82 = arith.constant 0 : index
    %464 = vector.load %arg2[%463, %c0_82] : memref<64x384xbf16, #tpu.memory_space<vmem>>, vector<8x384xbf16>
    %465 = arith.extf %464 : vector<8x384xbf16> to vector<8x384xf32>
    %466 = arith.truncf %454 : vector<8x256xf32> to vector<8x256xbf16>
    %cst_83 = arith.constant dense<0.000000e+00> : vector<8x768xf32>
    %467 = tpu.matmul %466, %3, %cst_83 {dimension_numbers = #tpu.dot_dimension_numbers<[1], [0], [0], [1], [0, 0, 1, 1], [], []>} : vector<8x256xbf16>, vector<256x768xbf16>, vector<8x768xf32> -> vector<8x768xf32>
    %468 = vector.extract_strided_slice %467 {offsets = [0, 0], sizes = [8, 384], strides = [1, 1]} : vector<8x768xf32> to vector<8x384xf32>
    %469 = vector.extract_strided_slice %454 {offsets = [0, 0], sizes = [8, 128], strides = [1, 1]} : vector<8x256xf32> to vector<8x128xf32>
    %470 = vector.extract_strided_slice %462 {offsets = [0, 0], sizes = [8, 128], strides = [1, 1]} : vector<8x384xf32> to vector<8x128xf32>
    %471 = vector.extract_strided_slice %468 {offsets = [0, 0], sizes = [8, 128], strides = [1, 1]} : vector<8x384xf32> to vector<8x128xf32>
    %472 = arith.addf %470, %471 : vector<8x128xf32>
    %473 = arith.negf %472 : vector<8x128xf32>
    %474 = math.exp %473 : vector<8x128xf32>
    %cst_84 = arith.constant 1.000000e+00 : f32
    %475 = vector.broadcast %cst_84 : f32 to vector<8x128xf32>
    %476 = arith.addf %475, %474 : vector<8x128xf32>
    %477 = arith.divf %475, %476 : vector<8x128xf32>
    %478 = vector.extract_strided_slice %462 {offsets = [0, 128], sizes = [8, 128], strides = [1, 1]} : vector<8x384xf32> to vector<8x128xf32>
    %479 = vector.extract_strided_slice %468 {offsets = [0, 128], sizes = [8, 128], strides = [1, 1]} : vector<8x384xf32> to vector<8x128xf32>
    %480 = arith.addf %478, %479 : vector<8x128xf32>
    %481 = arith.negf %480 : vector<8x128xf32>
    %482 = math.exp %481 : vector<8x128xf32>
    %cst_85 = arith.constant 1.000000e+00 : f32
    %483 = vector.broadcast %cst_85 : f32 to vector<8x128xf32>
    %484 = arith.addf %483, %482 : vector<8x128xf32>
    %485 = arith.divf %483, %484 : vector<8x128xf32>
    %486 = vector.extract_strided_slice %462 {offsets = [0, 256], sizes = [8, 128], strides = [1, 1]} : vector<8x384xf32> to vector<8x128xf32>
    %487 = vector.extract_strided_slice %468 {offsets = [0, 256], sizes = [8, 128], strides = [1, 1]} : vector<8x384xf32> to vector<8x128xf32>
    %488 = arith.addf %487, %6 : vector<8x128xf32>
    %489 = arith.mulf %477, %488 : vector<8x128xf32>
    %490 = arith.addf %486, %489 : vector<8x128xf32>
    %491 = math.tanh %490 : vector<8x128xf32>
    %492 = arith.subf %469, %491 : vector<8x128xf32>
    %493 = arith.mulf %485, %492 : vector<8x128xf32>
    %494 = arith.addf %491, %493 : vector<8x128xf32>
    %495 = vector.extract_strided_slice %467 {offsets = [0, 384], sizes = [8, 384], strides = [1, 1]} : vector<8x768xf32> to vector<8x384xf32>
    %496 = vector.extract_strided_slice %454 {offsets = [0, 128], sizes = [8, 128], strides = [1, 1]} : vector<8x256xf32> to vector<8x128xf32>
    %497 = vector.extract_strided_slice %465 {offsets = [0, 0], sizes = [8, 128], strides = [1, 1]} : vector<8x384xf32> to vector<8x128xf32>
    %498 = vector.extract_strided_slice %495 {offsets = [0, 0], sizes = [8, 128], strides = [1, 1]} : vector<8x384xf32> to vector<8x128xf32>
    %499 = arith.addf %497, %498 : vector<8x128xf32>
    %500 = arith.negf %499 : vector<8x128xf32>
    %501 = math.exp %500 : vector<8x128xf32>
    %cst_86 = arith.constant 1.000000e+00 : f32
    %502 = vector.broadcast %cst_86 : f32 to vector<8x128xf32>
    %503 = arith.addf %502, %501 : vector<8x128xf32>
    %504 = arith.divf %502, %503 : vector<8x128xf32>
    %505 = vector.extract_strided_slice %465 {offsets = [0, 128], sizes = [8, 128], strides = [1, 1]} : vector<8x384xf32> to vector<8x128xf32>
    %506 = vector.extract_strided_slice %495 {offsets = [0, 128], sizes = [8, 128], strides = [1, 1]} : vector<8x384xf32> to vector<8x128xf32>
    %507 = arith.addf %505, %506 : vector<8x128xf32>
    %508 = arith.negf %507 : vector<8x128xf32>
    %509 = math.exp %508 : vector<8x128xf32>
    %cst_87 = arith.constant 1.000000e+00 : f32
    %510 = vector.broadcast %cst_87 : f32 to vector<8x128xf32>
    %511 = arith.addf %510, %509 : vector<8x128xf32>
    %512 = arith.divf %510, %511 : vector<8x128xf32>
    %513 = vector.extract_strided_slice %465 {offsets = [0, 256], sizes = [8, 128], strides = [1, 1]} : vector<8x384xf32> to vector<8x128xf32>
    %514 = vector.extract_strided_slice %495 {offsets = [0, 256], sizes = [8, 128], strides = [1, 1]} : vector<8x384xf32> to vector<8x128xf32>
    %515 = arith.addf %514, %9 : vector<8x128xf32>
    %516 = arith.mulf %504, %515 : vector<8x128xf32>
    %517 = arith.addf %513, %516 : vector<8x128xf32>
    %518 = math.tanh %517 : vector<8x128xf32>
    %519 = arith.subf %496, %518 : vector<8x128xf32>
    %520 = arith.mulf %512, %519 : vector<8x128xf32>
    %521 = arith.addf %518, %520 : vector<8x128xf32>
    %522 = arith.truncf %494 : vector<8x128xf32> to vector<8x128xbf16>
    %523 = arith.index_cast %456 : i32 to index
    %c0_88 = arith.constant 0 : index
    %524 = vector.load %arg6[%523, %c0_88] : memref<64x128xbf16, #tpu.memory_space<vmem>>, vector<8x128xbf16>
    tpu.vector_store %arg6[%523, %c0_88], %522 {strides = array<i32>} : memref<64x128xbf16, #tpu.memory_space<vmem>>, vector<8x128xbf16>,
    %525 = arith.truncf %521 : vector<8x128xf32> to vector<8x128xbf16>
    %526 = arith.index_cast %459 : i32 to index
    %c0_89 = arith.constant 0 : index
    %527 = vector.load %arg7[%526, %c0_89] : memref<64x128xbf16, #tpu.memory_space<vmem>>, vector<8x128xbf16>
    tpu.vector_store %arg7[%526, %c0_89], %525 {strides = array<i32>} : memref<64x128xbf16, #tpu.memory_space<vmem>>, vector<8x128xbf16>,
    %528 = tpu.concatenate %494, %521 in 1 : vector<8x128xf32>, vector<8x128xf32> -> vector<8x256xf32>
    %c7_i32_90 = arith.constant 7 : i32
    %c8_i32_91 = arith.constant 8 : i32
    %529 = arith.muli %c7_i32_90, %c8_i32_91 : i32
    %530 = tpu.assume_multiple %529, 8 : i32
    %c7_i32_92 = arith.constant 7 : i32
    %531 = arith.subi %c7_i32_92, %c7_i32_90 : i32
    %c8_i32_93 = arith.constant 8 : i32
    %532 = arith.muli %531, %c8_i32_93 : i32
    %533 = tpu.assume_multiple %532, 8 : i32
    %534 = arith.index_cast %530 : i32 to index
    %c0_94 = arith.constant 0 : index
    %535 = vector.load %arg1[%534, %c0_94] : memref<64x384xbf16, #tpu.memory_space<vmem>>, vector<8x384xbf16>
    %536 = arith.extf %535 : vector<8x384xbf16> to vector<8x384xf32>
    %537 = arith.index_cast %533 : i32 to index
    %c0_95 = arith.constant 0 : index
    %538 = vector.load %arg2[%537, %c0_95] : memref<64x384xbf16, #tpu.memory_space<vmem>>, vector<8x384xbf16>
    %539 = arith.extf %538 : vector<8x384xbf16> to vector<8x384xf32>
    %540 = arith.truncf %528 : vector<8x256xf32> to vector<8x256xbf16>
    %cst_96 = arith.constant dense<0.000000e+00> : vector<8x768xf32>
    %541 = tpu.matmul %540, %3, %cst_96 {dimension_numbers = #tpu.dot_dimension_numbers<[1], [0], [0], [1], [0, 0, 1, 1], [], []>} : vector<8x256xbf16>, vector<256x768xbf16>, vector<8x768xf32> -> vector<8x768xf32>
    %542 = vector.extract_strided_slice %541 {offsets = [0, 0], sizes = [8, 384], strides = [1, 1]} : vector<8x768xf32> to vector<8x384xf32>
    %543 = vector.extract_strided_slice %528 {offsets = [0, 0], sizes = [8, 128], strides = [1, 1]} : vector<8x256xf32> to vector<8x128xf32>
    %544 = vector.extract_strided_slice %536 {offsets = [0, 0], sizes = [8, 128], strides = [1, 1]} : vector<8x384xf32> to vector<8x128xf32>
    %545 = vector.extract_strided_slice %542 {offsets = [0, 0], sizes = [8, 128], strides = [1, 1]} : vector<8x384xf32> to vector<8x128xf32>
    %546 = arith.addf %544, %545 : vector<8x128xf32>
    %547 = arith.negf %546 : vector<8x128xf32>
    %548 = math.exp %547 : vector<8x128xf32>
    %cst_97 = arith.constant 1.000000e+00 : f32
    %549 = vector.broadcast %cst_97 : f32 to vector<8x128xf32>
    %550 = arith.addf %549, %548 : vector<8x128xf32>
    %551 = arith.divf %549, %550 : vector<8x128xf32>
    %552 = vector.extract_strided_slice %536 {offsets = [0, 128], sizes = [8, 128], strides = [1, 1]} : vector<8x384xf32> to vector<8x128xf32>
    %553 = vector.extract_strided_slice %542 {offsets = [0, 128], sizes = [8, 128], strides = [1, 1]} : vector<8x384xf32> to vector<8x128xf32>
    %554 = arith.addf %552, %553 : vector<8x128xf32>
    %555 = arith.negf %554 : vector<8x128xf32>
    %556 = math.exp %555 : vector<8x128xf32>
    %cst_98 = arith.constant 1.000000e+00 : f32
    %557 = vector.broadcast %cst_98 : f32 to vector<8x128xf32>
    %558 = arith.addf %557, %556 : vector<8x128xf32>
    %559 = arith.divf %557, %558 : vector<8x128xf32>
    %560 = vector.extract_strided_slice %536 {offsets = [0, 256], sizes = [8, 128], strides = [1, 1]} : vector<8x384xf32> to vector<8x128xf32>
    %561 = vector.extract_strided_slice %542 {offsets = [0, 256], sizes = [8, 128], strides = [1, 1]} : vector<8x384xf32> to vector<8x128xf32>
    %562 = arith.addf %561, %6 : vector<8x128xf32>
    %563 = arith.mulf %551, %562 : vector<8x128xf32>
    %564 = arith.addf %560, %563 : vector<8x128xf32>
    %565 = math.tanh %564 : vector<8x128xf32>
    %566 = arith.subf %543, %565 : vector<8x128xf32>
    %567 = arith.mulf %559, %566 : vector<8x128xf32>
    %568 = arith.addf %565, %567 : vector<8x128xf32>
    %569 = vector.extract_strided_slice %541 {offsets = [0, 384], sizes = [8, 384], strides = [1, 1]} : vector<8x768xf32> to vector<8x384xf32>
    %570 = vector.extract_strided_slice %528 {offsets = [0, 128], sizes = [8, 128], strides = [1, 1]} : vector<8x256xf32> to vector<8x128xf32>
    %571 = vector.extract_strided_slice %539 {offsets = [0, 0], sizes = [8, 128], strides = [1, 1]} : vector<8x384xf32> to vector<8x128xf32>
    %572 = vector.extract_strided_slice %569 {offsets = [0, 0], sizes = [8, 128], strides = [1, 1]} : vector<8x384xf32> to vector<8x128xf32>
    %573 = arith.addf %571, %572 : vector<8x128xf32>
    %574 = arith.negf %573 : vector<8x128xf32>
    %575 = math.exp %574 : vector<8x128xf32>
    %cst_99 = arith.constant 1.000000e+00 : f32
    %576 = vector.broadcast %cst_99 : f32 to vector<8x128xf32>
    %577 = arith.addf %576, %575 : vector<8x128xf32>
    %578 = arith.divf %576, %577 : vector<8x128xf32>
    %579 = vector.extract_strided_slice %539 {offsets = [0, 128], sizes = [8, 128], strides = [1, 1]} : vector<8x384xf32> to vector<8x128xf32>
    %580 = vector.extract_strided_slice %569 {offsets = [0, 128], sizes = [8, 128], strides = [1, 1]} : vector<8x384xf32> to vector<8x128xf32>
    %581 = arith.addf %579, %580 : vector<8x128xf32>
    %582 = arith.negf %581 : vector<8x128xf32>
    %583 = math.exp %582 : vector<8x128xf32>
    %cst_100 = arith.constant 1.000000e+00 : f32
    %584 = vector.broadcast %cst_100 : f32 to vector<8x128xf32>
    %585 = arith.addf %584, %583 : vector<8x128xf32>
    %586 = arith.divf %584, %585 : vector<8x128xf32>
    %587 = vector.extract_strided_slice %539 {offsets = [0, 256], sizes = [8, 128], strides = [1, 1]} : vector<8x384xf32> to vector<8x128xf32>
    %588 = vector.extract_strided_slice %569 {offsets = [0, 256], sizes = [8, 128], strides = [1, 1]} : vector<8x384xf32> to vector<8x128xf32>
    %589 = arith.addf %588, %9 : vector<8x128xf32>
    %590 = arith.mulf %578, %589 : vector<8x128xf32>
    %591 = arith.addf %587, %590 : vector<8x128xf32>
    %592 = math.tanh %591 : vector<8x128xf32>
    %593 = arith.subf %570, %592 : vector<8x128xf32>
    %594 = arith.mulf %586, %593 : vector<8x128xf32>
    %595 = arith.addf %592, %594 : vector<8x128xf32>
    %596 = arith.truncf %568 : vector<8x128xf32> to vector<8x128xbf16>
    %597 = arith.index_cast %530 : i32 to index
    %c0_101 = arith.constant 0 : index
    %598 = vector.load %arg6[%597, %c0_101] : memref<64x128xbf16, #tpu.memory_space<vmem>>, vector<8x128xbf16>
    tpu.vector_store %arg6[%597, %c0_101], %596 {strides = array<i32>} : memref<64x128xbf16, #tpu.memory_space<vmem>>, vector<8x128xbf16>,
    %599 = arith.truncf %595 : vector<8x128xf32> to vector<8x128xbf16>
    %600 = arith.index_cast %533 : i32 to index
    %c0_102 = arith.constant 0 : index
    %601 = vector.load %arg7[%600, %c0_102] : memref<64x128xbf16, #tpu.memory_space<vmem>>, vector<8x128xbf16>
    tpu.vector_store %arg7[%600, %c0_102], %599 {strides = array<i32>} : memref<64x128xbf16, #tpu.memory_space<vmem>>, vector<8x128xbf16>,
    %602 = tpu.concatenate %568, %595 in 1 : vector<8x128xf32>, vector<8x128xf32> -> vector<8x256xf32>
    %c8_i32_103 = arith.constant 8 : i32
    %c0_104 = arith.constant 0 : index
    %c0_105 = arith.constant 0 : index
    %603 = vector.load %arg8[%c0_104, %c0_105] : memref<8x256xf32, #tpu.memory_space<vmem>>, vector<8x256xf32>
    tpu.vector_store %arg8[%c0_104, %c0_105], %602 {strides = array<i32>} : memref<8x256xf32, #tpu.memory_space<vmem>>, vector<8x256xf32>,
    return
  }
  func.func @transform_0(%arg0: i32) -> (i32, i32) {
    %c0_i32 = arith.constant 0 : i32
    %c0_i32_0 = arith.constant 0 : i32
    return %arg0, %c0_i32 : i32, i32
  }
  func.func @transform_1(%arg0: i32) -> (i32, i32) {
    %c0_i32 = arith.constant 0 : i32
    %0 = arith.subi %c0_i32, %arg0 : i32
    %c0_i32_0 = arith.constant 0 : i32
    %c0_i32_1 = arith.constant 0 : i32
    return %0, %c0_i32_0 : i32, i32
  }
  func.func @transform_2(%arg0: i32) -> (i32, i32) {
    %c0_i32 = arith.constant 0 : i32
    %c0_i32_0 = arith.constant 0 : i32
    %c0_i32_1 = arith.constant 0 : i32
    return %c0_i32, %c0_i32_0 : i32, i32
  }
  func.func @transform_3(%arg0: i32) -> (i32, i32) {
    %c0_i32 = arith.constant 0 : i32
    %c0_i32_0 = arith.constant 0 : i32
    %c0_i32_1 = arith.constant 0 : i32
    return %c0_i32, %c0_i32_0 : i32, i32
  }
  func.func @transform_4(%arg0: i32) -> (i32, i32) {
    %c0_i32 = arith.constant 0 : i32
    %c0_i32_0 = arith.constant 0 : i32
    %c0_i32_1 = arith.constant 0 : i32
    return %c0_i32, %c0_i32_0 : i32, i32
  }
  func.func @transform_5(%arg0: i32) -> (i32, i32) {
    %c0_i32 = arith.constant 0 : i32
    %c0_i32_0 = arith.constant 0 : i32
    return %arg0, %c0_i32 : i32, i32
  }
  func.func @transform_6(%arg0: i32) -> (i32, i32) {
    %c0_i32 = arith.constant 0 : i32
    %0 = arith.subi %c0_i32, %arg0 : i32
    %c0_i32_0 = arith.constant 0 : i32
    %c0_i32_1 = arith.constant 0 : i32
    return %0, %c0_i32_0 : i32, i32
  }
}

module attributes {stable_mosaic.version = 11 : i64} {
  func.func @_head_kernel(%arg0: i32, %arg1: memref<64x128xbf16, #tpu.memory_space<vmem>>, %arg2: memref<64x128xbf16, #tpu.memory_space<vmem>>, %arg3: memref<128x128xbf16, #tpu.memory_space<vmem>>, %arg4: memref<128x128xbf16, #tpu.memory_space<vmem>>, %arg5: memref<1x128xf32, #tpu.memory_space<vmem>>, %arg6: memref<64x128xf32, #tpu.memory_space<vmem>>) attributes {dimension_semantics = [#tpu.dimension_semantics<parallel>], iteration_bounds = array<i64: 1>, scalar_prefetch = 0 : i64, scratch_operands = 0 : i64, tpu.core_type = #tpu.core_type<tc>, window_params = [{transform_indices = @transform_0, window_bounds = array<i64: 64, 128>}, {transform_indices = @transform_1, window_bounds = array<i64: 64, 128>}, {pipeline_mode = #tpu.pipeline_mode<synchronous>, transform_indices = @transform_2, window_bounds = array<i64: 128, 128>}, {pipeline_mode = #tpu.pipeline_mode<synchronous>, transform_indices = @transform_3, window_bounds = array<i64: 128, 128>}, {pipeline_mode = #tpu.pipeline_mode<synchronous>, transform_indices = @transform_4, window_bounds = array<i64: 1, 128>}, {transform_indices = @transform_5, window_bounds = array<i64: 64, 128>}]} {
    %c0 = arith.constant 0 : index
    %c0_0 = arith.constant 0 : index
    %0 = vector.load %arg1[%c0, %c0_0] : memref<64x128xbf16, #tpu.memory_space<vmem>>, vector<64x128xbf16>
    %c0_1 = arith.constant 0 : index
    %c0_2 = arith.constant 0 : index
    %1 = vector.load %arg2[%c0_1, %c0_2] : memref<64x128xbf16, #tpu.memory_space<vmem>>, vector<64x128xbf16>
    %c0_3 = arith.constant 0 : index
    %c0_4 = arith.constant 0 : index
    %2 = vector.load %arg3[%c0_3, %c0_4] : memref<128x128xbf16, #tpu.memory_space<vmem>>, vector<128x128xbf16>
    %cst = arith.constant dense<0.000000e+00> : vector<64x128xf32>
    %3 = tpu.matmul %0, %2, %cst {dimension_numbers = #tpu.dot_dimension_numbers<[1], [0], [0], [1], [0, 0, 1, 1], [], []>} : vector<64x128xbf16>, vector<128x128xbf16>, vector<64x128xf32> -> vector<64x128xf32>
    %c0_5 = arith.constant 0 : index
    %c0_6 = arith.constant 0 : index
    %4 = vector.load %arg4[%c0_5, %c0_6] : memref<128x128xbf16, #tpu.memory_space<vmem>>, vector<128x128xbf16>
    %cst_7 = arith.constant dense<0.000000e+00> : vector<64x128xf32>
    %5 = tpu.matmul %1, %4, %cst_7 {dimension_numbers = #tpu.dot_dimension_numbers<[1], [0], [0], [1], [0, 0, 1, 1], [], []>} : vector<64x128xbf16>, vector<128x128xbf16>, vector<64x128xf32> -> vector<64x128xf32>
    %6 = arith.addf %3, %5 : vector<64x128xf32>
    %c0_8 = arith.constant 0 : index
    %c0_9 = arith.constant 0 : index
    %7 = vector.load %arg5[%c0_8, %c0_9] : memref<1x128xf32, #tpu.memory_space<vmem>>, vector<1x128xf32>
    %8 = vector.broadcast %7 : vector<1x128xf32> to vector<64x128xf32>
    %9 = arith.addf %6, %8 : vector<64x128xf32>
    %c0_10 = arith.constant 0 : index
    %c0_11 = arith.constant 0 : index
    %10 = vector.load %arg6[%c0_10, %c0_11] : memref<64x128xf32, #tpu.memory_space<vmem>>, vector<64x128xf32>
    tpu.vector_store %arg6[%c0_10, %c0_11], %9 {strides = array<i32>} : memref<64x128xf32, #tpu.memory_space<vmem>>, vector<64x128xf32>,
    return
  }
  func.func @transform_0(%arg0: i32) -> (i32, i32) {
    %c0_i32 = arith.constant 0 : i32
    %c0_i32_0 = arith.constant 0 : i32
    return %arg0, %c0_i32 : i32, i32
  }
  func.func @transform_1(%arg0: i32) -> (i32, i32) {
    %c0_i32 = arith.constant 0 : i32
    %c0_i32_0 = arith.constant 0 : i32
    return %arg0, %c0_i32 : i32, i32
  }
  func.func @transform_2(%arg0: i32) -> (i32, i32) {
    %c0_i32 = arith.constant 0 : i32
    %c0_i32_0 = arith.constant 0 : i32
    %c0_i32_1 = arith.constant 0 : i32
    return %c0_i32, %c0_i32_0 : i32, i32
  }
  func.func @transform_3(%arg0: i32) -> (i32, i32) {
    %c0_i32 = arith.constant 0 : i32
    %c0_i32_0 = arith.constant 0 : i32
    %c0_i32_1 = arith.constant 0 : i32
    return %c0_i32, %c0_i32_0 : i32, i32
  }
  func.func @transform_4(%arg0: i32) -> (i32, i32) {
    %c0_i32 = arith.constant 0 : i32
    %c0_i32_0 = arith.constant 0 : i32
    %c0_i32_1 = arith.constant 0 : i32
    return %c0_i32, %c0_i32_0 : i32, i32
  }
  func.func @transform_5(%arg0: i32) -> (i32, i32) {
    %c0_i32 = arith.constant 0 : i32
    %c0_i32_0 = arith.constant 0 : i32
    return %arg0, %c0_i32 : i32, i32
  }
}

</mosaic_0001>

<llo_original>
// kernel: ctctop_r_forward.5
$region0: #{ctctop_r_forward.5}
  #allocation0 [shape = 'u32[]', space=smem, size = 0x4, offset = 0x4, fixed_abs, tag = 'smem constant byte address 0x4 - core index']
  #allocation1 [shape = 'u32[144,128]{1,0:T(1,128)}', space=vmem, size = 0x12000, scoped, tag = 'internal scratch']
  %s0 = inlined_call_operand.vmem [shape: f32[64,16], index: 0, kind: input, shape index: {}]
  %s1 = inlined_call_operand.vmem [shape: bf16[16,384], index: 1, kind: input, shape index: {}]
  %s2 = inlined_call_operand.vmem [shape: bf16[16,384], index: 2, kind: input, shape index: {}]
  %s3 = inlined_call_operand.vmem [shape: f32[1,384], index: 3, kind: input, shape index: {}]
  %s4 = inlined_call_operand.vmem [shape: f32[1,384], index: 4, kind: input, shape index: {}]
  %s5 = inlined_call_operand.vmem [shape: bf16[64,384], index: 5, kind: output, shape index: {0}]
  %s6 = inlined_call_operand.vmem [shape: bf16[64,384], index: 6, kind: output, shape index: {1}]
  %7 = xla_tuple %s5, %s6
  %s8 = sld [smem:[#allocation0]]
  $region38: #{ctctop_r_forward.5} parent=0
    _
  %s10 = ssub.s32 1, %s8
  %s11 = scalar_select 0, %s10, %s8
  // Predicated region
  $region2: #{ctctop_r_forward.5} parent=0 // pred_check
    _
  $region3: #{ctctop_r_forward.5} parent=0 // pred_check_branch
    %13 = sbr.rel (0) target = $region5
  $region4: #{ctctop_r_forward.5} parent=0 // pred_region
    _
  $region5: #{ctctop_r_forward.5} parent=0 // pred_fallthru
    _
  // Predicated region
  $region6: #{ctctop_r_forward.5} parent=0 // pred_check
    _
  $region7: #{ctctop_r_forward.5} parent=0 // pred_check_branch
    %15 = sbr.rel (0) target = $region9
  $region8: #{ctctop_r_forward.5} parent=0 // pred_region
    _
  $region9: #{ctctop_r_forward.5} parent=0 // pred_fallthru
    _
  // Predicated region
  $region10: #{ctctop_r_forward.5} parent=0 // pred_check
    _
  $region11: #{ctctop_r_forward.5} parent=0 // pred_check_branch
    %17 = sbr.rel (0) target = $region13
  $region12: #{ctctop_r_forward.5} parent=0 // pred_region
    _
  $region13: #{ctctop_r_forward.5} parent=0 // pred_fallthru
    _
  // Predicated region
  $region14: #{ctctop_r_forward.5} parent=0 // pred_check
    _
  $region15: #{ctctop_r_forward.5} parent=0 // pred_check_branch
    %19 = sbr.rel (0) target = $region17
  $region16: #{ctctop_r_forward.5} parent=0 // pred_region
    _
  $region17: #{ctctop_r_forward.5} parent=0 // pred_fallthru
    _
  // Predicated region
  $region18: #{ctctop_r_forward.5} parent=0 // pred_check
    _
  $region19: #{ctctop_r_forward.5} parent=0 // pred_check_branch
    %21 = sbr.rel (0) target = $region21
  $region20: #{ctctop_r_forward.5} parent=0 // pred_region
    _
  $region21: #{ctctop_r_forward.5} parent=0 // pred_fallthru
    _
  %v23 = vld [vmem:[%s0] sm:$0xff]
  %v24 = vld [vmem:[%s0 + $0x8] sm:$0xff]
  %v25 = vld [vmem:[%s0 + $0x10] sm:$0xff]
  %v26 = vld [vmem:[%s0 + $0x18] sm:$0xff]
  %v27 = vld [vmem:[%s0 + $0x20] sm:$0xff]
  %v28 = vld [vmem:[%s0 + $0x28] sm:$0xff]
  %v29 = vld [vmem:[%s0 + $0x30] sm:$0xff]
  %v30 = vld [vmem:[%s0 + $0x38] sm:$0xff]
  %v31 = vpack.c.bf16 %v24, %v23
  %v32 = vpack.c.bf16 %v26, %v25
  %v33 = vpack.c.bf16 %v28, %v27
  %v34 = vpack.c.bf16 %v30, %v29
  %v35 = vld [vmem:[%s1] sm:$0xff]
  %v36 = vld [vmem:[%s1 + $0x8] sm:$0xf]
  %v37 = vld [vmem:[%s1 + $0xc] sm:$0xff]
  %v38 = vld [vmem:[%s1 + $0x14] sm:$0xf]
  %v39 = vld [vmem:[%s3] sm:$0x7]
  %v41 = vlaneseq
  %v42 = vshrl.u32 %v41, 7
  %v43 = vsub.s32 0, %v42
  %v44 = vrot.slane %v39, %v43
  %v45 = vlaneseq
  %v46 = vshrl.u32 %v45, 7
  %v47 = vsub.s32 1, %v46
  %v48 = vrot.slane %v39, %v47
  %v49 = vlaneseq
  %v50 = vshrl.u32 %v49, 7
  %v51 = vsub.s32 2, %v50
  %v52 = vrot.slane %v39, %v51
  %v60 = vunpack.c.l.b16 %v35
  %v61 = vunpack.c.h.b16 %v35
  %v62 = vunpack.c.l.b16 %v36
  %v63 = vunpack.c.l.b16 %v37
  %v64 = vunpack.c.h.b16 %v37
  %v65 = vunpack.c.l.b16 %v38
  %v66 = vpack.c.b16 %v63, %v60
  %v67 = vpack.c.b16 %v64, %v61
  %v68 = vpack.c.b16 %v65, %v62
  %vm72 = vcmask 130048
  %v74 = vsel %vm72, %v31, 0
  %v77 = vsel %vm72, %v32, 0
  %v80 = vsel %vm72, %v33, 0
  %v83 = vsel %vm72, %v34, 0
  %85 = vmatprep.subr.bf16.mxu0 0
  %86 = vmatpush1.bf16.msra.mxu0 0
  %87 = vmatprep.subr.bf16.mxu0 0
  %88 = vmatpush1.bf16.msra.mxu0 0
  %89 = vmatprep.subr.bf16.mxu0 0
  %90 = vmatpush1.bf16.msra.mxu0 0
  %91 = vmatprep.subr.bf16.mxu0 0
  %92 = vmatpush1.bf16.msra.mxu0 0
  %93 = vmatprep.subr.bf16.mxu0 0
  %94 = vmatpush1.bf16.msra.mxu0 0
  %95 = vmatprep.subr.bf16.mxu0 0
  %96 = vmatpush1.bf16.msra.mxu0 0
  %97 = vmatprep.subr.bf16.mxu0 0
  %98 = vmatpush1.bf16.msra.mxu0 0
  %99 = vmatprep.subr.bf16.mxu0 %v67
  %100 = vmatpush1.bf16.msra.mxu0 %v66
  %101 = vmatprep.subr.bf16.mxu0 0
  %102 = vmatpush2.bf16.msra.mxu0 0
  %103 = vmatprep.subr.bf16.mxu0 0
  %104 = vmatpush2.bf16.msra.mxu0 0
  %105 = vmatprep.subr.bf16.mxu0 0
  %106 = vmatpush2.bf16.msra.mxu0 0
  %107 = vmatprep.subr.bf16.mxu0 0
  %108 = vmatpush2.bf16.msra.mxu0 0
  %109 = vmatprep.subr.bf16.mxu0 0
  %110 = vmatpush2.bf16.msra.mxu0 0
  %111 = vmatprep.subr.bf16.mxu0 0
  %112 = vmatpush2.bf16.msra.mxu0 0
  %113 = vmatprep.subr.bf16.mxu0 0
  %114 = vmatpush2.bf16.msra.mxu0 0
  %115 = vmatprep.subr.bf16.mxu0 0
  %116 = vmatpush2.bf16.msra.mxu0 0
  %117 = vmatprep.mubr.bf16.mxu0 0
  %118 = vmatmul.mubr.bf16.gmra.mxu0 %v74
  %v119 = vpop.f32.mrf.mxu0
  %v120 = vadd.f32 %v44, %v119
  %v121 = vpop.f32.mrf.mxu0
  %v122 = vadd.f32 %v48, %v121
  %v123 = vpop.f32.mrf.mxu0
  %v124 = vadd.f32 %v44, %v123
  %v125 = vpop.f32.mrf.mxu0
  %v126 = vadd.f32 %v48, %v125
  %127 = vmatprep.mubr.bf16.mxu0 0
  %128 = vmatmul.mubr.bf16.gmra.mxu0 %v77
  %v129 = vpop.f32.mrf.mxu0
  %v130 = vadd.f32 %v44, %v129
  %v131 = vpop.f32.mrf.mxu0
  %v132 = vadd.f32 %v48, %v131
  %v133 = vpop.f32.mrf.mxu0
  %v134 = vadd.f32 %v44, %v133
  %v135 = vpop.f32.mrf.mxu0
  %v136 = vadd.f32 %v48, %v135
  %137 = vmatprep.mubr.bf16.mxu0 0
  %138 = vmatmul.mubr.bf16.gmra.mxu0 %v80
  %v139 = vpop.f32.mrf.mxu0
  %v140 = vadd.f32 %v44, %v139
  %v141 = vpop.f32.mrf.mxu0
  %v142 = vadd.f32 %v48, %v141
  %v143 = vpop.f32.mrf.mxu0
  %v144 = vadd.f32 %v44, %v143
  %v145 = vpop.f32.mrf.mxu0
  %v146 = vadd.f32 %v48, %v145
  %147 = vmatprep.mubr.bf16.mxu0 0
  %148 = vmatmul.mubr.bf16.gmra.mxu0 %v83
  %v149 = vpop.f32.mrf.mxu0
  %v150 = vadd.f32 %v44, %v149
  %v151 = vpop.f32.mrf.mxu0
  %v152 = vadd.f32 %v48, %v151
  %v153 = vpop.f32.mrf.mxu0
  %v154 = vadd.f32 %v44, %v153
  %v155 = vpop.f32.mrf.mxu0
  %v156 = vadd.f32 %v48, %v155
  %157 = vdwg.mxu0
  %158 = vmatprep.subr.bf16.mxu0 0
  %159 = vmatpush1.bf16.msra.mxu0 0
  %160 = vmatprep.subr.bf16.mxu0 0
  %161 = vmatpush1.bf16.msra.mxu0 0
  %162 = vmatprep.subr.bf16.mxu0 0
  %163 = vmatpush1.bf16.msra.mxu0 0
  %164 = vmatprep.subr.bf16.mxu0 0
  %165 = vmatpush1.bf16.msra.mxu0 0
  %166 = vmatprep.subr.bf16.mxu0 0
  %167 = vmatpush1.bf16.msra.mxu0 0
  %168 = vmatprep.subr.bf16.mxu0 0
  %169 = vmatpush1.bf16.msra.mxu0 0
  %170 = vmatprep.subr.bf16.mxu0 0
  %171 = vmatpush1.bf16.msra.mxu0 0
  %172 = vmatprep.subr.bf16.mxu0 0
  %173 = vmatpush1.bf16.msra.mxu0 %v68
  %174 = vmatprep.subr.bf16.mxu0 0
  %175 = vmatpush2.bf16.msra.mxu0 0
  %176 = vmatprep.subr.bf16.mxu0 0
  %177 = vmatpush2.bf16.msra.mxu0 0
  %178 = vmatprep.subr.bf16.mxu0 0
  %179 = vmatpush2.bf16.msra.mxu0 0
  %180 = vmatprep.subr.bf16.mxu0 0
  %181 = vmatpush2.bf16.msra.mxu0 0
  %182 = vmatprep.subr.bf16.mxu0 0
  %183 = vmatpush2.bf16.msra.mxu0 0
  %184 = vmatprep.subr.bf16.mxu0 0
  %185 = vmatpush2.bf16.msra.mxu0 0
  %186 = vmatprep.subr.bf16.mxu0 0
  %187 = vmatpush2.bf16.msra.mxu0 0
  %188 = vmatprep.subr.bf16.mxu0 0
  %189 = vmatpush2.bf16.msra.mxu0 0
  %190 = vmatprep.mubr.bf16.mxu0 0
  %191 = vmatmul.mubr.bf16.gmra.mxu0 %v74
  %v192 = vpop.f32.mrf.mxu0
  %v193 = vadd.f32 %v52, %v192
  %v194 = vpop.f32.mrf.mxu0
  %v195 = vpop.f32.mrf.mxu0
  %v196 = vadd.f32 %v52, %v195
  %v197 = vpop.f32.mrf.mxu0
  %198 = vmatprep.mubr.bf16.mxu0 0
  %199 = vmatmul.mubr.bf16.gmra.mxu0 %v77
  %v200 = vpop.f32.mrf.mxu0
  %v201 = vadd.f32 %v52, %v200
  %v202 = vpop.f32.mrf.mxu0
  %v203 = vpop.f32.mrf.mxu0
  %v204 = vadd.f32 %v52, %v203
  %v205 = vpop.f32.mrf.mxu0
  %206 = vmatprep.mubr.bf16.mxu0 0
  %207 = vmatmul.mubr.bf16.gmra.mxu0 %v80
  %v208 = vpop.f32.mrf.mxu0
  %v209 = vadd.f32 %v52, %v208
  %v210 = vpop.f32.mrf.mxu0
  %v211 = vpop.f32.mrf.mxu0
  %v212 = vadd.f32 %v52, %v211
  %v213 = vpop.f32.mrf.mxu0
  %214 = vmatprep.mubr.bf16.mxu0 0
  %215 = vmatmul.mubr.bf16.gmra.mxu0 %v83
  %v216 = vpop.f32.mrf.mxu0
  %v217 = vadd.f32 %v52, %v216
  %v218 = vpop.f32.mrf.mxu0
  %v219 = vpop.f32.mrf.mxu0
  %v220 = vadd.f32 %v52, %v219
  %v221 = vpop.f32.mrf.mxu0
  %222 = vdwg.mxu0
  %v223 = vld [vmem:[%s2] sm:$0xff]
  %v224 = vld [vmem:[%s2 + $0x8] sm:$0xf]
  %v225 = vld [vmem:[%s2 + $0xc] sm:$0xff]
  %v226 = vld [vmem:[%s2 + $0x14] sm:$0xf]
  %v227 = vld [vmem:[%s4] sm:$0x7]
  %v229 = vlaneseq
  %v230 = vshrl.u32 %v229, 7
  %v231 = vsub.s32 0, %v230
  %v232 = vrot.slane %v227, %v231
  %v233 = vlaneseq
  %v234 = vshrl.u32 %v233, 7
  %v235 = vsub.s32 1, %v234
  %v236 = vrot.slane %v227, %v235
  %v237 = vlaneseq
  %v238 = vshrl.u32 %v237, 7
  %v239 = vsub.s32 2, %v238
  %v240 = vrot.slane %v227, %v239
  %v248 = vunpack.c.l.b16 %v223
  %v249 = vunpack.c.h.b16 %v223
  %v250 = vunpack.c.l.b16 %v224
  %v251 = vunpack.c.l.b16 %v225
  %v252 = vunpack.c.h.b16 %v225
  %v253 = vunpack.c.l.b16 %v226
  %v254 = vpack.c.b16 %v251, %v248
  %v255 = vpack.c.b16 %v252, %v249
  %v256 = vpack.c.b16 %v253, %v250
  %260 = vmatprep.subr.bf16.mxu0 0
  %261 = vmatpush1.bf16.msra.mxu0 0
  %262 = vmatprep.subr.bf16.mxu0 0
  %263 = vmatpush1.bf16.msra.mxu0 0
  %264 = vmatprep.subr.bf16.mxu0 0
  %265 = vmatpush1.bf16.msra.mxu0 0
  %266 = vmatprep.subr.bf16.mxu0 0
  %267 = vmatpush1.bf16.msra.mxu0 0
  %268 = vmatprep.subr.bf16.mxu0 0
  %269 = vmatpush1.bf16.msra.mxu0 0
  %270 = vmatprep.subr.bf16.mxu0 0
  %271 = vmatpush1.bf16.msra.mxu0 0
  %272 = vmatprep.subr.bf16.mxu0 0
  %273 = vmatpush1.bf16.msra.mxu0 0
  %274 = vmatprep.subr.bf16.mxu0 %v255
  %275 = vmatpush1.bf16.msra.mxu0 %v254
  %276 = vmatprep.subr.bf16.mxu0 0
  %277 = vmatpush2.bf16.msra.mxu0 0
  %278 = vmatprep.subr.bf16.mxu0 0
  %279 = vmatpush2.bf16.msra.mxu0 0
  %280 = vmatprep.subr.bf16.mxu0 0
  %281 = vmatpush2.bf16.msra.mxu0 0
  %282 = vmatprep.subr.bf16.mxu0 0
  %283 = vmatpush2.bf16.msra.mxu0 0
  %284 = vmatprep.subr.bf16.mxu0 0
  %285 = vmatpush2.bf16.msra.mxu0 0
  %286 = vmatprep.subr.bf16.mxu0 0
  %287 = vmatpush2.bf16.msra.mxu0 0
  %288 = vmatprep.subr.bf16.mxu0 0
  %289 = vmatpush2.bf16.msra.mxu0 0
  %290 = vmatprep.subr.bf16.mxu0 0
  %291 = vmatpush2.bf16.msra.mxu0 0
  %292 = vmatprep.mubr.bf16.mxu0 0
  %293 = vmatmul.mubr.bf16.gmra.mxu0 %v74
  %v294 = vpop.f32.mrf.mxu0
  %v295 = vadd.f32 %v232, %v294
  %v296 = vpop.f32.mrf.mxu0
  %v297 = vadd.f32 %v236, %v296
  %v298 = vpop.f32.mrf.mxu0
  %v299 = vadd.f32 %v232, %v298
  %v300 = vpop.f32.mrf.mxu0
  %v301 = vadd.f32 %v236, %v300
  %302 = vmatprep.mubr.bf16.mxu0 0
  %303 = vmatmul.mubr.bf16.gmra.mxu0 %v77
  %v304 = vpop.f32.mrf.mxu0
  %v305 = vadd.f32 %v232, %v304
  %v306 = vpop.f32.mrf.mxu0
  %v307 = vadd.f32 %v236, %v306
  %v308 = vpop.f32.mrf.mxu0
  %v309 = vadd.f32 %v232, %v308
  %v310 = vpop.f32.mrf.mxu0
  %v311 = vadd.f32 %v236, %v310
  %312 = vmatprep.mubr.bf16.mxu0 0
  %313 = vmatmul.mubr.bf16.gmra.mxu0 %v80
  %v314 = vpop.f32.mrf.mxu0
  %v315 = vadd.f32 %v232, %v314
  %v316 = vpop.f32.mrf.mxu0
  %v317 = vadd.f32 %v236, %v316
  %v318 = vpop.f32.mrf.mxu0
  %v319 = vadd.f32 %v232, %v318
  %v320 = vpop.f32.mrf.mxu0
  %v321 = vadd.f32 %v236, %v320
  %322 = vmatprep.mubr.bf16.mxu0 0
  %323 = vmatmul.mubr.bf16.gmra.mxu0 %v83
  %v324 = vpop.f32.mrf.mxu0
  %v325 = vadd.f32 %v232, %v324
  %v326 = vpop.f32.mrf.mxu0
  %v327 = vadd.f32 %v236, %v326
  %v328 = vpop.f32.mrf.mxu0
  %v329 = vadd.f32 %v232, %v328
  %v330 = vpop.f32.mrf.mxu0
  %v331 = vadd.f32 %v236, %v330
  %332 = vdwg.mxu0
  %333 = vmatprep.subr.bf16.mxu0 0
  %334 = vmatpush1.bf16.msra.mxu0 0
  %335 = vmatprep.subr.bf16.mxu0 0
  %336 = vmatpush1.bf16.msra.mxu0 0
  %337 = vmatprep.subr.bf16.mxu0 0
  %338 = vmatpush1.bf16.msra.mxu0 0
  %339 = vmatprep.subr.bf16.mxu0 0
  %340 = vmatpush1.bf16.msra.mxu0 0
  %341 = vmatprep.subr.bf16.mxu0 0
  %342 = vmatpush1.bf16.msra.mxu0 0
  %343 = vmatprep.subr.bf16.mxu0 0
  %344 = vmatpush1.bf16.msra.mxu0 0
  %345 = vmatprep.subr.bf16.mxu0 0
  %346 = vmatpush1.bf16.msra.mxu0 0
  %347 = vmatprep.subr.bf16.mxu0 0
  %348 = vmatpush1.bf16.msra.mxu0 %v256
  %349 = vmatprep.subr.bf16.mxu0 0
  %350 = vmatpush2.bf16.msra.mxu0 0
  %351 = vmatprep.subr.bf16.mxu0 0
  %352 = vmatpush2.bf16.msra.mxu0 0
  %353 = vmatprep.subr.bf16.mxu0 0
  %354 = vmatpush2.bf16.msra.mxu0 0
  %355 = vmatprep.subr.bf16.mxu0 0
  %356 = vmatpush2.bf16.msra.mxu0 0
  %357 = vmatprep.subr.bf16.mxu0 0
  %358 = vmatpush2.bf16.msra.mxu0 0
  %359 = vmatprep.subr.bf16.mxu0 0
  %360 = vmatpush2.bf16.msra.mxu0 0
  %361 = vmatprep.subr.bf16.mxu0 0
  %362 = vmatpush2.bf16.msra.mxu0 0
  %363 = vmatprep.subr.bf16.mxu0 0
  %364 = vmatpush2.bf16.msra.mxu0 0
  %365 = vmatprep.mubr.bf16.mxu0 0
  %366 = vmatmul.mubr.bf16.gmra.mxu0 %v74
  %v367 = vpop.f32.mrf.mxu0
  %v368 = vadd.f32 %v240, %v367
  %v369 = vpop.f32.mrf.mxu0
  %v370 = vpop.f32.mrf.mxu0
  %v371 = vadd.f32 %v240, %v370
  %v372 = vpop.f32.mrf.mxu0
  %373 = vmatprep.mubr.bf16.mxu0 0
  %374 = vmatmul.mubr.bf16.gmra.mxu0 %v77
  %v375 = vpop.f32.mrf.mxu0
  %v376 = vadd.f32 %v240, %v375
  %v377 = vpop.f32.mrf.mxu0
  %v378 = vpop.f32.mrf.mxu0
  %v379 = vadd.f32 %v240, %v378
  %v380 = vpop.f32.mrf.mxu0
  %381 = vmatprep.mubr.bf16.mxu0 0
  %382 = vmatmul.mubr.bf16.gmra.mxu0 %v80
  %v383 = vpop.f32.mrf.mxu0
  %v384 = vadd.f32 %v240, %v383
  %v385 = vpop.f32.mrf.mxu0
  %v386 = vpop.f32.mrf.mxu0
  %v387 = vadd.f32 %v240, %v386
  %v388 = vpop.f32.mrf.mxu0
  %389 = vmatprep.mubr.bf16.mxu0 0
  %390 = vmatmul.mubr.bf16.gmra.mxu0 %v83
  %v391 = vpop.f32.mrf.mxu0
  %v392 = vadd.f32 %v240, %v391
  %v393 = vpop.f32.mrf.mxu0
  %v394 = vpop.f32.mrf.mxu0
  %v395 = vadd.f32 %v240, %v394
  %v396 = vpop.f32.mrf.mxu0
  %397 = vdwg.mxu0
  %v398 = vpack.c.bf16 %v124, %v120
  %v399 = vpack.c.bf16 %v126, %v122
  %v400 = vpack.c.bf16 %v196, %v193
  %v401 = vpack.c.bf16 %v134, %v130
  %v402 = vpack.c.bf16 %v136, %v132
  %v403 = vpack.c.bf16 %v204, %v201
  %v404 = vpack.c.bf16 %v144, %v140
  %v405 = vpack.c.bf16 %v146, %v142
  %v406 = vpack.c.bf16 %v212, %v209
  %v407 = vpack.c.bf16 %v154, %v150
  %v408 = vpack.c.bf16 %v156, %v152
  %v409 = vpack.c.bf16 %v220, %v217
  %v422 = vunpack.c.l.b16 %v398
  %v423 = vunpack.c.l.b16 %v399
  %v424 = vunpack.c.l.b16 %v400
  %v425 = vunpack.c.h.b16 %v398
  %v426 = vunpack.c.h.b16 %v399
  %v427 = vunpack.c.h.b16 %v400
  %v428 = vunpack.c.l.b16 %v401
  %v429 = vunpack.c.l.b16 %v402
  %v430 = vunpack.c.l.b16 %v403
  %v431 = vunpack.c.h.b16 %v401
  %v432 = vunpack.c.h.b16 %v402
  %v433 = vunpack.c.h.b16 %v403
  %v434 = vunpack.c.l.b16 %v404
  %v435 = vunpack.c.l.b16 %v405
  %v436 = vunpack.c.l.b16 %v406
  %v437 = vunpack.c.h.b16 %v404
  %v438 = vunpack.c.h.b16 %v405
  %v439 = vunpack.c.h.b16 %v406
  %v440 = vunpack.c.l.b16 %v407
  %v441 = vunpack.c.l.b16 %v408
  %v442 = vunpack.c.l.b16 %v409
  %v443 = vunpack.c.h.b16 %v407
  %v444 = vunpack.c.h.b16 %v408
  %v445 = vunpack.c.h.b16 %v409
  %v446 = vpack.c.b16 %v423, %v422
  %v447 = vpack.c.b16 %v424, %v424
  %v448 = vpack.c.b16 %v426, %v425
  %v449 = vpack.c.b16 %v427, %v427
  %v450 = vpack.c.b16 %v429, %v428
  %v451 = vpack.c.b16 %v430, %v430
  %v452 = vpack.c.b16 %v432, %v431
  %v453 = vpack.c.b16 %v433, %v433
  %v454 = vpack.c.b16 %v435, %v434
  %v455 = vpack.c.b16 %v436, %v436
  %v456 = vpack.c.b16 %v438, %v437
  %v457 = vpack.c.b16 %v439, %v439
  %v458 = vpack.c.b16 %v441, %v440
  %v459 = vpack.c.b16 %v442, %v442
  %v460 = vpack.c.b16 %v444, %v443
  %v461 = vpack.c.b16 %v445, %v445
  %478 = vst [vmem:[%s5] sm:$0xff] %v446
  %479 = vst [vmem:[%s5 + $0x8] sm:$0xf] %v447
  %480 = vst [vmem:[%s5 + $0xc] sm:$0xff] %v448
  %481 = vst [vmem:[%s5 + $0x14] sm:$0xf] %v449
  %482 = vst [vmem:[%s5 + $0x18] sm:$0xff] %v450
  %483 = vst [vmem:[%s5 + $0x20] sm:$0xf] %v451
  %484 = vst [vmem:[%s5 + $0x24] sm:$0xff] %v452
  %485 = vst [vmem:[%s5 + $0x2c] sm:$0xf] %v453
  %486 = vst [vmem:[%s5 + $0x30] sm:$0xff] %v454
  %487 = vst [vmem:[%s5 + $0x38] sm:$0xf] %v455
  %488 = vst [vmem:[%s5 + $0x3c] sm:$0xff] %v456
  %489 = vst [vmem:[%s5 + $0x44] sm:$0xf] %v457
  %490 = vst [vmem:[%s5 + $0x48] sm:$0xff] %v458
  %491 = vst [vmem:[%s5 + $0x50] sm:$0xf] %v459
  %492 = vst [vmem:[%s5 + $0x54] sm:$0xff] %v460
  %493 = vst [vmem:[%s5 + $0x5c] sm:$0xf] %v461
  %v494 = vpack.c.bf16 %v299, %v295
  %v495 = vpack.c.bf16 %v301, %v297
  %v496 = vpack.c.bf16 %v371, %v368
  %v497 = vpack.c.bf16 %v309, %v305
  %v498 = vpack.c.bf16 %v311, %v307
  %v499 = vpack.c.bf16 %v379, %v376
  %v500 = vpack.c.bf16 %v319, %v315
  %v501 = vpack.c.bf16 %v321, %v317
  %v502 = vpack.c.bf16 %v387, %v384
  %v503 = vpack.c.bf16 %v329, %v325
  %v504 = vpack.c.bf16 %v331, %v327
  %v505 = vpack.c.bf16 %v395, %v392
  %v518 = vunpack.c.l.b16 %v494
  %v519 = vunpack.c.l.b16 %v495
  %v520 = vunpack.c.l.b16 %v496
  %v521 = vunpack.c.h.b16 %v494
  %v522 = vunpack.c.h.b16 %v495
  %v523 = vunpack.c.h.b16 %v496
  %v524 = vunpack.c.l.b16 %v497
  %v525 = vunpack.c.l.b16 %v498
  %v526 = vunpack.c.l.b16 %v499
  %v527 = vunpack.c.h.b16 %v497
  %v528 = vunpack.c.h.b16 %v498
  %v529 = vunpack.c.h.b16 %v499
  %v530 = vunpack.c.l.b16 %v500
  %v531 = vunpack.c.l.b16 %v501
  %v532 = vunpack.c.l.b16 %v502
  %v533 = vunpack.c.h.b16 %v500
  %v534 = vunpack.c.h.b16 %v501
  %v535 = vunpack.c.h.b16 %v502
  %v536 = vunpack.c.l.b16 %v503
  %v537 = vunpack.c.l.b16 %v504
  %v538 = vunpack.c.l.b16 %v505
  %v539 = vunpack.c.h.b16 %v503
  %v540 = vunpack.c.h.b16 %v504
  %v541 = vunpack.c.h.b16 %v505
  %v542 = vpack.c.b16 %v519, %v518
  %v543 = vpack.c.b16 %v520, %v520
  %v544 = vpack.c.b16 %v522, %v521
  %v545 = vpack.c.b16 %v523, %v523
  %v546 = vpack.c.b16 %v525, %v524
  %v547 = vpack.c.b16 %v526, %v526
  %v548 = vpack.c.b16 %v528, %v527
  %v549 = vpack.c.b16 %v529, %v529
  %v550 = vpack.c.b16 %v531, %v530
  %v551 = vpack.c.b16 %v532, %v532
  %v552 = vpack.c.b16 %v534, %v533
  %v553 = vpack.c.b16 %v535, %v535
  %v554 = vpack.c.b16 %v537, %v536
  %v555 = vpack.c.b16 %v538, %v538
  %v556 = vpack.c.b16 %v540, %v539
  %v557 = vpack.c.b16 %v541, %v541
  %574 = vst [vmem:[%s6] sm:$0xff] %v542
  %575 = vst [vmem:[%s6 + $0x8] sm:$0xf] %v543
  %576 = vst [vmem:[%s6 + $0xc] sm:$0xff] %v544
  %577 = vst [vmem:[%s6 + $0x14] sm:$0xf] %v545
  %578 = vst [vmem:[%s6 + $0x18] sm:$0xff] %v546
  %579 = vst [vmem:[%s6 + $0x20] sm:$0xf] %v547
  %580 = vst [vmem:[%s6 + $0x24] sm:$0xff] %v548
  %581 = vst [vmem:[%s6 + $0x2c] sm:$0xf] %v549
  %582 = vst [vmem:[%s6 + $0x30] sm:$0xff] %v550
  %583 = vst [vmem:[%s6 + $0x38] sm:$0xf] %v551
  %584 = vst [vmem:[%s6 + $0x3c] sm:$0xff] %v552
  %585 = vst [vmem:[%s6 + $0x44] sm:$0xf] %v553
  %586 = vst [vmem:[%s6 + $0x48] sm:$0xff] %v554
  %587 = vst [vmem:[%s6 + $0x50] sm:$0xf] %v555
  %588 = vst [vmem:[%s6 + $0x54] sm:$0xff] %v556
  %589 = vst [vmem:[%s6 + $0x5c] sm:$0xf] %v557
  // Predicated region
  $region22: #{ctctop_r_forward.5} parent=0 // pred_check
    _
  $region23: #{ctctop_r_forward.5} parent=0 // pred_check_branch
    %591 = sbr.rel (0) target = $region25
  $region24: #{ctctop_r_forward.5} parent=0 // pred_region
    _
  $region25: #{ctctop_r_forward.5} parent=0 // pred_fallthru
    _
  // Predicated region
  $region26: #{ctctop_r_forward.5} parent=0 // pred_check
    _
  $region27: #{ctctop_r_forward.5} parent=0 // pred_check_branch
    %593 = sbr.rel (0) target = $region29
  $region28: #{ctctop_r_forward.5} parent=0 // pred_region
    _
  $region29: #{ctctop_r_forward.5} parent=0 // pred_fallthru
    _
  // Predicated region
  $region30: #{ctctop_r_forward.5} parent=0 // pred_check
    _
  $region31: #{ctctop_r_forward.5} parent=0 // pred_check_branch
    %595 = sbr.rel (0) target = $region33
  $region32: #{ctctop_r_forward.5} parent=0 // pred_region
    _
  $region33: #{ctctop_r_forward.5} parent=0 // pred_fallthru
    _
  // Predicated region
  $region34: #{ctctop_r_forward.5} parent=0 // pred_check
    _
  $region35: #{ctctop_r_forward.5} parent=0 // pred_check_branch
    %597 = sbr.rel (0) target = $region37
  $region36: #{ctctop_r_forward.5} parent=0 // pred_region
    _
  $region37: #{ctctop_r_forward.5} parent=0 // pred_fallthru
    _

// kernel: ctctop_r_forward.9
$region0: #{ctctop_r_forward.9}
  #allocation0 [shape = 'u32[]', space=smem, size = 0x4, offset = 0x4, fixed_abs, tag = 'smem constant byte address 0x4 - core index']
  #allocation1 [shape = 'u32[144,128]{1,0:T(1,128)}', space=vmem, size = 0x12000, scoped, tag = 'internal scratch']
  %s0 = inlined_call_operand.vmem [shape: bf16[64,128], index: 0, kind: input, shape index: {}]
  %s1 = inlined_call_operand.vmem [shape: bf16[64,128], index: 1, kind: input, shape index: {}]
  %s2 = inlined_call_operand.vmem [shape: bf16[128,128], index: 2, kind: input, shape index: {}]
  %s3 = inlined_call_operand.vmem [shape: bf16[128,128], index: 3, kind: input, shape index: {}]
  %s4 = inlined_call_operand.vmem [shape: f32[1,128], index: 4, kind: input, shape index: {}]
  %s5 = inlined_call_operand.vmem [shape: f32[64,128], index: 5, kind: output, shape index: {}]
  %s6 = sld [smem:[#allocation0]]
  $region30: #{ctctop_r_forward.9} parent=0
    _
  %s8 = ssub.s32 1, %s6
  %s9 = scalar_select 0, %s8, %s6
  // Predicated region
  $region2: #{ctctop_r_forward.9} parent=0 // pred_check
    _
  $region3: #{ctctop_r_forward.9} parent=0 // pred_check_branch
    %11 = sbr.rel (0) target = $region5
  $region4: #{ctctop_r_forward.9} parent=0 // pred_region
    _
  $region5: #{ctctop_r_forward.9} parent=0 // pred_fallthru
    _
  // Predicated region
  $region6: #{ctctop_r_forward.9} parent=0 // pred_check
    _
  $region7: #{ctctop_r_forward.9} parent=0 // pred_check_branch
    %13 = sbr.rel (0) target = $region9
  $region8: #{ctctop_r_forward.9} parent=0 // pred_region
    _
  $region9: #{ctctop_r_forward.9} parent=0 // pred_fallthru
    _
  // Predicated region
  $region10: #{ctctop_r_forward.9} parent=0 // pred_check
    _
  $region11: #{ctctop_r_forward.9} parent=0 // pred_check_branch
    %15 = sbr.rel (0) target = $region13
  $region12: #{ctctop_r_forward.9} parent=0 // pred_region
    _
  $region13: #{ctctop_r_forward.9} parent=0 // pred_fallthru
    _
  // Predicated region
  $region14: #{ctctop_r_forward.9} parent=0 // pred_check
    _
  $region15: #{ctctop_r_forward.9} parent=0 // pred_check_branch
    %17 = sbr.rel (0) target = $region17
  $region16: #{ctctop_r_forward.9} parent=0 // pred_region
    _
  $region17: #{ctctop_r_forward.9} parent=0 // pred_fallthru
    _
  // Predicated region
  $region18: #{ctctop_r_forward.9} parent=0 // pred_check
    _
  $region19: #{ctctop_r_forward.9} parent=0 // pred_check_branch
    %19 = sbr.rel (0) target = $region21
  $region20: #{ctctop_r_forward.9} parent=0 // pred_region
    _
  $region21: #{ctctop_r_forward.9} parent=0 // pred_fallthru
    _
  %v21 = vld [vmem:[%s0] sm:$0xf]
  %v22 = vld [vmem:[%s0 + $0x4] sm:$0xf]
  %v23 = vld [vmem:[%s0 + $0x8] sm:$0xf]
  %v24 = vld [vmem:[%s0 + $0xc] sm:$0xf]
  %v25 = vld [vmem:[%s0 + $0x10] sm:$0xf]
  %v26 = vld [vmem:[%s0 + $0x14] sm:$0xf]
  %v27 = vld [vmem:[%s0 + $0x18] sm:$0xf]
  %v28 = vld [vmem:[%s0 + $0x1c] sm:$0xf]
  %v29 = vld [vmem:[%s1] sm:$0xf]
  %v30 = vld [vmem:[%s1 + $0x4] sm:$0xf]
  %v31 = vld [vmem:[%s1 + $0x8] sm:$0xf]
  %v32 = vld [vmem:[%s1 + $0xc] sm:$0xf]
  %v33 = vld [vmem:[%s1 + $0x10] sm:$0xf]
  %v34 = vld [vmem:[%s1 + $0x14] sm:$0xf]
  %v35 = vld [vmem:[%s1 + $0x18] sm:$0xf]
  %v36 = vld [vmem:[%s1 + $0x1c] sm:$0xf]
  %v37 = vld [vmem:[%s2] sm:$0xf]
  %v38 = vld [vmem:[%s2 + $0x4] sm:$0xf]
  %v39 = vld [vmem:[%s2 + $0x8] sm:$0xf]
  %v40 = vld [vmem:[%s2 + $0xc] sm:$0xf]
  %v41 = vld [vmem:[%s2 + $0x10] sm:$0xf]
  %v42 = vld [vmem:[%s2 + $0x14] sm:$0xf]
  %v43 = vld [vmem:[%s2 + $0x18] sm:$0xf]
  %v44 = vld [vmem:[%s2 + $0x1c] sm:$0xf]
  %v45 = vld [vmem:[%s2 + $0x20] sm:$0xf]
  %v46 = vld [vmem:[%s2 + $0x24] sm:$0xf]
  %v47 = vld [vmem:[%s2 + $0x28] sm:$0xf]
  %v48 = vld [vmem:[%s2 + $0x2c] sm:$0xf]
  %v49 = vld [vmem:[%s2 + $0x30] sm:$0xf]
  %v50 = vld [vmem:[%s2 + $0x34] sm:$0xf]
  %v51 = vld [vmem:[%s2 + $0x38] sm:$0xf]
  %v52 = vld [vmem:[%s2 + $0x3c] sm:$0xf]
  %v53 = vld [vmem:[%s3] sm:$0xf]
  %v54 = vld [vmem:[%s3 + $0x4] sm:$0xf]
  %v55 = vld [vmem:[%s3 + $0x8] sm:$0xf]
  %v56 = vld [vmem:[%s3 + $0xc] sm:$0xf]
  %v57 = vld [vmem:[%s3 + $0x10] sm:$0xf]
  %v58 = vld [vmem:[%s3 + $0x14] sm:$0xf]
  %v59 = vld [vmem:[%s3 + $0x18] sm:$0xf]
  %v60 = vld [vmem:[%s3 + $0x1c] sm:$0xf]
  %v61 = vld [vmem:[%s3 + $0x20] sm:$0xf]
  %v62 = vld [vmem:[%s3 + $0x24] sm:$0xf]
  %v63 = vld [vmem:[%s3 + $0x28] sm:$0xf]
  %v64 = vld [vmem:[%s3 + $0x2c] sm:$0xf]
  %v65 = vld [vmem:[%s3 + $0x30] sm:$0xf]
  %v66 = vld [vmem:[%s3 + $0x34] sm:$0xf]
  %v67 = vld [vmem:[%s3 + $0x38] sm:$0xf]
  %v68 = vld [vmem:[%s3 + $0x3c] sm:$0xf]
  %v77 = vunpack.c.l.b16 %v29
  %v78 = vunpack.c.l.b16 %v30
  %v79 = vunpack.c.l.b16 %v31
  %v80 = vunpack.c.l.b16 %v32
  %v81 = vunpack.c.l.b16 %v33
  %v82 = vunpack.c.l.b16 %v34
  %v83 = vunpack.c.l.b16 %v35
  %v84 = vunpack.c.l.b16 %v36
  %v85 = vpack.c.b16 %v78, %v77
  %v86 = vpack.c.b16 %v80, %v79
  %v87 = vpack.c.b16 %v82, %v81
  %v88 = vpack.c.b16 %v84, %v83
  %v109 = vunpack.c.l.b16 %v53
  %v110 = vunpack.c.l.b16 %v54
  %v111 = vunpack.c.l.b16 %v55
  %v112 = vunpack.c.l.b16 %v56
  %v113 = vunpack.c.l.b16 %v57
  %v114 = vunpack.c.l.b16 %v58
  %v115 = vunpack.c.l.b16 %v59
  %v116 = vunpack.c.l.b16 %v60
  %v117 = vunpack.c.l.b16 %v61
  %v118 = vunpack.c.l.b16 %v62
  %v119 = vunpack.c.l.b16 %v63
  %v120 = vunpack.c.l.b16 %v64
  %v121 = vunpack.c.l.b16 %v65
  %v122 = vunpack.c.l.b16 %v66
  %v123 = vunpack.c.l.b16 %v67
  %v124 = vunpack.c.l.b16 %v68
  %v125 = vpack.c.b16 %v110, %v109
  %v126 = vpack.c.b16 %v112, %v111
  %v127 = vpack.c.b16 %v114, %v113
  %v128 = vpack.c.b16 %v116, %v115
  %v129 = vpack.c.b16 %v118, %v117
  %v130 = vpack.c.b16 %v120, %v119
  %v131 = vpack.c.b16 %v122, %v121
  %v132 = vpack.c.b16 %v124, %v123
  %141 = vmatprep.subr.bf16.mxu0 0
  %142 = vmatpush1.bf16.msra.mxu0 %v132
  %143 = vmatprep.subr.bf16.mxu0 0
  %144 = vmatpush1.bf16.msra.mxu0 %v131
  %145 = vmatprep.subr.bf16.mxu0 0
  %146 = vmatpush1.bf16.msra.mxu0 %v130
  %147 = vmatprep.subr.bf16.mxu0 0
  %148 = vmatpush1.bf16.msra.mxu0 %v129
  %149 = vmatprep.subr.bf16.mxu0 0
  %150 = vmatpush1.bf16.msra.mxu0 %v128
  %151 = vmatprep.subr.bf16.mxu0 0
  %152 = vmatpush1.bf16.msra.mxu0 %v127
  %153 = vmatprep.subr.bf16.mxu0 0
  %154 = vmatpush1.bf16.msra.mxu0 %v126
  %155 = vmatprep.subr.bf16.mxu0 0
  %156 = vmatpush1.bf16.msra.mxu0 %v125
  %157 = vmatprep.subr.bf16.mxu0 0
  %158 = vmatpush2.bf16.msra.mxu0 0
  %159 = vmatprep.subr.bf16.mxu0 0
  %160 = vmatpush2.bf16.msra.mxu0 0
  %161 = vmatprep.subr.bf16.mxu0 0
  %162 = vmatpush2.bf16.msra.mxu0 0
  %163 = vmatprep.subr.bf16.mxu0 0
  %164 = vmatpush2.bf16.msra.mxu0 0
  %165 = vmatprep.subr.bf16.mxu0 0
  %166 = vmatpush2.bf16.msra.mxu0 0
  %167 = vmatprep.subr.bf16.mxu0 0
  %168 = vmatpush2.bf16.msra.mxu0 0
  %169 = vmatprep.subr.bf16.mxu0 0
  %170 = vmatpush2.bf16.msra.mxu0 0
  %171 = vmatprep.subr.bf16.mxu0 0
  %172 = vmatpush2.bf16.msra.mxu0 0
  %173 = vmatprep.mubr.bf16.mxu0 0
  %174 = vmatmul.mubr.bf16.gmra.mxu0 %v85
  %v175 = vpop.f32.mrf.mxu0
  %v176 = vadd.f32 0.0, %v175
  %v177 = vpop.f32.mrf.mxu0
  %v178 = vpop.f32.mrf.mxu0
  %v179 = vadd.f32 0.0, %v178
  %v180 = vpop.f32.mrf.mxu0
  %181 = vmatprep.mubr.bf16.mxu0 0
  %182 = vmatmul.mubr.bf16.gmra.mxu0 %v86
  %v183 = vpop.f32.mrf.mxu0
  %v184 = vadd.f32 0.0, %v183
  %v185 = vpop.f32.mrf.mxu0
  %v186 = vpop.f32.mrf.mxu0
  %v187 = vadd.f32 0.0, %v186
  %v188 = vpop.f32.mrf.mxu0
  %189 = vmatprep.mubr.bf16.mxu0 0
  %190 = vmatmul.mubr.bf16.gmra.mxu0 %v87
  %v191 = vpop.f32.mrf.mxu0
  %v192 = vadd.f32 0.0, %v191
  %v193 = vpop.f32.mrf.mxu0
  %v194 = vpop.f32.mrf.mxu0
  %v195 = vadd.f32 0.0, %v194
  %v196 = vpop.f32.mrf.mxu0
  %197 = vmatprep.mubr.bf16.mxu0 0
  %198 = vmatmul.mubr.bf16.gmra.mxu0 %v88
  %v199 = vpop.f32.mrf.mxu0
  %v200 = vadd.f32 0.0, %v199
  %v201 = vpop.f32.mrf.mxu0
  %v202 = vpop.f32.mrf.mxu0
  %v203 = vadd.f32 0.0, %v202
  %v204 = vpop.f32.mrf.mxu0
  %205 = vdwg.mxu0
  %v214 = vunpack.c.l.b16 %v21
  %v215 = vunpack.c.l.b16 %v22
  %v216 = vunpack.c.l.b16 %v23
  %v217 = vunpack.c.l.b16 %v24
  %v218 = vunpack.c.l.b16 %v25
  %v219 = vunpack.c.l.b16 %v26
  %v220 = vunpack.c.l.b16 %v27
  %v221 = vunpack.c.l.b16 %v28
  %v222 = vpack.c.b16 %v215, %v214
  %v223 = vpack.c.b16 %v217, %v216
  %v224 = vpack.c.b16 %v219, %v218
  %v225 = vpack.c.b16 %v221, %v220
  %v246 = vunpack.c.l.b16 %v37
  %v247 = vunpack.c.l.b16 %v38
  %v248 = vunpack.c.l.b16 %v39
  %v249 = vunpack.c.l.b16 %v40
  %v250 = vunpack.c.l.b16 %v41
  %v251 = vunpack.c.l.b16 %v42
  %v252 = vunpack.c.l.b16 %v43
  %v253 = vunpack.c.l.b16 %v44
  %v254 = vunpack.c.l.b16 %v45
  %v255 = vunpack.c.l.b16 %v46
  %v256 = vunpack.c.l.b16 %v47
  %v257 = vunpack.c.l.b16 %v48
  %v258 = vunpack.c.l.b16 %v49
  %v259 = vunpack.c.l.b16 %v50
  %v260 = vunpack.c.l.b16 %v51
  %v261 = vunpack.c.l.b16 %v52
  %v262 = vpack.c.b16 %v247, %v246
  %v263 = vpack.c.b16 %v249, %v248
  %v264 = vpack.c.b16 %v251, %v250
  %v265 = vpack.c.b16 %v253, %v252
  %v266 = vpack.c.b16 %v255, %v254
  %v267 = vpack.c.b16 %v257, %v256
  %v268 = vpack.c.b16 %v259, %v258
  %v269 = vpack.c.b16 %v261, %v260
  %278 = vmatprep.subr.bf16.mxu0 0
  %279 = vmatpush1.bf16.msra.mxu0 %v269
  %280 = vmatprep.subr.bf16.mxu0 0
  %281 = vmatpush1.bf16.msra.mxu0 %v268
  %282 = vmatprep.subr.bf16.mxu0 0
  %283 = vmatpush1.bf16.msra.mxu0 %v267
  %284 = vmatprep.subr.bf16.mxu0 0
  %285 = vmatpush1.bf16.msra.mxu0 %v266
  %286 = vmatprep.subr.bf16.mxu0 0
  %287 = vmatpush1.bf16.msra.mxu0 %v265
  %288 = vmatprep.subr.bf16.mxu0 0
  %289 = vmatpush1.bf16.msra.mxu0 %v264
  %290 = vmatprep.subr.bf16.mxu0 0
  %291 = vmatpush1.bf16.msra.mxu0 %v263
  %292 = vmatprep.subr.bf16.mxu0 0
  %293 = vmatpush1.bf16.msra.mxu0 %v262
  %294 = vmatprep.subr.bf16.mxu0 0
  %295 = vmatpush2.bf16.msra.mxu0 0
  %296 = vmatprep.subr.bf16.mxu0 0
  %297 = vmatpush2.bf16.msra.mxu0 0
  %298 = vmatprep.subr.bf16.mxu0 0
  %299 = vmatpush2.bf16.msra.mxu0 0
  %300 = vmatprep.subr.bf16.mxu0 0
  %301 = vmatpush2.bf16.msra.mxu0 0
  %302 = vmatprep.subr.bf16.mxu0 0
  %303 = vmatpush2.bf16.msra.mxu0 0
  %304 = vmatprep.subr.bf16.mxu0 0
  %305 = vmatpush2.bf16.msra.mxu0 0
  %306 = vmatprep.subr.bf16.mxu0 0
  %307 = vmatpush2.bf16.msra.mxu0 0
  %308 = vmatprep.subr.bf16.mxu0 0
  %309 = vmatpush2.bf16.msra.mxu0 0
  %310 = vmatprep.mubr.bf16.mxu0 0
  %311 = vmatmul.mubr.bf16.gmra.mxu0 %v222
  %v312 = vpop.f32.mrf.mxu0
  %v313 = vadd.f32 %v176, %v312
  %v314 = vpop.f32.mrf.mxu0
  %v315 = vpop.f32.mrf.mxu0
  %v316 = vadd.f32 %v179, %v315
  %v317 = vpop.f32.mrf.mxu0
  %318 = vmatprep.mubr.bf16.mxu0 0
  %319 = vmatmul.mubr.bf16.gmra.mxu0 %v223
  %v320 = vpop.f32.mrf.mxu0
  %v321 = vadd.f32 %v184, %v320
  %v322 = vpop.f32.mrf.mxu0
  %v323 = vpop.f32.mrf.mxu0
  %v324 = vadd.f32 %v187, %v323
  %v325 = vpop.f32.mrf.mxu0
  %326 = vmatprep.mubr.bf16.mxu0 0
  %327 = vmatmul.mubr.bf16.gmra.mxu0 %v224
  %v328 = vpop.f32.mrf.mxu0
  %v329 = vadd.f32 %v192, %v328
  %v330 = vpop.f32.mrf.mxu0
  %v331 = vpop.f32.mrf.mxu0
  %v332 = vadd.f32 %v195, %v331
  %v333 = vpop.f32.mrf.mxu0
  %334 = vmatprep.mubr.bf16.mxu0 0
  %335 = vmatmul.mubr.bf16.gmra.mxu0 %v225
  %v336 = vpop.f32.mrf.mxu0
  %v337 = vadd.f32 %v200, %v336
  %v338 = vpop.f32.mrf.mxu0
  %v339 = vpop.f32.mrf.mxu0
  %v340 = vadd.f32 %v203, %v339
  %v341 = vpop.f32.mrf.mxu0
  %342 = vdwg.mxu0
  %v343 = vld [vmem:[%s4] sm:$0x1]
  %v345 = vlaneseq
  %v346 = vshrl.u32 %v345, 7
  %v347 = vsub.s32 0, %v346
  %v348 = vrot.slane %v343, %v347
  %v350 = vadd.f32 %v313, %v348
  %v351 = vadd.f32 %v316, %v348
  %v352 = vadd.f32 %v321, %v348
  %v353 = vadd.f32 %v324, %v348
  %v354 = vadd.f32 %v329, %v348
  %v355 = vadd.f32 %v332, %v348
  %v356 = vadd.f32 %v337, %v348
  %v357 = vadd.f32 %v340, %v348
  %358 = vst [vmem:[%s5] sm:$0xff] %v350
  %359 = vst [vmem:[%s5 + $0x8] sm:$0xff] %v351
  %360 = vst [vmem:[%s5 + $0x10] sm:$0xff] %v352
  %361 = vst [vmem:[%s5 + $0x18] sm:$0xff] %v353
  %362 = vst [vmem:[%s5 + $0x20] sm:$0xff] %v354
  %363 = vst [vmem:[%s5 + $0x28] sm:$0xff] %v355
  %364 = vst [vmem:[%s5 + $0x30] sm:$0xff] %v356
  %365 = vst [vmem:[%s5 + $0x38] sm:$0xff] %v357
  // Predicated region
  $region22: #{ctctop_r_forward.9} parent=0 // pred_check
    _
  $region23: #{ctctop_r_forward.9} parent=0 // pred_check_branch
    %367 = sbr.rel (0) target = $region25
  $region24: #{ctctop_r_forward.9} parent=0 // pred_region
    _
  $region25: #{ctctop_r_forward.9} parent=0 // pred_fallthru
    _
  // Predicated region
  $region26: #{ctctop_r_forward.9} parent=0 // pred_check
    _
  $region27: #{ctctop_r_forward.9} parent=0 // pred_check_branch
    %369 = sbr.rel (0) target = $region29
  $region28: #{ctctop_r_forward.9} parent=0 // pred_region
    _
  $region29: #{ctctop_r_forward.9} parent=0 // pred_fallthru
    _

// kernel: ctctop_r_forward.7
$region0: #{ctctop_r_forward.7}
  #allocation0 [shape = 'u32[]', space=smem, size = 0x4, offset = 0x4, fixed_abs, tag = 'smem constant byte address 0x4 - core index']
  #allocation1 [shape = 'u32[144,128]{1,0:T(1,128)}', space=vmem, size = 0x12000, scoped, tag = 'internal scratch']
  %s0 = inlined_call_operand.vmem [shape: bf16[64,128], index: 0, kind: input, shape index: {}]
  %s1 = inlined_call_operand.vmem [shape: bf16[64,128], index: 1, kind: input, shape index: {}]
  %s2 = inlined_call_operand.vmem [shape: bf16[128,384], index: 2, kind: input, shape index: {}]
  %s3 = inlined_call_operand.vmem [shape: bf16[128,384], index: 3, kind: input, shape index: {}]
  %s4 = inlined_call_operand.hbm [shape: bf16[128,384], index: 4, kind: input, shape index: {}]
  %s5 = inlined_call_operand.hbm [shape: bf16[128,384], index: 5, kind: input, shape index: {}]
  %s6 = inlined_call_operand.vmem [shape: f32[1,384], index: 6, kind: input, shape index: {}]
  %s7 = inlined_call_operand.vmem [shape: f32[1,384], index: 7, kind: input, shape index: {}]
  %s8 = inlined_call_operand.vmem [shape: bf16[64,384], index: 8, kind: output, shape index: {0}]
  %s9 = inlined_call_operand.vmem [shape: bf16[64,384], index: 9, kind: output, shape index: {1}]
  %10 = xla_tuple %s8, %s9
  %s11 = sld [smem:[#allocation0]]
  $region58: #{ctctop_r_forward.7} parent=0
    _
  %s13 = ssub.s32 1, %s11
  %s14 = scalar_select 0, %s13, %s11
  $region1: #{ctctop_r_forward.7} parent=0
    #allocation2 [shape = 'u8[98304]{0}', space=vmem, size = 0x18000, scoped, tag = 'input window, operand 4, single buffered']
    #allocation3 [shape = 's32[1]{0}', space=sflag, size = 0x4, scoped, tag = 'scoped memory for ctctop_r_forward.7']
    #allocation4 [shape = 'u8[98304]{0}', space=vmem, size = 0x18000, scoped, tag = 'input window, operand 5, single buffered']
    #allocation5 [shape = 's32[1]{0}', space=sflag, size = 0x4, scoped, tag = 'scoped memory for ctctop_r_forward.7']
    %15 = vsyncpa [#allocation3], 0
    %16 = vsyncpa [#allocation5], 0
    // Predicated region
    $region2: #{ctctop_r_forward.7} parent=1 // pred_check
      _
    $region3: #{ctctop_r_forward.7} parent=1 // pred_check_branch
      %18 = sbr.rel (0) target = $region5
    $region4: #{ctctop_r_forward.7} parent=1 // pred_region
      _
    $region5: #{ctctop_r_forward.7} parent=1 // pred_fallthru
      _
    // Predicated region
    $region6: #{ctctop_r_forward.7} parent=1 // pred_check
      _
    $region7: #{ctctop_r_forward.7} parent=1 // pred_check_branch
      %20 = sbr.rel (0) target = $region9
    $region8: #{ctctop_r_forward.7} parent=1 // pred_region
      _
    $region9: #{ctctop_r_forward.7} parent=1 // pred_fallthru
      _
    // Predicated region
    $region10: #{ctctop_r_forward.7} parent=1 // pred_check
      _
    $region11: #{ctctop_r_forward.7} parent=1 // pred_check_branch
      %22 = sbr.rel (0) target = $region13
    $region12: #{ctctop_r_forward.7} parent=1 // pred_region
      _
    $region13: #{ctctop_r_forward.7} parent=1 // pred_fallthru
      _
    // Predicated region
    $region14: #{ctctop_r_forward.7} parent=1 // pred_check
      _
    $region15: #{ctctop_r_forward.7} parent=1 // pred_check_branch
      %24 = sbr.rel (0) target = $region17
    $region16: #{ctctop_r_forward.7} parent=1 // pred_region
      _
    $region17: #{ctctop_r_forward.7} parent=1 // pred_fallthru
      _
    // Predicated region
    $region18: #{ctctop_r_forward.7} parent=1 // pred_check
      _
    $region19: #{ctctop_r_forward.7} parent=1 // pred_check_branch
      %26 = sbr.rel (0) target = $region21
    $region20: #{ctctop_r_forward.7} parent=1 // pred_region
      %s28 = ssub.s32 3072, 3072
      %29 = vsyncadd [#allocation3], %s28
      %s30 = sshll.u32 [#allocation2], 4
      %s31 = int_to_ptr.vmem [resolvable:$true] %s30
      %36 = dma.hbm_to_vmem [thread:$0]  %s4, 3072, %s31, [#allocation3], 192, 192, 12
    $region21: #{ctctop_r_forward.7} parent=1 // pred_fallthru
      _
    // Predicated region
    $region22: #{ctctop_r_forward.7} parent=1 // pred_check
      _
    $region23: #{ctctop_r_forward.7} parent=1 // pred_check_branch
      %38 = sbr.rel (0) target = $region25
    $region24: #{ctctop_r_forward.7} parent=1 // pred_region
      %s40 = ssub.s32 3072, 3072
      %41 = vsyncadd [#allocation5], %s40
      %s42 = sshll.u32 [#allocation4], 4
      %s43 = int_to_ptr.vmem [resolvable:$true] %s42
      %48 = dma.hbm_to_vmem [thread:$0]  %s5, 3072, %s43, [#allocation5], 192, 192, 12
    $region25: #{ctctop_r_forward.7} parent=1 // pred_fallthru
      _
    // Predicated region
    $region26: #{ctctop_r_forward.7} parent=1 // pred_check
      _
    $region27: #{ctctop_r_forward.7} parent=1 // pred_check_branch
      %50 = sbr.rel (0) target = $region29
    $region28: #{ctctop_r_forward.7} parent=1 // pred_region
      _
    $region29: #{ctctop_r_forward.7} parent=1 // pred_fallthru
      _
    // Predicated region
    $region30: #{ctctop_r_forward.7} parent=1 // pred_check
      _
    $region31: #{ctctop_r_forward.7} parent=1 // pred_check_branch
      %52 = sbr.rel (0) target = $region33
    $region32: #{ctctop_r_forward.7} parent=1 // pred_region
      _
    $region33: #{ctctop_r_forward.7} parent=1 // pred_fallthru
      _
    // Predicated region
    $region34: #{ctctop_r_forward.7} parent=1 // pred_check
      _
    $region35: #{ctctop_r_forward.7} parent=1 // pred_check_branch
      %54 = sbr.rel (0) target = $region37
    $region36: #{ctctop_r_forward.7} parent=1 // pred_region
      %55 = dma.done [#allocation3], 3072
    $region37: #{ctctop_r_forward.7} parent=1 // pred_fallthru
      _
    // Predicated region
    $region38: #{ctctop_r_forward.7} parent=1 // pred_check
      _
    $region39: #{ctctop_r_forward.7} parent=1 // pred_check_branch
      %57 = sbr.rel (0) target = $region41
    $region40: #{ctctop_r_forward.7} parent=1 // pred_region
      %58 = dma.done [#allocation5], 3072
    $region41: #{ctctop_r_forward.7} parent=1 // pred_fallthru
      _
    %v60 = vld [vmem:[%s0] sm:$0xf]
    %v61 = vld [vmem:[%s0 + $0x4] sm:$0xf]
    %v62 = vld [vmem:[%s0 + $0x8] sm:$0xf]
    %v63 = vld [vmem:[%s0 + $0xc] sm:$0xf]
    %v64 = vld [vmem:[%s0 + $0x10] sm:$0xf]
    %v65 = vld [vmem:[%s0 + $0x14] sm:$0xf]
    %v66 = vld [vmem:[%s0 + $0x18] sm:$0xf]
    %v67 = vld [vmem:[%s0 + $0x1c] sm:$0xf]
    %v68 = vld [vmem:[%s1] sm:$0xf]
    %v69 = vld [vmem:[%s1 + $0x4] sm:$0xf]
    %v70 = vld [vmem:[%s1 + $0x8] sm:$0xf]
    %v71 = vld [vmem:[%s1 + $0xc] sm:$0xf]
    %v72 = vld [vmem:[%s1 + $0x10] sm:$0xf]
    %v73 = vld [vmem:[%s1 + $0x14] sm:$0xf]
    %v74 = vld [vmem:[%s1 + $0x18] sm:$0xf]
    %v75 = vld [vmem:[%s1 + $0x1c] sm:$0xf]
    %v76 = vld [vmem:[%s2] sm:$0xff]
    %v77 = vld [vmem:[%s2 + $0x8] sm:$0xf]
    %v78 = vld [vmem:[%s2 + $0xc] sm:$0xff]
    %v79 = vld [vmem:[%s2 + $0x14] sm:$0xf]
    %v80 = vld [vmem:[%s2 + $0x18] sm:$0xff]
    %v81 = vld [vmem:[%s2 + $0x20] sm:$0xf]
    %v82 = vld [vmem:[%s2 + $0x24] sm:$0xff]
    %v83 = vld [vmem:[%s2 + $0x2c] sm:$0xf]
    %v84 = vld [vmem:[%s2 + $0x30] sm:$0xff]
    %v85 = vld [vmem:[%s2 + $0x38] sm:$0xf]
    %v86 = vld [vmem:[%s2 + $0x3c] sm:$0xff]
    %v87 = vld [vmem:[%s2 + $0x44] sm:$0xf]
    %v88 = vld [vmem:[%s2 + $0x48] sm:$0xff]
    %v89 = vld [vmem:[%s2 + $0x50] sm:$0xf]
    %v90 = vld [vmem:[%s2 + $0x54] sm:$0xff]
    %v91 = vld [vmem:[%s2 + $0x5c] sm:$0xf]
    %v92 = vld [vmem:[%s2 + $0x60] sm:$0xff]
    %v93 = vld [vmem:[%s2 + $0x68] sm:$0xf]
    %v94 = vld [vmem:[%s2 + $0x6c] sm:$0xff]
    %v95 = vld [vmem:[%s2 + $0x74] sm:$0xf]
    %v96 = vld [vmem:[%s2 + $0x78] sm:$0xff]
    %v97 = vld [vmem:[%s2 + $0x80] sm:$0xf]
    %v98 = vld [vmem:[%s2 + $0x84] sm:$0xff]
    %v99 = vld [vmem:[%s2 + $0x8c] sm:$0xf]
    %v100 = vld [vmem:[%s2 + $0x90] sm:$0xff]
    %v101 = vld [vmem:[%s2 + $0x98] sm:$0xf]
    %v102 = vld [vmem:[%s2 + $0x9c] sm:$0xff]
    %v103 = vld [vmem:[%s2 + $0xa4] sm:$0xf]
    %v104 = vld [vmem:[%s2 + $0xa8] sm:$0xff]
    %v105 = vld [vmem:[%s2 + $0xb0] sm:$0xf]
    %v106 = vld [vmem:[%s2 + $0xb4] sm:$0xff]
    %v107 = vld [vmem:[%s2 + $0xbc] sm:$0xf]
    %v108 = vld [vmem:[%s3] sm:$0xff]
    %v109 = vld [vmem:[%s3 + $0x8] sm:$0xf]
    %v110 = vld [vmem:[%s3 + $0xc] sm:$0xff]
    %v111 = vld [vmem:[%s3 + $0x14] sm:$0xf]
    %v112 = vld [vmem:[%s3 + $0x18] sm:$0xff]
    %v113 = vld [vmem:[%s3 + $0x20] sm:$0xf]
    %v114 = vld [vmem:[%s3 + $0x24] sm:$0xff]
    %v115 = vld [vmem:[%s3 + $0x2c] sm:$0xf]
    %v116 = vld [vmem:[%s3 + $0x30] sm:$0xff]
    %v117 = vld [vmem:[%s3 + $0x38] sm:$0xf]
    %v118 = vld [vmem:[%s3 + $0x3c] sm:$0xff]
    %v119 = vld [vmem:[%s3 + $0x44] sm:$0xf]
    %v120 = vld [vmem:[%s3 + $0x48] sm:$0xff]
    %v121 = vld [vmem:[%s3 + $0x50] sm:$0xf]
    %v122 = vld [vmem:[%s3 + $0x54] sm:$0xff]
    %v123 = vld [vmem:[%s3 + $0x5c] sm:$0xf]
    %v124 = vld [vmem:[%s3 + $0x60] sm:$0xff]
    %v125 = vld [vmem:[%s3 + $0x68] sm:$0xf]
    %v126 = vld [vmem:[%s3 + $0x6c] sm:$0xff]
    %v127 = vld [vmem:[%s3 + $0x74] sm:$0xf]
    %v128 = vld [vmem:[%s3 + $0x78] sm:$0xff]
    %v129 = vld [vmem:[%s3 + $0x80] sm:$0xf]
    %v130 = vld [vmem:[%s3 + $0x84] sm:$0xff]
    %v131 = vld [vmem:[%s3 + $0x8c] sm:$0xf]
    %v132 = vld [vmem:[%s3 + $0x90] sm:$0xff]
    %v133 = vld [vmem:[%s3 + $0x98] sm:$0xf]
    %v134 = vld [vmem:[%s3 + $0x9c] sm:$0xff]
    %v135 = vld [vmem:[%s3 + $0xa4] sm:$0xf]
    %v136 = vld [vmem:[%s3 + $0xa8] sm:$0xff]
    %v137 = vld [vmem:[%s3 + $0xb0] sm:$0xf]
    %v138 = vld [vmem:[%s3 + $0xb4] sm:$0xff]
    %v139 = vld [vmem:[%s3 + $0xbc] sm:$0xf]
    %v148 = vunpack.c.l.b16 %v68
    %v149 = vunpack.c.l.b16 %v69
    %v150 = vunpack.c.l.b16 %v70
    %v151 = vunpack.c.l.b16 %v71
    %v152 = vunpack.c.l.b16 %v72
    %v153 = vunpack.c.l.b16 %v73
    %v154 = vunpack.c.l.b16 %v74
    %v155 = vunpack.c.l.b16 %v75
    %v156 = vpack.c.b16 %v149, %v148
    %v157 = vpack.c.b16 %v151, %v150
    %v158 = vpack.c.b16 %v153, %v152
    %v159 = vpack.c.b16 %v155, %v154
    %v196 = vunpack.c.l.b16 %v108
    %v197 = vunpack.c.h.b16 %v108
    %v198 = vunpack.c.l.b16 %v109
    %v199 = vunpack.c.l.b16 %v110
    %v200 = vunpack.c.h.b16 %v110
    %v201 = vunpack.c.l.b16 %v111
    %v202 = vunpack.c.l.b16 %v112
    %v203 = vunpack.c.h.b16 %v112
    %v204 = vunpack.c.l.b16 %v113
    %v205 = vunpack.c.l.b16 %v114
    %v206 = vunpack.c.h.b16 %v114
    %v207 = vunpack.c.l.b16 %v115
    %v208 = vunpack.c.l.b16 %v116
    %v209 = vunpack.c.h.b16 %v116
    %v210 = vunpack.c.l.b16 %v117
    %v211 = vunpack.c.l.b16 %v118
    %v212 = vunpack.c.h.b16 %v118
    %v213 = vunpack.c.l.b16 %v119
    %v214 = vunpack.c.l.b16 %v120
    %v215 = vunpack.c.h.b16 %v120
    %v216 = vunpack.c.l.b16 %v121
    %v217 = vunpack.c.l.b16 %v122
    %v218 = vunpack.c.h.b16 %v122
    %v219 = vunpack.c.l.b16 %v123
    %v220 = vunpack.c.l.b16 %v124
    %v221 = vunpack.c.h.b16 %v124
    %v222 = vunpack.c.l.b16 %v125
    %v223 = vunpack.c.l.b16 %v126
    %v224 = vunpack.c.h.b16 %v126
    %v225 = vunpack.c.l.b16 %v127
    %v226 = vunpack.c.l.b16 %v128
    %v227 = vunpack.c.h.b16 %v128
    %v228 = vunpack.c.l.b16 %v129
    %v229 = vunpack.c.l.b16 %v130
    %v230 = vunpack.c.h.b16 %v130
    %v231 = vunpack.c.l.b16 %v131
    %v232 = vunpack.c.l.b16 %v132
    %v233 = vunpack.c.h.b16 %v132
    %v234 = vunpack.c.l.b16 %v133
    %v235 = vunpack.c.l.b16 %v134
    %v236 = vunpack.c.h.b16 %v134
    %v237 = vunpack.c.l.b16 %v135
    %v238 = vunpack.c.l.b16 %v136
    %v239 = vunpack.c.h.b16 %v136
    %v240 = vunpack.c.l.b16 %v137
    %v241 = vunpack.c.l.b16 %v138
    %v242 = vunpack.c.h.b16 %v138
    %v243 = vunpack.c.l.b16 %v139
    %v244 = vpack.c.b16 %v199, %v196
    %v245 = vpack.c.b16 %v200, %v197
    %v246 = vpack.c.b16 %v201, %v198
    %v247 = vpack.c.b16 %v205, %v202
    %v248 = vpack.c.b16 %v206, %v203
    %v249 = vpack.c.b16 %v207, %v204
    %v250 = vpack.c.b16 %v211, %v208
    %v251 = vpack.c.b16 %v212, %v209
    %v252 = vpack.c.b16 %v213, %v210
    %v253 = vpack.c.b16 %v217, %v214
    %v254 = vpack.c.b16 %v218, %v215
    %v255 = vpack.c.b16 %v219, %v216
    %v256 = vpack.c.b16 %v223, %v220
    %v257 = vpack.c.b16 %v224, %v221
    %v258 = vpack.c.b16 %v225, %v222
    %v259 = vpack.c.b16 %v229, %v226
    %v260 = vpack.c.b16 %v230, %v227
    %v261 = vpack.c.b16 %v231, %v228
    %v262 = vpack.c.b16 %v235, %v232
    %v263 = vpack.c.b16 %v236, %v233
    %v264 = vpack.c.b16 %v237, %v234
    %v265 = vpack.c.b16 %v241, %v238
    %v266 = vpack.c.b16 %v242, %v239
    %v267 = vpack.c.b16 %v243, %v240
    %292 = vmatprep.subr.bf16.mxu0 %v266
    %293 = vmatpush1.bf16.msra.mxu0 %v265
    %294 = vmatprep.subr.bf16.mxu0 %v263
    %295 = vmatpush1.bf16.msra.mxu0 %v262
    %296 = vmatprep.subr.bf16.mxu0 %v260
    %297 = vmatpush1.bf16.msra.mxu0 %v259
    %298 = vmatprep.subr.bf16.mxu0 %v257
    %299 = vmatpush1.bf16.msra.mxu0 %v256
    %300 = vmatprep.subr.bf16.mxu0 %v254
    %301 = vmatpush1.bf16.msra.mxu0 %v253
    %302 = vmatprep.subr.bf16.mxu0 %v251
    %303 = vmatpush1.bf16.msra.mxu0 %v250
    %304 = vmatprep.subr.bf16.mxu0 %v248
    %305 = vmatpush1.bf16.msra.mxu0 %v247
    %306 = vmatprep.subr.bf16.mxu0 %v245
    %307 = vmatpush1.bf16.msra.mxu0 %v244
    %308 = vmatprep.subr.bf16.mxu0 0
    %309 = vmatpush2.bf16.msra.mxu0 0
    %310 = vmatprep.subr.bf16.mxu0 0
    %311 = vmatpush2.bf16.msra.mxu0 0
    %312 = vmatprep.subr.bf16.mxu0 0
    %313 = vmatpush2.bf16.msra.mxu0 0
    %314 = vmatprep.subr.bf16.mxu0 0
    %315 = vmatpush2.bf16.msra.mxu0 0
    %316 = vmatprep.subr.bf16.mxu0 0
    %317 = vmatpush2.bf16.msra.mxu0 0
    %318 = vmatprep.subr.bf16.mxu0 0
    %319 = vmatpush2.bf16.msra.mxu0 0
    %320 = vmatprep.subr.bf16.mxu0 0
    %321 = vmatpush2.bf16.msra.mxu0 0
    %322 = vmatprep.subr.bf16.mxu0 0
    %323 = vmatpush2.bf16.msra.mxu0 0
    %324 = vmatprep.mubr.bf16.mxu0 0
    %325 = vmatmul.mubr.bf16.gmra.mxu0 %v156
    %v326 = vpop.f32.mrf.mxu0
    %v327 = vadd.f32 0.0, %v326
    %v328 = vpop.f32.mrf.mxu0
    %v329 = vadd.f32 0.0, %v328
    %v330 = vpop.f32.mrf.mxu0
    %v331 = vadd.f32 0.0, %v330
    %v332 = vpop.f32.mrf.mxu0
    %v333 = vadd.f32 0.0, %v332
    %334 = vmatprep.mubr.bf16.mxu0 0
    %335 = vmatmul.mubr.bf16.gmra.mxu0 %v157
    %v336 = vpop.f32.mrf.mxu0
    %v337 = vadd.f32 0.0, %v336
    %v338 = vpop.f32.mrf.mxu0
    %v339 = vadd.f32 0.0, %v338
    %v340 = vpop.f32.mrf.mxu0
    %v341 = vadd.f32 0.0, %v340
    %v342 = vpop.f32.mrf.mxu0
    %v343 = vadd.f32 0.0, %v342
    %344 = vmatprep.mubr.bf16.mxu0 0
    %345 = vmatmul.mubr.bf16.gmra.mxu0 %v158
    %v346 = vpop.f32.mrf.mxu0
    %v347 = vadd.f32 0.0, %v346
    %v348 = vpop.f32.mrf.mxu0
    %v349 = vadd.f32 0.0, %v348
    %v350 = vpop.f32.mrf.mxu0
    %v351 = vadd.f32 0.0, %v350
    %v352 = vpop.f32.mrf.mxu0
    %v353 = vadd.f32 0.0, %v352
    %354 = vmatprep.mubr.bf16.mxu0 0
    %355 = vmatmul.mubr.bf16.gmra.mxu0 %v159
    %v356 = vpop.f32.mrf.mxu0
    %v357 = vadd.f32 0.0, %v356
    %v358 = vpop.f32.mrf.mxu0
    %v359 = vadd.f32 0.0, %v358
    %v360 = vpop.f32.mrf.mxu0
    %v361 = vadd.f32 0.0, %v360
    %v362 = vpop.f32.mrf.mxu0
    %v363 = vadd.f32 0.0, %v362
    %364 = vdwg.mxu0
    %365 = vmatprep.subr.bf16.mxu0 0
    %366 = vmatpush1.bf16.msra.mxu0 %v267
    %367 = vmatprep.subr.bf16.mxu0 0
    %368 = vmatpush1.bf16.msra.mxu0 %v264
    %369 = vmatprep.subr.bf16.mxu0 0
    %370 = vmatpush1.bf16.msra.mxu0 %v261
    %371 = vmatprep.subr.bf16.mxu0 0
    %372 = vmatpush1.bf16.msra.mxu0 %v258
    %373 = vmatprep.subr.bf16.mxu0 0
    %374 = vmatpush1.bf16.msra.mxu0 %v255
    %375 = vmatprep.subr.bf16.mxu0 0
    %376 = vmatpush1.bf16.msra.mxu0 %v252
    %377 = vmatprep.subr.bf16.mxu0 0
    %378 = vmatpush1.bf16.msra.mxu0 %v249
    %379 = vmatprep.subr.bf16.mxu0 0
    %380 = vmatpush1.bf16.msra.mxu0 %v246
    %381 = vmatprep.subr.bf16.mxu0 0
    %382 = vmatpush2.bf16.msra.mxu0 0
    %383 = vmatprep.subr.bf16.mxu0 0
    %384 = vmatpush2.bf16.msra.mxu0 0
    %385 = vmatprep.subr.bf16.mxu0 0
    %386 = vmatpush2.bf16.msra.mxu0 0
    %387 = vmatprep.subr.bf16.mxu0 0
    %388 = vmatpush2.bf16.msra.mxu0 0
    %389 = vmatprep.subr.bf16.mxu0 0
    %390 = vmatpush2.bf16.msra.mxu0 0
    %391 = vmatprep.subr.bf16.mxu0 0
    %392 = vmatpush2.bf16.msra.mxu0 0
    %393 = vmatprep.subr.bf16.mxu0 0
    %394 = vmatpush2.bf16.msra.mxu0 0
    %395 = vmatprep.subr.bf16.mxu0 0
    %396 = vmatpush2.bf16.msra.mxu0 0
    %397 = vmatprep.mubr.bf16.mxu0 0
    %398 = vmatmul.mubr.bf16.gmra.mxu0 %v156
    %v399 = vpop.f32.mrf.mxu0
    %v400 = vadd.f32 0.0, %v399
    %v401 = vpop.f32.mrf.mxu0
    %v402 = vpop.f32.mrf.mxu0
    %v403 = vadd.f32 0.0, %v402
    %v404 = vpop.f32.mrf.mxu0
    %405 = vmatprep.mubr.bf16.mxu0 0
    %406 = vmatmul.mubr.bf16.gmra.mxu0 %v157
    %v407 = vpop.f32.mrf.mxu0
    %v408 = vadd.f32 0.0, %v407
    %v409 = vpop.f32.mrf.mxu0
    %v410 = vpop.f32.mrf.mxu0
    %v411 = vadd.f32 0.0, %v410
    %v412 = vpop.f32.mrf.mxu0
    %413 = vmatprep.mubr.bf16.mxu0 0
    %414 = vmatmul.mubr.bf16.gmra.mxu0 %v158
    %v415 = vpop.f32.mrf.mxu0
    %v416 = vadd.f32 0.0, %v415
    %v417 = vpop.f32.mrf.mxu0
    %v418 = vpop.f32.mrf.mxu0
    %v419 = vadd.f32 0.0, %v418
    %v420 = vpop.f32.mrf.mxu0
    %421 = vmatprep.mubr.bf16.mxu0 0
    %422 = vmatmul.mubr.bf16.gmra.mxu0 %v159
    %v423 = vpop.f32.mrf.mxu0
    %v424 = vadd.f32 0.0, %v423
    %v425 = vpop.f32.mrf.mxu0
    %v426 = vpop.f32.mrf.mxu0
    %v427 = vadd.f32 0.0, %v426
    %v428 = vpop.f32.mrf.mxu0
    %429 = vdwg.mxu0
    %v438 = vunpack.c.l.b16 %v60
    %v439 = vunpack.c.l.b16 %v61
    %v440 = vunpack.c.l.b16 %v62
    %v441 = vunpack.c.l.b16 %v63
    %v442 = vunpack.c.l.b16 %v64
    %v443 = vunpack.c.l.b16 %v65
    %v444 = vunpack.c.l.b16 %v66
    %v445 = vunpack.c.l.b16 %v67
    %v446 = vpack.c.b16 %v439, %v438
    %v447 = vpack.c.b16 %v441, %v440
    %v448 = vpack.c.b16 %v443, %v442
    %v449 = vpack.c.b16 %v445, %v444
    %v486 = vunpack.c.l.b16 %v76
    %v487 = vunpack.c.h.b16 %v76
    %v488 = vunpack.c.l.b16 %v77
    %v489 = vunpack.c.l.b16 %v78
    %v490 = vunpack.c.h.b16 %v78
    %v491 = vunpack.c.l.b16 %v79
    %v492 = vunpack.c.l.b16 %v80
    %v493 = vunpack.c.h.b16 %v80
    %v494 = vunpack.c.l.b16 %v81
    %v495 = vunpack.c.l.b16 %v82
    %v496 = vunpack.c.h.b16 %v82
    %v497 = vunpack.c.l.b16 %v83
    %v498 = vunpack.c.l.b16 %v84
    %v499 = vunpack.c.h.b16 %v84
    %v500 = vunpack.c.l.b16 %v85
    %v501 = vunpack.c.l.b16 %v86
    %v502 = vunpack.c.h.b16 %v86
    %v503 = vunpack.c.l.b16 %v87
    %v504 = vunpack.c.l.b16 %v88
    %v505 = vunpack.c.h.b16 %v88
    %v506 = vunpack.c.l.b16 %v89
    %v507 = vunpack.c.l.b16 %v90
    %v508 = vunpack.c.h.b16 %v90
    %v509 = vunpack.c.l.b16 %v91
    %v510 = vunpack.c.l.b16 %v92
    %v511 = vunpack.c.h.b16 %v92
    %v512 = vunpack.c.l.b16 %v93
    %v513 = vunpack.c.l.b16 %v94
    %v514 = vunpack.c.h.b16 %v94
    %v515 = vunpack.c.l.b16 %v95
    %v516 = vunpack.c.l.b16 %v96
    %v517 = vunpack.c.h.b16 %v96
    %v518 = vunpack.c.l.b16 %v97
    %v519 = vunpack.c.l.b16 %v98
    %v520 = vunpack.c.h.b16 %v98
    %v521 = vunpack.c.l.b16 %v99
    %v522 = vunpack.c.l.b16 %v100
    %v523 = vunpack.c.h.b16 %v100
    %v524 = vunpack.c.l.b16 %v101
    %v525 = vunpack.c.l.b16 %v102
    %v526 = vunpack.c.h.b16 %v102
    %v527 = vunpack.c.l.b16 %v103
    %v528 = vunpack.c.l.b16 %v104
    %v529 = vunpack.c.h.b16 %v104
    %v530 = vunpack.c.l.b16 %v105
    %v531 = vunpack.c.l.b16 %v106
    %v532 = vunpack.c.h.b16 %v106
    %v533 = vunpack.c.l.b16 %v107
    %v534 = vpack.c.b16 %v489, %v486
    %v535 = vpack.c.b16 %v490, %v487
    %v536 = vpack.c.b16 %v491, %v488
    %v537 = vpack.c.b16 %v495, %v492
    %v538 = vpack.c.b16 %v496, %v493
    %v539 = vpack.c.b16 %v497, %v494
    %v540 = vpack.c.b16 %v501, %v498
    %v541 = vpack.c.b16 %v502, %v499
    %v542 = vpack.c.b16 %v503, %v500
    %v543 = vpack.c.b16 %v507, %v504
    %v544 = vpack.c.b16 %v508, %v505
    %v545 = vpack.c.b16 %v509, %v506
    %v546 = vpack.c.b16 %v513, %v510
    %v547 = vpack.c.b16 %v514, %v511
    %v548 = vpack.c.b16 %v515, %v512
    %v549 = vpack.c.b16 %v519, %v516
    %v550 = vpack.c.b16 %v520, %v517
    %v551 = vpack.c.b16 %v521, %v518
    %v552 = vpack.c.b16 %v525, %v522
    %v553 = vpack.c.b16 %v526, %v523
    %v554 = vpack.c.b16 %v527, %v524
    %v555 = vpack.c.b16 %v531, %v528
    %v556 = vpack.c.b16 %v532, %v529
    %v557 = vpack.c.b16 %v533, %v530
    %582 = vmatprep.subr.bf16.mxu0 %v556
    %583 = vmatpush1.bf16.msra.mxu0 %v555
    %584 = vmatprep.subr.bf16.mxu0 %v553
    %585 = vmatpush1.bf16.msra.mxu0 %v552
    %586 = vmatprep.subr.bf16.mxu0 %v550
    %587 = vmatpush1.bf16.msra.mxu0 %v549
    %588 = vmatprep.subr.bf16.mxu0 %v547
    %589 = vmatpush1.bf16.msra.mxu0 %v546
    %590 = vmatprep.subr.bf16.mxu0 %v544
    %591 = vmatpush1.bf16.msra.mxu0 %v543
    %592 = vmatprep.subr.bf16.mxu0 %v541
    %593 = vmatpush1.bf16.msra.mxu0 %v540
    %594 = vmatprep.subr.bf16.mxu0 %v538
    %595 = vmatpush1.bf16.msra.mxu0 %v537
    %596 = vmatprep.subr.bf16.mxu0 %v535
    %597 = vmatpush1.bf16.msra.mxu0 %v534
    %598 = vmatprep.subr.bf16.mxu0 0
    %599 = vmatpush2.bf16.msra.mxu0 0
    %600 = vmatprep.subr.bf16.mxu0 0
    %601 = vmatpush2.bf16.msra.mxu0 0
    %602 = vmatprep.subr.bf16.mxu0 0
    %603 = vmatpush2.bf16.msra.mxu0 0
    %604 = vmatprep.subr.bf16.mxu0 0
    %605 = vmatpush2.bf16.msra.mxu0 0
    %606 = vmatprep.subr.bf16.mxu0 0
    %607 = vmatpush2.bf16.msra.mxu0 0
    %608 = vmatprep.subr.bf16.mxu0 0
    %609 = vmatpush2.bf16.msra.mxu0 0
    %610 = vmatprep.subr.bf16.mxu0 0
    %611 = vmatpush2.bf16.msra.mxu0 0
    %612 = vmatprep.subr.bf16.mxu0 0
    %613 = vmatpush2.bf16.msra.mxu0 0
    %614 = vmatprep.mubr.bf16.mxu0 0
    %615 = vmatmul.mubr.bf16.gmra.mxu0 %v446
    %v616 = vpop.f32.mrf.mxu0
    %v617 = vadd.f32 %v327, %v616
    %v618 = vpop.f32.mrf.mxu0
    %v619 = vadd.f32 %v329, %v618
    %v620 = vpop.f32.mrf.mxu0
    %v621 = vadd.f32 %v331, %v620
    %v622 = vpop.f32.mrf.mxu0
    %v623 = vadd.f32 %v333, %v622
    %624 = vmatprep.mubr.bf16.mxu0 0
    %625 = vmatmul.mubr.bf16.gmra.mxu0 %v447
    %v626 = vpop.f32.mrf.mxu0
    %v627 = vadd.f32 %v337, %v626
    %v628 = vpop.f32.mrf.mxu0
    %v629 = vadd.f32 %v339, %v628
    %v630 = vpop.f32.mrf.mxu0
    %v631 = vadd.f32 %v341, %v630
    %v632 = vpop.f32.mrf.mxu0
    %v633 = vadd.f32 %v343, %v632
    %634 = vmatprep.mubr.bf16.mxu0 0
    %635 = vmatmul.mubr.bf16.gmra.mxu0 %v448
    %v636 = vpop.f32.mrf.mxu0
    %v637 = vadd.f32 %v347, %v636
    %v638 = vpop.f32.mrf.mxu0
    %v639 = vadd.f32 %v349, %v638
    %v640 = vpop.f32.mrf.mxu0
    %v641 = vadd.f32 %v351, %v640
    %v642 = vpop.f32.mrf.mxu0
    %v643 = vadd.f32 %v353, %v642
    %644 = vmatprep.mubr.bf16.mxu0 0
    %645 = vmatmul.mubr.bf16.gmra.mxu0 %v449
    %v646 = vpop.f32.mrf.mxu0
    %v647 = vadd.f32 %v357, %v646
    %v648 = vpop.f32.mrf.mxu0
    %v649 = vadd.f32 %v359, %v648
    %v650 = vpop.f32.mrf.mxu0
    %v651 = vadd.f32 %v361, %v650
    %v652 = vpop.f32.mrf.mxu0
    %v653 = vadd.f32 %v363, %v652
    %654 = vdwg.mxu0
    %655 = vmatprep.subr.bf16.mxu0 0
    %656 = vmatpush1.bf16.msra.mxu0 %v557
    %657 = vmatprep.subr.bf16.mxu0 0
    %658 = vmatpush1.bf16.msra.mxu0 %v554
    %659 = vmatprep.subr.bf16.mxu0 0
    %660 = vmatpush1.bf16.msra.mxu0 %v551
    %661 = vmatprep.subr.bf16.mxu0 0
    %662 = vmatpush1.bf16.msra.mxu0 %v548
    %663 = vmatprep.subr.bf16.mxu0 0
    %664 = vmatpush1.bf16.msra.mxu0 %v545
    %665 = vmatprep.subr.bf16.mxu0 0
    %666 = vmatpush1.bf16.msra.mxu0 %v542
    %667 = vmatprep.subr.bf16.mxu0 0
    %668 = vmatpush1.bf16.msra.mxu0 %v539
    %669 = vmatprep.subr.bf16.mxu0 0
    %670 = vmatpush1.bf16.msra.mxu0 %v536
    %671 = vmatprep.subr.bf16.mxu0 0
    %672 = vmatpush2.bf16.msra.mxu0 0
    %673 = vmatprep.subr.bf16.mxu0 0
    %674 = vmatpush2.bf16.msra.mxu0 0
    %675 = vmatprep.subr.bf16.mxu0 0
    %676 = vmatpush2.bf16.msra.mxu0 0
    %677 = vmatprep.subr.bf16.mxu0 0
    %678 = vmatpush2.bf16.msra.mxu0 0
    %679 = vmatprep.subr.bf16.mxu0 0
    %680 = vmatpush2.bf16.msra.mxu0 0
    %681 = vmatprep.subr.bf16.mxu0 0
    %682 = vmatpush2.bf16.msra.mxu0 0
    %683 = vmatprep.subr.bf16.mxu0 0
    %684 = vmatpush2.bf16.msra.mxu0 0
    %685 = vmatprep.subr.bf16.mxu0 0
    %686 = vmatpush2.bf16.msra.mxu0 0
    %687 = vmatprep.mubr.bf16.mxu0 0
    %688 = vmatmul.mubr.bf16.gmra.mxu0 %v446
    %v689 = vpop.f32.mrf.mxu0
    %v690 = vadd.f32 %v400, %v689
    %v691 = vpop.f32.mrf.mxu0
    %v692 = vpop.f32.mrf.mxu0
    %v693 = vadd.f32 %v403, %v692
    %v694 = vpop.f32.mrf.mxu0
    %695 = vmatprep.mubr.bf16.mxu0 0
    %696 = vmatmul.mubr.bf16.gmra.mxu0 %v447
    %v697 = vpop.f32.mrf.mxu0
    %v698 = vadd.f32 %v408, %v697
    %v699 = vpop.f32.mrf.mxu0
    %v700 = vpop.f32.mrf.mxu0
    %v701 = vadd.f32 %v411, %v700
    %v702 = vpop.f32.mrf.mxu0
    %703 = vmatprep.mubr.bf16.mxu0 0
    %704 = vmatmul.mubr.bf16.gmra.mxu0 %v448
    %v705 = vpop.f32.mrf.mxu0
    %v706 = vadd.f32 %v416, %v705
    %v707 = vpop.f32.mrf.mxu0
    %v708 = vpop.f32.mrf.mxu0
    %v709 = vadd.f32 %v419, %v708
    %v710 = vpop.f32.mrf.mxu0
    %711 = vmatprep.mubr.bf16.mxu0 0
    %712 = vmatmul.mubr.bf16.gmra.mxu0 %v449
    %v713 = vpop.f32.mrf.mxu0
    %v714 = vadd.f32 %v424, %v713
    %v715 = vpop.f32.mrf.mxu0
    %v716 = vpop.f32.mrf.mxu0
    %v717 = vadd.f32 %v427, %v716
    %v718 = vpop.f32.mrf.mxu0
    %719 = vdwg.mxu0
    %v720 = vld [vmem:[%s6] sm:$0x7]
    %v722 = vlaneseq
    %v723 = vshrl.u32 %v722, 7
    %v724 = vsub.s32 0, %v723
    %v725 = vrot.slane %v720, %v724
    %v726 = vlaneseq
    %v727 = vshrl.u32 %v726, 7
    %v728 = vsub.s32 1, %v727
    %v729 = vrot.slane %v720, %v728
    %v730 = vlaneseq
    %v731 = vshrl.u32 %v730, 7
    %v732 = vsub.s32 2, %v731
    %v733 = vrot.slane %v720, %v732
    %v737 = vadd.f32 %v617, %v725
    %v738 = vadd.f32 %v619, %v729
    %v739 = vadd.f32 %v690, %v733
    %v740 = vadd.f32 %v621, %v725
    %v741 = vadd.f32 %v623, %v729
    %v742 = vadd.f32 %v693, %v733
    %v743 = vadd.f32 %v627, %v725
    %v744 = vadd.f32 %v629, %v729
    %v745 = vadd.f32 %v698, %v733
    %v746 = vadd.f32 %v631, %v725
    %v747 = vadd.f32 %v633, %v729
    %v748 = vadd.f32 %v701, %v733
    %v749 = vadd.f32 %v637, %v725
    %v750 = vadd.f32 %v639, %v729
    %v751 = vadd.f32 %v706, %v733
    %v752 = vadd.f32 %v641, %v725
    %v753 = vadd.f32 %v643, %v729
    %v754 = vadd.f32 %v709, %v733
    %v755 = vadd.f32 %v647, %v725
    %v756 = vadd.f32 %v649, %v729
    %v757 = vadd.f32 %v714, %v733
    %v758 = vadd.f32 %v651, %v725
    %v759 = vadd.f32 %v653, %v729
    %v760 = vadd.f32 %v717, %v733
    %v761 = vld [vmem:[#allocation2] sm:$0xff]
    %v762 = vld [vmem:[#allocation2 + $0x8] sm:$0xf]
    %v763 = vld [vmem:[#allocation2 + $0xc] sm:$0xff]
    %v764 = vld [vmem:[#allocation2 + $0x14] sm:$0xf]
    %v765 = vld [vmem:[#allocation2 + $0x18] sm:$0xff]
    %v766 = vld [vmem:[#allocation2 + $0x20] sm:$0xf]
    %v767 = vld [vmem:[#allocation2 + $0x24] sm:$0xff]
    %v768 = vld [vmem:[#allocation2 + $0x2c] sm:$0xf]
    %v769 = vld [vmem:[#allocation2 + $0x30] sm:$0xff]
    %v770 = vld [vmem:[#allocation2 + $0x38] sm:$0xf]
    %v771 = vld [vmem:[#allocation2 + $0x3c] sm:$0xff]
    %v772 = vld [vmem:[#allocation2 + $0x44] sm:$0xf]
    %v773 = vld [vmem:[#allocation2 + $0x48] sm:$0xff]
    %v774 = vld [vmem:[#allocation2 + $0x50] sm:$0xf]
    %v775 = vld [vmem:[#allocation2 + $0x54] sm:$0xff]
    %v776 = vld [vmem:[#allocation2 + $0x5c] sm:$0xf]
    %v777 = vld [vmem:[#allocation2 + $0x60] sm:$0xff]
    %v778 = vld [vmem:[#allocation2 + $0x68] sm:$0xf]
    %v779 = vld [vmem:[#allocation2 + $0x6c] sm:$0xff]
    %v780 = vld [vmem:[#allocation2 + $0x74] sm:$0xf]
    %v781 = vld [vmem:[#allocation2 + $0x78] sm:$0xff]
    %v782 = vld [vmem:[#allocation2 + $0x80] sm:$0xf]
    %v783 = vld [vmem:[#allocation2 + $0x84] sm:$0xff]
    %v784 = vld [vmem:[#allocation2 + $0x8c] sm:$0xf]
    %v785 = vld [vmem:[#allocation2 + $0x90] sm:$0xff]
    %v786 = vld [vmem:[#allocation2 + $0x98] sm:$0xf]
    %v787 = vld [vmem:[#allocation2 + $0x9c] sm:$0xff]
    %v788 = vld [vmem:[#allocation2 + $0xa4] sm:$0xf]
    %v789 = vld [vmem:[#allocation2 + $0xa8] sm:$0xff]
    %v790 = vld [vmem:[#allocation2 + $0xb0] sm:$0xf]
    %v791 = vld [vmem:[#allocation2 + $0xb4] sm:$0xff]
    %v792 = vld [vmem:[#allocation2 + $0xbc] sm:$0xf]
    %v793 = vld [vmem:[#allocation4] sm:$0xff]
    %v794 = vld [vmem:[#allocation4 + $0x8] sm:$0xf]
    %v795 = vld [vmem:[#allocation4 + $0xc] sm:$0xff]
    %v796 = vld [vmem:[#allocation4 + $0x14] sm:$0xf]
    %v797 = vld [vmem:[#allocation4 + $0x18] sm:$0xff]
    %v798 = vld [vmem:[#allocation4 + $0x20] sm:$0xf]
    %v799 = vld [vmem:[#allocation4 + $0x24] sm:$0xff]
    %v800 = vld [vmem:[#allocation4 + $0x2c] sm:$0xf]
    %v801 = vld [vmem:[#allocation4 + $0x30] sm:$0xff]
    %v802 = vld [vmem:[#allocation4 + $0x38] sm:$0xf]
    %v803 = vld [vmem:[#allocation4 + $0x3c] sm:$0xff]
    %v804 = vld [vmem:[#allocation4 + $0x44] sm:$0xf]
    %v805 = vld [vmem:[#allocation4 + $0x48] sm:$0xff]
    %v806 = vld [vmem:[#allocation4 + $0x50] sm:$0xf]
    %v807 = vld [vmem:[#allocation4 + $0x54] sm:$0xff]
    %v808 = vld [vmem:[#allocation4 + $0x5c] sm:$0xf]
    %v809 = vld [vmem:[#allocation4 + $0x60] sm:$0xff]
    %v810 = vld [vmem:[#allocation4 + $0x68] sm:$0xf]
    %v811 = vld [vmem:[#allocation4 + $0x6c] sm:$0xff]
    %v812 = vld [vmem:[#allocation4 + $0x74] sm:$0xf]
    %v813 = vld [vmem:[#allocation4 + $0x78] sm:$0xff]
    %v814 = vld [vmem:[#allocation4 + $0x80] sm:$0xf]
    %v815 = vld [vmem:[#allocation4 + $0x84] sm:$0xff]
    %v816 = vld [vmem:[#allocation4 + $0x8c] sm:$0xf]
    %v817 = vld [vmem:[#allocation4 + $0x90] sm:$0xff]
    %v818 = vld [vmem:[#allocation4 + $0x98] sm:$0xf]
    %v819 = vld [vmem:[#allocation4 + $0x9c] sm:$0xff]
    %v820 = vld [vmem:[#allocation4 + $0xa4] sm:$0xf]
    %v821 = vld [vmem:[#allocation4 + $0xa8] sm:$0xff]
    %v822 = vld [vmem:[#allocation4 + $0xb0] sm:$0xf]
    %v823 = vld [vmem:[#allocation4 + $0xb4] sm:$0xff]
    %v824 = vld [vmem:[#allocation4 + $0xbc] sm:$0xf]
    %v857 = vunpack.c.l.b16 %v793
    %v858 = vunpack.c.h.b16 %v793
    %v859 = vunpack.c.l.b16 %v794
    %v860 = vunpack.c.l.b16 %v795
    %v861 = vunpack.c.h.b16 %v795
    %v862 = vunpack.c.l.b16 %v796
    %v863 = vunpack.c.l.b16 %v797
    %v864 = vunpack.c.h.b16 %v797
    %v865 = vunpack.c.l.b16 %v798
    %v866 = vunpack.c.l.b16 %v799
    %v867 = vunpack.c.h.b16 %v799
    %v868 = vunpack.c.l.b16 %v800
    %v869 = vunpack.c.l.b16 %v801
    %v870 = vunpack.c.h.b16 %v801
    %v871 = vunpack.c.l.b16 %v802
    %v872 = vunpack.c.l.b16 %v803
    %v873 = vunpack.c.h.b16 %v803
    %v874 = vunpack.c.l.b16 %v804
    %v875 = vunpack.c.l.b16 %v805
    %v876 = vunpack.c.h.b16 %v805
    %v877 = vunpack.c.l.b16 %v806
    %v878 = vunpack.c.l.b16 %v807
    %v879 = vunpack.c.h.b16 %v807
    %v880 = vunpack.c.l.b16 %v808
    %v881 = vunpack.c.l.b16 %v809
    %v882 = vunpack.c.h.b16 %v809
    %v883 = vunpack.c.l.b16 %v810
    %v884 = vunpack.c.l.b16 %v811
    %v885 = vunpack.c.h.b16 %v811
    %v886 = vunpack.c.l.b16 %v812
    %v887 = vunpack.c.l.b16 %v813
    %v888 = vunpack.c.h.b16 %v813
    %v889 = vunpack.c.l.b16 %v814
    %v890 = vunpack.c.l.b16 %v815
    %v891 = vunpack.c.h.b16 %v815
    %v892 = vunpack.c.l.b16 %v816
    %v893 = vunpack.c.l.b16 %v817
    %v894 = vunpack.c.h.b16 %v817
    %v895 = vunpack.c.l.b16 %v818
    %v896 = vunpack.c.l.b16 %v819
    %v897 = vunpack.c.h.b16 %v819
    %v898 = vunpack.c.l.b16 %v820
    %v899 = vunpack.c.l.b16 %v821
    %v900 = vunpack.c.h.b16 %v821
    %v901 = vunpack.c.l.b16 %v822
    %v902 = vunpack.c.l.b16 %v823
    %v903 = vunpack.c.h.b16 %v823
    %v904 = vunpack.c.l.b16 %v824
    %v905 = vpack.c.b16 %v860, %v857
    %v906 = vpack.c.b16 %v861, %v858
    %v907 = vpack.c.b16 %v862, %v859
    %v908 = vpack.c.b16 %v866, %v863
    %v909 = vpack.c.b16 %v867, %v864
    %v910 = vpack.c.b16 %v868, %v865
    %v911 = vpack.c.b16 %v872, %v869
    %v912 = vpack.c.b16 %v873, %v870
    %v913 = vpack.c.b16 %v874, %v871
    %v914 = vpack.c.b16 %v878, %v875
    %v915 = vpack.c.b16 %v879, %v876
    %v916 = vpack.c.b16 %v880, %v877
    %v917 = vpack.c.b16 %v884, %v881
    %v918 = vpack.c.b16 %v885, %v882
    %v919 = vpack.c.b16 %v886, %v883
    %v920 = vpack.c.b16 %v890, %v887
    %v921 = vpack.c.b16 %v891, %v888
    %v922 = vpack.c.b16 %v892, %v889
    %v923 = vpack.c.b16 %v896, %v893
    %v924 = vpack.c.b16 %v897, %v894
    %v925 = vpack.c.b16 %v898, %v895
    %v926 = vpack.c.b16 %v902, %v899
    %v927 = vpack.c.b16 %v903, %v900
    %v928 = vpack.c.b16 %v904, %v901
    %953 = vmatprep.subr.bf16.mxu0 %v927
    %954 = vmatpush1.bf16.msra.mxu0 %v926
    %955 = vmatprep.subr.bf16.mxu0 %v924
    %956 = vmatpush1.bf16.msra.mxu0 %v923
    %957 = vmatprep.subr.bf16.mxu0 %v921
    %958 = vmatpush1.bf16.msra.mxu0 %v920
    %959 = vmatprep.subr.bf16.mxu0 %v918
    %960 = vmatpush1.bf16.msra.mxu0 %v917
    %961 = vmatprep.subr.bf16.mxu0 %v915
    %962 = vmatpush1.bf16.msra.mxu0 %v914
    %963 = vmatprep.subr.bf16.mxu0 %v912
    %964 = vmatpush1.bf16.msra.mxu0 %v911
    %965 = vmatprep.subr.bf16.mxu0 %v909
    %966 = vmatpush1.bf16.msra.mxu0 %v908
    %967 = vmatprep.subr.bf16.mxu0 %v906
    %968 = vmatpush1.bf16.msra.mxu0 %v905
    %969 = vmatprep.subr.bf16.mxu0 0
    %970 = vmatpush2.bf16.msra.mxu0 0
    %971 = vmatprep.subr.bf16.mxu0 0
    %972 = vmatpush2.bf16.msra.mxu0 0
    %973 = vmatprep.subr.bf16.mxu0 0
    %974 = vmatpush2.bf16.msra.mxu0 0
    %975 = vmatprep.subr.bf16.mxu0 0
    %976 = vmatpush2.bf16.msra.mxu0 0
    %977 = vmatprep.subr.bf16.mxu0 0
    %978 = vmatpush2.bf16.msra.mxu0 0
    %979 = vmatprep.subr.bf16.mxu0 0
    %980 = vmatpush2.bf16.msra.mxu0 0
    %981 = vmatprep.subr.bf16.mxu0 0
    %982 = vmatpush2.bf16.msra.mxu0 0
    %983 = vmatprep.subr.bf16.mxu0 0
    %984 = vmatpush2.bf16.msra.mxu0 0
    %985 = vmatprep.mubr.bf16.mxu0 0
    %986 = vmatmul.mubr.bf16.gmra.mxu0 %v156
    %v987 = vpop.f32.mrf.mxu0
    %v988 = vadd.f32 0.0, %v987
    %v989 = vpop.f32.mrf.mxu0
    %v990 = vadd.f32 0.0, %v989
    %v991 = vpop.f32.mrf.mxu0
    %v992 = vadd.f32 0.0, %v991
    %v993 = vpop.f32.mrf.mxu0
    %v994 = vadd.f32 0.0, %v993
    %995 = vmatprep.mubr.bf16.mxu0 0
    %996 = vmatmul.mubr.bf16.gmra.mxu0 %v157
    %v997 = vpop.f32.mrf.mxu0
    %v998 = vadd.f32 0.0, %v997
    %v999 = vpop.f32.mrf.mxu0
    %v1000 = vadd.f32 0.0, %v999
    %v1001 = vpop.f32.mrf.mxu0
    %v1002 = vadd.f32 0.0, %v1001
    %v1003 = vpop.f32.mrf.mxu0
    %v1004 = vadd.f32 0.0, %v1003
    %1005 = vmatprep.mubr.bf16.mxu0 0
    %1006 = vmatmul.mubr.bf16.gmra.mxu0 %v158
    %v1007 = vpop.f32.mrf.mxu0
    %v1008 = vadd.f32 0.0, %v1007
    %v1009 = vpop.f32.mrf.mxu0
    %v1010 = vadd.f32 0.0, %v1009
    %v1011 = vpop.f32.mrf.mxu0
    %v1012 = vadd.f32 0.0, %v1011
    %v1013 = vpop.f32.mrf.mxu0
    %v1014 = vadd.f32 0.0, %v1013
    %1015 = vmatprep.mubr.bf16.mxu0 0
    %1016 = vmatmul.mubr.bf16.gmra.mxu0 %v159
    %v1017 = vpop.f32.mrf.mxu0
    %v1018 = vadd.f32 0.0, %v1017
    %v1019 = vpop.f32.mrf.mxu0
    %v1020 = vadd.f32 0.0, %v1019
    %v1021 = vpop.f32.mrf.mxu0
    %v1022 = vadd.f32 0.0, %v1021
    %v1023 = vpop.f32.mrf.mxu0
    %v1024 = vadd.f32 0.0, %v1023
    %1025 = vdwg.mxu0
    %1026 = vmatprep.subr.bf16.mxu0 0
    %1027 = vmatpush1.bf16.msra.mxu0 %v928
    %1028 = vmatprep.subr.bf16.mxu0 0
    %1029 = vmatpush1.bf16.msra.mxu0 %v925
    %1030 = vmatprep.subr.bf16.mxu0 0
    %1031 = vmatpush1.bf16.msra.mxu0 %v922
    %1032 = vmatprep.subr.bf16.mxu0 0
    %1033 = vmatpush1.bf16.msra.mxu0 %v919
    %1034 = vmatprep.subr.bf16.mxu0 0
    %1035 = vmatpush1.bf16.msra.mxu0 %v916
    %1036 = vmatprep.subr.bf16.mxu0 0
    %1037 = vmatpush1.bf16.msra.mxu0 %v913
    %1038 = vmatprep.subr.bf16.mxu0 0
    %1039 = vmatpush1.bf16.msra.mxu0 %v910
    %1040 = vmatprep.subr.bf16.mxu0 0
    %1041 = vmatpush1.bf16.msra.mxu0 %v907
    %1042 = vmatprep.subr.bf16.mxu0 0
    %1043 = vmatpush2.bf16.msra.mxu0 0
    %1044 = vmatprep.subr.bf16.mxu0 0
    %1045 = vmatpush2.bf16.msra.mxu0 0
    %1046 = vmatprep.subr.bf16.mxu0 0
    %1047 = vmatpush2.bf16.msra.mxu0 0
    %1048 = vmatprep.subr.bf16.mxu0 0
    %1049 = vmatpush2.bf16.msra.mxu0 0
    %1050 = vmatprep.subr.bf16.mxu0 0
    %1051 = vmatpush2.bf16.msra.mxu0 0
    %1052 = vmatprep.subr.bf16.mxu0 0
    %1053 = vmatpush2.bf16.msra.mxu0 0
    %1054 = vmatprep.subr.bf16.mxu0 0
    %1055 = vmatpush2.bf16.msra.mxu0 0
    %1056 = vmatprep.subr.bf16.mxu0 0
    %1057 = vmatpush2.bf16.msra.mxu0 0
    %1058 = vmatprep.mubr.bf16.mxu0 0
    %1059 = vmatmul.mubr.bf16.gmra.mxu0 %v156
    %v1060 = vpop.f32.mrf.mxu0
    %v1061 = vadd.f32 0.0, %v1060
    %v1062 = vpop.f32.mrf.mxu0
    %v1063 = vpop.f32.mrf.mxu0
    %v1064 = vadd.f32 0.0, %v1063
    %v1065 = vpop.f32.mrf.mxu0
    %1066 = vmatprep.mubr.bf16.mxu0 0
    %1067 = vmatmul.mubr.bf16.gmra.mxu0 %v157
    %v1068 = vpop.f32.mrf.mxu0
    %v1069 = vadd.f32 0.0, %v1068
    %v1070 = vpop.f32.mrf.mxu0
    %v1071 = vpop.f32.mrf.mxu0
    %v1072 = vadd.f32 0.0, %v1071
    %v1073 = vpop.f32.mrf.mxu0
    %1074 = vmatprep.mubr.bf16.mxu0 0
    %1075 = vmatmul.mubr.bf16.gmra.mxu0 %v158
    %v1076 = vpop.f32.mrf.mxu0
    %v1077 = vadd.f32 0.0, %v1076
    %v1078 = vpop.f32.mrf.mxu0
    %v1079 = vpop.f32.mrf.mxu0
    %v1080 = vadd.f32 0.0, %v1079
    %v1081 = vpop.f32.mrf.mxu0
    %1082 = vmatprep.mubr.bf16.mxu0 0
    %1083 = vmatmul.mubr.bf16.gmra.mxu0 %v159
    %v1084 = vpop.f32.mrf.mxu0
    %v1085 = vadd.f32 0.0, %v1084
    %v1086 = vpop.f32.mrf.mxu0
    %v1087 = vpop.f32.mrf.mxu0
    %v1088 = vadd.f32 0.0, %v1087
    %v1089 = vpop.f32.mrf.mxu0
    %1090 = vdwg.mxu0
    %v1123 = vunpack.c.l.b16 %v761
    %v1124 = vunpack.c.h.b16 %v761
    %v1125 = vunpack.c.l.b16 %v762
    %v1126 = vunpack.c.l.b16 %v763
    %v1127 = vunpack.c.h.b16 %v763
    %v1128 = vunpack.c.l.b16 %v764
    %v1129 = vunpack.c.l.b16 %v765
    %v1130 = vunpack.c.h.b16 %v765
    %v1131 = vunpack.c.l.b16 %v766
    %v1132 = vunpack.c.l.b16 %v767
    %v1133 = vunpack.c.h.b16 %v767
    %v1134 = vunpack.c.l.b16 %v768
    %v1135 = vunpack.c.l.b16 %v769
    %v1136 = vunpack.c.h.b16 %v769
    %v1137 = vunpack.c.l.b16 %v770
    %v1138 = vunpack.c.l.b16 %v771
    %v1139 = vunpack.c.h.b16 %v771
    %v1140 = vunpack.c.l.b16 %v772
    %v1141 = vunpack.c.l.b16 %v773
    %v1142 = vunpack.c.h.b16 %v773
    %v1143 = vunpack.c.l.b16 %v774
    %v1144 = vunpack.c.l.b16 %v775
    %v1145 = vunpack.c.h.b16 %v775
    %v1146 = vunpack.c.l.b16 %v776
    %v1147 = vunpack.c.l.b16 %v777
    %v1148 = vunpack.c.h.b16 %v777
    %v1149 = vunpack.c.l.b16 %v778
    %v1150 = vunpack.c.l.b16 %v779
    %v1151 = vunpack.c.h.b16 %v779
    %v1152 = vunpack.c.l.b16 %v780
    %v1153 = vunpack.c.l.b16 %v781
    %v1154 = vunpack.c.h.b16 %v781
    %v1155 = vunpack.c.l.b16 %v782
    %v1156 = vunpack.c.l.b16 %v783
    %v1157 = vunpack.c.h.b16 %v783
    %v1158 = vunpack.c.l.b16 %v784
    %v1159 = vunpack.c.l.b16 %v785
    %v1160 = vunpack.c.h.b16 %v785
    %v1161 = vunpack.c.l.b16 %v786
    %v1162 = vunpack.c.l.b16 %v787
    %v1163 = vunpack.c.h.b16 %v787
    %v1164 = vunpack.c.l.b16 %v788
    %v1165 = vunpack.c.l.b16 %v789
    %v1166 = vunpack.c.h.b16 %v789
    %v1167 = vunpack.c.l.b16 %v790
    %v1168 = vunpack.c.l.b16 %v791
    %v1169 = vunpack.c.h.b16 %v791
    %v1170 = vunpack.c.l.b16 %v792
    %v1171 = vpack.c.b16 %v1126, %v1123
    %v1172 = vpack.c.b16 %v1127, %v1124
    %v1173 = vpack.c.b16 %v1128, %v1125
    %v1174 = vpack.c.b16 %v1132, %v1129
    %v1175 = vpack.c.b16 %v1133, %v1130
    %v1176 = vpack.c.b16 %v1134, %v1131
    %v1177 = vpack.c.b16 %v1138, %v1135
    %v1178 = vpack.c.b16 %v1139, %v1136
    %v1179 = vpack.c.b16 %v1140, %v1137
    %v1180 = vpack.c.b16 %v1144, %v1141
    %v1181 = vpack.c.b16 %v1145, %v1142
    %v1182 = vpack.c.b16 %v1146, %v1143
    %v1183 = vpack.c.b16 %v1150, %v1147
    %v1184 = vpack.c.b16 %v1151, %v1148
    %v1185 = vpack.c.b16 %v1152, %v1149
    %v1186 = vpack.c.b16 %v1156, %v1153
    %v1187 = vpack.c.b16 %v1157, %v1154
    %v1188 = vpack.c.b16 %v1158, %v1155
    %v1189 = vpack.c.b16 %v1162, %v1159
    %v1190 = vpack.c.b16 %v1163, %v1160
    %v1191 = vpack.c.b16 %v1164, %v1161
    %v1192 = vpack.c.b16 %v1168, %v1165
    %v1193 = vpack.c.b16 %v1169, %v1166
    %v1194 = vpack.c.b16 %v1170, %v1167
    %1219 = vmatprep.subr.bf16.mxu0 %v1193
    %1220 = vmatpush1.bf16.msra.mxu0 %v1192
    %1221 = vmatprep.subr.bf16.mxu0 %v1190
    %1222 = vmatpush1.bf16.msra.mxu0 %v1189
    %1223 = vmatprep.subr.bf16.mxu0 %v1187
    %1224 = vmatpush1.bf16.msra.mxu0 %v1186
    %1225 = vmatprep.subr.bf16.mxu0 %v1184
    %1226 = vmatpush1.bf16.msra.mxu0 %v1183
    %1227 = vmatprep.subr.bf16.mxu0 %v1181
    %1228 = vmatpush1.bf16.msra.mxu0 %v1180
    %1229 = vmatprep.subr.bf16.mxu0 %v1178
    %1230 = vmatpush1.bf16.msra.mxu0 %v1177
    %1231 = vmatprep.subr.bf16.mxu0 %v1175
    %1232 = vmatpush1.bf16.msra.mxu0 %v1174
    %1233 = vmatprep.subr.bf16.mxu0 %v1172
    %1234 = vmatpush1.bf16.msra.mxu0 %v1171
    %1235 = vmatprep.subr.bf16.mxu0 0
    %1236 = vmatpush2.bf16.msra.mxu0 0
    %1237 = vmatprep.subr.bf16.mxu0 0
    %1238 = vmatpush2.bf16.msra.mxu0 0
    %1239 = vmatprep.subr.bf16.mxu0 0
    %1240 = vmatpush2.bf16.msra.mxu0 0
    %1241 = vmatprep.subr.bf16.mxu0 0
    %1242 = vmatpush2.bf16.msra.mxu0 0
    %1243 = vmatprep.subr.bf16.mxu0 0
    %1244 = vmatpush2.bf16.msra.mxu0 0
    %1245 = vmatprep.subr.bf16.mxu0 0
    %1246 = vmatpush2.bf16.msra.mxu0 0
    %1247 = vmatprep.subr.bf16.mxu0 0
    %1248 = vmatpush2.bf16.msra.mxu0 0
    %1249 = vmatprep.subr.bf16.mxu0 0
    %1250 = vmatpush2.bf16.msra.mxu0 0
    %1251 = vmatprep.mubr.bf16.mxu0 0
    %1252 = vmatmul.mubr.bf16.gmra.mxu0 %v446
    %v1253 = vpop.f32.mrf.mxu0
    %v1254 = vadd.f32 %v988, %v1253
    %v1255 = vpop.f32.mrf.mxu0
    %v1256 = vadd.f32 %v990, %v1255
    %v1257 = vpop.f32.mrf.mxu0
    %v1258 = vadd.f32 %v992, %v1257
    %v1259 = vpop.f32.mrf.mxu0
    %v1260 = vadd.f32 %v994, %v1259
    %1261 = vmatprep.mubr.bf16.mxu0 0
    %1262 = vmatmul.mubr.bf16.gmra.mxu0 %v447
    %v1263 = vpop.f32.mrf.mxu0
    %v1264 = vadd.f32 %v998, %v1263
    %v1265 = vpop.f32.mrf.mxu0
    %v1266 = vadd.f32 %v1000, %v1265
    %v1267 = vpop.f32.mrf.mxu0
    %v1268 = vadd.f32 %v1002, %v1267
    %v1269 = vpop.f32.mrf.mxu0
    %v1270 = vadd.f32 %v1004, %v1269
    %1271 = vmatprep.mubr.bf16.mxu0 0
    %1272 = vmatmul.mubr.bf16.gmra.mxu0 %v448
    %v1273 = vpop.f32.mrf.mxu0
    %v1274 = vadd.f32 %v1008, %v1273
    %v1275 = vpop.f32.mrf.mxu0
    %v1276 = vadd.f32 %v1010, %v1275
    %v1277 = vpop.f32.mrf.mxu0
    %v1278 = vadd.f32 %v1012, %v1277
    %v1279 = vpop.f32.mrf.mxu0
    %v1280 = vadd.f32 %v1014, %v1279
    %1281 = vmatprep.mubr.bf16.mxu0 0
    %1282 = vmatmul.mubr.bf16.gmra.mxu0 %v449
    %v1283 = vpop.f32.mrf.mxu0
    %v1284 = vadd.f32 %v1018, %v1283
    %v1285 = vpop.f32.mrf.mxu0
    %v1286 = vadd.f32 %v1020, %v1285
    %v1287 = vpop.f32.mrf.mxu0
    %v1288 = vadd.f32 %v1022, %v1287
    %v1289 = vpop.f32.mrf.mxu0
    %v1290 = vadd.f32 %v1024, %v1289
    %1291 = vdwg.mxu0
    %1292 = vmatprep.subr.bf16.mxu0 0
    %1293 = vmatpush1.bf16.msra.mxu0 %v1194
    %1294 = vmatprep.subr.bf16.mxu0 0
    %1295 = vmatpush1.bf16.msra.mxu0 %v1191
    %1296 = vmatprep.subr.bf16.mxu0 0
    %1297 = vmatpush1.bf16.msra.mxu0 %v1188
    %1298 = vmatprep.subr.bf16.mxu0 0
    %1299 = vmatpush1.bf16.msra.mxu0 %v1185
    %1300 = vmatprep.subr.bf16.mxu0 0
    %1301 = vmatpush1.bf16.msra.mxu0 %v1182
    %1302 = vmatprep.subr.bf16.mxu0 0
    %1303 = vmatpush1.bf16.msra.mxu0 %v1179
    %1304 = vmatprep.subr.bf16.mxu0 0
    %1305 = vmatpush1.bf16.msra.mxu0 %v1176
    %1306 = vmatprep.subr.bf16.mxu0 0
    %1307 = vmatpush1.bf16.msra.mxu0 %v1173
    %1308 = vmatprep.subr.bf16.mxu0 0
    %1309 = vmatpush2.bf16.msra.mxu0 0
    %1310 = vmatprep.subr.bf16.mxu0 0
    %1311 = vmatpush2.bf16.msra.mxu0 0
    %1312 = vmatprep.subr.bf16.mxu0 0
    %1313 = vmatpush2.bf16.msra.mxu0 0
    %1314 = vmatprep.subr.bf16.mxu0 0
    %1315 = vmatpush2.bf16.msra.mxu0 0
    %1316 = vmatprep.subr.bf16.mxu0 0
    %1317 = vmatpush2.bf16.msra.mxu0 0
    %1318 = vmatprep.subr.bf16.mxu0 0
    %1319 = vmatpush2.bf16.msra.mxu0 0
    %1320 = vmatprep.subr.bf16.mxu0 0
    %1321 = vmatpush2.bf16.msra.mxu0 0
    %1322 = vmatprep.subr.bf16.mxu0 0
    %1323 = vmatpush2.bf16.msra.mxu0 0
    %1324 = vmatprep.mubr.bf16.mxu0 0
    %1325 = vmatmul.mubr.bf16.gmra.mxu0 %v446
    %v1326 = vpop.f32.mrf.mxu0
    %v1327 = vadd.f32 %v1061, %v1326
    %v1328 = vpop.f32.mrf.mxu0
    %v1329 = vpop.f32.mrf.mxu0
    %v1330 = vadd.f32 %v1064, %v1329
    %v1331 = vpop.f32.mrf.mxu0
    %1332 = vmatprep.mubr.bf16.mxu0 0
    %1333 = vmatmul.mubr.bf16.gmra.mxu0 %v447
    %v1334 = vpop.f32.mrf.mxu0
    %v1335 = vadd.f32 %v1069, %v1334
    %v1336 = vpop.f32.mrf.mxu0
    %v1337 = vpop.f32.mrf.mxu0
    %v1338 = vadd.f32 %v1072, %v1337
    %v1339 = vpop.f32.mrf.mxu0
    %1340 = vmatprep.mubr.bf16.mxu0 0
    %1341 = vmatmul.mubr.bf16.gmra.mxu0 %v448
    %v1342 = vpop.f32.mrf.mxu0
    %v1343 = vadd.f32 %v1077, %v1342
    %v1344 = vpop.f32.mrf.mxu0
    %v1345 = vpop.f32.mrf.mxu0
    %v1346 = vadd.f32 %v1080, %v1345
    %v1347 = vpop.f32.mrf.mxu0
    %1348 = vmatprep.mubr.bf16.mxu0 0
    %1349 = vmatmul.mubr.bf16.gmra.mxu0 %v449
    %v1350 = vpop.f32.mrf.mxu0
    %v1351 = vadd.f32 %v1085, %v1350
    %v1352 = vpop.f32.mrf.mxu0
    %v1353 = vpop.f32.mrf.mxu0
    %v1354 = vadd.f32 %v1088, %v1353
    %v1355 = vpop.f32.mrf.mxu0
    %1356 = vdwg.mxu0
    %v1357 = vld [vmem:[%s7] sm:$0x7]
    %v1359 = vlaneseq
    %v1360 = vshrl.u32 %v1359, 7
    %v1361 = vsub.s32 0, %v1360
    %v1362 = vrot.slane %v1357, %v1361
    %v1363 = vlaneseq
    %v1364 = vshrl.u32 %v1363, 7
    %v1365 = vsub.s32 1, %v1364
    %v1366 = vrot.slane %v1357, %v1365
    %v1367 = vlaneseq
    %v1368 = vshrl.u32 %v1367, 7
    %v1369 = vsub.s32 2, %v1368
    %v1370 = vrot.slane %v1357, %v1369
    %v1374 = vadd.f32 %v1254, %v1362
    %v1375 = vadd.f32 %v1256, %v1366
    %v1376 = vadd.f32 %v1327, %v1370
    %v1377 = vadd.f32 %v1258, %v1362
    %v1378 = vadd.f32 %v1260, %v1366
    %v1379 = vadd.f32 %v1330, %v1370
    %v1380 = vadd.f32 %v1264, %v1362
    %v1381 = vadd.f32 %v1266, %v1366
    %v1382 = vadd.f32 %v1335, %v1370
    %v1383 = vadd.f32 %v1268, %v1362
    %v1384 = vadd.f32 %v1270, %v1366
    %v1385 = vadd.f32 %v1338, %v1370
    %v1386 = vadd.f32 %v1274, %v1362
    %v1387 = vadd.f32 %v1276, %v1366
    %v1388 = vadd.f32 %v1343, %v1370
    %v1389 = vadd.f32 %v1278, %v1362
    %v1390 = vadd.f32 %v1280, %v1366
    %v1391 = vadd.f32 %v1346, %v1370
    %v1392 = vadd.f32 %v1284, %v1362
    %v1393 = vadd.f32 %v1286, %v1366
    %v1394 = vadd.f32 %v1351, %v1370
    %v1395 = vadd.f32 %v1288, %v1362
    %v1396 = vadd.f32 %v1290, %v1366
    %v1397 = vadd.f32 %v1354, %v1370
    %v1398 = vpack.c.bf16 %v740, %v737
    %v1399 = vpack.c.bf16 %v741, %v738
    %v1400 = vpack.c.bf16 %v742, %v739
    %v1401 = vpack.c.bf16 %v746, %v743
    %v1402 = vpack.c.bf16 %v747, %v744
    %v1403 = vpack.c.bf16 %v748, %v745
    %v1404 = vpack.c.bf16 %v752, %v749
    %v1405 = vpack.c.bf16 %v753, %v750
    %v1406 = vpack.c.bf16 %v754, %v751
    %v1407 = vpack.c.bf16 %v758, %v755
    %v1408 = vpack.c.bf16 %v759, %v756
    %v1409 = vpack.c.bf16 %v760, %v757
    %v1422 = vunpack.c.l.b16 %v1398
    %v1423 = vunpack.c.l.b16 %v1399
    %v1424 = vunpack.c.l.b16 %v1400
    %v1425 = vunpack.c.h.b16 %v1398
    %v1426 = vunpack.c.h.b16 %v1399
    %v1427 = vunpack.c.h.b16 %v1400
    %v1428 = vunpack.c.l.b16 %v1401
    %v1429 = vunpack.c.l.b16 %v1402
    %v1430 = vunpack.c.l.b16 %v1403
    %v1431 = vunpack.c.h.b16 %v1401
    %v1432 = vunpack.c.h.b16 %v1402
    %v1433 = vunpack.c.h.b16 %v1403
    %v1434 = vunpack.c.l.b16 %v1404
    %v1435 = vunpack.c.l.b16 %v1405
    %v1436 = vunpack.c.l.b16 %v1406
    %v1437 = vunpack.c.h.b16 %v1404
    %v1438 = vunpack.c.h.b16 %v1405
    %v1439 = vunpack.c.h.b16 %v1406
    %v1440 = vunpack.c.l.b16 %v1407
    %v1441 = vunpack.c.l.b16 %v1408
    %v1442 = vunpack.c.l.b16 %v1409
    %v1443 = vunpack.c.h.b16 %v1407
    %v1444 = vunpack.c.h.b16 %v1408
    %v1445 = vunpack.c.h.b16 %v1409
    %v1446 = vpack.c.b16 %v1423, %v1422
    %v1447 = vpack.c.b16 %v1424, %v1424
    %v1448 = vpack.c.b16 %v1426, %v1425
    %v1449 = vpack.c.b16 %v1427, %v1427
    %v1450 = vpack.c.b16 %v1429, %v1428
    %v1451 = vpack.c.b16 %v1430, %v1430
    %v1452 = vpack.c.b16 %v1432, %v1431
    %v1453 = vpack.c.b16 %v1433, %v1433
    %v1454 = vpack.c.b16 %v1435, %v1434
    %v1455 = vpack.c.b16 %v1436, %v1436
    %v1456 = vpack.c.b16 %v1438, %v1437
    %v1457 = vpack.c.b16 %v1439, %v1439
    %v1458 = vpack.c.b16 %v1441, %v1440
    %v1459 = vpack.c.b16 %v1442, %v1442
    %v1460 = vpack.c.b16 %v1444, %v1443
    %v1461 = vpack.c.b16 %v1445, %v1445
    %1478 = vst [vmem:[%s8] sm:$0xff] %v1446
    %1479 = vst [vmem:[%s8 + $0x8] sm:$0xf] %v1447
    %1480 = vst [vmem:[%s8 + $0xc] sm:$0xff] %v1448
    %1481 = vst [vmem:[%s8 + $0x14] sm:$0xf] %v1449
    %1482 = vst [vmem:[%s8 + $0x18] sm:$0xff] %v1450
    %1483 = vst [vmem:[%s8 + $0x20] sm:$0xf] %v1451
    %1484 = vst [vmem:[%s8 + $0x24] sm:$0xff] %v1452
    %1485 = vst [vmem:[%s8 + $0x2c] sm:$0xf] %v1453
    %1486 = vst [vmem:[%s8 + $0x30] sm:$0xff] %v1454
    %1487 = vst [vmem:[%s8 + $0x38] sm:$0xf] %v1455
    %1488 = vst [vmem:[%s8 + $0x3c] sm:$0xff] %v1456
    %1489 = vst [vmem:[%s8 + $0x44] sm:$0xf] %v1457
    %1490 = vst [vmem:[%s8 + $0x48] sm:$0xff] %v1458
    %1491 = vst [vmem:[%s8 + $0x50] sm:$0xf] %v1459
    %1492 = vst [vmem:[%s8 + $0x54] sm:$0xff] %v1460
    %1493 = vst [vmem:[%s8 + $0x5c] sm:$0xf] %v1461
    %v1494 = vpack.c.bf16 %v1377, %v1374
    %v1495 = vpack.c.bf16 %v1378, %v1375
    %v1496 = vpack.c.bf16 %v1379, %v1376
    %v1497 = vpack.c.bf16 %v1383, %v1380
    %v1498 = vpack.c.bf16 %v1384, %v1381
    %v1499 = vpack.c.bf16 %v1385, %v1382
    %v1500 = vpack.c.bf16 %v1389, %v1386
    %v1501 = vpack.c.bf16 %v1390, %v1387
    %v1502 = vpack.c.bf16 %v1391, %v1388
    %v1503 = vpack.c.bf16 %v1395, %v1392
    %v1504 = vpack.c.bf16 %v1396, %v1393
    %v1505 = vpack.c.bf16 %v1397, %v1394
    %v1518 = vunpack.c.l.b16 %v1494
    %v1519 = vunpack.c.l.b16 %v1495
    %v1520 = vunpack.c.l.b16 %v1496
    %v1521 = vunpack.c.h.b16 %v1494
    %v1522 = vunpack.c.h.b16 %v1495
    %v1523 = vunpack.c.h.b16 %v1496
    %v1524 = vunpack.c.l.b16 %v1497
    %v1525 = vunpack.c.l.b16 %v1498
    %v1526 = vunpack.c.l.b16 %v1499
    %v1527 = vunpack.c.h.b16 %v1497
    %v1528 = vunpack.c.h.b16 %v1498
    %v1529 = vunpack.c.h.b16 %v1499
    %v1530 = vunpack.c.l.b16 %v1500
    %v1531 = vunpack.c.l.b16 %v1501
    %v1532 = vunpack.c.l.b16 %v1502
    %v1533 = vunpack.c.h.b16 %v1500
    %v1534 = vunpack.c.h.b16 %v1501
    %v1535 = vunpack.c.h.b16 %v1502
    %v1536 = vunpack.c.l.b16 %v1503
    %v1537 = vunpack.c.l.b16 %v1504
    %v1538 = vunpack.c.l.b16 %v1505
    %v1539 = vunpack.c.h.b16 %v1503
    %v1540 = vunpack.c.h.b16 %v1504
    %v1541 = vunpack.c.h.b16 %v1505
    %v1542 = vpack.c.b16 %v1519, %v1518
    %v1543 = vpack.c.b16 %v1520, %v1520
    %v1544 = vpack.c.b16 %v1522, %v1521
    %v1545 = vpack.c.b16 %v1523, %v1523
    %v1546 = vpack.c.b16 %v1525, %v1524
    %v1547 = vpack.c.b16 %v1526, %v1526
    %v1548 = vpack.c.b16 %v1528, %v1527
    %v1549 = vpack.c.b16 %v1529, %v1529
    %v1550 = vpack.c.b16 %v1531, %v1530
    %v1551 = vpack.c.b16 %v1532, %v1532
    %v1552 = vpack.c.b16 %v1534, %v1533
    %v1553 = vpack.c.b16 %v1535, %v1535
    %v1554 = vpack.c.b16 %v1537, %v1536
    %v1555 = vpack.c.b16 %v1538, %v1538
    %v1556 = vpack.c.b16 %v1540, %v1539
    %v1557 = vpack.c.b16 %v1541, %v1541
    %1574 = vst [vmem:[%s9] sm:$0xff] %v1542
    %1575 = vst [vmem:[%s9 + $0x8] sm:$0xf] %v1543
    %1576 = vst [vmem:[%s9 + $0xc] sm:$0xff] %v1544
    %1577 = vst [vmem:[%s9 + $0x14] sm:$0xf] %v1545
    %1578 = vst [vmem:[%s9 + $0x18] sm:$0xff] %v1546
    %1579 = vst [vmem:[%s9 + $0x20] sm:$0xf] %v1547
    %1580 = vst [vmem:[%s9 + $0x24] sm:$0xff] %v1548
    %1581 = vst [vmem:[%s9 + $0x2c] sm:$0xf] %v1549
    %1582 = vst [vmem:[%s9 + $0x30] sm:$0xff] %v1550
    %1583 = vst [vmem:[%s9 + $0x38] sm:$0xf] %v1551
    %1584 = vst [vmem:[%s9 + $0x3c] sm:$0xff] %v1552
    %1585 = vst [vmem:[%s9 + $0x44] sm:$0xf] %v1553
    %1586 = vst [vmem:[%s9 + $0x48] sm:$0xff] %v1554
    %1587 = vst [vmem:[%s9 + $0x50] sm:$0xf] %v1555
    %1588 = vst [vmem:[%s9 + $0x54] sm:$0xff] %v1556
    %1589 = vst [vmem:[%s9 + $0x5c] sm:$0xf] %v1557
    // Predicated region
    $region42: #{ctctop_r_forward.7} parent=1 // pred_check
      _
    $region43: #{ctctop_r_forward.7} parent=1 // pred_check_branch
      %1591 = sbr.rel (0) target = $region45
    $region44: #{ctctop_r_forward.7} parent=1 // pred_region
      _
    $region45: #{ctctop_r_forward.7} parent=1 // pred_fallthru
      _
    // Predicated region
    $region46: #{ctctop_r_forward.7} parent=1 // pred_check
      _
    $region47: #{ctctop_r_forward.7} parent=1 // pred_check_branch
      %1593 = sbr.rel (0) target = $region49
    $region48: #{ctctop_r_forward.7} parent=1 // pred_region
      _
    $region49: #{ctctop_r_forward.7} parent=1 // pred_fallthru
      _
    // Predicated region
    $region50: #{ctctop_r_forward.7} parent=1 // pred_check
      _
    $region51: #{ctctop_r_forward.7} parent=1 // pred_check_branch
      %1595 = sbr.rel (0) target = $region53
    $region52: #{ctctop_r_forward.7} parent=1 // pred_region
      _
    $region53: #{ctctop_r_forward.7} parent=1 // pred_fallthru
      _
    // Predicated region
    $region54: #{ctctop_r_forward.7} parent=1 // pred_check
      _
    $region55: #{ctctop_r_forward.7} parent=1 // pred_check_branch
      %1597 = sbr.rel (0) target = $region57
    $region56: #{ctctop_r_forward.7} parent=1 // pred_region
      _
    $region57: #{ctctop_r_forward.7} parent=1 // pred_fallthru
      _
    %1598 = vsyncpa [#allocation3], 1
    %1599 = vsyncpa [#allocation5], 1

// kernel: ctctop_r_forward.8
$region0: #{ctctop_r_forward.8}
  #allocation0 [shape = 'u32[]', space=smem, size = 0x4, offset = 0x4, fixed_abs, tag = 'smem constant byte address 0x4 - core index']
  #allocation1 [shape = 'u32[144,128]{1,0:T(1,128)}', space=vmem, size = 0x12000, scoped, tag = 'internal scratch']
  #allocation2 [shape = 'f32[8,256]{1,0:T(8,128)}', space=vmem, size = 0x2000, scoped, tag = 'scratch operand']
  %s0 = inlined_call_operand.vmem [shape: bf16[64,384], index: 0, kind: input, shape index: {}]
  %s1 = inlined_call_operand.vmem [shape: bf16[64,384], index: 1, kind: input, shape index: {}]
  %s2 = inlined_call_operand.vmem [shape: bf16[256,768], index: 2, kind: input, shape index: {}]
  %s3 = inlined_call_operand.vmem [shape: f32[1,128], index: 3, kind: input, shape index: {}]
  %s4 = inlined_call_operand.vmem [shape: f32[1,128], index: 4, kind: input, shape index: {}]
  %s5 = inlined_call_operand.vmem [shape: bf16[64,128], index: 5, kind: output, shape index: {0}]
  %s6 = inlined_call_operand.vmem [shape: bf16[64,128], index: 6, kind: output, shape index: {1}]
  %7 = xla_tuple %s5, %s6
  %s8 = sld [smem:[#allocation0]]
  $region42: #{ctctop_r_forward.8} parent=0
    _
  %s10 = ssub.s32 1, %s8
  %s11 = scalar_select 0, %s10, %s8
  // Predicated region
  $region2: #{ctctop_r_forward.8} parent=0 // pred_check
    _
  $region3: #{ctctop_r_forward.8} parent=0 // pred_check_branch
    %13 = sbr.rel (0) target = $region5
  $region4: #{ctctop_r_forward.8} parent=0 // pred_region
    _
  $region5: #{ctctop_r_forward.8} parent=0 // pred_fallthru
    _
  // Predicated region
  $region6: #{ctctop_r_forward.8} parent=0 // pred_check
    _
  $region7: #{ctctop_r_forward.8} parent=0 // pred_check_branch
    %15 = sbr.rel (0) target = $region9
  $region8: #{ctctop_r_forward.8} parent=0 // pred_region
    %s16 = ssub.s32 0, 0
    %s17 = smul.u32 8, %s16
    %p18 = scmp.lt.s32.totalorder %s17, 7
    %s19 = scalar_select %p18, %s17, 7
    %s20 = smul.addr %s19, 3
    %s21 = smul.addr %s20, 4
    %s22 = scalar_lea.vmem %s1, %s21
    %s23 = ssub.s32 0, 0
    %s24 = smul.u32 8, %s23
  $region9: #{ctctop_r_forward.8} parent=0 // pred_fallthru
    _
  // Predicated region
  $region10: #{ctctop_r_forward.8} parent=0 // pred_check
    _
  $region11: #{ctctop_r_forward.8} parent=0 // pred_check_branch
    %26 = sbr.rel (0) target = $region13
  $region12: #{ctctop_r_forward.8} parent=0 // pred_region
    _
  $region13: #{ctctop_r_forward.8} parent=0 // pred_fallthru
    _
  // Predicated region
  $region14: #{ctctop_r_forward.8} parent=0 // pred_check
    _
  $region15: #{ctctop_r_forward.8} parent=0 // pred_check_branch
    %28 = sbr.rel (0) target = $region17
  $region16: #{ctctop_r_forward.8} parent=0 // pred_region
    _
  $region17: #{ctctop_r_forward.8} parent=0 // pred_fallthru
    _
  // Predicated region
  $region18: #{ctctop_r_forward.8} parent=0 // pred_check
    _
  $region19: #{ctctop_r_forward.8} parent=0 // pred_check_branch
    %30 = sbr.rel (0) target = $region21
  $region20: #{ctctop_r_forward.8} parent=0 // pred_region
    _
  $region21: #{ctctop_r_forward.8} parent=0 // pred_fallthru
    _
  %s31 = ssub.s32 0, 0
  %s32 = smul.u32 8, %s31
  %p33 = scmp.lt.s32.totalorder %s32, 7
  %s34 = scalar_select %p33, %s32, 7
  %s35 = smul.addr %s34, 3
  %s36 = smul.addr %s35, 4
  %s37 = scalar_lea.vmem %s1, %s36
  %s38 = ssub.s32 0, 0
  %s39 = smul.u32 8, %s38
  %p40 = scmp.lt.s32.totalorder %s39, 7
  %s41 = scalar_select %p40, %s39, 7
  %s42 = smul.addr %s41, 4
  %s43 = scalar_lea.vmem %s6, %s42
  %s44 = ssub.s32 0, 0
  %s45 = smul.u32 8, %s44
  %p46 = scmp.lt.s32.totalorder %s45, 7
  %s47 = scalar_select %p46, %s45, 7
  %s48 = smul.addr %s47, 3
  %s49 = smul.addr %s48, 4
  %s50 = scalar_lea.vmem %s1, %s49
  %s51 = ssub.s32 0, 0
  %s52 = smul.u32 8, %s51
  %s53 = ssub.s32 0, 0
  %s54 = smul.u32 8, %s53
  %p55 = scmp.lt.s32.totalorder %s54, 7
  %s56 = scalar_select %p55, %s54, 7
  %s57 = smul.addr %s56, 4
  %s58 = scalar_lea.vmem %s6, %s57
  %s59 = ssub.s32 0, 0
  %s60 = smul.u32 8, %s59
  %p61 = scmp.eq.s32.totalorder 0, 0
  // Predicated region
  $region22: #{ctctop_r_forward.8} parent=0 // pred_check
    %p62 = pneg %p61
  $region23: #{ctctop_r_forward.8} parent=0 // pred_check_branch
    %64 = sbr.rel (%p62) target = $region25
  $region24: #{ctctop_r_forward.8} parent=0 // pred_region
    %65 = vst [vmem:[#allocation2] sm:$0xff] 0.0
    %66 = vst [vmem:[#allocation2 + $0x8] sm:$0xff] 0.0
  $region25: #{ctctop_r_forward.8} parent=0 // pred_fallthru
    _
  %v67 = vld [vmem:[%s2] sm:$0xff]
  %v68 = vld [vmem:[%s2 + $0x8] sm:$0xff]
  %v69 = vld [vmem:[%s2 + $0x10] sm:$0xff]
  %v70 = vld [vmem:[%s2 + $0x18] sm:$0xff]
  %v71 = vld [vmem:[%s2 + $0x20] sm:$0xff]
  %v72 = vld [vmem:[%s2 + $0x28] sm:$0xff]
  %v73 = vld [vmem:[%s2 + $0x30] sm:$0xff]
  %v74 = vld [vmem:[%s2 + $0x38] sm:$0xff]
  %v75 = vld [vmem:[%s2 + $0x40] sm:$0xff]
  %v76 = vld [vmem:[%s2 + $0x48] sm:$0xff]
  %v77 = vld [vmem:[%s2 + $0x50] sm:$0xff]
  %v78 = vld [vmem:[%s2 + $0x58] sm:$0xff]
  %v79 = vld [vmem:[%s2 + $0x60] sm:$0xff]
  %v80 = vld [vmem:[%s2 + $0x68] sm:$0xff]
  %v81 = vld [vmem:[%s2 + $0x70] sm:$0xff]
  %v82 = vld [vmem:[%s2 + $0x78] sm:$0xff]
  %v83 = vld [vmem:[%s2 + $0x80] sm:$0xff]
  %v84 = vld [vmem:[%s2 + $0x88] sm:$0xff]
  %v85 = vld [vmem:[%s2 + $0x90] sm:$0xff]
  %v86 = vld [vmem:[%s2 + $0x98] sm:$0xff]
  %v87 = vld [vmem:[%s2 + $0xa0] sm:$0xff]
  %v88 = vld [vmem:[%s2 + $0xa8] sm:$0xff]
  %v89 = vld [vmem:[%s2 + $0xb0] sm:$0xff]
  %v90 = vld [vmem:[%s2 + $0xb8] sm:$0xff]
  %v91 = vld [vmem:[%s2 + $0xc0] sm:$0xff]
  %v92 = vld [vmem:[%s2 + $0xc8] sm:$0xff]
  %v93 = vld [vmem:[%s2 + $0xd0] sm:$0xff]
  %v94 = vld [vmem:[%s2 + $0xd8] sm:$0xff]
  %v95 = vld [vmem:[%s2 + $0xe0] sm:$0xff]
  %v96 = vld [vmem:[%s2 + $0xe8] sm:$0xff]
  %v97 = vld [vmem:[%s2 + $0xf0] sm:$0xff]
  %v98 = vld [vmem:[%s2 + $0xf8] sm:$0xff]
  %v99 = vld [vmem:[%s2 + $0x100] sm:$0xff]
  %v100 = vld [vmem:[%s2 + $0x108] sm:$0xff]
  %v101 = vld [vmem:[%s2 + $0x110] sm:$0xff]
  %v102 = vld [vmem:[%s2 + $0x118] sm:$0xff]
  %v103 = vld [vmem:[%s2 + $0x120] sm:$0xff]
  %v104 = vld [vmem:[%s2 + $0x128] sm:$0xff]
  %v105 = vld [vmem:[%s2 + $0x130] sm:$0xff]
  %v106 = vld [vmem:[%s2 + $0x138] sm:$0xff]
  %v107 = vld [vmem:[%s2 + $0x140] sm:$0xff]
  %v108 = vld [vmem:[%s2 + $0x148] sm:$0xff]
  %v109 = vld [vmem:[%s2 + $0x150] sm:$0xff]
  %v110 = vld [vmem:[%s2 + $0x158] sm:$0xff]
  %v111 = vld [vmem:[%s2 + $0x160] sm:$0xff]
  %v112 = vld [vmem:[%s2 + $0x168] sm:$0xff]
  %v113 = vld [vmem:[%s2 + $0x170] sm:$0xff]
  %v114 = vld [vmem:[%s2 + $0x178] sm:$0xff]
  %v115 = vld [vmem:[%s2 + $0x180] sm:$0xff]
  %v116 = vld [vmem:[%s2 + $0x188] sm:$0xff]
  %v117 = vld [vmem:[%s2 + $0x190] sm:$0xff]
  %v118 = vld [vmem:[%s2 + $0x198] sm:$0xff]
  %v119 = vld [vmem:[%s2 + $0x1a0] sm:$0xff]
  %v120 = vld [vmem:[%s2 + $0x1a8] sm:$0xff]
  %v121 = vld [vmem:[%s2 + $0x1b0] sm:$0xff]
  %v122 = vld [vmem:[%s2 + $0x1b8] sm:$0xff]
  %v123 = vld [vmem:[%s2 + $0x1c0] sm:$0xff]
  %v124 = vld [vmem:[%s2 + $0x1c8] sm:$0xff]
  %v125 = vld [vmem:[%s2 + $0x1d0] sm:$0xff]
  %v126 = vld [vmem:[%s2 + $0x1d8] sm:$0xff]
  %v127 = vld [vmem:[%s2 + $0x1e0] sm:$0xff]
  %v128 = vld [vmem:[%s2 + $0x1e8] sm:$0xff]
  %v129 = vld [vmem:[%s2 + $0x1f0] sm:$0xff]
  %v130 = vld [vmem:[%s2 + $0x1f8] sm:$0xff]
  %v131 = vld [vmem:[%s2 + $0x200] sm:$0xff]
  %v132 = vld [vmem:[%s2 + $0x208] sm:$0xff]
  %v133 = vld [vmem:[%s2 + $0x210] sm:$0xff]
  %v134 = vld [vmem:[%s2 + $0x218] sm:$0xff]
  %v135 = vld [vmem:[%s2 + $0x220] sm:$0xff]
  %v136 = vld [vmem:[%s2 + $0x228] sm:$0xff]
  %v137 = vld [vmem:[%s2 + $0x230] sm:$0xff]
  %v138 = vld [vmem:[%s2 + $0x238] sm:$0xff]
  %v139 = vld [vmem:[%s2 + $0x240] sm:$0xff]
  %v140 = vld [vmem:[%s2 + $0x248] sm:$0xff]
  %v141 = vld [vmem:[%s2 + $0x250] sm:$0xff]
  %v142 = vld [vmem:[%s2 + $0x258] sm:$0xff]
  %v143 = vld [vmem:[%s2 + $0x260] sm:$0xff]
  %v144 = vld [vmem:[%s2 + $0x268] sm:$0xff]
  %v145 = vld [vmem:[%s2 + $0x270] sm:$0xff]
  %v146 = vld [vmem:[%s2 + $0x278] sm:$0xff]
  %v147 = vld [vmem:[%s2 + $0x280] sm:$0xff]
  %v148 = vld [vmem:[%s2 + $0x288] sm:$0xff]
  %v149 = vld [vmem:[%s2 + $0x290] sm:$0xff]
  %v150 = vld [vmem:[%s2 + $0x298] sm:$0xff]
  %v151 = vld [vmem:[%s2 + $0x2a0] sm:$0xff]
  %v152 = vld [vmem:[%s2 + $0x2a8] sm:$0xff]
  %v153 = vld [vmem:[%s2 + $0x2b0] sm:$0xff]
  %v154 = vld [vmem:[%s2 + $0x2b8] sm:$0xff]
  %v155 = vld [vmem:[%s2 + $0x2c0] sm:$0xff]
  %v156 = vld [vmem:[%s2 + $0x2c8] sm:$0xff]
  %v157 = vld [vmem:[%s2 + $0x2d0] sm:$0xff]
  %v158 = vld [vmem:[%s2 + $0x2d8] sm:$0xff]
  %v159 = vld [vmem:[%s2 + $0x2e0] sm:$0xff]
  %v160 = vld [vmem:[%s2 + $0x2e8] sm:$0xff]
  %v161 = vld [vmem:[%s2 + $0x2f0] sm:$0xff]
  %v162 = vld [vmem:[%s2 + $0x2f8] sm:$0xff]
  %v163 = vld [vmem:[%s3] sm:$0x1]
  %v165 = vlaneseq
  %v166 = vshrl.u32 %v165, 7
  %v167 = vsub.s32 0, %v166
  %v168 = vrot.slane %v163, %v167
  %v170 = vld [vmem:[%s4] sm:$0x1]
  %v172 = vlaneseq
  %v173 = vshrl.u32 %v172, 7
  %v174 = vsub.s32 0, %v173
  %v175 = vrot.slane %v170, %v174
  %v177 = vld [vmem:[#allocation2] sm:$0xff]
  %v178 = vld [vmem:[#allocation2 + $0x8] sm:$0xff]
  %s179 = smul.u32 0, 3
  %s180 = smul.addr %s179, 4
  %s181 = scalar_lea.vmem %s0, %s180
  %v182 = vld [vmem:[%s181] sm:$0xff]
  %v183 = vld [vmem:[%s181 + $0x8] sm:$0xf]
  %v184 = vunpack.c.l.bf16 %v182
  %v185 = vunpack.c.h.bf16 %v182
  %v186 = vunpack.c.l.bf16 %v183
  %s187 = smul.u32 7, 3
  %s188 = smul.addr %s187, 4
  %s189 = scalar_lea.vmem %s50, %s188
  %v190 = vld [vmem:[%s189] sm:$0xff]
  %v191 = vld [vmem:[%s189 + $0x8] sm:$0xf]
  %v192 = vunpack.c.l.bf16 %v190
  %v193 = vunpack.c.h.bf16 %v190
  %v194 = vunpack.c.l.bf16 %v191
  %v195 = vpack.c.bf16 %v177, %v177
  %v196 = vpack.c.bf16 %v178, %v178
  %v293 = vunpack.c.l.b16 %v67
  %v294 = vunpack.c.h.b16 %v67
  %v295 = vunpack.c.l.b16 %v68
  %v296 = vunpack.c.h.b16 %v68
  %v297 = vunpack.c.l.b16 %v69
  %v298 = vunpack.c.h.b16 %v69
  %v299 = vunpack.c.l.b16 %v70
  %v300 = vunpack.c.h.b16 %v70
  %v301 = vunpack.c.l.b16 %v71
  %v302 = vunpack.c.h.b16 %v71
  %v303 = vunpack.c.l.b16 %v72
  %v304 = vunpack.c.h.b16 %v72
  %v305 = vunpack.c.l.b16 %v73
  %v306 = vunpack.c.h.b16 %v73
  %v307 = vunpack.c.l.b16 %v74
  %v308 = vunpack.c.h.b16 %v74
  %v309 = vunpack.c.l.b16 %v75
  %v310 = vunpack.c.h.b16 %v75
  %v311 = vunpack.c.l.b16 %v76
  %v312 = vunpack.c.h.b16 %v76
  %v313 = vunpack.c.l.b16 %v77
  %v314 = vunpack.c.h.b16 %v77
  %v315 = vunpack.c.l.b16 %v78
  %v316 = vunpack.c.h.b16 %v78
  %v317 = vunpack.c.l.b16 %v79
  %v318 = vunpack.c.h.b16 %v79
  %v319 = vunpack.c.l.b16 %v80
  %v320 = vunpack.c.h.b16 %v80
  %v321 = vunpack.c.l.b16 %v81
  %v322 = vunpack.c.h.b16 %v81
  %v323 = vunpack.c.l.b16 %v82
  %v324 = vunpack.c.h.b16 %v82
  %v325 = vunpack.c.l.b16 %v83
  %v326 = vunpack.c.h.b16 %v83
  %v327 = vunpack.c.l.b16 %v84
  %v328 = vunpack.c.h.b16 %v84
  %v329 = vunpack.c.l.b16 %v85
  %v330 = vunpack.c.h.b16 %v85
  %v331 = vunpack.c.l.b16 %v86
  %v332 = vunpack.c.h.b16 %v86
  %v333 = vunpack.c.l.b16 %v87
  %v334 = vunpack.c.h.b16 %v87
  %v335 = vunpack.c.l.b16 %v88
  %v336 = vunpack.c.h.b16 %v88
  %v337 = vunpack.c.l.b16 %v89
  %v338 = vunpack.c.h.b16 %v89
  %v339 = vunpack.c.l.b16 %v90
  %v340 = vunpack.c.h.b16 %v90
  %v341 = vunpack.c.l.b16 %v91
  %v342 = vunpack.c.h.b16 %v91
  %v343 = vunpack.c.l.b16 %v92
  %v344 = vunpack.c.h.b16 %v92
  %v345 = vunpack.c.l.b16 %v93
  %v346 = vunpack.c.h.b16 %v93
  %v347 = vunpack.c.l.b16 %v94
  %v348 = vunpack.c.h.b16 %v94
  %v349 = vunpack.c.l.b16 %v95
  %v350 = vunpack.c.h.b16 %v95
  %v351 = vunpack.c.l.b16 %v96
  %v352 = vunpack.c.h.b16 %v96
  %v353 = vunpack.c.l.b16 %v97
  %v354 = vunpack.c.h.b16 %v97
  %v355 = vunpack.c.l.b16 %v98
  %v356 = vunpack.c.h.b16 %v98
  %v357 = vunpack.c.l.b16 %v99
  %v358 = vunpack.c.h.b16 %v99
  %v359 = vunpack.c.l.b16 %v100
  %v360 = vunpack.c.h.b16 %v100
  %v361 = vunpack.c.l.b16 %v101
  %v362 = vunpack.c.h.b16 %v101
  %v363 = vunpack.c.l.b16 %v102
  %v364 = vunpack.c.h.b16 %v102
  %v365 = vunpack.c.l.b16 %v103
  %v366 = vunpack.c.h.b16 %v103
  %v367 = vunpack.c.l.b16 %v104
  %v368 = vunpack.c.h.b16 %v104
  %v369 = vunpack.c.l.b16 %v105
  %v370 = vunpack.c.h.b16 %v105
  %v371 = vunpack.c.l.b16 %v106
  %v372 = vunpack.c.h.b16 %v106
  %v373 = vunpack.c.l.b16 %v107
  %v374 = vunpack.c.h.b16 %v107
  %v375 = vunpack.c.l.b16 %v108
  %v376 = vunpack.c.h.b16 %v108
  %v377 = vunpack.c.l.b16 %v109
  %v378 = vunpack.c.h.b16 %v109
  %v379 = vunpack.c.l.b16 %v110
  %v380 = vunpack.c.h.b16 %v110
  %v381 = vunpack.c.l.b16 %v111
  %v382 = vunpack.c.h.b16 %v111
  %v383 = vunpack.c.l.b16 %v112
  %v384 = vunpack.c.h.b16 %v112
  %v385 = vunpack.c.l.b16 %v113
  %v386 = vunpack.c.h.b16 %v113
  %v387 = vunpack.c.l.b16 %v114
  %v388 = vunpack.c.h.b16 %v114
  %v389 = vunpack.c.l.b16 %v115
  %v390 = vunpack.c.h.b16 %v115
  %v391 = vunpack.c.l.b16 %v116
  %v392 = vunpack.c.h.b16 %v116
  %v393 = vunpack.c.l.b16 %v117
  %v394 = vunpack.c.h.b16 %v117
  %v395 = vunpack.c.l.b16 %v118
  %v396 = vunpack.c.h.b16 %v118
  %v397 = vunpack.c.l.b16 %v119
  %v398 = vunpack.c.h.b16 %v119
  %v399 = vunpack.c.l.b16 %v120
  %v400 = vunpack.c.h.b16 %v120
  %v401 = vunpack.c.l.b16 %v121
  %v402 = vunpack.c.h.b16 %v121
  %v403 = vunpack.c.l.b16 %v122
  %v404 = vunpack.c.h.b16 %v122
  %v405 = vunpack.c.l.b16 %v123
  %v406 = vunpack.c.h.b16 %v123
  %v407 = vunpack.c.l.b16 %v124
  %v408 = vunpack.c.h.b16 %v124
  %v409 = vunpack.c.l.b16 %v125
  %v410 = vunpack.c.h.b16 %v125
  %v411 = vunpack.c.l.b16 %v126
  %v412 = vunpack.c.h.b16 %v126
  %v413 = vunpack.c.l.b16 %v127
  %v414 = vunpack.c.h.b16 %v127
  %v415 = vunpack.c.l.b16 %v128
  %v416 = vunpack.c.h.b16 %v128
  %v417 = vunpack.c.l.b16 %v129
  %v418 = vunpack.c.h.b16 %v129
  %v419 = vunpack.c.l.b16 %v130
  %v420 = vunpack.c.h.b16 %v130
  %v421 = vunpack.c.l.b16 %v131
  %v422 = vunpack.c.h.b16 %v131
  %v423 = vunpack.c.l.b16 %v132
  %v424 = vunpack.c.h.b16 %v132
  %v425 = vunpack.c.l.b16 %v133
  %v426 = vunpack.c.h.b16 %v133
  %v427 = vunpack.c.l.b16 %v134
  %v428 = vunpack.c.h.b16 %v134
  %v429 = vunpack.c.l.b16 %v135
  %v430 = vunpack.c.h.b16 %v135
  %v431 = vunpack.c.l.b16 %v136
  %v432 = vunpack.c.h.b16 %v136
  %v433 = vunpack.c.l.b16 %v137
  %v434 = vunpack.c.h.b16 %v137
  %v435 = vunpack.c.l.b16 %v138
  %v436 = vunpack.c.h.b16 %v138
  %v437 = vunpack.c.l.b16 %v139
  %v438 = vunpack.c.h.b16 %v139
  %v439 = vunpack.c.l.b16 %v140
  %v440 = vunpack.c.h.b16 %v140
  %v441 = vunpack.c.l.b16 %v141
  %v442 = vunpack.c.h.b16 %v141
  %v443 = vunpack.c.l.b16 %v142
  %v444 = vunpack.c.h.b16 %v142
  %v445 = vunpack.c.l.b16 %v143
  %v446 = vunpack.c.h.b16 %v143
  %v447 = vunpack.c.l.b16 %v144
  %v448 = vunpack.c.h.b16 %v144
  %v449 = vunpack.c.l.b16 %v145
  %v450 = vunpack.c.h.b16 %v145
  %v451 = vunpack.c.l.b16 %v146
  %v452 = vunpack.c.h.b16 %v146
  %v453 = vunpack.c.l.b16 %v147
  %v454 = vunpack.c.h.b16 %v147
  %v455 = vunpack.c.l.b16 %v148
  %v456 = vunpack.c.h.b16 %v148
  %v457 = vunpack.c.l.b16 %v149
  %v458 = vunpack.c.h.b16 %v149
  %v459 = vunpack.c.l.b16 %v150
  %v460 = vunpack.c.h.b16 %v150
  %v461 = vunpack.c.l.b16 %v151
  %v462 = vunpack.c.h.b16 %v151
  %v463 = vunpack.c.l.b16 %v152
  %v464 = vunpack.c.h.b16 %v152
  %v465 = vunpack.c.l.b16 %v153
  %v466 = vunpack.c.h.b16 %v153
  %v467 = vunpack.c.l.b16 %v154
  %v468 = vunpack.c.h.b16 %v154
  %v469 = vunpack.c.l.b16 %v155
  %v470 = vunpack.c.h.b16 %v155
  %v471 = vunpack.c.l.b16 %v156
  %v472 = vunpack.c.h.b16 %v156
  %v473 = vunpack.c.l.b16 %v157
  %v474 = vunpack.c.h.b16 %v157
  %v475 = vunpack.c.l.b16 %v158
  %v476 = vunpack.c.h.b16 %v158
  %v477 = vunpack.c.l.b16 %v159
  %v478 = vunpack.c.h.b16 %v159
  %v479 = vunpack.c.l.b16 %v160
  %v480 = vunpack.c.h.b16 %v160
  %v481 = vunpack.c.l.b16 %v161
  %v482 = vunpack.c.h.b16 %v161
  %v483 = vunpack.c.l.b16 %v162
  %v484 = vunpack.c.h.b16 %v162
  %v485 = vpack.c.b16 %v299, %v293
  %v486 = vpack.c.b16 %v300, %v294
  %v487 = vpack.c.b16 %v301, %v295
  %v488 = vpack.c.b16 %v302, %v296
  %v489 = vpack.c.b16 %v303, %v297
  %v490 = vpack.c.b16 %v304, %v298
  %v491 = vpack.c.b16 %v311, %v305
  %v492 = vpack.c.b16 %v312, %v306
  %v493 = vpack.c.b16 %v313, %v307
  %v494 = vpack.c.b16 %v314, %v308
  %v495 = vpack.c.b16 %v315, %v309
  %v496 = vpack.c.b16 %v316, %v310
  %v497 = vpack.c.b16 %v323, %v317
  %v498 = vpack.c.b16 %v324, %v318
  %v499 = vpack.c.b16 %v325, %v319
  %v500 = vpack.c.b16 %v326, %v320
  %v501 = vpack.c.b16 %v327, %v321
  %v502 = vpack.c.b16 %v328, %v322
  %v503 = vpack.c.b16 %v335, %v329
  %v504 = vpack.c.b16 %v336, %v330
  %v505 = vpack.c.b16 %v337, %v331
  %v506 = vpack.c.b16 %v338, %v332
  %v507 = vpack.c.b16 %v339, %v333
  %v508 = vpack.c.b16 %v340, %v334
  %v509 = vpack.c.b16 %v347, %v341
  %v510 = vpack.c.b16 %v348, %v342
  %v511 = vpack.c.b16 %v349, %v343
  %v512 = vpack.c.b16 %v350, %v344
  %v513 = vpack.c.b16 %v351, %v345
  %v514 = vpack.c.b16 %v352, %v346
  %v515 = vpack.c.b16 %v359, %v353
  %v516 = vpack.c.b16 %v360, %v354
  %v517 = vpack.c.b16 %v361, %v355
  %v518 = vpack.c.b16 %v362, %v356
  %v519 = vpack.c.b16 %v363, %v357
  %v520 = vpack.c.b16 %v364, %v358
  %v521 = vpack.c.b16 %v371, %v365
  %v522 = vpack.c.b16 %v372, %v366
  %v523 = vpack.c.b16 %v373, %v367
  %v524 = vpack.c.b16 %v374, %v368
  %v525 = vpack.c.b16 %v375, %v369
  %v526 = vpack.c.b16 %v376, %v370
  %v527 = vpack.c.b16 %v383, %v377
  %v528 = vpack.c.b16 %v384, %v378
  %v529 = vpack.c.b16 %v385, %v379
  %v530 = vpack.c.b16 %v386, %v380
  %v531 = vpack.c.b16 %v387, %v381
  %v532 = vpack.c.b16 %v388, %v382
  %v533 = vpack.c.b16 %v395, %v389
  %v534 = vpack.c.b16 %v396, %v390
  %v535 = vpack.c.b16 %v397, %v391
  %v536 = vpack.c.b16 %v398, %v392
  %v537 = vpack.c.b16 %v399, %v393
  %v538 = vpack.c.b16 %v400, %v394
  %v539 = vpack.c.b16 %v407, %v401
  %v540 = vpack.c.b16 %v408, %v402
  %v541 = vpack.c.b16 %v409, %v403
  %v542 = vpack.c.b16 %v410, %v404
  %v543 = vpack.c.b16 %v411, %v405
  %v544 = vpack.c.b16 %v412, %v406
  %v545 = vpack.c.b16 %v419, %v413
  %v546 = vpack.c.b16 %v420, %v414
  %v547 = vpack.c.b16 %v421, %v415
  %v548 = vpack.c.b16 %v422, %v416
  %v549 = vpack.c.b16 %v423, %v417
  %v550 = vpack.c.b16 %v424, %v418
  %v551 = vpack.c.b16 %v431, %v425
  %v552 = vpack.c.b16 %v432, %v426
  %v553 = vpack.c.b16 %v433, %v427
  %v554 = vpack.c.b16 %v434, %v428
  %v555 = vpack.c.b16 %v435, %v429
  %v556 = vpack.c.b16 %v436, %v430
  %v557 = vpack.c.b16 %v443, %v437
  %v558 = vpack.c.b16 %v444, %v438
  %v559 = vpack.c.b16 %v445, %v439
  %v560 = vpack.c.b16 %v446, %v440
  %v561 = vpack.c.b16 %v447, %v441
  %v562 = vpack.c.b16 %v448, %v442
  %v563 = vpack.c.b16 %v455, %v449
  %v564 = vpack.c.b16 %v456, %v450
  %v565 = vpack.c.b16 %v457, %v451
  %v566 = vpack.c.b16 %v458, %v452
  %v567 = vpack.c.b16 %v459, %v453
  %v568 = vpack.c.b16 %v460, %v454
  %v569 = vpack.c.b16 %v467, %v461
  %v570 = vpack.c.b16 %v468, %v462
  %v571 = vpack.c.b16 %v469, %v463
  %v572 = vpack.c.b16 %v470, %v464
  %v573 = vpack.c.b16 %v471, %v465
  %v574 = vpack.c.b16 %v472, %v466
  %v575 = vpack.c.b16 %v479, %v473
  %v576 = vpack.c.b16 %v480, %v474
  %v577 = vpack.c.b16 %v481, %v475
  %v578 = vpack.c.b16 %v482, %v476
  %v579 = vpack.c.b16 %v483, %v477
  %v580 = vpack.c.b16 %v484, %v478
  %677 = vmatprep.subr.bf16.mxu0 %v528
  %678 = vmatpush1.bf16.msra.mxu0 %v527
  %679 = vmatprep.subr.bf16.mxu0 %v522
  %680 = vmatpush1.bf16.msra.mxu0 %v521
  %681 = vmatprep.subr.bf16.mxu0 %v516
  %682 = vmatpush1.bf16.msra.mxu0 %v515
  %683 = vmatprep.subr.bf16.mxu0 %v510
  %684 = vmatpush1.bf16.msra.mxu0 %v509
  %685 = vmatprep.subr.bf16.mxu0 %v504
  %686 = vmatpush1.bf16.msra.mxu0 %v503
  %687 = vmatprep.subr.bf16.mxu0 %v498
  %688 = vmatpush1.bf16.msra.mxu0 %v497
  %689 = vmatprep.subr.bf16.mxu0 %v492
  %690 = vmatpush1.bf16.msra.mxu0 %v491
  %691 = vmatprep.subr.bf16.mxu0 %v486
  %692 = vmatpush1.bf16.msra.mxu0 %v485
  %693 = vmatprep.subr.bf16.mxu0 %v576
  %694 = vmatpush2.bf16.msra.mxu0 %v575
  %695 = vmatprep.subr.bf16.mxu0 %v570
  %696 = vmatpush2.bf16.msra.mxu0 %v569
  %697 = vmatprep.subr.bf16.mxu0 %v564
  %698 = vmatpush2.bf16.msra.mxu0 %v563
  %699 = vmatprep.subr.bf16.mxu0 %v558
  %700 = vmatpush2.bf16.msra.mxu0 %v557
  %701 = vmatprep.subr.bf16.mxu0 %v552
  %702 = vmatpush2.bf16.msra.mxu0 %v551
  %703 = vmatprep.subr.bf16.mxu0 %v546
  %704 = vmatpush2.bf16.msra.mxu0 %v545
  %705 = vmatprep.subr.bf16.mxu0 %v540
  %706 = vmatpush2.bf16.msra.mxu0 %v539
  %707 = vmatprep.subr.bf16.mxu0 %v534
  %708 = vmatpush2.bf16.msra.mxu0 %v533
  %709 = vmatprep.mubr.bf16.mxu0 %v196
  %710 = vmatmul.mubr.bf16.gmra.mxu0 %v195
  %v711 = vpop.f32.mrf.mxu0
  %v712 = vadd.f32 0.0, %v711
  %v713 = vpop.f32.mrf.mxu0
  %v714 = vadd.f32 0.0, %v713
  %v715 = vpop.f32.mrf.mxu0
  %v716 = vpop.f32.mrf.mxu0
  %717 = vdwg.mxu0
  %718 = vmatprep.subr.bf16.mxu0 %v530
  %719 = vmatpush1.bf16.msra.mxu0 %v529
  %720 = vmatprep.subr.bf16.mxu0 %v524
  %721 = vmatpush1.bf16.msra.mxu0 %v523
  %722 = vmatprep.subr.bf16.mxu0 %v518
  %723 = vmatpush1.bf16.msra.mxu0 %v517
  %724 = vmatprep.subr.bf16.mxu0 %v512
  %725 = vmatpush1.bf16.msra.mxu0 %v511
  %726 = vmatprep.subr.bf16.mxu0 %v506
  %727 = vmatpush1.bf16.msra.mxu0 %v505
  %728 = vmatprep.subr.bf16.mxu0 %v500
  %729 = vmatpush1.bf16.msra.mxu0 %v499
  %730 = vmatprep.subr.bf16.mxu0 %v494
  %731 = vmatpush1.bf16.msra.mxu0 %v493
  %732 = vmatprep.subr.bf16.mxu0 %v488
  %733 = vmatpush1.bf16.msra.mxu0 %v487
  %734 = vmatprep.subr.bf16.mxu0 %v578
  %735 = vmatpush2.bf16.msra.mxu0 %v577
  %736 = vmatprep.subr.bf16.mxu0 %v572
  %737 = vmatpush2.bf16.msra.mxu0 %v571
  %738 = vmatprep.subr.bf16.mxu0 %v566
  %739 = vmatpush2.bf16.msra.mxu0 %v565
  %740 = vmatprep.subr.bf16.mxu0 %v560
  %741 = vmatpush2.bf16.msra.mxu0 %v559
  %742 = vmatprep.subr.bf16.mxu0 %v554
  %743 = vmatpush2.bf16.msra.mxu0 %v553
  %744 = vmatprep.subr.bf16.mxu0 %v548
  %745 = vmatpush2.bf16.msra.mxu0 %v547
  %746 = vmatprep.subr.bf16.mxu0 %v542
  %747 = vmatpush2.bf16.msra.mxu0 %v541
  %748 = vmatprep.subr.bf16.mxu0 %v536
  %749 = vmatpush2.bf16.msra.mxu0 %v535
  %750 = vmatprep.mubr.bf16.mxu0 %v196
  %751 = vmatmul.mubr.bf16.gmra.mxu0 %v195
  %v752 = vpop.f32.mrf.mxu0
  %v753 = vadd.f32 0.0, %v752
  %v754 = vpop.f32.mrf.mxu0
  %v755 = vadd.f32 0.0, %v754
  %v756 = vpop.f32.mrf.mxu0
  %v757 = vpop.f32.mrf.mxu0
  %758 = vdwg.mxu0
  %759 = vmatprep.subr.bf16.mxu0 %v532
  %760 = vmatpush1.bf16.msra.mxu0 %v531
  %761 = vmatprep.subr.bf16.mxu0 %v526
  %762 = vmatpush1.bf16.msra.mxu0 %v525
  %763 = vmatprep.subr.bf16.mxu0 %v520
  %764 = vmatpush1.bf16.msra.mxu0 %v519
  %765 = vmatprep.subr.bf16.mxu0 %v514
  %766 = vmatpush1.bf16.msra.mxu0 %v513
  %767 = vmatprep.subr.bf16.mxu0 %v508
  %768 = vmatpush1.bf16.msra.mxu0 %v507
  %769 = vmatprep.subr.bf16.mxu0 %v502
  %770 = vmatpush1.bf16.msra.mxu0 %v501
  %771 = vmatprep.subr.bf16.mxu0 %v496
  %772 = vmatpush1.bf16.msra.mxu0 %v495
  %773 = vmatprep.subr.bf16.mxu0 %v490
  %774 = vmatpush1.bf16.msra.mxu0 %v489
  %775 = vmatprep.subr.bf16.mxu0 %v580
  %776 = vmatpush2.bf16.msra.mxu0 %v579
  %777 = vmatprep.subr.bf16.mxu0 %v574
  %778 = vmatpush2.bf16.msra.mxu0 %v573
  %779 = vmatprep.subr.bf16.mxu0 %v568
  %780 = vmatpush2.bf16.msra.mxu0 %v567
  %781 = vmatprep.subr.bf16.mxu0 %v562
  %782 = vmatpush2.bf16.msra.mxu0 %v561
  %783 = vmatprep.subr.bf16.mxu0 %v556
  %784 = vmatpush2.bf16.msra.mxu0 %v555
  %785 = vmatprep.subr.bf16.mxu0 %v550
  %786 = vmatpush2.bf16.msra.mxu0 %v549
  %787 = vmatprep.subr.bf16.mxu0 %v544
  %788 = vmatpush2.bf16.msra.mxu0 %v543
  %789 = vmatprep.subr.bf16.mxu0 %v538
  %790 = vmatpush2.bf16.msra.mxu0 %v537
  %791 = vmatprep.mubr.bf16.mxu0 %v196
  %792 = vmatmul.mubr.bf16.gmra.mxu0 %v195
  %v793 = vpop.f32.mrf.mxu0
  %v794 = vadd.f32 0.0, %v793
  %v795 = vpop.f32.mrf.mxu0
  %v796 = vadd.f32 0.0, %v795
  %v797 = vpop.f32.mrf.mxu0
  %v798 = vpop.f32.mrf.mxu0
  %799 = vdwg.mxu0
  %v800 = vadd.f32 %v184, %v712
  %v801 = vxor.u32 %v800, 2147483648
  %v802 = vmul.f32 %v801, 1.442695
  %v803 = vpow.pop %v802
  %v804 = vadd.f32 %v803, 1.0
  %v805 = vrcp.pop %v804
  %v806 = vmul.f32 1.0, %v805
  %v807 = vadd.f32 %v185, %v714
  %v808 = vxor.u32 %v807, 2147483648
  %v809 = vmul.f32 %v808, 1.442695
  %v810 = vpow.pop %v809
  %v811 = vadd.f32 %v810, 1.0
  %v812 = vrcp.pop %v811
  %v813 = vmul.f32 1.0, %v812
  %v814 = vadd.f32 %v753, %v168
  %v815 = vmul.f32 %v806, %v814
  %v816 = vadd.f32 %v186, %v815
  %v817 = vtanh.pop %v816
  %v818 = vsub.f32 %v177, %v817
  %v819 = vmul.f32 %v813, %v818
  %v820 = vadd.f32 %v817, %v819
  %v821 = vadd.f32 %v192, %v755
  %v822 = vxor.u32 %v821, 2147483648
  %v823 = vmul.f32 %v822, 1.442695
  %v824 = vpow.pop %v823
  %v825 = vadd.f32 %v824, 1.0
  %v826 = vrcp.pop %v825
  %v827 = vmul.f32 1.0, %v826
  %v828 = vadd.f32 %v193, %v794
  %v829 = vxor.u32 %v828, 2147483648
  %v830 = vmul.f32 %v829, 1.442695
  %v831 = vpow.pop %v830
  %v832 = vadd.f32 %v831, 1.0
  %v833 = vrcp.pop %v832
  %v834 = vmul.f32 1.0, %v833
  %v835 = vadd.f32 %v796, %v175
  %v836 = vmul.f32 %v827, %v835
  %v837 = vadd.f32 %v194, %v836
  %v838 = vtanh.pop %v837
  %v839 = vsub.f32 %v178, %v838
  %v840 = vmul.f32 %v834, %v839
  %v841 = vadd.f32 %v838, %v840
  %v842 = vpack.c.bf16 %v820, %v820
  %843 = vst [vmem:[%s5] sm:$0xf] %v842
  %v844 = vpack.c.bf16 %v841, %v841
  %s845 = scalar_lea.vmem %s58, 28
  %846 = vst [vmem:[%s845] sm:$0xf] %v844
  %s847 = smul.u32 1, 3
  %s848 = smul.addr %s847, 4
  %s849 = scalar_lea.vmem %s0, %s848
  %v850 = vld [vmem:[%s849] sm:$0xff]
  %v851 = vld [vmem:[%s849 + $0x8] sm:$0xf]
  %v852 = vunpack.c.l.bf16 %v850
  %v853 = vunpack.c.h.bf16 %v850
  %v854 = vunpack.c.l.bf16 %v851
  %s855 = smul.u32 6, 3
  %s856 = smul.addr %s855, 4
  %s857 = scalar_lea.vmem %s50, %s856
  %v858 = vld [vmem:[%s857] sm:$0xff]
  %v859 = vld [vmem:[%s857 + $0x8] sm:$0xf]
  %v860 = vunpack.c.l.bf16 %v858
  %v861 = vunpack.c.h.bf16 %v858
  %v862 = vunpack.c.l.bf16 %v859
  %863 = vmatprep.subr.bf16.mxu0 %v528
  %864 = vmatpush1.bf16.msra.mxu0 %v527
  %865 = vmatprep.subr.bf16.mxu0 %v522
  %866 = vmatpush1.bf16.msra.mxu0 %v521
  %867 = vmatprep.subr.bf16.mxu0 %v516
  %868 = vmatpush1.bf16.msra.mxu0 %v515
  %869 = vmatprep.subr.bf16.mxu0 %v510
  %870 = vmatpush1.bf16.msra.mxu0 %v509
  %871 = vmatprep.subr.bf16.mxu0 %v504
  %872 = vmatpush1.bf16.msra.mxu0 %v503
  %873 = vmatprep.subr.bf16.mxu0 %v498
  %874 = vmatpush1.bf16.msra.mxu0 %v497
  %875 = vmatprep.subr.bf16.mxu0 %v492
  %876 = vmatpush1.bf16.msra.mxu0 %v491
  %877 = vmatprep.subr.bf16.mxu0 %v486
  %878 = vmatpush1.bf16.msra.mxu0 %v485
  %879 = vmatprep.subr.bf16.mxu0 %v576
  %880 = vmatpush2.bf16.msra.mxu0 %v575
  %881 = vmatprep.subr.bf16.mxu0 %v570
  %882 = vmatpush2.bf16.msra.mxu0 %v569
  %883 = vmatprep.subr.bf16.mxu0 %v564
  %884 = vmatpush2.bf16.msra.mxu0 %v563
  %885 = vmatprep.subr.bf16.mxu0 %v558
  %886 = vmatpush2.bf16.msra.mxu0 %v557
  %887 = vmatprep.subr.bf16.mxu0 %v552
  %888 = vmatpush2.bf16.msra.mxu0 %v551
  %889 = vmatprep.subr.bf16.mxu0 %v546
  %890 = vmatpush2.bf16.msra.mxu0 %v545
  %891 = vmatprep.subr.bf16.mxu0 %v540
  %892 = vmatpush2.bf16.msra.mxu0 %v539
  %893 = vmatprep.subr.bf16.mxu0 %v534
  %894 = vmatpush2.bf16.msra.mxu0 %v533
  %895 = vmatprep.mubr.bf16.mxu0 %v844
  %896 = vmatmul.mubr.bf16.gmra.mxu0 %v842
  %v897 = vpop.f32.mrf.mxu0
  %v898 = vadd.f32 0.0, %v897
  %v899 = vpop.f32.mrf.mxu0
  %v900 = vadd.f32 0.0, %v899
  %v901 = vpop.f32.mrf.mxu0
  %v902 = vpop.f32.mrf.mxu0
  %903 = vdwg.mxu0
  %904 = vmatprep.subr.bf16.mxu0 %v530
  %905 = vmatpush1.bf16.msra.mxu0 %v529
  %906 = vmatprep.subr.bf16.mxu0 %v524
  %907 = vmatpush1.bf16.msra.mxu0 %v523
  %908 = vmatprep.subr.bf16.mxu0 %v518
  %909 = vmatpush1.bf16.msra.mxu0 %v517
  %910 = vmatprep.subr.bf16.mxu0 %v512
  %911 = vmatpush1.bf16.msra.mxu0 %v511
  %912 = vmatprep.subr.bf16.mxu0 %v506
  %913 = vmatpush1.bf16.msra.mxu0 %v505
  %914 = vmatprep.subr.bf16.mxu0 %v500
  %915 = vmatpush1.bf16.msra.mxu0 %v499
  %916 = vmatprep.subr.bf16.mxu0 %v494
  %917 = vmatpush1.bf16.msra.mxu0 %v493
  %918 = vmatprep.subr.bf16.mxu0 %v488
  %919 = vmatpush1.bf16.msra.mxu0 %v487
  %920 = vmatprep.subr.bf16.mxu0 %v578
  %921 = vmatpush2.bf16.msra.mxu0 %v577
  %922 = vmatprep.subr.bf16.mxu0 %v572
  %923 = vmatpush2.bf16.msra.mxu0 %v571
  %924 = vmatprep.subr.bf16.mxu0 %v566
  %925 = vmatpush2.bf16.msra.mxu0 %v565
  %926 = vmatprep.subr.bf16.mxu0 %v560
  %927 = vmatpush2.bf16.msra.mxu0 %v559
  %928 = vmatprep.subr.bf16.mxu0 %v554
  %929 = vmatpush2.bf16.msra.mxu0 %v553
  %930 = vmatprep.subr.bf16.mxu0 %v548
  %931 = vmatpush2.bf16.msra.mxu0 %v547
  %932 = vmatprep.subr.bf16.mxu0 %v542
  %933 = vmatpush2.bf16.msra.mxu0 %v541
  %934 = vmatprep.subr.bf16.mxu0 %v536
  %935 = vmatpush2.bf16.msra.mxu0 %v535
  %936 = vmatprep.mubr.bf16.mxu0 %v844
  %937 = vmatmul.mubr.bf16.gmra.mxu0 %v842
  %v938 = vpop.f32.mrf.mxu0
  %v939 = vadd.f32 0.0, %v938
  %v940 = vpop.f32.mrf.mxu0
  %v941 = vadd.f32 0.0, %v940
  %v942 = vpop.f32.mrf.mxu0
  %v943 = vpop.f32.mrf.mxu0
  %944 = vdwg.mxu0
  %945 = vmatprep.subr.bf16.mxu0 %v532
  %946 = vmatpush1.bf16.msra.mxu0 %v531
  %947 = vmatprep.subr.bf16.mxu0 %v526
  %948 = vmatpush1.bf16.msra.mxu0 %v525
  %949 = vmatprep.subr.bf16.mxu0 %v520
  %950 = vmatpush1.bf16.msra.mxu0 %v519
  %951 = vmatprep.subr.bf16.mxu0 %v514
  %952 = vmatpush1.bf16.msra.mxu0 %v513
  %953 = vmatprep.subr.bf16.mxu0 %v508
  %954 = vmatpush1.bf16.msra.mxu0 %v507
  %955 = vmatprep.subr.bf16.mxu0 %v502
  %956 = vmatpush1.bf16.msra.mxu0 %v501
  %957 = vmatprep.subr.bf16.mxu0 %v496
  %958 = vmatpush1.bf16.msra.mxu0 %v495
  %959 = vmatprep.subr.bf16.mxu0 %v490
  %960 = vmatpush1.bf16.msra.mxu0 %v489
  %961 = vmatprep.subr.bf16.mxu0 %v580
  %962 = vmatpush2.bf16.msra.mxu0 %v579
  %963 = vmatprep.subr.bf16.mxu0 %v574
  %964 = vmatpush2.bf16.msra.mxu0 %v573
  %965 = vmatprep.subr.bf16.mxu0 %v568
  %966 = vmatpush2.bf16.msra.mxu0 %v567
  %967 = vmatprep.subr.bf16.mxu0 %v562
  %968 = vmatpush2.bf16.msra.mxu0 %v561
  %969 = vmatprep.subr.bf16.mxu0 %v556
  %970 = vmatpush2.bf16.msra.mxu0 %v555
  %971 = vmatprep.subr.bf16.mxu0 %v550
  %972 = vmatpush2.bf16.msra.mxu0 %v549
  %973 = vmatprep.subr.bf16.mxu0 %v544
  %974 = vmatpush2.bf16.msra.mxu0 %v543
  %975 = vmatprep.subr.bf16.mxu0 %v538
  %976 = vmatpush2.bf16.msra.mxu0 %v537
  %977 = vmatprep.mubr.bf16.mxu0 %v844
  %978 = vmatmul.mubr.bf16.gmra.mxu0 %v842
  %v979 = vpop.f32.mrf.mxu0
  %v980 = vadd.f32 0.0, %v979
  %v981 = vpop.f32.mrf.mxu0
  %v982 = vadd.f32 0.0, %v981
  %v983 = vpop.f32.mrf.mxu0
  %v984 = vpop.f32.mrf.mxu0
  %985 = vdwg.mxu0
  %v986 = vadd.f32 %v852, %v898
  %v987 = vxor.u32 %v986, 2147483648
  %v988 = vmul.f32 %v987, 1.442695
  %v989 = vpow.pop %v988
  %v990 = vadd.f32 %v989, 1.0
  %v991 = vrcp.pop %v990
  %v992 = vmul.f32 1.0, %v991
  %v993 = vadd.f32 %v853, %v900
  %v994 = vxor.u32 %v993, 2147483648
  %v995 = vmul.f32 %v994, 1.442695
  %v996 = vpow.pop %v995
  %v997 = vadd.f32 %v996, 1.0
  %v998 = vrcp.pop %v997
  %v999 = vmul.f32 1.0, %v998
  %v1000 = vadd.f32 %v939, %v168
  %v1001 = vmul.f32 %v992, %v1000
  %v1002 = vadd.f32 %v854, %v1001
  %v1003 = vtanh.pop %v1002
  %v1004 = vsub.f32 %v820, %v1003
  %v1005 = vmul.f32 %v999, %v1004
  %v1006 = vadd.f32 %v1003, %v1005
  %v1007 = vadd.f32 %v860, %v941
  %v1008 = vxor.u32 %v1007, 2147483648
  %v1009 = vmul.f32 %v1008, 1.442695
  %v1010 = vpow.pop %v1009
  %v1011 = vadd.f32 %v1010, 1.0
  %v1012 = vrcp.pop %v1011
  %v1013 = vmul.f32 1.0, %v1012
  %v1014 = vadd.f32 %v861, %v980
  %v1015 = vxor.u32 %v1014, 2147483648
  %v1016 = vmul.f32 %v1015, 1.442695
  %v1017 = vpow.pop %v1016
  %v1018 = vadd.f32 %v1017, 1.0
  %v1019 = vrcp.pop %v1018
  %v1020 = vmul.f32 1.0, %v1019
  %v1021 = vadd.f32 %v982, %v175
  %v1022 = vmul.f32 %v1013, %v1021
  %v1023 = vadd.f32 %v862, %v1022
  %v1024 = vtanh.pop %v1023
  %v1025 = vsub.f32 %v841, %v1024
  %v1026 = vmul.f32 %v1020, %v1025
  %v1027 = vadd.f32 %v1024, %v1026
  %v1028 = vpack.c.bf16 %v1006, %v1006
  %s1029 = scalar_lea.vmem %s5, 4
  %1030 = vst [vmem:[%s1029] sm:$0xf] %v1028
  %v1031 = vpack.c.bf16 %v1027, %v1027
  %s1032 = scalar_lea.vmem %s58, 24
  %1033 = vst [vmem:[%s1032] sm:$0xf] %v1031
  %s1034 = smul.u32 2, 3
  %s1035 = smul.addr %s1034, 4
  %s1036 = scalar_lea.vmem %s0, %s1035
  %v1037 = vld [vmem:[%s1036] sm:$0xff]
  %v1038 = vld [vmem:[%s1036 + $0x8] sm:$0xf]
  %v1039 = vunpack.c.l.bf16 %v1037
  %v1040 = vunpack.c.h.bf16 %v1037
  %v1041 = vunpack.c.l.bf16 %v1038
  %s1042 = smul.u32 5, 3
  %s1043 = smul.addr %s1042, 4
  %s1044 = scalar_lea.vmem %s50, %s1043
  %v1045 = vld [vmem:[%s1044] sm:$0xff]
  %v1046 = vld [vmem:[%s1044 + $0x8] sm:$0xf]
  %v1047 = vunpack.c.l.bf16 %v1045
  %v1048 = vunpack.c.h.bf16 %v1045
  %v1049 = vunpack.c.l.bf16 %v1046
  %1050 = vmatprep.subr.bf16.mxu0 %v528
  %1051 = vmatpush1.bf16.msra.mxu0 %v527
  %1052 = vmatprep.subr.bf16.mxu0 %v522
  %1053 = vmatpush1.bf16.msra.mxu0 %v521
  %1054 = vmatprep.subr.bf16.mxu0 %v516
  %1055 = vmatpush1.bf16.msra.mxu0 %v515
  %1056 = vmatprep.subr.bf16.mxu0 %v510
  %1057 = vmatpush1.bf16.msra.mxu0 %v509
  %1058 = vmatprep.subr.bf16.mxu0 %v504
  %1059 = vmatpush1.bf16.msra.mxu0 %v503
  %1060 = vmatprep.subr.bf16.mxu0 %v498
  %1061 = vmatpush1.bf16.msra.mxu0 %v497
  %1062 = vmatprep.subr.bf16.mxu0 %v492
  %1063 = vmatpush1.bf16.msra.mxu0 %v491
  %1064 = vmatprep.subr.bf16.mxu0 %v486
  %1065 = vmatpush1.bf16.msra.mxu0 %v485
  %1066 = vmatprep.subr.bf16.mxu0 %v576
  %1067 = vmatpush2.bf16.msra.mxu0 %v575
  %1068 = vmatprep.subr.bf16.mxu0 %v570
  %1069 = vmatpush2.bf16.msra.mxu0 %v569
  %1070 = vmatprep.subr.bf16.mxu0 %v564
  %1071 = vmatpush2.bf16.msra.mxu0 %v563
  %1072 = vmatprep.subr.bf16.mxu0 %v558
  %1073 = vmatpush2.bf16.msra.mxu0 %v557
  %1074 = vmatprep.subr.bf16.mxu0 %v552
  %1075 = vmatpush2.bf16.msra.mxu0 %v551
  %1076 = vmatprep.subr.bf16.mxu0 %v546
  %1077 = vmatpush2.bf16.msra.mxu0 %v545
  %1078 = vmatprep.subr.bf16.mxu0 %v540
  %1079 = vmatpush2.bf16.msra.mxu0 %v539
  %1080 = vmatprep.subr.bf16.mxu0 %v534
  %1081 = vmatpush2.bf16.msra.mxu0 %v533
  %1082 = vmatprep.mubr.bf16.mxu0 %v1031
  %1083 = vmatmul.mubr.bf16.gmra.mxu0 %v1028
  %v1084 = vpop.f32.mrf.mxu0
  %v1085 = vadd.f32 0.0, %v1084
  %v1086 = vpop.f32.mrf.mxu0
  %v1087 = vadd.f32 0.0, %v1086
  %v1088 = vpop.f32.mrf.mxu0
  %v1089 = vpop.f32.mrf.mxu0
  %1090 = vdwg.mxu0
  %1091 = vmatprep.subr.bf16.mxu0 %v530
  %1092 = vmatpush1.bf16.msra.mxu0 %v529
  %1093 = vmatprep.subr.bf16.mxu0 %v524
  %1094 = vmatpush1.bf16.msra.mxu0 %v523
  %1095 = vmatprep.subr.bf16.mxu0 %v518
  %1096 = vmatpush1.bf16.msra.mxu0 %v517
  %1097 = vmatprep.subr.bf16.mxu0 %v512
  %1098 = vmatpush1.bf16.msra.mxu0 %v511
  %1099 = vmatprep.subr.bf16.mxu0 %v506
  %1100 = vmatpush1.bf16.msra.mxu0 %v505
  %1101 = vmatprep.subr.bf16.mxu0 %v500
  %1102 = vmatpush1.bf16.msra.mxu0 %v499
  %1103 = vmatprep.subr.bf16.mxu0 %v494
  %1104 = vmatpush1.bf16.msra.mxu0 %v493
  %1105 = vmatprep.subr.bf16.mxu0 %v488
  %1106 = vmatpush1.bf16.msra.mxu0 %v487
  %1107 = vmatprep.subr.bf16.mxu0 %v578
  %1108 = vmatpush2.bf16.msra.mxu0 %v577
  %1109 = vmatprep.subr.bf16.mxu0 %v572
  %1110 = vmatpush2.bf16.msra.mxu0 %v571
  %1111 = vmatprep.subr.bf16.mxu0 %v566
  %1112 = vmatpush2.bf16.msra.mxu0 %v565
  %1113 = vmatprep.subr.bf16.mxu0 %v560
  %1114 = vmatpush2.bf16.msra.mxu0 %v559
  %1115 = vmatprep.subr.bf16.mxu0 %v554
  %1116 = vmatpush2.bf16.msra.mxu0 %v553
  %1117 = vmatprep.subr.bf16.mxu0 %v548
  %1118 = vmatpush2.bf16.msra.mxu0 %v547
  %1119 = vmatprep.subr.bf16.mxu0 %v542
  %1120 = vmatpush2.bf16.msra.mxu0 %v541
  %1121 = vmatprep.subr.bf16.mxu0 %v536
  %1122 = vmatpush2.bf16.msra.mxu0 %v535
  %1123 = vmatprep.mubr.bf16.mxu0 %v1031
  %1124 = vmatmul.mubr.bf16.gmra.mxu0 %v1028
  %v1125 = vpop.f32.mrf.mxu0
  %v1126 = vadd.f32 0.0, %v1125
  %v1127 = vpop.f32.mrf.mxu0
  %v1128 = vadd.f32 0.0, %v1127
  %v1129 = vpop.f32.mrf.mxu0
  %v1130 = vpop.f32.mrf.mxu0
  %1131 = vdwg.mxu0
  %1132 = vmatprep.subr.bf16.mxu0 %v532
  %1133 = vmatpush1.bf16.msra.mxu0 %v531
  %1134 = vmatprep.subr.bf16.mxu0 %v526
  %1135 = vmatpush1.bf16.msra.mxu0 %v525
  %1136 = vmatprep.subr.bf16.mxu0 %v520
  %1137 = vmatpush1.bf16.msra.mxu0 %v519
  %1138 = vmatprep.subr.bf16.mxu0 %v514
  %1139 = vmatpush1.bf16.msra.mxu0 %v513
  %1140 = vmatprep.subr.bf16.mxu0 %v508
  %1141 = vmatpush1.bf16.msra.mxu0 %v507
  %1142 = vmatprep.subr.bf16.mxu0 %v502
  %1143 = vmatpush1.bf16.msra.mxu0 %v501
  %1144 = vmatprep.subr.bf16.mxu0 %v496
  %1145 = vmatpush1.bf16.msra.mxu0 %v495
  %1146 = vmatprep.subr.bf16.mxu0 %v490
  %1147 = vmatpush1.bf16.msra.mxu0 %v489
  %1148 = vmatprep.subr.bf16.mxu0 %v580
  %1149 = vmatpush2.bf16.msra.mxu0 %v579
  %1150 = vmatprep.subr.bf16.mxu0 %v574
  %1151 = vmatpush2.bf16.msra.mxu0 %v573
  %1152 = vmatprep.subr.bf16.mxu0 %v568
  %1153 = vmatpush2.bf16.msra.mxu0 %v567
  %1154 = vmatprep.subr.bf16.mxu0 %v562
  %1155 = vmatpush2.bf16.msra.mxu0 %v561
  %1156 = vmatprep.subr.bf16.mxu0 %v556
  %1157 = vmatpush2.bf16.msra.mxu0 %v555
  %1158 = vmatprep.subr.bf16.mxu0 %v550
  %1159 = vmatpush2.bf16.msra.mxu0 %v549
  %1160 = vmatprep.subr.bf16.mxu0 %v544
  %1161 = vmatpush2.bf16.msra.mxu0 %v543
  %1162 = vmatprep.subr.bf16.mxu0 %v538
  %1163 = vmatpush2.bf16.msra.mxu0 %v537
  %1164 = vmatprep.mubr.bf16.mxu0 %v1031
  %1165 = vmatmul.mubr.bf16.gmra.mxu0 %v1028
  %v1166 = vpop.f32.mrf.mxu0
  %v1167 = vadd.f32 0.0, %v1166
  %v1168 = vpop.f32.mrf.mxu0
  %v1169 = vadd.f32 0.0, %v1168
  %v1170 = vpop.f32.mrf.mxu0
  %v1171 = vpop.f32.mrf.mxu0
  %1172 = vdwg.mxu0
  %v1173 = vadd.f32 %v1039, %v1085
  %v1174 = vxor.u32 %v1173, 2147483648
  %v1175 = vmul.f32 %v1174, 1.442695
  %v1176 = vpow.pop %v1175
  %v1177 = vadd.f32 %v1176, 1.0
  %v1178 = vrcp.pop %v1177
  %v1179 = vmul.f32 1.0, %v1178
  %v1180 = vadd.f32 %v1040, %v1087
  %v1181 = vxor.u32 %v1180, 2147483648
  %v1182 = vmul.f32 %v1181, 1.442695
  %v1183 = vpow.pop %v1182
  %v1184 = vadd.f32 %v1183, 1.0
  %v1185 = vrcp.pop %v1184
  %v1186 = vmul.f32 1.0, %v1185
  %v1187 = vadd.f32 %v1126, %v168
  %v1188 = vmul.f32 %v1179, %v1187
  %v1189 = vadd.f32 %v1041, %v1188
  %v1190 = vtanh.pop %v1189
  %v1191 = vsub.f32 %v1006, %v1190
  %v1192 = vmul.f32 %v1186, %v1191
  %v1193 = vadd.f32 %v1190, %v1192
  %v1194 = vadd.f32 %v1047, %v1128
  %v1195 = vxor.u32 %v1194, 2147483648
  %v1196 = vmul.f32 %v1195, 1.442695
  %v1197 = vpow.pop %v1196
  %v1198 = vadd.f32 %v1197, 1.0
  %v1199 = vrcp.pop %v1198
  %v1200 = vmul.f32 1.0, %v1199
  %v1201 = vadd.f32 %v1048, %v1167
  %v1202 = vxor.u32 %v1201, 2147483648
  %v1203 = vmul.f32 %v1202, 1.442695
  %v1204 = vpow.pop %v1203
  %v1205 = vadd.f32 %v1204, 1.0
  %v1206 = vrcp.pop %v1205
  %v1207 = vmul.f32 1.0, %v1206
  %v1208 = vadd.f32 %v1169, %v175
  %v1209 = vmul.f32 %v1200, %v1208
  %v1210 = vadd.f32 %v1049, %v1209
  %v1211 = vtanh.pop %v1210
  %v1212 = vsub.f32 %v1027, %v1211
  %v1213 = vmul.f32 %v1207, %v1212
  %v1214 = vadd.f32 %v1211, %v1213
  %v1215 = vpack.c.bf16 %v1193, %v1193
  %s1216 = scalar_lea.vmem %s5, 8
  %1217 = vst [vmem:[%s1216] sm:$0xf] %v1215
  %v1218 = vpack.c.bf16 %v1214, %v1214
  %s1219 = scalar_lea.vmem %s58, 20
  %1220 = vst [vmem:[%s1219] sm:$0xf] %v1218
  %s1221 = smul.u32 3, 3
  %s1222 = smul.addr %s1221, 4
  %s1223 = scalar_lea.vmem %s0, %s1222
  %v1224 = vld [vmem:[%s1223] sm:$0xff]
  %v1225 = vld [vmem:[%s1223 + $0x8] sm:$0xf]
  %v1226 = vunpack.c.l.bf16 %v1224
  %v1227 = vunpack.c.h.bf16 %v1224
  %v1228 = vunpack.c.l.bf16 %v1225
  %s1229 = smul.u32 4, 3
  %s1230 = smul.addr %s1229, 4
  %s1231 = scalar_lea.vmem %s50, %s1230
  %v1232 = vld [vmem:[%s1231] sm:$0xff]
  %v1233 = vld [vmem:[%s1231 + $0x8] sm:$0xf]
  %v1234 = vunpack.c.l.bf16 %v1232
  %v1235 = vunpack.c.h.bf16 %v1232
  %v1236 = vunpack.c.l.bf16 %v1233
  %1237 = vmatprep.subr.bf16.mxu0 %v528
  %1238 = vmatpush1.bf16.msra.mxu0 %v527
  %1239 = vmatprep.subr.bf16.mxu0 %v522
  %1240 = vmatpush1.bf16.msra.mxu0 %v521
  %1241 = vmatprep.subr.bf16.mxu0 %v516
  %1242 = vmatpush1.bf16.msra.mxu0 %v515
  %1243 = vmatprep.subr.bf16.mxu0 %v510
  %1244 = vmatpush1.bf16.msra.mxu0 %v509
  %1245 = vmatprep.subr.bf16.mxu0 %v504
  %1246 = vmatpush1.bf16.msra.mxu0 %v503
  %1247 = vmatprep.subr.bf16.mxu0 %v498
  %1248 = vmatpush1.bf16.msra.mxu0 %v497
  %1249 = vmatprep.subr.bf16.mxu0 %v492
  %1250 = vmatpush1.bf16.msra.mxu0 %v491
  %1251 = vmatprep.subr.bf16.mxu0 %v486
  %1252 = vmatpush1.bf16.msra.mxu0 %v485
  %1253 = vmatprep.subr.bf16.mxu0 %v576
  %1254 = vmatpush2.bf16.msra.mxu0 %v575
  %1255 = vmatprep.subr.bf16.mxu0 %v570
  %1256 = vmatpush2.bf16.msra.mxu0 %v569
  %1257 = vmatprep.subr.bf16.mxu0 %v564
  %1258 = vmatpush2.bf16.msra.mxu0 %v563
  %1259 = vmatprep.subr.bf16.mxu0 %v558
  %1260 = vmatpush2.bf16.msra.mxu0 %v557
  %1261 = vmatprep.subr.bf16.mxu0 %v552
  %1262 = vmatpush2.bf16.msra.mxu0 %v551
  %1263 = vmatprep.subr.bf16.mxu0 %v546
  %1264 = vmatpush2.bf16.msra.mxu0 %v545
  %1265 = vmatprep.subr.bf16.mxu0 %v540
  %1266 = vmatpush2.bf16.msra.mxu0 %v539
  %1267 = vmatprep.subr.bf16.mxu0 %v534
  %1268 = vmatpush2.bf16.msra.mxu0 %v533
  %1269 = vmatprep.mubr.bf16.mxu0 %v1218
  %1270 = vmatmul.mubr.bf16.gmra.mxu0 %v1215
  %v1271 = vpop.f32.mrf.mxu0
  %v1272 = vadd.f32 0.0, %v1271
  %v1273 = vpop.f32.mrf.mxu0
  %v1274 = vadd.f32 0.0, %v1273
  %v1275 = vpop.f32.mrf.mxu0
  %v1276 = vpop.f32.mrf.mxu0
  %1277 = vdwg.mxu0
  %1278 = vmatprep.subr.bf16.mxu0 %v530
  %1279 = vmatpush1.bf16.msra.mxu0 %v529
  %1280 = vmatprep.subr.bf16.mxu0 %v524
  %1281 = vmatpush1.bf16.msra.mxu0 %v523
  %1282 = vmatprep.subr.bf16.mxu0 %v518
  %1283 = vmatpush1.bf16.msra.mxu0 %v517
  %1284 = vmatprep.subr.bf16.mxu0 %v512
  %1285 = vmatpush1.bf16.msra.mxu0 %v511
  %1286 = vmatprep.subr.bf16.mxu0 %v506
  %1287 = vmatpush1.bf16.msra.mxu0 %v505
  %1288 = vmatprep.subr.bf16.mxu0 %v500
  %1289 = vmatpush1.bf16.msra.mxu0 %v499
  %1290 = vmatprep.subr.bf16.mxu0 %v494
  %1291 = vmatpush1.bf16.msra.mxu0 %v493
  %1292 = vmatprep.subr.bf16.mxu0 %v488
  %1293 = vmatpush1.bf16.msra.mxu0 %v487
  %1294 = vmatprep.subr.bf16.mxu0 %v578
  %1295 = vmatpush2.bf16.msra.mxu0 %v577
  %1296 = vmatprep.subr.bf16.mxu0 %v572
  %1297 = vmatpush2.bf16.msra.mxu0 %v571
  %1298 = vmatprep.subr.bf16.mxu0 %v566
  %1299 = vmatpush2.bf16.msra.mxu0 %v565
  %1300 = vmatprep.subr.bf16.mxu0 %v560
  %1301 = vmatpush2.bf16.msra.mxu0 %v559
  %1302 = vmatprep.subr.bf16.mxu0 %v554
  %1303 = vmatpush2.bf16.msra.mxu0 %v553
  %1304 = vmatprep.subr.bf16.mxu0 %v548
  %1305 = vmatpush2.bf16.msra.mxu0 %v547
  %1306 = vmatprep.subr.bf16.mxu0 %v542
  %1307 = vmatpush2.bf16.msra.mxu0 %v541
  %1308 = vmatprep.subr.bf16.mxu0 %v536
  %1309 = vmatpush2.bf16.msra.mxu0 %v535
  %1310 = vmatprep.mubr.bf16.mxu0 %v1218
  %1311 = vmatmul.mubr.bf16.gmra.mxu0 %v1215
  %v1312 = vpop.f32.mrf.mxu0
  %v1313 = vadd.f32 0.0, %v1312
  %v1314 = vpop.f32.mrf.mxu0
  %v1315 = vadd.f32 0.0, %v1314
  %v1316 = vpop.f32.mrf.mxu0
  %v1317 = vpop.f32.mrf.mxu0
  %1318 = vdwg.mxu0
  %1319 = vmatprep.subr.bf16.mxu0 %v532
  %1320 = vmatpush1.bf16.msra.mxu0 %v531
  %1321 = vmatprep.subr.bf16.mxu0 %v526
  %1322 = vmatpush1.bf16.msra.mxu0 %v525
  %1323 = vmatprep.subr.bf16.mxu0 %v520
  %1324 = vmatpush1.bf16.msra.mxu0 %v519
  %1325 = vmatprep.subr.bf16.mxu0 %v514
  %1326 = vmatpush1.bf16.msra.mxu0 %v513
  %1327 = vmatprep.subr.bf16.mxu0 %v508
  %1328 = vmatpush1.bf16.msra.mxu0 %v507
  %1329 = vmatprep.subr.bf16.mxu0 %v502
  %1330 = vmatpush1.bf16.msra.mxu0 %v501
  %1331 = vmatprep.subr.bf16.mxu0 %v496
  %1332 = vmatpush1.bf16.msra.mxu0 %v495
  %1333 = vmatprep.subr.bf16.mxu0 %v490
  %1334 = vmatpush1.bf16.msra.mxu0 %v489
  %1335 = vmatprep.subr.bf16.mxu0 %v580
  %1336 = vmatpush2.bf16.msra.mxu0 %v579
  %1337 = vmatprep.subr.bf16.mxu0 %v574
  %1338 = vmatpush2.bf16.msra.mxu0 %v573
  %1339 = vmatprep.subr.bf16.mxu0 %v568
  %1340 = vmatpush2.bf16.msra.mxu0 %v567
  %1341 = vmatprep.subr.bf16.mxu0 %v562
  %1342 = vmatpush2.bf16.msra.mxu0 %v561
  %1343 = vmatprep.subr.bf16.mxu0 %v556
  %1344 = vmatpush2.bf16.msra.mxu0 %v555
  %1345 = vmatprep.subr.bf16.mxu0 %v550
  %1346 = vmatpush2.bf16.msra.mxu0 %v549
  %1347 = vmatprep.subr.bf16.mxu0 %v544
  %1348 = vmatpush2.bf16.msra.mxu0 %v543
  %1349 = vmatprep.subr.bf16.mxu0 %v538
  %1350 = vmatpush2.bf16.msra.mxu0 %v537
  %1351 = vmatprep.mubr.bf16.mxu0 %v1218
  %1352 = vmatmul.mubr.bf16.gmra.mxu0 %v1215
  %v1353 = vpop.f32.mrf.mxu0
  %v1354 = vadd.f32 0.0, %v1353
  %v1355 = vpop.f32.mrf.mxu0
  %v1356 = vadd.f32 0.0, %v1355
  %v1357 = vpop.f32.mrf.mxu0
  %v1358 = vpop.f32.mrf.mxu0
  %1359 = vdwg.mxu0
  %v1360 = vadd.f32 %v1226, %v1272
  %v1361 = vxor.u32 %v1360, 2147483648
  %v1362 = vmul.f32 %v1361, 1.442695
  %v1363 = vpow.pop %v1362
  %v1364 = vadd.f32 %v1363, 1.0
  %v1365 = vrcp.pop %v1364
  %v1366 = vmul.f32 1.0, %v1365
  %v1367 = vadd.f32 %v1227, %v1274
  %v1368 = vxor.u32 %v1367, 2147483648
  %v1369 = vmul.f32 %v1368, 1.442695
  %v1370 = vpow.pop %v1369
  %v1371 = vadd.f32 %v1370, 1.0
  %v1372 = vrcp.pop %v1371
  %v1373 = vmul.f32 1.0, %v1372
  %v1374 = vadd.f32 %v1313, %v168
  %v1375 = vmul.f32 %v1366, %v1374
  %v1376 = vadd.f32 %v1228, %v1375
  %v1377 = vtanh.pop %v1376
  %v1378 = vsub.f32 %v1193, %v1377
  %v1379 = vmul.f32 %v1373, %v1378
  %v1380 = vadd.f32 %v1377, %v1379
  %v1381 = vadd.f32 %v1234, %v1315
  %v1382 = vxor.u32 %v1381, 2147483648
  %v1383 = vmul.f32 %v1382, 1.442695
  %v1384 = vpow.pop %v1383
  %v1385 = vadd.f32 %v1384, 1.0
  %v1386 = vrcp.pop %v1385
  %v1387 = vmul.f32 1.0, %v1386
  %v1388 = vadd.f32 %v1235, %v1354
  %v1389 = vxor.u32 %v1388, 2147483648
  %v1390 = vmul.f32 %v1389, 1.442695
  %v1391 = vpow.pop %v1390
  %v1392 = vadd.f32 %v1391, 1.0
  %v1393 = vrcp.pop %v1392
  %v1394 = vmul.f32 1.0, %v1393
  %v1395 = vadd.f32 %v1356, %v175
  %v1396 = vmul.f32 %v1387, %v1395
  %v1397 = vadd.f32 %v1236, %v1396
  %v1398 = vtanh.pop %v1397
  %v1399 = vsub.f32 %v1214, %v1398
  %v1400 = vmul.f32 %v1394, %v1399
  %v1401 = vadd.f32 %v1398, %v1400
  %v1402 = vpack.c.bf16 %v1380, %v1380
  %s1403 = scalar_lea.vmem %s5, 12
  %1404 = vst [vmem:[%s1403] sm:$0xf] %v1402
  %v1405 = vpack.c.bf16 %v1401, %v1401
  %s1406 = scalar_lea.vmem %s58, 16
  %1407 = vst [vmem:[%s1406] sm:$0xf] %v1405
  %s1408 = smul.addr %s1229, 4
  %s1409 = scalar_lea.vmem %s0, %s1408
  %v1410 = vld [vmem:[%s1409] sm:$0xff]
  %v1411 = vld [vmem:[%s1409 + $0x8] sm:$0xf]
  %v1412 = vunpack.c.l.bf16 %v1410
  %v1413 = vunpack.c.h.bf16 %v1410
  %v1414 = vunpack.c.l.bf16 %v1411
  %s1415 = smul.addr %s1221, 4
  %s1416 = scalar_lea.vmem %s50, %s1415
  %v1417 = vld [vmem:[%s1416] sm:$0xff]
  %v1418 = vld [vmem:[%s1416 + $0x8] sm:$0xf]
  %v1419 = vunpack.c.l.bf16 %v1417
  %v1420 = vunpack.c.h.bf16 %v1417
  %v1421 = vunpack.c.l.bf16 %v1418
  %1422 = vmatprep.subr.bf16.mxu0 %v528
  %1423 = vmatpush1.bf16.msra.mxu0 %v527
  %1424 = vmatprep.subr.bf16.mxu0 %v522
  %1425 = vmatpush1.bf16.msra.mxu0 %v521
  %1426 = vmatprep.subr.bf16.mxu0 %v516
  %1427 = vmatpush1.bf16.msra.mxu0 %v515
  %1428 = vmatprep.subr.bf16.mxu0 %v510
  %1429 = vmatpush1.bf16.msra.mxu0 %v509
  %1430 = vmatprep.subr.bf16.mxu0 %v504
  %1431 = vmatpush1.bf16.msra.mxu0 %v503
  %1432 = vmatprep.subr.bf16.mxu0 %v498
  %1433 = vmatpush1.bf16.msra.mxu0 %v497
  %1434 = vmatprep.subr.bf16.mxu0 %v492
  %1435 = vmatpush1.bf16.msra.mxu0 %v491
  %1436 = vmatprep.subr.bf16.mxu0 %v486
  %1437 = vmatpush1.bf16.msra.mxu0 %v485
  %1438 = vmatprep.subr.bf16.mxu0 %v576
  %1439 = vmatpush2.bf16.msra.mxu0 %v575
  %1440 = vmatprep.subr.bf16.mxu0 %v570
  %1441 = vmatpush2.bf16.msra.mxu0 %v569
  %1442 = vmatprep.subr.bf16.mxu0 %v564
  %1443 = vmatpush2.bf16.msra.mxu0 %v563
  %1444 = vmatprep.subr.bf16.mxu0 %v558
  %1445 = vmatpush2.bf16.msra.mxu0 %v557
  %1446 = vmatprep.subr.bf16.mxu0 %v552
  %1447 = vmatpush2.bf16.msra.mxu0 %v551
  %1448 = vmatprep.subr.bf16.mxu0 %v546
  %1449 = vmatpush2.bf16.msra.mxu0 %v545
  %1450 = vmatprep.subr.bf16.mxu0 %v540
  %1451 = vmatpush2.bf16.msra.mxu0 %v539
  %1452 = vmatprep.subr.bf16.mxu0 %v534
  %1453 = vmatpush2.bf16.msra.mxu0 %v533
  %1454 = vmatprep.mubr.bf16.mxu0 %v1405
  %1455 = vmatmul.mubr.bf16.gmra.mxu0 %v1402
  %v1456 = vpop.f32.mrf.mxu0
  %v1457 = vadd.f32 0.0, %v1456
  %v1458 = vpop.f32.mrf.mxu0
  %v1459 = vadd.f32 0.0, %v1458
  %v1460 = vpop.f32.mrf.mxu0
  %v1461 = vpop.f32.mrf.mxu0
  %1462 = vdwg.mxu0
  %1463 = vmatprep.subr.bf16.mxu0 %v530
  %1464 = vmatpush1.bf16.msra.mxu0 %v529
  %1465 = vmatprep.subr.bf16.mxu0 %v524
  %1466 = vmatpush1.bf16.msra.mxu0 %v523
  %1467 = vmatprep.subr.bf16.mxu0 %v518
  %1468 = vmatpush1.bf16.msra.mxu0 %v517
  %1469 = vmatprep.subr.bf16.mxu0 %v512
  %1470 = vmatpush1.bf16.msra.mxu0 %v511
  %1471 = vmatprep.subr.bf16.mxu0 %v506
  %1472 = vmatpush1.bf16.msra.mxu0 %v505
  %1473 = vmatprep.subr.bf16.mxu0 %v500
  %1474 = vmatpush1.bf16.msra.mxu0 %v499
  %1475 = vmatprep.subr.bf16.mxu0 %v494
  %1476 = vmatpush1.bf16.msra.mxu0 %v493
  %1477 = vmatprep.subr.bf16.mxu0 %v488
  %1478 = vmatpush1.bf16.msra.mxu0 %v487
  %1479 = vmatprep.subr.bf16.mxu0 %v578
  %1480 = vmatpush2.bf16.msra.mxu0 %v577
  %1481 = vmatprep.subr.bf16.mxu0 %v572
  %1482 = vmatpush2.bf16.msra.mxu0 %v571
  %1483 = vmatprep.subr.bf16.mxu0 %v566
  %1484 = vmatpush2.bf16.msra.mxu0 %v565
  %1485 = vmatprep.subr.bf16.mxu0 %v560
  %1486 = vmatpush2.bf16.msra.mxu0 %v559
  %1487 = vmatprep.subr.bf16.mxu0 %v554
  %1488 = vmatpush2.bf16.msra.mxu0 %v553
  %1489 = vmatprep.subr.bf16.mxu0 %v548
  %1490 = vmatpush2.bf16.msra.mxu0 %v547
  %1491 = vmatprep.subr.bf16.mxu0 %v542
  %1492 = vmatpush2.bf16.msra.mxu0 %v541
  %1493 = vmatprep.subr.bf16.mxu0 %v536
  %1494 = vmatpush2.bf16.msra.mxu0 %v535
  %1495 = vmatprep.mubr.bf16.mxu0 %v1405
  %1496 = vmatmul.mubr.bf16.gmra.mxu0 %v1402
  %v1497 = vpop.f32.mrf.mxu0
  %v1498 = vadd.f32 0.0, %v1497
  %v1499 = vpop.f32.mrf.mxu0
  %v1500 = vadd.f32 0.0, %v1499
  %v1501 = vpop.f32.mrf.mxu0
  %v1502 = vpop.f32.mrf.mxu0
  %1503 = vdwg.mxu0
  %1504 = vmatprep.subr.bf16.mxu0 %v532
  %1505 = vmatpush1.bf16.msra.mxu0 %v531
  %1506 = vmatprep.subr.bf16.mxu0 %v526
  %1507 = vmatpush1.bf16.msra.mxu0 %v525
  %1508 = vmatprep.subr.bf16.mxu0 %v520
  %1509 = vmatpush1.bf16.msra.mxu0 %v519
  %1510 = vmatprep.subr.bf16.mxu0 %v514
  %1511 = vmatpush1.bf16.msra.mxu0 %v513
  %1512 = vmatprep.subr.bf16.mxu0 %v508
  %1513 = vmatpush1.bf16.msra.mxu0 %v507
  %1514 = vmatprep.subr.bf16.mxu0 %v502
  %1515 = vmatpush1.bf16.msra.mxu0 %v501
  %1516 = vmatprep.subr.bf16.mxu0 %v496
  %1517 = vmatpush1.bf16.msra.mxu0 %v495
  %1518 = vmatprep.subr.bf16.mxu0 %v490
  %1519 = vmatpush1.bf16.msra.mxu0 %v489
  %1520 = vmatprep.subr.bf16.mxu0 %v580
  %1521 = vmatpush2.bf16.msra.mxu0 %v579
  %1522 = vmatprep.subr.bf16.mxu0 %v574
  %1523 = vmatpush2.bf16.msra.mxu0 %v573
  %1524 = vmatprep.subr.bf16.mxu0 %v568
  %1525 = vmatpush2.bf16.msra.mxu0 %v567
  %1526 = vmatprep.subr.bf16.mxu0 %v562
  %1527 = vmatpush2.bf16.msra.mxu0 %v561
  %1528 = vmatprep.subr.bf16.mxu0 %v556
  %1529 = vmatpush2.bf16.msra.mxu0 %v555
  %1530 = vmatprep.subr.bf16.mxu0 %v550
  %1531 = vmatpush2.bf16.msra.mxu0 %v549
  %1532 = vmatprep.subr.bf16.mxu0 %v544
  %1533 = vmatpush2.bf16.msra.mxu0 %v543
  %1534 = vmatprep.subr.bf16.mxu0 %v538
  %1535 = vmatpush2.bf16.msra.mxu0 %v537
  %1536 = vmatprep.mubr.bf16.mxu0 %v1405
  %1537 = vmatmul.mubr.bf16.gmra.mxu0 %v1402
  %v1538 = vpop.f32.mrf.mxu0
  %v1539 = vadd.f32 0.0, %v1538
  %v1540 = vpop.f32.mrf.mxu0
  %v1541 = vadd.f32 0.0, %v1540
  %v1542 = vpop.f32.mrf.mxu0
  %v1543 = vpop.f32.mrf.mxu0
  %1544 = vdwg.mxu0
  %v1545 = vadd.f32 %v1412, %v1457
  %v1546 = vxor.u32 %v1545, 2147483648
  %v1547 = vmul.f32 %v1546, 1.442695
  %v1548 = vpow.pop %v1547
  %v1549 = vadd.f32 %v1548, 1.0
  %v1550 = vrcp.pop %v1549
  %v1551 = vmul.f32 1.0, %v1550
  %v1552 = vadd.f32 %v1413, %v1459
  %v1553 = vxor.u32 %v1552, 2147483648
  %v1554 = vmul.f32 %v1553, 1.442695
  %v1555 = vpow.pop %v1554
  %v1556 = vadd.f32 %v1555, 1.0
  %v1557 = vrcp.pop %v1556
  %v1558 = vmul.f32 1.0, %v1557
  %v1559 = vadd.f32 %v1498, %v168
  %v1560 = vmul.f32 %v1551, %v1559
  %v1561 = vadd.f32 %v1414, %v1560
  %v1562 = vtanh.pop %v1561
  %v1563 = vsub.f32 %v1380, %v1562
  %v1564 = vmul.f32 %v1558, %v1563
  %v1565 = vadd.f32 %v1562, %v1564
  %v1566 = vadd.f32 %v1419, %v1500
  %v1567 = vxor.u32 %v1566, 2147483648
  %v1568 = vmul.f32 %v1567, 1.442695
  %v1569 = vpow.pop %v1568
  %v1570 = vadd.f32 %v1569, 1.0
  %v1571 = vrcp.pop %v1570
  %v1572 = vmul.f32 1.0, %v1571
  %v1573 = vadd.f32 %v1420, %v1539
  %v1574 = vxor.u32 %v1573, 2147483648
  %v1575 = vmul.f32 %v1574, 1.442695
  %v1576 = vpow.pop %v1575
  %v1577 = vadd.f32 %v1576, 1.0
  %v1578 = vrcp.pop %v1577
  %v1579 = vmul.f32 1.0, %v1578
  %v1580 = vadd.f32 %v1541, %v175
  %v1581 = vmul.f32 %v1572, %v1580
  %v1582 = vadd.f32 %v1421, %v1581
  %v1583 = vtanh.pop %v1582
  %v1584 = vsub.f32 %v1401, %v1583
  %v1585 = vmul.f32 %v1579, %v1584
  %v1586 = vadd.f32 %v1583, %v1585
  %v1587 = vpack.c.bf16 %v1565, %v1565
  %s1588 = scalar_lea.vmem %s5, 16
  %1589 = vst [vmem:[%s1588] sm:$0xf] %v1587
  %v1590 = vpack.c.bf16 %v1586, %v1586
  %s1591 = scalar_lea.vmem %s58, 12
  %1592 = vst [vmem:[%s1591] sm:$0xf] %v1590
  %s1593 = smul.addr %s1042, 4
  %s1594 = scalar_lea.vmem %s0, %s1593
  %v1595 = vld [vmem:[%s1594] sm:$0xff]
  %v1596 = vld [vmem:[%s1594 + $0x8] sm:$0xf]
  %v1597 = vunpack.c.l.bf16 %v1595
  %v1598 = vunpack.c.h.bf16 %v1595
  %v1599 = vunpack.c.l.bf16 %v1596
  %s1600 = smul.addr %s1034, 4
  %s1601 = scalar_lea.vmem %s50, %s1600
  %v1602 = vld [vmem:[%s1601] sm:$0xff]
  %v1603 = vld [vmem:[%s1601 + $0x8] sm:$0xf]
  %v1604 = vunpack.c.l.bf16 %v1602
  %v1605 = vunpack.c.h.bf16 %v1602
  %v1606 = vunpack.c.l.bf16 %v1603
  %1607 = vmatprep.subr.bf16.mxu0 %v528
  %1608 = vmatpush1.bf16.msra.mxu0 %v527
  %1609 = vmatprep.subr.bf16.mxu0 %v522
  %1610 = vmatpush1.bf16.msra.mxu0 %v521
  %1611 = vmatprep.subr.bf16.mxu0 %v516
  %1612 = vmatpush1.bf16.msra.mxu0 %v515
  %1613 = vmatprep.subr.bf16.mxu0 %v510
  %1614 = vmatpush1.bf16.msra.mxu0 %v509
  %1615 = vmatprep.subr.bf16.mxu0 %v504
  %1616 = vmatpush1.bf16.msra.mxu0 %v503
  %1617 = vmatprep.subr.bf16.mxu0 %v498
  %1618 = vmatpush1.bf16.msra.mxu0 %v497
  %1619 = vmatprep.subr.bf16.mxu0 %v492
  %1620 = vmatpush1.bf16.msra.mxu0 %v491
  %1621 = vmatprep.subr.bf16.mxu0 %v486
  %1622 = vmatpush1.bf16.msra.mxu0 %v485
  %1623 = vmatprep.subr.bf16.mxu0 %v576
  %1624 = vmatpush2.bf16.msra.mxu0 %v575
  %1625 = vmatprep.subr.bf16.mxu0 %v570
  %1626 = vmatpush2.bf16.msra.mxu0 %v569
  %1627 = vmatprep.subr.bf16.mxu0 %v564
  %1628 = vmatpush2.bf16.msra.mxu0 %v563
  %1629 = vmatprep.subr.bf16.mxu0 %v558
  %1630 = vmatpush2.bf16.msra.mxu0 %v557
  %1631 = vmatprep.subr.bf16.mxu0 %v552
  %1632 = vmatpush2.bf16.msra.mxu0 %v551
  %1633 = vmatprep.subr.bf16.mxu0 %v546
  %1634 = vmatpush2.bf16.msra.mxu0 %v545
  %1635 = vmatprep.subr.bf16.mxu0 %v540
  %1636 = vmatpush2.bf16.msra.mxu0 %v539
  %1637 = vmatprep.subr.bf16.mxu0 %v534
  %1638 = vmatpush2.bf16.msra.mxu0 %v533
  %1639 = vmatprep.mubr.bf16.mxu0 %v1590
  %1640 = vmatmul.mubr.bf16.gmra.mxu0 %v1587
  %v1641 = vpop.f32.mrf.mxu0
  %v1642 = vadd.f32 0.0, %v1641
  %v1643 = vpop.f32.mrf.mxu0
  %v1644 = vadd.f32 0.0, %v1643
  %v1645 = vpop.f32.mrf.mxu0
  %v1646 = vpop.f32.mrf.mxu0
  %1647 = vdwg.mxu0
  %1648 = vmatprep.subr.bf16.mxu0 %v530
  %1649 = vmatpush1.bf16.msra.mxu0 %v529
  %1650 = vmatprep.subr.bf16.mxu0 %v524
  %1651 = vmatpush1.bf16.msra.mxu0 %v523
  %1652 = vmatprep.subr.bf16.mxu0 %v518
  %1653 = vmatpush1.bf16.msra.mxu0 %v517
  %1654 = vmatprep.subr.bf16.mxu0 %v512
  %1655 = vmatpush1.bf16.msra.mxu0 %v511
  %1656 = vmatprep.subr.bf16.mxu0 %v506
  %1657 = vmatpush1.bf16.msra.mxu0 %v505
  %1658 = vmatprep.subr.bf16.mxu0 %v500
  %1659 = vmatpush1.bf16.msra.mxu0 %v499
  %1660 = vmatprep.subr.bf16.mxu0 %v494
  %1661 = vmatpush1.bf16.msra.mxu0 %v493
  %1662 = vmatprep.subr.bf16.mxu0 %v488
  %1663 = vmatpush1.bf16.msra.mxu0 %v487
  %1664 = vmatprep.subr.bf16.mxu0 %v578
  %1665 = vmatpush2.bf16.msra.mxu0 %v577
  %1666 = vmatprep.subr.bf16.mxu0 %v572
  %1667 = vmatpush2.bf16.msra.mxu0 %v571
  %1668 = vmatprep.subr.bf16.mxu0 %v566
  %1669 = vmatpush2.bf16.msra.mxu0 %v565
  %1670 = vmatprep.subr.bf16.mxu0 %v560
  %1671 = vmatpush2.bf16.msra.mxu0 %v559
  %1672 = vmatprep.subr.bf16.mxu0 %v554
  %1673 = vmatpush2.bf16.msra.mxu0 %v553
  %1674 = vmatprep.subr.bf16.mxu0 %v548
  %1675 = vmatpush2.bf16.msra.mxu0 %v547
  %1676 = vmatprep.subr.bf16.mxu0 %v542
  %1677 = vmatpush2.bf16.msra.mxu0 %v541
  %1678 = vmatprep.subr.bf16.mxu0 %v536
  %1679 = vmatpush2.bf16.msra.mxu0 %v535
  %1680 = vmatprep.mubr.bf16.mxu0 %v1590
  %1681 = vmatmul.mubr.bf16.gmra.mxu0 %v1587
  %v1682 = vpop.f32.mrf.mxu0
  %v1683 = vadd.f32 0.0, %v1682
  %v1684 = vpop.f32.mrf.mxu0
  %v1685 = vadd.f32 0.0, %v1684
  %v1686 = vpop.f32.mrf.mxu0
  %v1687 = vpop.f32.mrf.mxu0
  %1688 = vdwg.mxu0
  %1689 = vmatprep.subr.bf16.mxu0 %v532
  %1690 = vmatpush1.bf16.msra.mxu0 %v531
  %1691 = vmatprep.subr.bf16.mxu0 %v526
  %1692 = vmatpush1.bf16.msra.mxu0 %v525
  %1693 = vmatprep.subr.bf16.mxu0 %v520
  %1694 = vmatpush1.bf16.msra.mxu0 %v519
  %1695 = vmatprep.subr.bf16.mxu0 %v514
  %1696 = vmatpush1.bf16.msra.mxu0 %v513
  %1697 = vmatprep.subr.bf16.mxu0 %v508
  %1698 = vmatpush1.bf16.msra.mxu0 %v507
  %1699 = vmatprep.subr.bf16.mxu0 %v502
  %1700 = vmatpush1.bf16.msra.mxu0 %v501
  %1701 = vmatprep.subr.bf16.mxu0 %v496
  %1702 = vmatpush1.bf16.msra.mxu0 %v495
  %1703 = vmatprep.subr.bf16.mxu0 %v490
  %1704 = vmatpush1.bf16.msra.mxu0 %v489
  %1705 = vmatprep.subr.bf16.mxu0 %v580
  %1706 = vmatpush2.bf16.msra.mxu0 %v579
  %1707 = vmatprep.subr.bf16.mxu0 %v574
  %1708 = vmatpush2.bf16.msra.mxu0 %v573
  %1709 = vmatprep.subr.bf16.mxu0 %v568
  %1710 = vmatpush2.bf16.msra.mxu0 %v567
  %1711 = vmatprep.subr.bf16.mxu0 %v562
  %1712 = vmatpush2.bf16.msra.mxu0 %v561
  %1713 = vmatprep.subr.bf16.mxu0 %v556
  %1714 = vmatpush2.bf16.msra.mxu0 %v555
  %1715 = vmatprep.subr.bf16.mxu0 %v550
  %1716 = vmatpush2.bf16.msra.mxu0 %v549
  %1717 = vmatprep.subr.bf16.mxu0 %v544
  %1718 = vmatpush2.bf16.msra.mxu0 %v543
  %1719 = vmatprep.subr.bf16.mxu0 %v538
  %1720 = vmatpush2.bf16.msra.mxu0 %v537
  %1721 = vmatprep.mubr.bf16.mxu0 %v1590
  %1722 = vmatmul.mubr.bf16.gmra.mxu0 %v1587
  %v1723 = vpop.f32.mrf.mxu0
  %v1724 = vadd.f32 0.0, %v1723
  %v1725 = vpop.f32.mrf.mxu0
  %v1726 = vadd.f32 0.0, %v1725
  %v1727 = vpop.f32.mrf.mxu0
  %v1728 = vpop.f32.mrf.mxu0
  %1729 = vdwg.mxu0
  %v1730 = vadd.f32 %v1597, %v1642
  %v1731 = vxor.u32 %v1730, 2147483648
  %v1732 = vmul.f32 %v1731, 1.442695
  %v1733 = vpow.pop %v1732
  %v1734 = vadd.f32 %v1733, 1.0
  %v1735 = vrcp.pop %v1734
  %v1736 = vmul.f32 1.0, %v1735
  %v1737 = vadd.f32 %v1598, %v1644
  %v1738 = vxor.u32 %v1737, 2147483648
  %v1739 = vmul.f32 %v1738, 1.442695
  %v1740 = vpow.pop %v1739
  %v1741 = vadd.f32 %v1740, 1.0
  %v1742 = vrcp.pop %v1741
  %v1743 = vmul.f32 1.0, %v1742
  %v1744 = vadd.f32 %v1683, %v168
  %v1745 = vmul.f32 %v1736, %v1744
  %v1746 = vadd.f32 %v1599, %v1745
  %v1747 = vtanh.pop %v1746
  %v1748 = vsub.f32 %v1565, %v1747
  %v1749 = vmul.f32 %v1743, %v1748
  %v1750 = vadd.f32 %v1747, %v1749
  %v1751 = vadd.f32 %v1604, %v1685
  %v1752 = vxor.u32 %v1751, 2147483648
  %v1753 = vmul.f32 %v1752, 1.442695
  %v1754 = vpow.pop %v1753
  %v1755 = vadd.f32 %v1754, 1.0
  %v1756 = vrcp.pop %v1755
  %v1757 = vmul.f32 1.0, %v1756
  %v1758 = vadd.f32 %v1605, %v1724
  %v1759 = vxor.u32 %v1758, 2147483648
  %v1760 = vmul.f32 %v1759, 1.442695
  %v1761 = vpow.pop %v1760
  %v1762 = vadd.f32 %v1761, 1.0
  %v1763 = vrcp.pop %v1762
  %v1764 = vmul.f32 1.0, %v1763
  %v1765 = vadd.f32 %v1726, %v175
  %v1766 = vmul.f32 %v1757, %v1765
  %v1767 = vadd.f32 %v1606, %v1766
  %v1768 = vtanh.pop %v1767
  %v1769 = vsub.f32 %v1586, %v1768
  %v1770 = vmul.f32 %v1764, %v1769
  %v1771 = vadd.f32 %v1768, %v1770
  %v1772 = vpack.c.bf16 %v1750, %v1750
  %s1773 = scalar_lea.vmem %s5, 20
  %1774 = vst [vmem:[%s1773] sm:$0xf] %v1772
  %v1775 = vpack.c.bf16 %v1771, %v1771
  %s1776 = scalar_lea.vmem %s58, 8
  %1777 = vst [vmem:[%s1776] sm:$0xf] %v1775
  %s1778 = smul.addr %s855, 4
  %s1779 = scalar_lea.vmem %s0, %s1778
  %v1780 = vld [vmem:[%s1779] sm:$0xff]
  %v1781 = vld [vmem:[%s1779 + $0x8] sm:$0xf]
  %v1782 = vunpack.c.l.bf16 %v1780
  %v1783 = vunpack.c.h.bf16 %v1780
  %v1784 = vunpack.c.l.bf16 %v1781
  %s1785 = smul.addr %s847, 4
  %s1786 = scalar_lea.vmem %s50, %s1785
  %v1787 = vld [vmem:[%s1786] sm:$0xff]
  %v1788 = vld [vmem:[%s1786 + $0x8] sm:$0xf]
  %v1789 = vunpack.c.l.bf16 %v1787
  %v1790 = vunpack.c.h.bf16 %v1787
  %v1791 = vunpack.c.l.bf16 %v1788
  %1792 = vmatprep.subr.bf16.mxu0 %v528
  %1793 = vmatpush1.bf16.msra.mxu0 %v527
  %1794 = vmatprep.subr.bf16.mxu0 %v522
  %1795 = vmatpush1.bf16.msra.mxu0 %v521
  %1796 = vmatprep.subr.bf16.mxu0 %v516
  %1797 = vmatpush1.bf16.msra.mxu0 %v515
  %1798 = vmatprep.subr.bf16.mxu0 %v510
  %1799 = vmatpush1.bf16.msra.mxu0 %v509
  %1800 = vmatprep.subr.bf16.mxu0 %v504
  %1801 = vmatpush1.bf16.msra.mxu0 %v503
  %1802 = vmatprep.subr.bf16.mxu0 %v498
  %1803 = vmatpush1.bf16.msra.mxu0 %v497
  %1804 = vmatprep.subr.bf16.mxu0 %v492
  %1805 = vmatpush1.bf16.msra.mxu0 %v491
  %1806 = vmatprep.subr.bf16.mxu0 %v486
  %1807 = vmatpush1.bf16.msra.mxu0 %v485
  %1808 = vmatprep.subr.bf16.mxu0 %v576
  %1809 = vmatpush2.bf16.msra.mxu0 %v575
  %1810 = vmatprep.subr.bf16.mxu0 %v570
  %1811 = vmatpush2.bf16.msra.mxu0 %v569
  %1812 = vmatprep.subr.bf16.mxu0 %v564
  %1813 = vmatpush2.bf16.msra.mxu0 %v563
  %1814 = vmatprep.subr.bf16.mxu0 %v558
  %1815 = vmatpush2.bf16.msra.mxu0 %v557
  %1816 = vmatprep.subr.bf16.mxu0 %v552
  %1817 = vmatpush2.bf16.msra.mxu0 %v551
  %1818 = vmatprep.subr.bf16.mxu0 %v546
  %1819 = vmatpush2.bf16.msra.mxu0 %v545
  %1820 = vmatprep.subr.bf16.mxu0 %v540
  %1821 = vmatpush2.bf16.msra.mxu0 %v539
  %1822 = vmatprep.subr.bf16.mxu0 %v534
  %1823 = vmatpush2.bf16.msra.mxu0 %v533
  %1824 = vmatprep.mubr.bf16.mxu0 %v1775
  %1825 = vmatmul.mubr.bf16.gmra.mxu0 %v1772
  %v1826 = vpop.f32.mrf.mxu0
  %v1827 = vadd.f32 0.0, %v1826
  %v1828 = vpop.f32.mrf.mxu0
  %v1829 = vadd.f32 0.0, %v1828
  %v1830 = vpop.f32.mrf.mxu0
  %v1831 = vpop.f32.mrf.mxu0
  %1832 = vdwg.mxu0
  %1833 = vmatprep.subr.bf16.mxu0 %v530
  %1834 = vmatpush1.bf16.msra.mxu0 %v529
  %1835 = vmatprep.subr.bf16.mxu0 %v524
  %1836 = vmatpush1.bf16.msra.mxu0 %v523
  %1837 = vmatprep.subr.bf16.mxu0 %v518
  %1838 = vmatpush1.bf16.msra.mxu0 %v517
  %1839 = vmatprep.subr.bf16.mxu0 %v512
  %1840 = vmatpush1.bf16.msra.mxu0 %v511
  %1841 = vmatprep.subr.bf16.mxu0 %v506
  %1842 = vmatpush1.bf16.msra.mxu0 %v505
  %1843 = vmatprep.subr.bf16.mxu0 %v500
  %1844 = vmatpush1.bf16.msra.mxu0 %v499
  %1845 = vmatprep.subr.bf16.mxu0 %v494
  %1846 = vmatpush1.bf16.msra.mxu0 %v493
  %1847 = vmatprep.subr.bf16.mxu0 %v488
  %1848 = vmatpush1.bf16.msra.mxu0 %v487
  %1849 = vmatprep.subr.bf16.mxu0 %v578
  %1850 = vmatpush2.bf16.msra.mxu0 %v577
  %1851 = vmatprep.subr.bf16.mxu0 %v572
  %1852 = vmatpush2.bf16.msra.mxu0 %v571
  %1853 = vmatprep.subr.bf16.mxu0 %v566
  %1854 = vmatpush2.bf16.msra.mxu0 %v565
  %1855 = vmatprep.subr.bf16.mxu0 %v560
  %1856 = vmatpush2.bf16.msra.mxu0 %v559
  %1857 = vmatprep.subr.bf16.mxu0 %v554
  %1858 = vmatpush2.bf16.msra.mxu0 %v553
  %1859 = vmatprep.subr.bf16.mxu0 %v548
  %1860 = vmatpush2.bf16.msra.mxu0 %v547
  %1861 = vmatprep.subr.bf16.mxu0 %v542
  %1862 = vmatpush2.bf16.msra.mxu0 %v541
  %1863 = vmatprep.subr.bf16.mxu0 %v536
  %1864 = vmatpush2.bf16.msra.mxu0 %v535
  %1865 = vmatprep.mubr.bf16.mxu0 %v1775
  %1866 = vmatmul.mubr.bf16.gmra.mxu0 %v1772
  %v1867 = vpop.f32.mrf.mxu0
  %v1868 = vadd.f32 0.0, %v1867
  %v1869 = vpop.f32.mrf.mxu0
  %v1870 = vadd.f32 0.0, %v1869
  %v1871 = vpop.f32.mrf.mxu0
  %v1872 = vpop.f32.mrf.mxu0
  %1873 = vdwg.mxu0
  %1874 = vmatprep.subr.bf16.mxu0 %v532
  %1875 = vmatpush1.bf16.msra.mxu0 %v531
  %1876 = vmatprep.subr.bf16.mxu0 %v526
  %1877 = vmatpush1.bf16.msra.mxu0 %v525
  %1878 = vmatprep.subr.bf16.mxu0 %v520
  %1879 = vmatpush1.bf16.msra.mxu0 %v519
  %1880 = vmatprep.subr.bf16.mxu0 %v514
  %1881 = vmatpush1.bf16.msra.mxu0 %v513
  %1882 = vmatprep.subr.bf16.mxu0 %v508
  %1883 = vmatpush1.bf16.msra.mxu0 %v507
  %1884 = vmatprep.subr.bf16.mxu0 %v502
  %1885 = vmatpush1.bf16.msra.mxu0 %v501
  %1886 = vmatprep.subr.bf16.mxu0 %v496
  %1887 = vmatpush1.bf16.msra.mxu0 %v495
  %1888 = vmatprep.subr.bf16.mxu0 %v490
  %1889 = vmatpush1.bf16.msra.mxu0 %v489
  %1890 = vmatprep.subr.bf16.mxu0 %v580
  %1891 = vmatpush2.bf16.msra.mxu0 %v579
  %1892 = vmatprep.subr.bf16.mxu0 %v574
  %1893 = vmatpush2.bf16.msra.mxu0 %v573
  %1894 = vmatprep.subr.bf16.mxu0 %v568
  %1895 = vmatpush2.bf16.msra.mxu0 %v567
  %1896 = vmatprep.subr.bf16.mxu0 %v562
  %1897 = vmatpush2.bf16.msra.mxu0 %v561
  %1898 = vmatprep.subr.bf16.mxu0 %v556
  %1899 = vmatpush2.bf16.msra.mxu0 %v555
  %1900 = vmatprep.subr.bf16.mxu0 %v550
  %1901 = vmatpush2.bf16.msra.mxu0 %v549
  %1902 = vmatprep.subr.bf16.mxu0 %v544
  %1903 = vmatpush2.bf16.msra.mxu0 %v543
  %1904 = vmatprep.subr.bf16.mxu0 %v538
  %1905 = vmatpush2.bf16.msra.mxu0 %v537
  %1906 = vmatprep.mubr.bf16.mxu0 %v1775
  %1907 = vmatmul.mubr.bf16.gmra.mxu0 %v1772
  %v1908 = vpop.f32.mrf.mxu0
  %v1909 = vadd.f32 0.0, %v1908
  %v1910 = vpop.f32.mrf.mxu0
  %v1911 = vadd.f32 0.0, %v1910
  %v1912 = vpop.f32.mrf.mxu0
  %v1913 = vpop.f32.mrf.mxu0
  %1914 = vdwg.mxu0
  %v1915 = vadd.f32 %v1782, %v1827
  %v1916 = vxor.u32 %v1915, 2147483648
  %v1917 = vmul.f32 %v1916, 1.442695
  %v1918 = vpow.pop %v1917
  %v1919 = vadd.f32 %v1918, 1.0
  %v1920 = vrcp.pop %v1919
  %v1921 = vmul.f32 1.0, %v1920
  %v1922 = vadd.f32 %v1783, %v1829
  %v1923 = vxor.u32 %v1922, 2147483648
  %v1924 = vmul.f32 %v1923, 1.442695
  %v1925 = vpow.pop %v1924
  %v1926 = vadd.f32 %v1925, 1.0
  %v1927 = vrcp.pop %v1926
  %v1928 = vmul.f32 1.0, %v1927
  %v1929 = vadd.f32 %v1868, %v168
  %v1930 = vmul.f32 %v1921, %v1929
  %v1931 = vadd.f32 %v1784, %v1930
  %v1932 = vtanh.pop %v1931
  %v1933 = vsub.f32 %v1750, %v1932
  %v1934 = vmul.f32 %v1928, %v1933
  %v1935 = vadd.f32 %v1932, %v1934
  %v1936 = vadd.f32 %v1789, %v1870
  %v1937 = vxor.u32 %v1936, 2147483648
  %v1938 = vmul.f32 %v1937, 1.442695
  %v1939 = vpow.pop %v1938
  %v1940 = vadd.f32 %v1939, 1.0
  %v1941 = vrcp.pop %v1940
  %v1942 = vmul.f32 1.0, %v1941
  %v1943 = vadd.f32 %v1790, %v1909
  %v1944 = vxor.u32 %v1943, 2147483648
  %v1945 = vmul.f32 %v1944, 1.442695
  %v1946 = vpow.pop %v1945
  %v1947 = vadd.f32 %v1946, 1.0
  %v1948 = vrcp.pop %v1947
  %v1949 = vmul.f32 1.0, %v1948
  %v1950 = vadd.f32 %v1911, %v175
  %v1951 = vmul.f32 %v1942, %v1950
  %v1952 = vadd.f32 %v1791, %v1951
  %v1953 = vtanh.pop %v1952
  %v1954 = vsub.f32 %v1771, %v1953
  %v1955 = vmul.f32 %v1949, %v1954
  %v1956 = vadd.f32 %v1953, %v1955
  %v1957 = vpack.c.bf16 %v1935, %v1935
  %s1958 = scalar_lea.vmem %s5, 24
  %1959 = vst [vmem:[%s1958] sm:$0xf] %v1957
  %v1960 = vpack.c.bf16 %v1956, %v1956
  %s1961 = scalar_lea.vmem %s58, 4
  %1962 = vst [vmem:[%s1961] sm:$0xf] %v1960
  %s1963 = smul.addr %s187, 4
  %s1964 = scalar_lea.vmem %s0, %s1963
  %v1965 = vld [vmem:[%s1964] sm:$0xff]
  %v1966 = vld [vmem:[%s1964 + $0x8] sm:$0xf]
  %v1967 = vunpack.c.l.bf16 %v1965
  %v1968 = vunpack.c.h.bf16 %v1965
  %v1969 = vunpack.c.l.bf16 %v1966
  %s1970 = smul.addr %s179, 4
  %s1971 = scalar_lea.vmem %s50, %s1970
  %v1972 = vld [vmem:[%s1971] sm:$0xff]
  %v1973 = vld [vmem:[%s1971 + $0x8] sm:$0xf]
  %v1974 = vunpack.c.l.bf16 %v1972
  %v1975 = vunpack.c.h.bf16 %v1972
  %v1976 = vunpack.c.l.bf16 %v1973
  %1977 = vmatprep.subr.bf16.mxu0 %v528
  %1978 = vmatpush1.bf16.msra.mxu0 %v527
  %1979 = vmatprep.subr.bf16.mxu0 %v522
  %1980 = vmatpush1.bf16.msra.mxu0 %v521
  %1981 = vmatprep.subr.bf16.mxu0 %v516
  %1982 = vmatpush1.bf16.msra.mxu0 %v515
  %1983 = vmatprep.subr.bf16.mxu0 %v510
  %1984 = vmatpush1.bf16.msra.mxu0 %v509
  %1985 = vmatprep.subr.bf16.mxu0 %v504
  %1986 = vmatpush1.bf16.msra.mxu0 %v503
  %1987 = vmatprep.subr.bf16.mxu0 %v498
  %1988 = vmatpush1.bf16.msra.mxu0 %v497
  %1989 = vmatprep.subr.bf16.mxu0 %v492
  %1990 = vmatpush1.bf16.msra.mxu0 %v491
  %1991 = vmatprep.subr.bf16.mxu0 %v486
  %1992 = vmatpush1.bf16.msra.mxu0 %v485
  %1993 = vmatprep.subr.bf16.mxu0 %v576
  %1994 = vmatpush2.bf16.msra.mxu0 %v575
  %1995 = vmatprep.subr.bf16.mxu0 %v570
  %1996 = vmatpush2.bf16.msra.mxu0 %v569
  %1997 = vmatprep.subr.bf16.mxu0 %v564
  %1998 = vmatpush2.bf16.msra.mxu0 %v563
  %1999 = vmatprep.subr.bf16.mxu0 %v558
  %2000 = vmatpush2.bf16.msra.mxu0 %v557
  %2001 = vmatprep.subr.bf16.mxu0 %v552
  %2002 = vmatpush2.bf16.msra.mxu0 %v551
  %2003 = vmatprep.subr.bf16.mxu0 %v546
  %2004 = vmatpush2.bf16.msra.mxu0 %v545
  %2005 = vmatprep.subr.bf16.mxu0 %v540
  %2006 = vmatpush2.bf16.msra.mxu0 %v539
  %2007 = vmatprep.subr.bf16.mxu0 %v534
  %2008 = vmatpush2.bf16.msra.mxu0 %v533
  %2009 = vmatprep.mubr.bf16.mxu0 %v1960
  %2010 = vmatmul.mubr.bf16.gmra.mxu0 %v1957
  %v2011 = vpop.f32.mrf.mxu0
  %v2012 = vadd.f32 0.0, %v2011
  %v2013 = vpop.f32.mrf.mxu0
  %v2014 = vadd.f32 0.0, %v2013
  %v2015 = vpop.f32.mrf.mxu0
  %v2016 = vpop.f32.mrf.mxu0
  %2017 = vdwg.mxu0
  %2018 = vmatprep.subr.bf16.mxu0 %v530
  %2019 = vmatpush1.bf16.msra.mxu0 %v529
  %2020 = vmatprep.subr.bf16.mxu0 %v524
  %2021 = vmatpush1.bf16.msra.mxu0 %v523
  %2022 = vmatprep.subr.bf16.mxu0 %v518
  %2023 = vmatpush1.bf16.msra.mxu0 %v517
  %2024 = vmatprep.subr.bf16.mxu0 %v512
  %2025 = vmatpush1.bf16.msra.mxu0 %v511
  %2026 = vmatprep.subr.bf16.mxu0 %v506
  %2027 = vmatpush1.bf16.msra.mxu0 %v505
  %2028 = vmatprep.subr.bf16.mxu0 %v500
  %2029 = vmatpush1.bf16.msra.mxu0 %v499
  %2030 = vmatprep.subr.bf16.mxu0 %v494
  %2031 = vmatpush1.bf16.msra.mxu0 %v493
  %2032 = vmatprep.subr.bf16.mxu0 %v488
  %2033 = vmatpush1.bf16.msra.mxu0 %v487
  %2034 = vmatprep.subr.bf16.mxu0 %v578
  %2035 = vmatpush2.bf16.msra.mxu0 %v577
  %2036 = vmatprep.subr.bf16.mxu0 %v572
  %2037 = vmatpush2.bf16.msra.mxu0 %v571
  %2038 = vmatprep.subr.bf16.mxu0 %v566
  %2039 = vmatpush2.bf16.msra.mxu0 %v565
  %2040 = vmatprep.subr.bf16.mxu0 %v560
  %2041 = vmatpush2.bf16.msra.mxu0 %v559
  %2042 = vmatprep.subr.bf16.mxu0 %v554
  %2043 = vmatpush2.bf16.msra.mxu0 %v553
  %2044 = vmatprep.subr.bf16.mxu0 %v548
  %2045 = vmatpush2.bf16.msra.mxu0 %v547
  %2046 = vmatprep.subr.bf16.mxu0 %v542
  %2047 = vmatpush2.bf16.msra.mxu0 %v541
  %2048 = vmatprep.subr.bf16.mxu0 %v536
  %2049 = vmatpush2.bf16.msra.mxu0 %v535
  %2050 = vmatprep.mubr.bf16.mxu0 %v1960
  %2051 = vmatmul.mubr.bf16.gmra.mxu0 %v1957
  %v2052 = vpop.f32.mrf.mxu0
  %v2053 = vadd.f32 0.0, %v2052
  %v2054 = vpop.f32.mrf.mxu0
  %v2055 = vadd.f32 0.0, %v2054
  %v2056 = vpop.f32.mrf.mxu0
  %v2057 = vpop.f32.mrf.mxu0
  %2058 = vdwg.mxu0
  %2059 = vmatprep.subr.bf16.mxu0 %v532
  %2060 = vmatpush1.bf16.msra.mxu0 %v531
  %2061 = vmatprep.subr.bf16.mxu0 %v526
  %2062 = vmatpush1.bf16.msra.mxu0 %v525
  %2063 = vmatprep.subr.bf16.mxu0 %v520
  %2064 = vmatpush1.bf16.msra.mxu0 %v519
  %2065 = vmatprep.subr.bf16.mxu0 %v514
  %2066 = vmatpush1.bf16.msra.mxu0 %v513
  %2067 = vmatprep.subr.bf16.mxu0 %v508
  %2068 = vmatpush1.bf16.msra.mxu0 %v507
  %2069 = vmatprep.subr.bf16.mxu0 %v502
  %2070 = vmatpush1.bf16.msra.mxu0 %v501
  %2071 = vmatprep.subr.bf16.mxu0 %v496
  %2072 = vmatpush1.bf16.msra.mxu0 %v495
  %2073 = vmatprep.subr.bf16.mxu0 %v490
  %2074 = vmatpush1.bf16.msra.mxu0 %v489
  %2075 = vmatprep.subr.bf16.mxu0 %v580
  %2076 = vmatpush2.bf16.msra.mxu0 %v579
  %2077 = vmatprep.subr.bf16.mxu0 %v574
  %2078 = vmatpush2.bf16.msra.mxu0 %v573
  %2079 = vmatprep.subr.bf16.mxu0 %v568
  %2080 = vmatpush2.bf16.msra.mxu0 %v567
  %2081 = vmatprep.subr.bf16.mxu0 %v562
  %2082 = vmatpush2.bf16.msra.mxu0 %v561
  %2083 = vmatprep.subr.bf16.mxu0 %v556
  %2084 = vmatpush2.bf16.msra.mxu0 %v555
  %2085 = vmatprep.subr.bf16.mxu0 %v550
  %2086 = vmatpush2.bf16.msra.mxu0 %v549
  %2087 = vmatprep.subr.bf16.mxu0 %v544
  %2088 = vmatpush2.bf16.msra.mxu0 %v543
  %2089 = vmatprep.subr.bf16.mxu0 %v538
  %2090 = vmatpush2.bf16.msra.mxu0 %v537
  %2091 = vmatprep.mubr.bf16.mxu0 %v1960
  %2092 = vmatmul.mubr.bf16.gmra.mxu0 %v1957
  %v2093 = vpop.f32.mrf.mxu0
  %v2094 = vadd.f32 0.0, %v2093
  %v2095 = vpop.f32.mrf.mxu0
  %v2096 = vadd.f32 0.0, %v2095
  %v2097 = vpop.f32.mrf.mxu0
  %v2098 = vpop.f32.mrf.mxu0
  %2099 = vdwg.mxu0
  %v2100 = vadd.f32 %v1967, %v2012
  %v2101 = vxor.u32 %v2100, 2147483648
  %v2102 = vmul.f32 %v2101, 1.442695
  %v2103 = vpow.pop %v2102
  %v2104 = vadd.f32 %v2103, 1.0
  %v2105 = vrcp.pop %v2104
  %v2106 = vmul.f32 1.0, %v2105
  %v2107 = vadd.f32 %v1968, %v2014
  %v2108 = vxor.u32 %v2107, 2147483648
  %v2109 = vmul.f32 %v2108, 1.442695
  %v2110 = vpow.pop %v2109
  %v2111 = vadd.f32 %v2110, 1.0
  %v2112 = vrcp.pop %v2111
  %v2113 = vmul.f32 1.0, %v2112
  %v2114 = vadd.f32 %v2053, %v168
  %v2115 = vmul.f32 %v2106, %v2114
  %v2116 = vadd.f32 %v1969, %v2115
  %v2117 = vtanh.pop %v2116
  %v2118 = vsub.f32 %v1935, %v2117
  %v2119 = vmul.f32 %v2113, %v2118
  %v2120 = vadd.f32 %v2117, %v2119
  %v2121 = vadd.f32 %v1974, %v2055
  %v2122 = vxor.u32 %v2121, 2147483648
  %v2123 = vmul.f32 %v2122, 1.442695
  %v2124 = vpow.pop %v2123
  %v2125 = vadd.f32 %v2124, 1.0
  %v2126 = vrcp.pop %v2125
  %v2127 = vmul.f32 1.0, %v2126
  %v2128 = vadd.f32 %v1975, %v2094
  %v2129 = vxor.u32 %v2128, 2147483648
  %v2130 = vmul.f32 %v2129, 1.442695
  %v2131 = vpow.pop %v2130
  %v2132 = vadd.f32 %v2131, 1.0
  %v2133 = vrcp.pop %v2132
  %v2134 = vmul.f32 1.0, %v2133
  %v2135 = vadd.f32 %v2096, %v175
  %v2136 = vmul.f32 %v2127, %v2135
  %v2137 = vadd.f32 %v1976, %v2136
  %v2138 = vtanh.pop %v2137
  %v2139 = vsub.f32 %v1956, %v2138
  %v2140 = vmul.f32 %v2134, %v2139
  %v2141 = vadd.f32 %v2138, %v2140
  %v2142 = vpack.c.bf16 %v2120, %v2120
  %s2143 = scalar_lea.vmem %s5, 28
  %2144 = vst [vmem:[%s2143] sm:$0xf] %v2142
  %v2145 = vpack.c.bf16 %v2141, %v2141
  %2146 = vst [vmem:[%s58] sm:$0xf] %v2145
  %2147 = vst [vmem:[#allocation2] sm:$0xff] %v2120
  %2148 = vst [vmem:[#allocation2 + $0x8] sm:$0xff] %v2141
  %s2149 = ssub.s32 0, 0
  %s2150 = smul.u32 8, %s2149
  %p2151 = scmp.lt.s32.totalorder %s2150, 7
  %s2152 = scalar_select %p2151, %s2150, 7
  %s2153 = smul.addr %s2152, 4
  %s2154 = scalar_lea.vmem %s6, %s2153
  // Predicated region
  $region26: #{ctctop_r_forward.8} parent=0 // pred_check
    _
  $region27: #{ctctop_r_forward.8} parent=0 // pred_check_branch
    %2156 = sbr.rel (0) target = $region29
  $region28: #{ctctop_r_forward.8} parent=0 // pred_region
    _
  $region29: #{ctctop_r_forward.8} parent=0 // pred_fallthru
    _
  // Predicated region
  $region30: #{ctctop_r_forward.8} parent=0 // pred_check
    _
  $region31: #{ctctop_r_forward.8} parent=0 // pred_check_branch
    %2158 = sbr.rel (0) target = $region33
  $region32: #{ctctop_r_forward.8} parent=0 // pred_region
    %s2159 = ssub.s32 0, 0
    %s2160 = smul.u32 8, %s2159
  $region33: #{ctctop_r_forward.8} parent=0 // pred_fallthru
    _
  // Predicated region
  $region34: #{ctctop_r_forward.8} parent=0 // pred_check
    _
  $region35: #{ctctop_r_forward.8} parent=0 // pred_check_branch
    %2162 = sbr.rel (0) target = $region37
  $region36: #{ctctop_r_forward.8} parent=0 // pred_region
    _
  $region37: #{ctctop_r_forward.8} parent=0 // pred_fallthru
    _
  // Predicated region
  $region38: #{ctctop_r_forward.8} parent=0 // pred_check
    _
  $region39: #{ctctop_r_forward.8} parent=0 // pred_check_branch
    %2164 = sbr.rel (0) target = $region41
  $region40: #{ctctop_r_forward.8} parent=0 // pred_region
    %s2165 = ssub.s32 0, 0
    %s2166 = smul.u32 8, %s2165
    %p2167 = scmp.lt.s32.totalorder %s2166, 7
    %s2168 = scalar_select %p2167, %s2166, 7
    %s2169 = smul.addr %s2168, 4
    %s2170 = scalar_lea.vmem %s6, %s2169
  $region41: #{ctctop_r_forward.8} parent=0 // pred_fallthru
    _

// kernel: ctctop_r_forward.6
$region0: #{ctctop_r_forward.6}
  #allocation0 [shape = 'u32[]', space=smem, size = 0x4, offset = 0x4, fixed_abs, tag = 'smem constant byte address 0x4 - core index']
  #allocation1 [shape = 'u32[144,128]{1,0:T(1,128)}', space=vmem, size = 0x12000, scoped, tag = 'internal scratch']
  #allocation2 [shape = 'f32[8,256]{1,0:T(8,128)}', space=vmem, size = 0x2000, scoped, tag = 'scratch operand']
  %s0 = inlined_call_operand.vmem [shape: bf16[64,384], index: 0, kind: input, shape index: {}]
  %s1 = inlined_call_operand.vmem [shape: bf16[64,384], index: 1, kind: input, shape index: {}]
  %s2 = inlined_call_operand.hbm [shape: bf16[256,768], index: 2, kind: input, shape index: {}]
  %s3 = inlined_call_operand.vmem [shape: f32[1,128], index: 3, kind: input, shape index: {}]
  %s4 = inlined_call_operand.vmem [shape: f32[1,128], index: 4, kind: input, shape index: {}]
  %s5 = inlined_call_operand.vmem [shape: bf16[64,128], index: 5, kind: output, shape index: {0}]
  %s6 = inlined_call_operand.vmem [shape: bf16[64,128], index: 6, kind: output, shape index: {1}]
  %7 = xla_tuple %s5, %s6
  %s8 = sld [smem:[#allocation0]]
  $region46: #{ctctop_r_forward.6} parent=0
    _
  %s10 = ssub.s32 1, %s8
  %s11 = scalar_select 0, %s10, %s8
  $region1: #{ctctop_r_forward.6} parent=0
    #allocation3 [shape = 'u8[393216]{0}', space=vmem, size = 0x60000, scoped, tag = 'input window, operand 2, single buffered']
    #allocation4 [shape = 's32[1]{0}', space=sflag, size = 0x4, scoped, tag = 'scoped memory for ctctop_r_forward.6']
    %12 = vsyncpa [#allocation4], 0
    // Predicated region
    $region2: #{ctctop_r_forward.6} parent=1 // pred_check
      _
    $region3: #{ctctop_r_forward.6} parent=1 // pred_check_branch
      %14 = sbr.rel (0) target = $region5
    $region4: #{ctctop_r_forward.6} parent=1 // pred_region
      _
    $region5: #{ctctop_r_forward.6} parent=1 // pred_fallthru
      _
    // Predicated region
    $region6: #{ctctop_r_forward.6} parent=1 // pred_check
      _
    $region7: #{ctctop_r_forward.6} parent=1 // pred_check_branch
      %16 = sbr.rel (0) target = $region9
    $region8: #{ctctop_r_forward.6} parent=1 // pred_region
      %s17 = ssub.s32 0, 0
      %s18 = smul.u32 8, %s17
      %p19 = scmp.lt.s32.totalorder %s18, 7
      %s20 = scalar_select %p19, %s18, 7
      %s21 = smul.addr %s20, 3
      %s22 = smul.addr %s21, 4
      %s23 = scalar_lea.vmem %s1, %s22
      %s24 = ssub.s32 0, 0
      %s25 = smul.u32 8, %s24
    $region9: #{ctctop_r_forward.6} parent=1 // pred_fallthru
      _
    // Predicated region
    $region10: #{ctctop_r_forward.6} parent=1 // pred_check
      _
    $region11: #{ctctop_r_forward.6} parent=1 // pred_check_branch
      %27 = sbr.rel (0) target = $region13
    $region12: #{ctctop_r_forward.6} parent=1 // pred_region
      %s29 = ssub.s32 12288, 12288
      %30 = vsyncadd [#allocation4], %s29
      %s31 = sshll.u32 [#allocation3], 4
      %s32 = int_to_ptr.vmem [resolvable:$true] %s31
      %37 = dma.hbm_to_vmem [thread:$0]  %s2, 12288, %s32, [#allocation4], 384, 384, 24
    $region13: #{ctctop_r_forward.6} parent=1 // pred_fallthru
      _
    // Predicated region
    $region14: #{ctctop_r_forward.6} parent=1 // pred_check
      _
    $region15: #{ctctop_r_forward.6} parent=1 // pred_check_branch
      %39 = sbr.rel (0) target = $region17
    $region16: #{ctctop_r_forward.6} parent=1 // pred_region
      _
    $region17: #{ctctop_r_forward.6} parent=1 // pred_fallthru
      _
    // Predicated region
    $region18: #{ctctop_r_forward.6} parent=1 // pred_check
      _
    $region19: #{ctctop_r_forward.6} parent=1 // pred_check_branch
      %41 = sbr.rel (0) target = $region21
    $region20: #{ctctop_r_forward.6} parent=1 // pred_region
      _
    $region21: #{ctctop_r_forward.6} parent=1 // pred_fallthru
      _
    // Predicated region
    $region22: #{ctctop_r_forward.6} parent=1 // pred_check
      _
    $region23: #{ctctop_r_forward.6} parent=1 // pred_check_branch
      %43 = sbr.rel (0) target = $region25
    $region24: #{ctctop_r_forward.6} parent=1 // pred_region
      %44 = dma.done [#allocation4], 12288
    $region25: #{ctctop_r_forward.6} parent=1 // pred_fallthru
      _
    %s45 = ssub.s32 0, 0
    %s46 = smul.u32 8, %s45
    %p47 = scmp.lt.s32.totalorder %s46, 7
    %s48 = scalar_select %p47, %s46, 7
    %s49 = smul.addr %s48, 3
    %s50 = smul.addr %s49, 4
    %s51 = scalar_lea.vmem %s1, %s50
    %s52 = ssub.s32 0, 0
    %s53 = smul.u32 8, %s52
    %p54 = scmp.lt.s32.totalorder %s53, 7
    %s55 = scalar_select %p54, %s53, 7
    %s56 = smul.addr %s55, 4
    %s57 = scalar_lea.vmem %s6, %s56
    %s58 = ssub.s32 0, 0
    %s59 = smul.u32 8, %s58
    %p60 = scmp.lt.s32.totalorder %s59, 7
    %s61 = scalar_select %p60, %s59, 7
    %s62 = smul.addr %s61, 3
    %s63 = smul.addr %s62, 4
    %s64 = scalar_lea.vmem %s1, %s63
    %s65 = ssub.s32 0, 0
    %s66 = smul.u32 8, %s65
    %s67 = ssub.s32 0, 0
    %s68 = smul.u32 8, %s67
    %p69 = scmp.lt.s32.totalorder %s68, 7
    %s70 = scalar_select %p69, %s68, 7
    %s71 = smul.addr %s70, 4
    %s72 = scalar_lea.vmem %s6, %s71
    %s73 = ssub.s32 0, 0
    %s74 = smul.u32 8, %s73
    %p75 = scmp.eq.s32.totalorder 0, 0
    // Predicated region
    $region26: #{ctctop_r_forward.6} parent=1 // pred_check
      %p76 = pneg %p75
    $region27: #{ctctop_r_forward.6} parent=1 // pred_check_branch
      %78 = sbr.rel (%p76) target = $region29
    $region28: #{ctctop_r_forward.6} parent=1 // pred_region
      %79 = vst [vmem:[#allocation2] sm:$0xff] 0.0
      %80 = vst [vmem:[#allocation2 + $0x8] sm:$0xff] 0.0
    $region29: #{ctctop_r_forward.6} parent=1 // pred_fallthru
      _
    %v81 = vld [vmem:[#allocation3] sm:$0xff]
    %v82 = vld [vmem:[#allocation3 + $0x8] sm:$0xff]
    %v83 = vld [vmem:[#allocation3 + $0x10] sm:$0xff]
    %v84 = vld [vmem:[#allocation3 + $0x18] sm:$0xff]
    %v85 = vld [vmem:[#allocation3 + $0x20] sm:$0xff]
    %v86 = vld [vmem:[#allocation3 + $0x28] sm:$0xff]
    %v87 = vld [vmem:[#allocation3 + $0x30] sm:$0xff]
    %v88 = vld [vmem:[#allocation3 + $0x38] sm:$0xff]
    %v89 = vld [vmem:[#allocation3 + $0x40] sm:$0xff]
    %v90 = vld [vmem:[#allocation3 + $0x48] sm:$0xff]
    %v91 = vld [vmem:[#allocation3 + $0x50] sm:$0xff]
    %v92 = vld [vmem:[#allocation3 + $0x58] sm:$0xff]
    %v93 = vld [vmem:[#allocation3 + $0x60] sm:$0xff]
    %v94 = vld [vmem:[#allocation3 + $0x68] sm:$0xff]
    %v95 = vld [vmem:[#allocation3 + $0x70] sm:$0xff]
    %v96 = vld [vmem:[#allocation3 + $0x78] sm:$0xff]
    %v97 = vld [vmem:[#allocation3 + $0x80] sm:$0xff]
    %v98 = vld [vmem:[#allocation3 + $0x88] sm:$0xff]
    %v99 = vld [vmem:[#allocation3 + $0x90] sm:$0xff]
    %v100 = vld [vmem:[#allocation3 + $0x98] sm:$0xff]
    %v101 = vld [vmem:[#allocation3 + $0xa0] sm:$0xff]
    %v102 = vld [vmem:[#allocation3 + $0xa8] sm:$0xff]
    %v103 = vld [vmem:[#allocation3 + $0xb0] sm:$0xff]
    %v104 = vld [vmem:[#allocation3 + $0xb8] sm:$0xff]
    %v105 = vld [vmem:[#allocation3 + $0xc0] sm:$0xff]
    %v106 = vld [vmem:[#allocation3 + $0xc8] sm:$0xff]
    %v107 = vld [vmem:[#allocation3 + $0xd0] sm:$0xff]
    %v108 = vld [vmem:[#allocation3 + $0xd8] sm:$0xff]
    %v109 = vld [vmem:[#allocation3 + $0xe0] sm:$0xff]
    %v110 = vld [vmem:[#allocation3 + $0xe8] sm:$0xff]
    %v111 = vld [vmem:[#allocation3 + $0xf0] sm:$0xff]
    %v112 = vld [vmem:[#allocation3 + $0xf8] sm:$0xff]
    %v113 = vld [vmem:[#allocation3 + $0x100] sm:$0xff]
    %v114 = vld [vmem:[#allocation3 + $0x108] sm:$0xff]
    %v115 = vld [vmem:[#allocation3 + $0x110] sm:$0xff]
    %v116 = vld [vmem:[#allocation3 + $0x118] sm:$0xff]
    %v117 = vld [vmem:[#allocation3 + $0x120] sm:$0xff]
    %v118 = vld [vmem:[#allocation3 + $0x128] sm:$0xff]
    %v119 = vld [vmem:[#allocation3 + $0x130] sm:$0xff]
    %v120 = vld [vmem:[#allocation3 + $0x138] sm:$0xff]
    %v121 = vld [vmem:[#allocation3 + $0x140] sm:$0xff]
    %v122 = vld [vmem:[#allocation3 + $0x148] sm:$0xff]
    %v123 = vld [vmem:[#allocation3 + $0x150] sm:$0xff]
    %v124 = vld [vmem:[#allocation3 + $0x158] sm:$0xff]
    %v125 = vld [vmem:[#allocation3 + $0x160] sm:$0xff]
    %v126 = vld [vmem:[#allocation3 + $0x168] sm:$0xff]
    %v127 = vld [vmem:[#allocation3 + $0x170] sm:$0xff]
    %v128 = vld [vmem:[#allocation3 + $0x178] sm:$0xff]
    %v129 = vld [vmem:[#allocation3 + $0x180] sm:$0xff]
    %v130 = vld [vmem:[#allocation3 + $0x188] sm:$0xff]
    %v131 = vld [vmem:[#allocation3 + $0x190] sm:$0xff]
    %v132 = vld [vmem:[#allocation3 + $0x198] sm:$0xff]
    %v133 = vld [vmem:[#allocation3 + $0x1a0] sm:$0xff]
    %v134 = vld [vmem:[#allocation3 + $0x1a8] sm:$0xff]
    %v135 = vld [vmem:[#allocation3 + $0x1b0] sm:$0xff]
    %v136 = vld [vmem:[#allocation3 + $0x1b8] sm:$0xff]
    %v137 = vld [vmem:[#allocation3 + $0x1c0] sm:$0xff]
    %v138 = vld [vmem:[#allocation3 + $0x1c8] sm:$0xff]
    %v139 = vld [vmem:[#allocation3 + $0x1d0] sm:$0xff]
    %v140 = vld [vmem:[#allocation3 + $0x1d8] sm:$0xff]
    %v141 = vld [vmem:[#allocation3 + $0x1e0] sm:$0xff]
    %v142 = vld [vmem:[#allocation3 + $0x1e8] sm:$0xff]
    %v143 = vld [vmem:[#allocation3 + $0x1f0] sm:$0xff]
    %v144 = vld [vmem:[#allocation3 + $0x1f8] sm:$0xff]
    %v145 = vld [vmem:[#allocation3 + $0x200] sm:$0xff]
    %v146 = vld [vmem:[#allocation3 + $0x208] sm:$0xff]
    %v147 = vld [vmem:[#allocation3 + $0x210] sm:$0xff]
    %v148 = vld [vmem:[#allocation3 + $0x218] sm:$0xff]
    %v149 = vld [vmem:[#allocation3 + $0x220] sm:$0xff]
    %v150 = vld [vmem:[#allocation3 + $0x228] sm:$0xff]
    %v151 = vld [vmem:[#allocation3 + $0x230] sm:$0xff]
    %v152 = vld [vmem:[#allocation3 + $0x238] sm:$0xff]
    %v153 = vld [vmem:[#allocation3 + $0x240] sm:$0xff]
    %v154 = vld [vmem:[#allocation3 + $0x248] sm:$0xff]
    %v155 = vld [vmem:[#allocation3 + $0x250] sm:$0xff]
    %v156 = vld [vmem:[#allocation3 + $0x258] sm:$0xff]
    %v157 = vld [vmem:[#allocation3 + $0x260] sm:$0xff]
    %v158 = vld [vmem:[#allocation3 + $0x268] sm:$0xff]
    %v159 = vld [vmem:[#allocation3 + $0x270] sm:$0xff]
    %v160 = vld [vmem:[#allocation3 + $0x278] sm:$0xff]
    %v161 = vld [vmem:[#allocation3 + $0x280] sm:$0xff]
    %v162 = vld [vmem:[#allocation3 + $0x288] sm:$0xff]
    %v163 = vld [vmem:[#allocation3 + $0x290] sm:$0xff]
    %v164 = vld [vmem:[#allocation3 + $0x298] sm:$0xff]
    %v165 = vld [vmem:[#allocation3 + $0x2a0] sm:$0xff]
    %v166 = vld [vmem:[#allocation3 + $0x2a8] sm:$0xff]
    %v167 = vld [vmem:[#allocation3 + $0x2b0] sm:$0xff]
    %v168 = vld [vmem:[#allocation3 + $0x2b8] sm:$0xff]
    %v169 = vld [vmem:[#allocation3 + $0x2c0] sm:$0xff]
    %v170 = vld [vmem:[#allocation3 + $0x2c8] sm:$0xff]
    %v171 = vld [vmem:[#allocation3 + $0x2d0] sm:$0xff]
    %v172 = vld [vmem:[#allocation3 + $0x2d8] sm:$0xff]
    %v173 = vld [vmem:[#allocation3 + $0x2e0] sm:$0xff]
    %v174 = vld [vmem:[#allocation3 + $0x2e8] sm:$0xff]
    %v175 = vld [vmem:[#allocation3 + $0x2f0] sm:$0xff]
    %v176 = vld [vmem:[#allocation3 + $0x2f8] sm:$0xff]
    %v177 = vld [vmem:[%s3] sm:$0x1]
    %v179 = vlaneseq
    %v180 = vshrl.u32 %v179, 7
    %v181 = vsub.s32 0, %v180
    %v182 = vrot.slane %v177, %v181
    %v184 = vld [vmem:[%s4] sm:$0x1]
    %v186 = vlaneseq
    %v187 = vshrl.u32 %v186, 7
    %v188 = vsub.s32 0, %v187
    %v189 = vrot.slane %v184, %v188
    %v191 = vld [vmem:[#allocation2] sm:$0xff]
    %v192 = vld [vmem:[#allocation2 + $0x8] sm:$0xff]
    %s193 = smul.u32 0, 3
    %s194 = smul.addr %s193, 4
    %s195 = scalar_lea.vmem %s0, %s194
    %v196 = vld [vmem:[%s195] sm:$0xff]
    %v197 = vld [vmem:[%s195 + $0x8] sm:$0xf]
    %v198 = vunpack.c.l.bf16 %v196
    %v199 = vunpack.c.h.bf16 %v196
    %v200 = vunpack.c.l.bf16 %v197
    %s201 = smul.u32 7, 3
    %s202 = smul.addr %s201, 4
    %s203 = scalar_lea.vmem %s64, %s202
    %v204 = vld [vmem:[%s203] sm:$0xff]
    %v205 = vld [vmem:[%s203 + $0x8] sm:$0xf]
    %v206 = vunpack.c.l.bf16 %v204
    %v207 = vunpack.c.h.bf16 %v204
    %v208 = vunpack.c.l.bf16 %v205
    %v209 = vpack.c.bf16 %v191, %v191
    %v210 = vpack.c.bf16 %v192, %v192
    %v307 = vunpack.c.l.b16 %v81
    %v308 = vunpack.c.h.b16 %v81
    %v309 = vunpack.c.l.b16 %v82
    %v310 = vunpack.c.h.b16 %v82
    %v311 = vunpack.c.l.b16 %v83
    %v312 = vunpack.c.h.b16 %v83
    %v313 = vunpack.c.l.b16 %v84
    %v314 = vunpack.c.h.b16 %v84
    %v315 = vunpack.c.l.b16 %v85
    %v316 = vunpack.c.h.b16 %v85
    %v317 = vunpack.c.l.b16 %v86
    %v318 = vunpack.c.h.b16 %v86
    %v319 = vunpack.c.l.b16 %v87
    %v320 = vunpack.c.h.b16 %v87
    %v321 = vunpack.c.l.b16 %v88
    %v322 = vunpack.c.h.b16 %v88
    %v323 = vunpack.c.l.b16 %v89
    %v324 = vunpack.c.h.b16 %v89
    %v325 = vunpack.c.l.b16 %v90
    %v326 = vunpack.c.h.b16 %v90
    %v327 = vunpack.c.l.b16 %v91
    %v328 = vunpack.c.h.b16 %v91
    %v329 = vunpack.c.l.b16 %v92
    %v330 = vunpack.c.h.b16 %v92
    %v331 = vunpack.c.l.b16 %v93
    %v332 = vunpack.c.h.b16 %v93
    %v333 = vunpack.c.l.b16 %v94
    %v334 = vunpack.c.h.b16 %v94
    %v335 = vunpack.c.l.b16 %v95
    %v336 = vunpack.c.h.b16 %v95
    %v337 = vunpack.c.l.b16 %v96
    %v338 = vunpack.c.h.b16 %v96
    %v339 = vunpack.c.l.b16 %v97
    %v340 = vunpack.c.h.b16 %v97
    %v341 = vunpack.c.l.b16 %v98
    %v342 = vunpack.c.h.b16 %v98
    %v343 = vunpack.c.l.b16 %v99
    %v344 = vunpack.c.h.b16 %v99
    %v345 = vunpack.c.l.b16 %v100
    %v346 = vunpack.c.h.b16 %v100
    %v347 = vunpack.c.l.b16 %v101
    %v348 = vunpack.c.h.b16 %v101
    %v349 = vunpack.c.l.b16 %v102
    %v350 = vunpack.c.h.b16 %v102
    %v351 = vunpack.c.l.b16 %v103
    %v352 = vunpack.c.h.b16 %v103
    %v353 = vunpack.c.l.b16 %v104
    %v354 = vunpack.c.h.b16 %v104
    %v355 = vunpack.c.l.b16 %v105
    %v356 = vunpack.c.h.b16 %v105
    %v357 = vunpack.c.l.b16 %v106
    %v358 = vunpack.c.h.b16 %v106
    %v359 = vunpack.c.l.b16 %v107
    %v360 = vunpack.c.h.b16 %v107
    %v361 = vunpack.c.l.b16 %v108
    %v362 = vunpack.c.h.b16 %v108
    %v363 = vunpack.c.l.b16 %v109
    %v364 = vunpack.c.h.b16 %v109
    %v365 = vunpack.c.l.b16 %v110
    %v366 = vunpack.c.h.b16 %v110
    %v367 = vunpack.c.l.b16 %v111
    %v368 = vunpack.c.h.b16 %v111
    %v369 = vunpack.c.l.b16 %v112
    %v370 = vunpack.c.h.b16 %v112
    %v371 = vunpack.c.l.b16 %v113
    %v372 = vunpack.c.h.b16 %v113
    %v373 = vunpack.c.l.b16 %v114
    %v374 = vunpack.c.h.b16 %v114
    %v375 = vunpack.c.l.b16 %v115
    %v376 = vunpack.c.h.b16 %v115
    %v377 = vunpack.c.l.b16 %v116
    %v378 = vunpack.c.h.b16 %v116
    %v379 = vunpack.c.l.b16 %v117
    %v380 = vunpack.c.h.b16 %v117
    %v381 = vunpack.c.l.b16 %v118
    %v382 = vunpack.c.h.b16 %v118
    %v383 = vunpack.c.l.b16 %v119
    %v384 = vunpack.c.h.b16 %v119
    %v385 = vunpack.c.l.b16 %v120
    %v386 = vunpack.c.h.b16 %v120
    %v387 = vunpack.c.l.b16 %v121
    %v388 = vunpack.c.h.b16 %v121
    %v389 = vunpack.c.l.b16 %v122
    %v390 = vunpack.c.h.b16 %v122
    %v391 = vunpack.c.l.b16 %v123
    %v392 = vunpack.c.h.b16 %v123
    %v393 = vunpack.c.l.b16 %v124
    %v394 = vunpack.c.h.b16 %v124
    %v395 = vunpack.c.l.b16 %v125
    %v396 = vunpack.c.h.b16 %v125
    %v397 = vunpack.c.l.b16 %v126
    %v398 = vunpack.c.h.b16 %v126
    %v399 = vunpack.c.l.b16 %v127
    %v400 = vunpack.c.h.b16 %v127
    %v401 = vunpack.c.l.b16 %v128
    %v402 = vunpack.c.h.b16 %v128
    %v403 = vunpack.c.l.b16 %v129
    %v404 = vunpack.c.h.b16 %v129
    %v405 = vunpack.c.l.b16 %v130
    %v406 = vunpack.c.h.b16 %v130
    %v407 = vunpack.c.l.b16 %v131
    %v408 = vunpack.c.h.b16 %v131
    %v409 = vunpack.c.l.b16 %v132
    %v410 = vunpack.c.h.b16 %v132
    %v411 = vunpack.c.l.b16 %v133
    %v412 = vunpack.c.h.b16 %v133
    %v413 = vunpack.c.l.b16 %v134
    %v414 = vunpack.c.h.b16 %v134
    %v415 = vunpack.c.l.b16 %v135
    %v416 = vunpack.c.h.b16 %v135
    %v417 = vunpack.c.l.b16 %v136
    %v418 = vunpack.c.h.b16 %v136
    %v419 = vunpack.c.l.b16 %v137
    %v420 = vunpack.c.h.b16 %v137
    %v421 = vunpack.c.l.b16 %v138
    %v422 = vunpack.c.h.b16 %v138
    %v423 = vunpack.c.l.b16 %v139
    %v424 = vunpack.c.h.b16 %v139
    %v425 = vunpack.c.l.b16 %v140
    %v426 = vunpack.c.h.b16 %v140
    %v427 = vunpack.c.l.b16 %v141
    %v428 = vunpack.c.h.b16 %v141
    %v429 = vunpack.c.l.b16 %v142
    %v430 = vunpack.c.h.b16 %v142
    %v431 = vunpack.c.l.b16 %v143
    %v432 = vunpack.c.h.b16 %v143
    %v433 = vunpack.c.l.b16 %v144
    %v434 = vunpack.c.h.b16 %v144
    %v435 = vunpack.c.l.b16 %v145
    %v436 = vunpack.c.h.b16 %v145
    %v437 = vunpack.c.l.b16 %v146
    %v438 = vunpack.c.h.b16 %v146
    %v439 = vunpack.c.l.b16 %v147
    %v440 = vunpack.c.h.b16 %v147
    %v441 = vunpack.c.l.b16 %v148
    %v442 = vunpack.c.h.b16 %v148
    %v443 = vunpack.c.l.b16 %v149
    %v444 = vunpack.c.h.b16 %v149
    %v445 = vunpack.c.l.b16 %v150
    %v446 = vunpack.c.h.b16 %v150
    %v447 = vunpack.c.l.b16 %v151
    %v448 = vunpack.c.h.b16 %v151
    %v449 = vunpack.c.l.b16 %v152
    %v450 = vunpack.c.h.b16 %v152
    %v451 = vunpack.c.l.b16 %v153
    %v452 = vunpack.c.h.b16 %v153
    %v453 = vunpack.c.l.b16 %v154
    %v454 = vunpack.c.h.b16 %v154
    %v455 = vunpack.c.l.b16 %v155
    %v456 = vunpack.c.h.b16 %v155
    %v457 = vunpack.c.l.b16 %v156
    %v458 = vunpack.c.h.b16 %v156
    %v459 = vunpack.c.l.b16 %v157
    %v460 = vunpack.c.h.b16 %v157
    %v461 = vunpack.c.l.b16 %v158
    %v462 = vunpack.c.h.b16 %v158
    %v463 = vunpack.c.l.b16 %v159
    %v464 = vunpack.c.h.b16 %v159
    %v465 = vunpack.c.l.b16 %v160
    %v466 = vunpack.c.h.b16 %v160
    %v467 = vunpack.c.l.b16 %v161
    %v468 = vunpack.c.h.b16 %v161
    %v469 = vunpack.c.l.b16 %v162
    %v470 = vunpack.c.h.b16 %v162
    %v471 = vunpack.c.l.b16 %v163
    %v472 = vunpack.c.h.b16 %v163
    %v473 = vunpack.c.l.b16 %v164
    %v474 = vunpack.c.h.b16 %v164
    %v475 = vunpack.c.l.b16 %v165
    %v476 = vunpack.c.h.b16 %v165
    %v477 = vunpack.c.l.b16 %v166
    %v478 = vunpack.c.h.b16 %v166
    %v479 = vunpack.c.l.b16 %v167
    %v480 = vunpack.c.h.b16 %v167
    %v481 = vunpack.c.l.b16 %v168
    %v482 = vunpack.c.h.b16 %v168
    %v483 = vunpack.c.l.b16 %v169
    %v484 = vunpack.c.h.b16 %v169
    %v485 = vunpack.c.l.b16 %v170
    %v486 = vunpack.c.h.b16 %v170
    %v487 = vunpack.c.l.b16 %v171
    %v488 = vunpack.c.h.b16 %v171
    %v489 = vunpack.c.l.b16 %v172
    %v490 = vunpack.c.h.b16 %v172
    %v491 = vunpack.c.l.b16 %v173
    %v492 = vunpack.c.h.b16 %v173
    %v493 = vunpack.c.l.b16 %v174
    %v494 = vunpack.c.h.b16 %v174
    %v495 = vunpack.c.l.b16 %v175
    %v496 = vunpack.c.h.b16 %v175
    %v497 = vunpack.c.l.b16 %v176
    %v498 = vunpack.c.h.b16 %v176
    %v499 = vpack.c.b16 %v313, %v307
    %v500 = vpack.c.b16 %v314, %v308
    %v501 = vpack.c.b16 %v315, %v309
    %v502 = vpack.c.b16 %v316, %v310
    %v503 = vpack.c.b16 %v317, %v311
    %v504 = vpack.c.b16 %v318, %v312
    %v505 = vpack.c.b16 %v325, %v319
    %v506 = vpack.c.b16 %v326, %v320
    %v507 = vpack.c.b16 %v327, %v321
    %v508 = vpack.c.b16 %v328, %v322
    %v509 = vpack.c.b16 %v329, %v323
    %v510 = vpack.c.b16 %v330, %v324
    %v511 = vpack.c.b16 %v337, %v331
    %v512 = vpack.c.b16 %v338, %v332
    %v513 = vpack.c.b16 %v339, %v333
    %v514 = vpack.c.b16 %v340, %v334
    %v515 = vpack.c.b16 %v341, %v335
    %v516 = vpack.c.b16 %v342, %v336
    %v517 = vpack.c.b16 %v349, %v343
    %v518 = vpack.c.b16 %v350, %v344
    %v519 = vpack.c.b16 %v351, %v345
    %v520 = vpack.c.b16 %v352, %v346
    %v521 = vpack.c.b16 %v353, %v347
    %v522 = vpack.c.b16 %v354, %v348
    %v523 = vpack.c.b16 %v361, %v355
    %v524 = vpack.c.b16 %v362, %v356
    %v525 = vpack.c.b16 %v363, %v357
    %v526 = vpack.c.b16 %v364, %v358
    %v527 = vpack.c.b16 %v365, %v359
    %v528 = vpack.c.b16 %v366, %v360
    %v529 = vpack.c.b16 %v373, %v367
    %v530 = vpack.c.b16 %v374, %v368
    %v531 = vpack.c.b16 %v375, %v369
    %v532 = vpack.c.b16 %v376, %v370
    %v533 = vpack.c.b16 %v377, %v371
    %v534 = vpack.c.b16 %v378, %v372
    %v535 = vpack.c.b16 %v385, %v379
    %v536 = vpack.c.b16 %v386, %v380
    %v537 = vpack.c.b16 %v387, %v381
    %v538 = vpack.c.b16 %v388, %v382
    %v539 = vpack.c.b16 %v389, %v383
    %v540 = vpack.c.b16 %v390, %v384
    %v541 = vpack.c.b16 %v397, %v391
    %v542 = vpack.c.b16 %v398, %v392
    %v543 = vpack.c.b16 %v399, %v393
    %v544 = vpack.c.b16 %v400, %v394
    %v545 = vpack.c.b16 %v401, %v395
    %v546 = vpack.c.b16 %v402, %v396
    %v547 = vpack.c.b16 %v409, %v403
    %v548 = vpack.c.b16 %v410, %v404
    %v549 = vpack.c.b16 %v411, %v405
    %v550 = vpack.c.b16 %v412, %v406
    %v551 = vpack.c.b16 %v413, %v407
    %v552 = vpack.c.b16 %v414, %v408
    %v553 = vpack.c.b16 %v421, %v415
    %v554 = vpack.c.b16 %v422, %v416
    %v555 = vpack.c.b16 %v423, %v417
    %v556 = vpack.c.b16 %v424, %v418
    %v557 = vpack.c.b16 %v425, %v419
    %v558 = vpack.c.b16 %v426, %v420
    %v559 = vpack.c.b16 %v433, %v427
    %v560 = vpack.c.b16 %v434, %v428
    %v561 = vpack.c.b16 %v435, %v429
    %v562 = vpack.c.b16 %v436, %v430
    %v563 = vpack.c.b16 %v437, %v431
    %v564 = vpack.c.b16 %v438, %v432
    %v565 = vpack.c.b16 %v445, %v439
    %v566 = vpack.c.b16 %v446, %v440
    %v567 = vpack.c.b16 %v447, %v441
    %v568 = vpack.c.b16 %v448, %v442
    %v569 = vpack.c.b16 %v449, %v443
    %v570 = vpack.c.b16 %v450, %v444
    %v571 = vpack.c.b16 %v457, %v451
    %v572 = vpack.c.b16 %v458, %v452
    %v573 = vpack.c.b16 %v459, %v453
    %v574 = vpack.c.b16 %v460, %v454
    %v575 = vpack.c.b16 %v461, %v455
    %v576 = vpack.c.b16 %v462, %v456
    %v577 = vpack.c.b16 %v469, %v463
    %v578 = vpack.c.b16 %v470, %v464
    %v579 = vpack.c.b16 %v471, %v465
    %v580 = vpack.c.b16 %v472, %v466
    %v581 = vpack.c.b16 %v473, %v467
    %v582 = vpack.c.b16 %v474, %v468
    %v583 = vpack.c.b16 %v481, %v475
    %v584 = vpack.c.b16 %v482, %v476
    %v585 = vpack.c.b16 %v483, %v477
    %v586 = vpack.c.b16 %v484, %v478
    %v587 = vpack.c.b16 %v485, %v479
    %v588 = vpack.c.b16 %v486, %v480
    %v589 = vpack.c.b16 %v493, %v487
    %v590 = vpack.c.b16 %v494, %v488
    %v591 = vpack.c.b16 %v495, %v489
    %v592 = vpack.c.b16 %v496, %v490
    %v593 = vpack.c.b16 %v497, %v491
    %v594 = vpack.c.b16 %v498, %v492
    %691 = vmatprep.subr.bf16.mxu0 %v542
    %692 = vmatpush1.bf16.msra.mxu0 %v541
    %693 = vmatprep.subr.bf16.mxu0 %v536
    %694 = vmatpush1.bf16.msra.mxu0 %v535
    %695 = vmatprep.subr.bf16.mxu0 %v530
    %696 = vmatpush1.bf16.msra.mxu0 %v529
    %697 = vmatprep.subr.bf16.mxu0 %v524
    %698 = vmatpush1.bf16.msra.mxu0 %v523
    %699 = vmatprep.subr.bf16.mxu0 %v518
    %700 = vmatpush1.bf16.msra.mxu0 %v517
    %701 = vmatprep.subr.bf16.mxu0 %v512
    %702 = vmatpush1.bf16.msra.mxu0 %v511
    %703 = vmatprep.subr.bf16.mxu0 %v506
    %704 = vmatpush1.bf16.msra.mxu0 %v505
    %705 = vmatprep.subr.bf16.mxu0 %v500
    %706 = vmatpush1.bf16.msra.mxu0 %v499
    %707 = vmatprep.subr.bf16.mxu0 %v590
    %708 = vmatpush2.bf16.msra.mxu0 %v589
    %709 = vmatprep.subr.bf16.mxu0 %v584
    %710 = vmatpush2.bf16.msra.mxu0 %v583
    %711 = vmatprep.subr.bf16.mxu0 %v578
    %712 = vmatpush2.bf16.msra.mxu0 %v577
    %713 = vmatprep.subr.bf16.mxu0 %v572
    %714 = vmatpush2.bf16.msra.mxu0 %v571
    %715 = vmatprep.subr.bf16.mxu0 %v566
    %716 = vmatpush2.bf16.msra.mxu0 %v565
    %717 = vmatprep.subr.bf16.mxu0 %v560
    %718 = vmatpush2.bf16.msra.mxu0 %v559
    %719 = vmatprep.subr.bf16.mxu0 %v554
    %720 = vmatpush2.bf16.msra.mxu0 %v553
    %721 = vmatprep.subr.bf16.mxu0 %v548
    %722 = vmatpush2.bf16.msra.mxu0 %v547
    %723 = vmatprep.mubr.bf16.mxu0 %v210
    %724 = vmatmul.mubr.bf16.gmra.mxu0 %v209
    %v725 = vpop.f32.mrf.mxu0
    %v726 = vadd.f32 0.0, %v725
    %v727 = vpop.f32.mrf.mxu0
    %v728 = vadd.f32 0.0, %v727
    %v729 = vpop.f32.mrf.mxu0
    %v730 = vpop.f32.mrf.mxu0
    %731 = vdwg.mxu0
    %732 = vmatprep.subr.bf16.mxu0 %v544
    %733 = vmatpush1.bf16.msra.mxu0 %v543
    %734 = vmatprep.subr.bf16.mxu0 %v538
    %735 = vmatpush1.bf16.msra.mxu0 %v537
    %736 = vmatprep.subr.bf16.mxu0 %v532
    %737 = vmatpush1.bf16.msra.mxu0 %v531
    %738 = vmatprep.subr.bf16.mxu0 %v526
    %739 = vmatpush1.bf16.msra.mxu0 %v525
    %740 = vmatprep.subr.bf16.mxu0 %v520
    %741 = vmatpush1.bf16.msra.mxu0 %v519
    %742 = vmatprep.subr.bf16.mxu0 %v514
    %743 = vmatpush1.bf16.msra.mxu0 %v513
    %744 = vmatprep.subr.bf16.mxu0 %v508
    %745 = vmatpush1.bf16.msra.mxu0 %v507
    %746 = vmatprep.subr.bf16.mxu0 %v502
    %747 = vmatpush1.bf16.msra.mxu0 %v501
    %748 = vmatprep.subr.bf16.mxu0 %v592
    %749 = vmatpush2.bf16.msra.mxu0 %v591
    %750 = vmatprep.subr.bf16.mxu0 %v586
    %751 = vmatpush2.bf16.msra.mxu0 %v585
    %752 = vmatprep.subr.bf16.mxu0 %v580
    %753 = vmatpush2.bf16.msra.mxu0 %v579
    %754 = vmatprep.subr.bf16.mxu0 %v574
    %755 = vmatpush2.bf16.msra.mxu0 %v573
    %756 = vmatprep.subr.bf16.mxu0 %v568
    %757 = vmatpush2.bf16.msra.mxu0 %v567
    %758 = vmatprep.subr.bf16.mxu0 %v562
    %759 = vmatpush2.bf16.msra.mxu0 %v561
    %760 = vmatprep.subr.bf16.mxu0 %v556
    %761 = vmatpush2.bf16.msra.mxu0 %v555
    %762 = vmatprep.subr.bf16.mxu0 %v550
    %763 = vmatpush2.bf16.msra.mxu0 %v549
    %764 = vmatprep.mubr.bf16.mxu0 %v210
    %765 = vmatmul.mubr.bf16.gmra.mxu0 %v209
    %v766 = vpop.f32.mrf.mxu0
    %v767 = vadd.f32 0.0, %v766
    %v768 = vpop.f32.mrf.mxu0
    %v769 = vadd.f32 0.0, %v768
    %v770 = vpop.f32.mrf.mxu0
    %v771 = vpop.f32.mrf.mxu0
    %772 = vdwg.mxu0
    %773 = vmatprep.subr.bf16.mxu0 %v546
    %774 = vmatpush1.bf16.msra.mxu0 %v545
    %775 = vmatprep.subr.bf16.mxu0 %v540
    %776 = vmatpush1.bf16.msra.mxu0 %v539
    %777 = vmatprep.subr.bf16.mxu0 %v534
    %778 = vmatpush1.bf16.msra.mxu0 %v533
    %779 = vmatprep.subr.bf16.mxu0 %v528
    %780 = vmatpush1.bf16.msra.mxu0 %v527
    %781 = vmatprep.subr.bf16.mxu0 %v522
    %782 = vmatpush1.bf16.msra.mxu0 %v521
    %783 = vmatprep.subr.bf16.mxu0 %v516
    %784 = vmatpush1.bf16.msra.mxu0 %v515
    %785 = vmatprep.subr.bf16.mxu0 %v510
    %786 = vmatpush1.bf16.msra.mxu0 %v509
    %787 = vmatprep.subr.bf16.mxu0 %v504
    %788 = vmatpush1.bf16.msra.mxu0 %v503
    %789 = vmatprep.subr.bf16.mxu0 %v594
    %790 = vmatpush2.bf16.msra.mxu0 %v593
    %791 = vmatprep.subr.bf16.mxu0 %v588
    %792 = vmatpush2.bf16.msra.mxu0 %v587
    %793 = vmatprep.subr.bf16.mxu0 %v582
    %794 = vmatpush2.bf16.msra.mxu0 %v581
    %795 = vmatprep.subr.bf16.mxu0 %v576
    %796 = vmatpush2.bf16.msra.mxu0 %v575
    %797 = vmatprep.subr.bf16.mxu0 %v570
    %798 = vmatpush2.bf16.msra.mxu0 %v569
    %799 = vmatprep.subr.bf16.mxu0 %v564
    %800 = vmatpush2.bf16.msra.mxu0 %v563
    %801 = vmatprep.subr.bf16.mxu0 %v558
    %802 = vmatpush2.bf16.msra.mxu0 %v557
    %803 = vmatprep.subr.bf16.mxu0 %v552
    %804 = vmatpush2.bf16.msra.mxu0 %v551
    %805 = vmatprep.mubr.bf16.mxu0 %v210
    %806 = vmatmul.mubr.bf16.gmra.mxu0 %v209
    %v807 = vpop.f32.mrf.mxu0
    %v808 = vadd.f32 0.0, %v807
    %v809 = vpop.f32.mrf.mxu0
    %v810 = vadd.f32 0.0, %v809
    %v811 = vpop.f32.mrf.mxu0
    %v812 = vpop.f32.mrf.mxu0
    %813 = vdwg.mxu0
    %v814 = vadd.f32 %v198, %v726
    %v815 = vxor.u32 %v814, 2147483648
    %v816 = vmul.f32 %v815, 1.442695
    %v817 = vpow.pop %v816
    %v818 = vadd.f32 %v817, 1.0
    %v819 = vrcp.pop %v818
    %v820 = vmul.f32 1.0, %v819
    %v821 = vadd.f32 %v199, %v728
    %v822 = vxor.u32 %v821, 2147483648
    %v823 = vmul.f32 %v822, 1.442695
    %v824 = vpow.pop %v823
    %v825 = vadd.f32 %v824, 1.0
    %v826 = vrcp.pop %v825
    %v827 = vmul.f32 1.0, %v826
    %v828 = vadd.f32 %v767, %v182
    %v829 = vmul.f32 %v820, %v828
    %v830 = vadd.f32 %v200, %v829
    %v831 = vtanh.pop %v830
    %v832 = vsub.f32 %v191, %v831
    %v833 = vmul.f32 %v827, %v832
    %v834 = vadd.f32 %v831, %v833
    %v835 = vadd.f32 %v206, %v769
    %v836 = vxor.u32 %v835, 2147483648
    %v837 = vmul.f32 %v836, 1.442695
    %v838 = vpow.pop %v837
    %v839 = vadd.f32 %v838, 1.0
    %v840 = vrcp.pop %v839
    %v841 = vmul.f32 1.0, %v840
    %v842 = vadd.f32 %v207, %v808
    %v843 = vxor.u32 %v842, 2147483648
    %v844 = vmul.f32 %v843, 1.442695
    %v845 = vpow.pop %v844
    %v846 = vadd.f32 %v845, 1.0
    %v847 = vrcp.pop %v846
    %v848 = vmul.f32 1.0, %v847
    %v849 = vadd.f32 %v810, %v189
    %v850 = vmul.f32 %v841, %v849
    %v851 = vadd.f32 %v208, %v850
    %v852 = vtanh.pop %v851
    %v853 = vsub.f32 %v192, %v852
    %v854 = vmul.f32 %v848, %v853
    %v855 = vadd.f32 %v852, %v854
    %v856 = vpack.c.bf16 %v834, %v834
    %857 = vst [vmem:[%s5] sm:$0xf] %v856
    %v858 = vpack.c.bf16 %v855, %v855
    %s859 = scalar_lea.vmem %s72, 28
    %860 = vst [vmem:[%s859] sm:$0xf] %v858
    %s861 = smul.u32 1, 3
    %s862 = smul.addr %s861, 4
    %s863 = scalar_lea.vmem %s0, %s862
    %v864 = vld [vmem:[%s863] sm:$0xff]
    %v865 = vld [vmem:[%s863 + $0x8] sm:$0xf]
    %v866 = vunpack.c.l.bf16 %v864
    %v867 = vunpack.c.h.bf16 %v864
    %v868 = vunpack.c.l.bf16 %v865
    %s869 = smul.u32 6, 3
    %s870 = smul.addr %s869, 4
    %s871 = scalar_lea.vmem %s64, %s870
    %v872 = vld [vmem:[%s871] sm:$0xff]
    %v873 = vld [vmem:[%s871 + $0x8] sm:$0xf]
    %v874 = vunpack.c.l.bf16 %v872
    %v875 = vunpack.c.h.bf16 %v872
    %v876 = vunpack.c.l.bf16 %v873
    %877 = vmatprep.subr.bf16.mxu0 %v542
    %878 = vmatpush1.bf16.msra.mxu0 %v541
    %879 = vmatprep.subr.bf16.mxu0 %v536
    %880 = vmatpush1.bf16.msra.mxu0 %v535
    %881 = vmatprep.subr.bf16.mxu0 %v530
    %882 = vmatpush1.bf16.msra.mxu0 %v529
    %883 = vmatprep.subr.bf16.mxu0 %v524
    %884 = vmatpush1.bf16.msra.mxu0 %v523
    %885 = vmatprep.subr.bf16.mxu0 %v518
    %886 = vmatpush1.bf16.msra.mxu0 %v517
    %887 = vmatprep.subr.bf16.mxu0 %v512
    %888 = vmatpush1.bf16.msra.mxu0 %v511
    %889 = vmatprep.subr.bf16.mxu0 %v506
    %890 = vmatpush1.bf16.msra.mxu0 %v505
    %891 = vmatprep.subr.bf16.mxu0 %v500
    %892 = vmatpush1.bf16.msra.mxu0 %v499
    %893 = vmatprep.subr.bf16.mxu0 %v590
    %894 = vmatpush2.bf16.msra.mxu0 %v589
    %895 = vmatprep.subr.bf16.mxu0 %v584
    %896 = vmatpush2.bf16.msra.mxu0 %v583
    %897 = vmatprep.subr.bf16.mxu0 %v578
    %898 = vmatpush2.bf16.msra.mxu0 %v577
    %899 = vmatprep.subr.bf16.mxu0 %v572
    %900 = vmatpush2.bf16.msra.mxu0 %v571
    %901 = vmatprep.subr.bf16.mxu0 %v566
    %902 = vmatpush2.bf16.msra.mxu0 %v565
    %903 = vmatprep.subr.bf16.mxu0 %v560
    %904 = vmatpush2.bf16.msra.mxu0 %v559
    %905 = vmatprep.subr.bf16.mxu0 %v554
    %906 = vmatpush2.bf16.msra.mxu0 %v553
    %907 = vmatprep.subr.bf16.mxu0 %v548
    %908 = vmatpush2.bf16.msra.mxu0 %v547
    %909 = vmatprep.mubr.bf16.mxu0 %v858
    %910 = vmatmul.mubr.bf16.gmra.mxu0 %v856
    %v911 = vpop.f32.mrf.mxu0
    %v912 = vadd.f32 0.0, %v911
    %v913 = vpop.f32.mrf.mxu0
    %v914 = vadd.f32 0.0, %v913
    %v915 = vpop.f32.mrf.mxu0
    %v916 = vpop.f32.mrf.mxu0
    %917 = vdwg.mxu0
    %918 = vmatprep.subr.bf16.mxu0 %v544
    %919 = vmatpush1.bf16.msra.mxu0 %v543
    %920 = vmatprep.subr.bf16.mxu0 %v538
    %921 = vmatpush1.bf16.msra.mxu0 %v537
    %922 = vmatprep.subr.bf16.mxu0 %v532
    %923 = vmatpush1.bf16.msra.mxu0 %v531
    %924 = vmatprep.subr.bf16.mxu0 %v526
    %925 = vmatpush1.bf16.msra.mxu0 %v525
    %926 = vmatprep.subr.bf16.mxu0 %v520
    %927 = vmatpush1.bf16.msra.mxu0 %v519
    %928 = vmatprep.subr.bf16.mxu0 %v514
    %929 = vmatpush1.bf16.msra.mxu0 %v513
    %930 = vmatprep.subr.bf16.mxu0 %v508
    %931 = vmatpush1.bf16.msra.mxu0 %v507
    %932 = vmatprep.subr.bf16.mxu0 %v502
    %933 = vmatpush1.bf16.msra.mxu0 %v501
    %934 = vmatprep.subr.bf16.mxu0 %v592
    %935 = vmatpush2.bf16.msra.mxu0 %v591
    %936 = vmatprep.subr.bf16.mxu0 %v586
    %937 = vmatpush2.bf16.msra.mxu0 %v585
    %938 = vmatprep.subr.bf16.mxu0 %v580
    %939 = vmatpush2.bf16.msra.mxu0 %v579
    %940 = vmatprep.subr.bf16.mxu0 %v574
    %941 = vmatpush2.bf16.msra.mxu0 %v573
    %942 = vmatprep.subr.bf16.mxu0 %v568
    %943 = vmatpush2.bf16.msra.mxu0 %v567
    %944 = vmatprep.subr.bf16.mxu0 %v562
    %945 = vmatpush2.bf16.msra.mxu0 %v561
    %946 = vmatprep.subr.bf16.mxu0 %v556
    %947 = vmatpush2.bf16.msra.mxu0 %v555
    %948 = vmatprep.subr.bf16.mxu0 %v550
    %949 = vmatpush2.bf16.msra.mxu0 %v549
    %950 = vmatprep.mubr.bf16.mxu0 %v858
    %951 = vmatmul.mubr.bf16.gmra.mxu0 %v856
    %v952 = vpop.f32.mrf.mxu0
    %v953 = vadd.f32 0.0, %v952
    %v954 = vpop.f32.mrf.mxu0
    %v955 = vadd.f32 0.0, %v954
    %v956 = vpop.f32.mrf.mxu0
    %v957 = vpop.f32.mrf.mxu0
    %958 = vdwg.mxu0
    %959 = vmatprep.subr.bf16.mxu0 %v546
    %960 = vmatpush1.bf16.msra.mxu0 %v545
    %961 = vmatprep.subr.bf16.mxu0 %v540
    %962 = vmatpush1.bf16.msra.mxu0 %v539
    %963 = vmatprep.subr.bf16.mxu0 %v534
    %964 = vmatpush1.bf16.msra.mxu0 %v533
    %965 = vmatprep.subr.bf16.mxu0 %v528
    %966 = vmatpush1.bf16.msra.mxu0 %v527
    %967 = vmatprep.subr.bf16.mxu0 %v522
    %968 = vmatpush1.bf16.msra.mxu0 %v521
    %969 = vmatprep.subr.bf16.mxu0 %v516
    %970 = vmatpush1.bf16.msra.mxu0 %v515
    %971 = vmatprep.subr.bf16.mxu0 %v510
    %972 = vmatpush1.bf16.msra.mxu0 %v509
    %973 = vmatprep.subr.bf16.mxu0 %v504
    %974 = vmatpush1.bf16.msra.mxu0 %v503
    %975 = vmatprep.subr.bf16.mxu0 %v594
    %976 = vmatpush2.bf16.msra.mxu0 %v593
    %977 = vmatprep.subr.bf16.mxu0 %v588
    %978 = vmatpush2.bf16.msra.mxu0 %v587
    %979 = vmatprep.subr.bf16.mxu0 %v582
    %980 = vmatpush2.bf16.msra.mxu0 %v581
    %981 = vmatprep.subr.bf16.mxu0 %v576
    %982 = vmatpush2.bf16.msra.mxu0 %v575
    %983 = vmatprep.subr.bf16.mxu0 %v570
    %984 = vmatpush2.bf16.msra.mxu0 %v569
    %985 = vmatprep.subr.bf16.mxu0 %v564
    %986 = vmatpush2.bf16.msra.mxu0 %v563
    %987 = vmatprep.subr.bf16.mxu0 %v558
    %988 = vmatpush2.bf16.msra.mxu0 %v557
    %989 = vmatprep.subr.bf16.mxu0 %v552
    %990 = vmatpush2.bf16.msra.mxu0 %v551
    %991 = vmatprep.mubr.bf16.mxu0 %v858
    %992 = vmatmul.mubr.bf16.gmra.mxu0 %v856
    %v993 = vpop.f32.mrf.mxu0
    %v994 = vadd.f32 0.0, %v993
    %v995 = vpop.f32.mrf.mxu0
    %v996 = vadd.f32 0.0, %v995
    %v997 = vpop.f32.mrf.mxu0
    %v998 = vpop.f32.mrf.mxu0
    %999 = vdwg.mxu0
    %v1000 = vadd.f32 %v866, %v912
    %v1001 = vxor.u32 %v1000, 2147483648
    %v1002 = vmul.f32 %v1001, 1.442695
    %v1003 = vpow.pop %v1002
    %v1004 = vadd.f32 %v1003, 1.0
    %v1005 = vrcp.pop %v1004
    %v1006 = vmul.f32 1.0, %v1005
    %v1007 = vadd.f32 %v867, %v914
    %v1008 = vxor.u32 %v1007, 2147483648
    %v1009 = vmul.f32 %v1008, 1.442695
    %v1010 = vpow.pop %v1009
    %v1011 = vadd.f32 %v1010, 1.0
    %v1012 = vrcp.pop %v1011
    %v1013 = vmul.f32 1.0, %v1012
    %v1014 = vadd.f32 %v953, %v182
    %v1015 = vmul.f32 %v1006, %v1014
    %v1016 = vadd.f32 %v868, %v1015
    %v1017 = vtanh.pop %v1016
    %v1018 = vsub.f32 %v834, %v1017
    %v1019 = vmul.f32 %v1013, %v1018
    %v1020 = vadd.f32 %v1017, %v1019
    %v1021 = vadd.f32 %v874, %v955
    %v1022 = vxor.u32 %v1021, 2147483648
    %v1023 = vmul.f32 %v1022, 1.442695
    %v1024 = vpow.pop %v1023
    %v1025 = vadd.f32 %v1024, 1.0
    %v1026 = vrcp.pop %v1025
    %v1027 = vmul.f32 1.0, %v1026
    %v1028 = vadd.f32 %v875, %v994
    %v1029 = vxor.u32 %v1028, 2147483648
    %v1030 = vmul.f32 %v1029, 1.442695
    %v1031 = vpow.pop %v1030
    %v1032 = vadd.f32 %v1031, 1.0
    %v1033 = vrcp.pop %v1032
    %v1034 = vmul.f32 1.0, %v1033
    %v1035 = vadd.f32 %v996, %v189
    %v1036 = vmul.f32 %v1027, %v1035
    %v1037 = vadd.f32 %v876, %v1036
    %v1038 = vtanh.pop %v1037
    %v1039 = vsub.f32 %v855, %v1038
    %v1040 = vmul.f32 %v1034, %v1039
    %v1041 = vadd.f32 %v1038, %v1040
    %v1042 = vpack.c.bf16 %v1020, %v1020
    %s1043 = scalar_lea.vmem %s5, 4
    %1044 = vst [vmem:[%s1043] sm:$0xf] %v1042
    %v1045 = vpack.c.bf16 %v1041, %v1041
    %s1046 = scalar_lea.vmem %s72, 24
    %1047 = vst [vmem:[%s1046] sm:$0xf] %v1045
    %s1048 = smul.u32 2, 3
    %s1049 = smul.addr %s1048, 4
    %s1050 = scalar_lea.vmem %s0, %s1049
    %v1051 = vld [vmem:[%s1050] sm:$0xff]
    %v1052 = vld [vmem:[%s1050 + $0x8] sm:$0xf]
    %v1053 = vunpack.c.l.bf16 %v1051
    %v1054 = vunpack.c.h.bf16 %v1051
    %v1055 = vunpack.c.l.bf16 %v1052
    %s1056 = smul.u32 5, 3
    %s1057 = smul.addr %s1056, 4
    %s1058 = scalar_lea.vmem %s64, %s1057
    %v1059 = vld [vmem:[%s1058] sm:$0xff]
    %v1060 = vld [vmem:[%s1058 + $0x8] sm:$0xf]
    %v1061 = vunpack.c.l.bf16 %v1059
    %v1062 = vunpack.c.h.bf16 %v1059
    %v1063 = vunpack.c.l.bf16 %v1060
    %1064 = vmatprep.subr.bf16.mxu0 %v542
    %1065 = vmatpush1.bf16.msra.mxu0 %v541
    %1066 = vmatprep.subr.bf16.mxu0 %v536
    %1067 = vmatpush1.bf16.msra.mxu0 %v535
    %1068 = vmatprep.subr.bf16.mxu0 %v530
    %1069 = vmatpush1.bf16.msra.mxu0 %v529
    %1070 = vmatprep.subr.bf16.mxu0 %v524
    %1071 = vmatpush1.bf16.msra.mxu0 %v523
    %1072 = vmatprep.subr.bf16.mxu0 %v518
    %1073 = vmatpush1.bf16.msra.mxu0 %v517
    %1074 = vmatprep.subr.bf16.mxu0 %v512
    %1075 = vmatpush1.bf16.msra.mxu0 %v511
    %1076 = vmatprep.subr.bf16.mxu0 %v506
    %1077 = vmatpush1.bf16.msra.mxu0 %v505
    %1078 = vmatprep.subr.bf16.mxu0 %v500
    %1079 = vmatpush1.bf16.msra.mxu0 %v499
    %1080 = vmatprep.subr.bf16.mxu0 %v590
    %1081 = vmatpush2.bf16.msra.mxu0 %v589
    %1082 = vmatprep.subr.bf16.mxu0 %v584
    %1083 = vmatpush2.bf16.msra.mxu0 %v583
    %1084 = vmatprep.subr.bf16.mxu0 %v578
    %1085 = vmatpush2.bf16.msra.mxu0 %v577
    %1086 = vmatprep.subr.bf16.mxu0 %v572
    %1087 = vmatpush2.bf16.msra.mxu0 %v571
    %1088 = vmatprep.subr.bf16.mxu0 %v566
    %1089 = vmatpush2.bf16.msra.mxu0 %v565
    %1090 = vmatprep.subr.bf16.mxu0 %v560
    %1091 = vmatpush2.bf16.msra.mxu0 %v559
    %1092 = vmatprep.subr.bf16.mxu0 %v554
    %1093 = vmatpush2.bf16.msra.mxu0 %v553
    %1094 = vmatprep.subr.bf16.mxu0 %v548
    %1095 = vmatpush2.bf16.msra.mxu0 %v547
    %1096 = vmatprep.mubr.bf16.mxu0 %v1045
    %1097 = vmatmul.mubr.bf16.gmra.mxu0 %v1042
    %v1098 = vpop.f32.mrf.mxu0
    %v1099 = vadd.f32 0.0, %v1098
    %v1100 = vpop.f32.mrf.mxu0
    %v1101 = vadd.f32 0.0, %v1100
    %v1102 = vpop.f32.mrf.mxu0
    %v1103 = vpop.f32.mrf.mxu0
    %1104 = vdwg.mxu0
    %1105 = vmatprep.subr.bf16.mxu0 %v544
    %1106 = vmatpush1.bf16.msra.mxu0 %v543
    %1107 = vmatprep.subr.bf16.mxu0 %v538
    %1108 = vmatpush1.bf16.msra.mxu0 %v537
    %1109 = vmatprep.subr.bf16.mxu0 %v532
    %1110 = vmatpush1.bf16.msra.mxu0 %v531
    %1111 = vmatprep.subr.bf16.mxu0 %v526
    %1112 = vmatpush1.bf16.msra.mxu0 %v525
    %1113 = vmatprep.subr.bf16.mxu0 %v520
    %1114 = vmatpush1.bf16.msra.mxu0 %v519
    %1115 = vmatprep.subr.bf16.mxu0 %v514
    %1116 = vmatpush1.bf16.msra.mxu0 %v513
    %1117 = vmatprep.subr.bf16.mxu0 %v508
    %1118 = vmatpush1.bf16.msra.mxu0 %v507
    %1119 = vmatprep.subr.bf16.mxu0 %v502
    %1120 = vmatpush1.bf16.msra.mxu0 %v501
    %1121 = vmatprep.subr.bf16.mxu0 %v592
    %1122 = vmatpush2.bf16.msra.mxu0 %v591
    %1123 = vmatprep.subr.bf16.mxu0 %v586
    %1124 = vmatpush2.bf16.msra.mxu0 %v585
    %1125 = vmatprep.subr.bf16.mxu0 %v580
    %1126 = vmatpush2.bf16.msra.mxu0 %v579
    %1127 = vmatprep.subr.bf16.mxu0 %v574
    %1128 = vmatpush2.bf16.msra.mxu0 %v573
    %1129 = vmatprep.subr.bf16.mxu0 %v568
    %1130 = vmatpush2.bf16.msra.mxu0 %v567
    %1131 = vmatprep.subr.bf16.mxu0 %v562
    %1132 = vmatpush2.bf16.msra.mxu0 %v561
    %1133 = vmatprep.subr.bf16.mxu0 %v556
    %1134 = vmatpush2.bf16.msra.mxu0 %v555
    %1135 = vmatprep.subr.bf16.mxu0 %v550
    %1136 = vmatpush2.bf16.msra.mxu0 %v549
    %1137 = vmatprep.mubr.bf16.mxu0 %v1045
    %1138 = vmatmul.mubr.bf16.gmra.mxu0 %v1042
    %v1139 = vpop.f32.mrf.mxu0
    %v1140 = vadd.f32 0.0, %v1139
    %v1141 = vpop.f32.mrf.mxu0
    %v1142 = vadd.f32 0.0, %v1141
    %v1143 = vpop.f32.mrf.mxu0
    %v1144 = vpop.f32.mrf.mxu0
    %1145 = vdwg.mxu0
    %1146 = vmatprep.subr.bf16.mxu0 %v546
    %1147 = vmatpush1.bf16.msra.mxu0 %v545
    %1148 = vmatprep.subr.bf16.mxu0 %v540
    %1149 = vmatpush1.bf16.msra.mxu0 %v539
    %1150 = vmatprep.subr.bf16.mxu0 %v534
    %1151 = vmatpush1.bf16.msra.mxu0 %v533
    %1152 = vmatprep.subr.bf16.mxu0 %v528
    %1153 = vmatpush1.bf16.msra.mxu0 %v527
    %1154 = vmatprep.subr.bf16.mxu0 %v522
    %1155 = vmatpush1.bf16.msra.mxu0 %v521
    %1156 = vmatprep.subr.bf16.mxu0 %v516
    %1157 = vmatpush1.bf16.msra.mxu0 %v515
    %1158 = vmatprep.subr.bf16.mxu0 %v510
    %1159 = vmatpush1.bf16.msra.mxu0 %v509
    %1160 = vmatprep.subr.bf16.mxu0 %v504
    %1161 = vmatpush1.bf16.msra.mxu0 %v503
    %1162 = vmatprep.subr.bf16.mxu0 %v594
    %1163 = vmatpush2.bf16.msra.mxu0 %v593
    %1164 = vmatprep.subr.bf16.mxu0 %v588
    %1165 = vmatpush2.bf16.msra.mxu0 %v587
    %1166 = vmatprep.subr.bf16.mxu0 %v582
    %1167 = vmatpush2.bf16.msra.mxu0 %v581
    %1168 = vmatprep.subr.bf16.mxu0 %v576
    %1169 = vmatpush2.bf16.msra.mxu0 %v575
    %1170 = vmatprep.subr.bf16.mxu0 %v570
    %1171 = vmatpush2.bf16.msra.mxu0 %v569
    %1172 = vmatprep.subr.bf16.mxu0 %v564
    %1173 = vmatpush2.bf16.msra.mxu0 %v563
    %1174 = vmatprep.subr.bf16.mxu0 %v558
    %1175 = vmatpush2.bf16.msra.mxu0 %v557
    %1176 = vmatprep.subr.bf16.mxu0 %v552
    %1177 = vmatpush2.bf16.msra.mxu0 %v551
    %1178 = vmatprep.mubr.bf16.mxu0 %v1045
    %1179 = vmatmul.mubr.bf16.gmra.mxu0 %v1042
    %v1180 = vpop.f32.mrf.mxu0
    %v1181 = vadd.f32 0.0, %v1180
    %v1182 = vpop.f32.mrf.mxu0
    %v1183 = vadd.f32 0.0, %v1182
    %v1184 = vpop.f32.mrf.mxu0
    %v1185 = vpop.f32.mrf.mxu0
    %1186 = vdwg.mxu0
    %v1187 = vadd.f32 %v1053, %v1099
    %v1188 = vxor.u32 %v1187, 2147483648
    %v1189 = vmul.f32 %v1188, 1.442695
    %v1190 = vpow.pop %v1189
    %v1191 = vadd.f32 %v1190, 1.0
    %v1192 = vrcp.pop %v1191
    %v1193 = vmul.f32 1.0, %v1192
    %v1194 = vadd.f32 %v1054, %v1101
    %v1195 = vxor.u32 %v1194, 2147483648
    %v1196 = vmul.f32 %v1195, 1.442695
    %v1197 = vpow.pop %v1196
    %v1198 = vadd.f32 %v1197, 1.0
    %v1199 = vrcp.pop %v1198
    %v1200 = vmul.f32 1.0, %v1199
    %v1201 = vadd.f32 %v1140, %v182
    %v1202 = vmul.f32 %v1193, %v1201
    %v1203 = vadd.f32 %v1055, %v1202
    %v1204 = vtanh.pop %v1203
    %v1205 = vsub.f32 %v1020, %v1204
    %v1206 = vmul.f32 %v1200, %v1205
    %v1207 = vadd.f32 %v1204, %v1206
    %v1208 = vadd.f32 %v1061, %v1142
    %v1209 = vxor.u32 %v1208, 2147483648
    %v1210 = vmul.f32 %v1209, 1.442695
    %v1211 = vpow.pop %v1210
    %v1212 = vadd.f32 %v1211, 1.0
    %v1213 = vrcp.pop %v1212
    %v1214 = vmul.f32 1.0, %v1213
    %v1215 = vadd.f32 %v1062, %v1181
    %v1216 = vxor.u32 %v1215, 2147483648
    %v1217 = vmul.f32 %v1216, 1.442695
    %v1218 = vpow.pop %v1217
    %v1219 = vadd.f32 %v1218, 1.0
    %v1220 = vrcp.pop %v1219
    %v1221 = vmul.f32 1.0, %v1220
    %v1222 = vadd.f32 %v1183, %v189
    %v1223 = vmul.f32 %v1214, %v1222
    %v1224 = vadd.f32 %v1063, %v1223
    %v1225 = vtanh.pop %v1224
    %v1226 = vsub.f32 %v1041, %v1225
    %v1227 = vmul.f32 %v1221, %v1226
    %v1228 = vadd.f32 %v1225, %v1227
    %v1229 = vpack.c.bf16 %v1207, %v1207
    %s1230 = scalar_lea.vmem %s5, 8
    %1231 = vst [vmem:[%s1230] sm:$0xf] %v1229
    %v1232 = vpack.c.bf16 %v1228, %v1228
    %s1233 = scalar_lea.vmem %s72, 20
    %1234 = vst [vmem:[%s1233] sm:$0xf] %v1232
    %s1235 = smul.u32 3, 3
    %s1236 = smul.addr %s1235, 4
    %s1237 = scalar_lea.vmem %s0, %s1236
    %v1238 = vld [vmem:[%s1237] sm:$0xff]
    %v1239 = vld [vmem:[%s1237 + $0x8] sm:$0xf]
    %v1240 = vunpack.c.l.bf16 %v1238
    %v1241 = vunpack.c.h.bf16 %v1238
    %v1242 = vunpack.c.l.bf16 %v1239
    %s1243 = smul.u32 4, 3
    %s1244 = smul.addr %s1243, 4
    %s1245 = scalar_lea.vmem %s64, %s1244
    %v1246 = vld [vmem:[%s1245] sm:$0xff]
    %v1247 = vld [vmem:[%s1245 + $0x8] sm:$0xf]
    %v1248 = vunpack.c.l.bf16 %v1246
    %v1249 = vunpack.c.h.bf16 %v1246
    %v1250 = vunpack.c.l.bf16 %v1247
    %1251 = vmatprep.subr.bf16.mxu0 %v542
    %1252 = vmatpush1.bf16.msra.mxu0 %v541
    %1253 = vmatprep.subr.bf16.mxu0 %v536
    %1254 = vmatpush1.bf16.msra.mxu0 %v535
    %1255 = vmatprep.subr.bf16.mxu0 %v530
    %1256 = vmatpush1.bf16.msra.mxu0 %v529
    %1257 = vmatprep.subr.bf16.mxu0 %v524
    %1258 = vmatpush1.bf16.msra.mxu0 %v523
    %1259 = vmatprep.subr.bf16.mxu0 %v518
    %1260 = vmatpush1.bf16.msra.mxu0 %v517
    %1261 = vmatprep.subr.bf16.mxu0 %v512
    %1262 = vmatpush1.bf16.msra.mxu0 %v511
    %1263 = vmatprep.subr.bf16.mxu0 %v506
    %1264 = vmatpush1.bf16.msra.mxu0 %v505
    %1265 = vmatprep.subr.bf16.mxu0 %v500
    %1266 = vmatpush1.bf16.msra.mxu0 %v499
    %1267 = vmatprep.subr.bf16.mxu0 %v590
    %1268 = vmatpush2.bf16.msra.mxu0 %v589
    %1269 = vmatprep.subr.bf16.mxu0 %v584
    %1270 = vmatpush2.bf16.msra.mxu0 %v583
    %1271 = vmatprep.subr.bf16.mxu0 %v578
    %1272 = vmatpush2.bf16.msra.mxu0 %v577
    %1273 = vmatprep.subr.bf16.mxu0 %v572
    %1274 = vmatpush2.bf16.msra.mxu0 %v571
    %1275 = vmatprep.subr.bf16.mxu0 %v566
    %1276 = vmatpush2.bf16.msra.mxu0 %v565
    %1277 = vmatprep.subr.bf16.mxu0 %v560
    %1278 = vmatpush2.bf16.msra.mxu0 %v559
    %1279 = vmatprep.subr.bf16.mxu0 %v554
    %1280 = vmatpush2.bf16.msra.mxu0 %v553
    %1281 = vmatprep.subr.bf16.mxu0 %v548
    %1282 = vmatpush2.bf16.msra.mxu0 %v547
    %1283 = vmatprep.mubr.bf16.mxu0 %v1232
    %1284 = vmatmul.mubr.bf16.gmra.mxu0 %v1229
    %v1285 = vpop.f32.mrf.mxu0
    %v1286 = vadd.f32 0.0, %v1285
    %v1287 = vpop.f32.mrf.mxu0
    %v1288 = vadd.f32 0.0, %v1287
    %v1289 = vpop.f32.mrf.mxu0
    %v1290 = vpop.f32.mrf.mxu0
    %1291 = vdwg.mxu0
    %1292 = vmatprep.subr.bf16.mxu0 %v544
    %1293 = vmatpush1.bf16.msra.mxu0 %v543
    %1294 = vmatprep.subr.bf16.mxu0 %v538
    %1295 = vmatpush1.bf16.msra.mxu0 %v537
    %1296 = vmatprep.subr.bf16.mxu0 %v532
    %1297 = vmatpush1.bf16.msra.mxu0 %v531
    %1298 = vmatprep.subr.bf16.mxu0 %v526
    %1299 = vmatpush1.bf16.msra.mxu0 %v525
    %1300 = vmatprep.subr.bf16.mxu0 %v520
    %1301 = vmatpush1.bf16.msra.mxu0 %v519
    %1302 = vmatprep.subr.bf16.mxu0 %v514
    %1303 = vmatpush1.bf16.msra.mxu0 %v513
    %1304 = vmatprep.subr.bf16.mxu0 %v508
    %1305 = vmatpush1.bf16.msra.mxu0 %v507
    %1306 = vmatprep.subr.bf16.mxu0 %v502
    %1307 = vmatpush1.bf16.msra.mxu0 %v501
    %1308 = vmatprep.subr.bf16.mxu0 %v592
    %1309 = vmatpush2.bf16.msra.mxu0 %v591
    %1310 = vmatprep.subr.bf16.mxu0 %v586
    %1311 = vmatpush2.bf16.msra.mxu0 %v585
    %1312 = vmatprep.subr.bf16.mxu0 %v580
    %1313 = vmatpush2.bf16.msra.mxu0 %v579
    %1314 = vmatprep.subr.bf16.mxu0 %v574
    %1315 = vmatpush2.bf16.msra.mxu0 %v573
    %1316 = vmatprep.subr.bf16.mxu0 %v568
    %1317 = vmatpush2.bf16.msra.mxu0 %v567
    %1318 = vmatprep.subr.bf16.mxu0 %v562
    %1319 = vmatpush2.bf16.msra.mxu0 %v561
    %1320 = vmatprep.subr.bf16.mxu0 %v556
    %1321 = vmatpush2.bf16.msra.mxu0 %v555
    %1322 = vmatprep.subr.bf16.mxu0 %v550
    %1323 = vmatpush2.bf16.msra.mxu0 %v549
    %1324 = vmatprep.mubr.bf16.mxu0 %v1232
    %1325 = vmatmul.mubr.bf16.gmra.mxu0 %v1229
    %v1326 = vpop.f32.mrf.mxu0
    %v1327 = vadd.f32 0.0, %v1326
    %v1328 = vpop.f32.mrf.mxu0
    %v1329 = vadd.f32 0.0, %v1328
    %v1330 = vpop.f32.mrf.mxu0
    %v1331 = vpop.f32.mrf.mxu0
    %1332 = vdwg.mxu0
    %1333 = vmatprep.subr.bf16.mxu0 %v546
    %1334 = vmatpush1.bf16.msra.mxu0 %v545
    %1335 = vmatprep.subr.bf16.mxu0 %v540
    %1336 = vmatpush1.bf16.msra.mxu0 %v539
    %1337 = vmatprep.subr.bf16.mxu0 %v534
    %1338 = vmatpush1.bf16.msra.mxu0 %v533
    %1339 = vmatprep.subr.bf16.mxu0 %v528
    %1340 = vmatpush1.bf16.msra.mxu0 %v527
    %1341 = vmatprep.subr.bf16.mxu0 %v522
    %1342 = vmatpush1.bf16.msra.mxu0 %v521
    %1343 = vmatprep.subr.bf16.mxu0 %v516
    %1344 = vmatpush1.bf16.msra.mxu0 %v515
    %1345 = vmatprep.subr.bf16.mxu0 %v510
    %1346 = vmatpush1.bf16.msra.mxu0 %v509
    %1347 = vmatprep.subr.bf16.mxu0 %v504
    %1348 = vmatpush1.bf16.msra.mxu0 %v503
    %1349 = vmatprep.subr.bf16.mxu0 %v594
    %1350 = vmatpush2.bf16.msra.mxu0 %v593
    %1351 = vmatprep.subr.bf16.mxu0 %v588
    %1352 = vmatpush2.bf16.msra.mxu0 %v587
    %1353 = vmatprep.subr.bf16.mxu0 %v582
    %1354 = vmatpush2.bf16.msra.mxu0 %v581
    %1355 = vmatprep.subr.bf16.mxu0 %v576
    %1356 = vmatpush2.bf16.msra.mxu0 %v575
    %1357 = vmatprep.subr.bf16.mxu0 %v570
    %1358 = vmatpush2.bf16.msra.mxu0 %v569
    %1359 = vmatprep.subr.bf16.mxu0 %v564
    %1360 = vmatpush2.bf16.msra.mxu0 %v563
    %1361 = vmatprep.subr.bf16.mxu0 %v558
    %1362 = vmatpush2.bf16.msra.mxu0 %v557
    %1363 = vmatprep.subr.bf16.mxu0 %v552
    %1364 = vmatpush2.bf16.msra.mxu0 %v551
    %1365 = vmatprep.mubr.bf16.mxu0 %v1232
    %1366 = vmatmul.mubr.bf16.gmra.mxu0 %v1229
    %v1367 = vpop.f32.mrf.mxu0
    %v1368 = vadd.f32 0.0, %v1367
    %v1369 = vpop.f32.mrf.mxu0
    %v1370 = vadd.f32 0.0, %v1369
    %v1371 = vpop.f32.mrf.mxu0
    %v1372 = vpop.f32.mrf.mxu0
    %1373 = vdwg.mxu0
    %v1374 = vadd.f32 %v1240, %v1286
    %v1375 = vxor.u32 %v1374, 2147483648
    %v1376 = vmul.f32 %v1375, 1.442695
    %v1377 = vpow.pop %v1376
    %v1378 = vadd.f32 %v1377, 1.0
    %v1379 = vrcp.pop %v1378
    %v1380 = vmul.f32 1.0, %v1379
    %v1381 = vadd.f32 %v1241, %v1288
    %v1382 = vxor.u32 %v1381, 2147483648
    %v1383 = vmul.f32 %v1382, 1.442695
    %v1384 = vpow.pop %v1383
    %v1385 = vadd.f32 %v1384, 1.0
    %v1386 = vrcp.pop %v1385
    %v1387 = vmul.f32 1.0, %v1386
    %v1388 = vadd.f32 %v1327, %v182
    %v1389 = vmul.f32 %v1380, %v1388
    %v1390 = vadd.f32 %v1242, %v1389
    %v1391 = vtanh.pop %v1390
    %v1392 = vsub.f32 %v1207, %v1391
    %v1393 = vmul.f32 %v1387, %v1392
    %v1394 = vadd.f32 %v1391, %v1393
    %v1395 = vadd.f32 %v1248, %v1329
    %v1396 = vxor.u32 %v1395, 2147483648
    %v1397 = vmul.f32 %v1396, 1.442695
    %v1398 = vpow.pop %v1397
    %v1399 = vadd.f32 %v1398, 1.0
    %v1400 = vrcp.pop %v1399
    %v1401 = vmul.f32 1.0, %v1400
    %v1402 = vadd.f32 %v1249, %v1368
    %v1403 = vxor.u32 %v1402, 2147483648
    %v1404 = vmul.f32 %v1403, 1.442695
    %v1405 = vpow.pop %v1404
    %v1406 = vadd.f32 %v1405, 1.0
    %v1407 = vrcp.pop %v1406
    %v1408 = vmul.f32 1.0, %v1407
    %v1409 = vadd.f32 %v1370, %v189
    %v1410 = vmul.f32 %v1401, %v1409
    %v1411 = vadd.f32 %v1250, %v1410
    %v1412 = vtanh.pop %v1411
    %v1413 = vsub.f32 %v1228, %v1412
    %v1414 = vmul.f32 %v1408, %v1413
    %v1415 = vadd.f32 %v1412, %v1414
    %v1416 = vpack.c.bf16 %v1394, %v1394
    %s1417 = scalar_lea.vmem %s5, 12
    %1418 = vst [vmem:[%s1417] sm:$0xf] %v1416
    %v1419 = vpack.c.bf16 %v1415, %v1415
    %s1420 = scalar_lea.vmem %s72, 16
    %1421 = vst [vmem:[%s1420] sm:$0xf] %v1419
    %s1422 = smul.addr %s1243, 4
    %s1423 = scalar_lea.vmem %s0, %s1422
    %v1424 = vld [vmem:[%s1423] sm:$0xff]
    %v1425 = vld [vmem:[%s1423 + $0x8] sm:$0xf]
    %v1426 = vunpack.c.l.bf16 %v1424
    %v1427 = vunpack.c.h.bf16 %v1424
    %v1428 = vunpack.c.l.bf16 %v1425
    %s1429 = smul.addr %s1235, 4
    %s1430 = scalar_lea.vmem %s64, %s1429
    %v1431 = vld [vmem:[%s1430] sm:$0xff]
    %v1432 = vld [vmem:[%s1430 + $0x8] sm:$0xf]
    %v1433 = vunpack.c.l.bf16 %v1431
    %v1434 = vunpack.c.h.bf16 %v1431
    %v1435 = vunpack.c.l.bf16 %v1432
    %1436 = vmatprep.subr.bf16.mxu0 %v542
    %1437 = vmatpush1.bf16.msra.mxu0 %v541
    %1438 = vmatprep.subr.bf16.mxu0 %v536
    %1439 = vmatpush1.bf16.msra.mxu0 %v535
    %1440 = vmatprep.subr.bf16.mxu0 %v530
    %1441 = vmatpush1.bf16.msra.mxu0 %v529
    %1442 = vmatprep.subr.bf16.mxu0 %v524
    %1443 = vmatpush1.bf16.msra.mxu0 %v523
    %1444 = vmatprep.subr.bf16.mxu0 %v518
    %1445 = vmatpush1.bf16.msra.mxu0 %v517
    %1446 = vmatprep.subr.bf16.mxu0 %v512
    %1447 = vmatpush1.bf16.msra.mxu0 %v511
    %1448 = vmatprep.subr.bf16.mxu0 %v506
    %1449 = vmatpush1.bf16.msra.mxu0 %v505
    %1450 = vmatprep.subr.bf16.mxu0 %v500
    %1451 = vmatpush1.bf16.msra.mxu0 %v499
    %1452 = vmatprep.subr.bf16.mxu0 %v590
    %1453 = vmatpush2.bf16.msra.mxu0 %v589
    %1454 = vmatprep.subr.bf16.mxu0 %v584
    %1455 = vmatpush2.bf16.msra.mxu0 %v583
    %1456 = vmatprep.subr.bf16.mxu0 %v578
    %1457 = vmatpush2.bf16.msra.mxu0 %v577
    %1458 = vmatprep.subr.bf16.mxu0 %v572
    %1459 = vmatpush2.bf16.msra.mxu0 %v571
    %1460 = vmatprep.subr.bf16.mxu0 %v566
    %1461 = vmatpush2.bf16.msra.mxu0 %v565
    %1462 = vmatprep.subr.bf16.mxu0 %v560
    %1463 = vmatpush2.bf16.msra.mxu0 %v559
    %1464 = vmatprep.subr.bf16.mxu0 %v554
    %1465 = vmatpush2.bf16.msra.mxu0 %v553
    %1466 = vmatprep.subr.bf16.mxu0 %v548
    %1467 = vmatpush2.bf16.msra.mxu0 %v547
    %1468 = vmatprep.mubr.bf16.mxu0 %v1419
    %1469 = vmatmul.mubr.bf16.gmra.mxu0 %v1416
    %v1470 = vpop.f32.mrf.mxu0
    %v1471 = vadd.f32 0.0, %v1470
    %v1472 = vpop.f32.mrf.mxu0
    %v1473 = vadd.f32 0.0, %v1472
    %v1474 = vpop.f32.mrf.mxu0
    %v1475 = vpop.f32.mrf.mxu0
    %1476 = vdwg.mxu0
    %1477 = vmatprep.subr.bf16.mxu0 %v544
    %1478 = vmatpush1.bf16.msra.mxu0 %v543
    %1479 = vmatprep.subr.bf16.mxu0 %v538
    %1480 = vmatpush1.bf16.msra.mxu0 %v537
    %1481 = vmatprep.subr.bf16.mxu0 %v532
    %1482 = vmatpush1.bf16.msra.mxu0 %v531
    %1483 = vmatprep.subr.bf16.mxu0 %v526
    %1484 = vmatpush1.bf16.msra.mxu0 %v525
    %1485 = vmatprep.subr.bf16.mxu0 %v520
    %1486 = vmatpush1.bf16.msra.mxu0 %v519
    %1487 = vmatprep.subr.bf16.mxu0 %v514
    %1488 = vmatpush1.bf16.msra.mxu0 %v513
    %1489 = vmatprep.subr.bf16.mxu0 %v508
    %1490 = vmatpush1.bf16.msra.mxu0 %v507
    %1491 = vmatprep.subr.bf16.mxu0 %v502
    %1492 = vmatpush1.bf16.msra.mxu0 %v501
    %1493 = vmatprep.subr.bf16.mxu0 %v592
    %1494 = vmatpush2.bf16.msra.mxu0 %v591
    %1495 = vmatprep.subr.bf16.mxu0 %v586
    %1496 = vmatpush2.bf16.msra.mxu0 %v585
    %1497 = vmatprep.subr.bf16.mxu0 %v580
    %1498 = vmatpush2.bf16.msra.mxu0 %v579
    %1499 = vmatprep.subr.bf16.mxu0 %v574
    %1500 = vmatpush2.bf16.msra.mxu0 %v573
    %1501 = vmatprep.subr.bf16.mxu0 %v568
    %1502 = vmatpush2.bf16.msra.mxu0 %v567
    %1503 = vmatprep.subr.bf16.mxu0 %v562
    %1504 = vmatpush2.bf16.msra.mxu0 %v561
    %1505 = vmatprep.subr.bf16.mxu0 %v556
    %1506 = vmatpush2.bf16.msra.mxu0 %v555
    %1507 = vmatprep.subr.bf16.mxu0 %v550
    %1508 = vmatpush2.bf16.msra.mxu0 %v549
    %1509 = vmatprep.mubr.bf16.mxu0 %v1419
    %1510 = vmatmul.mubr.bf16.gmra.mxu0 %v1416
    %v1511 = vpop.f32.mrf.mxu0
    %v1512 = vadd.f32 0.0, %v1511
    %v1513 = vpop.f32.mrf.mxu0
    %v1514 = vadd.f32 0.0, %v1513
    %v1515 = vpop.f32.mrf.mxu0
    %v1516 = vpop.f32.mrf.mxu0
    %1517 = vdwg.mxu0
    %1518 = vmatprep.subr.bf16.mxu0 %v546
    %1519 = vmatpush1.bf16.msra.mxu0 %v545
    %1520 = vmatprep.subr.bf16.mxu0 %v540
    %1521 = vmatpush1.bf16.msra.mxu0 %v539
    %1522 = vmatprep.subr.bf16.mxu0 %v534
    %1523 = vmatpush1.bf16.msra.mxu0 %v533
    %1524 = vmatprep.subr.bf16.mxu0 %v528
    %1525 = vmatpush1.bf16.msra.mxu0 %v527
    %1526 = vmatprep.subr.bf16.mxu0 %v522
    %1527 = vmatpush1.bf16.msra.mxu0 %v521
    %1528 = vmatprep.subr.bf16.mxu0 %v516
    %1529 = vmatpush1.bf16.msra.mxu0 %v515
    %1530 = vmatprep.subr.bf16.mxu0 %v510
    %1531 = vmatpush1.bf16.msra.mxu0 %v509
    %1532 = vmatprep.subr.bf16.mxu0 %v504
    %1533 = vmatpush1.bf16.msra.mxu0 %v503
    %1534 = vmatprep.subr.bf16.mxu0 %v594
    %1535 = vmatpush2.bf16.msra.mxu0 %v593
    %1536 = vmatprep.subr.bf16.mxu0 %v588
    %1537 = vmatpush2.bf16.msra.mxu0 %v587
    %1538 = vmatprep.subr.bf16.mxu0 %v582
    %1539 = vmatpush2.bf16.msra.mxu0 %v581
    %1540 = vmatprep.subr.bf16.mxu0 %v576
    %1541 = vmatpush2.bf16.msra.mxu0 %v575
    %1542 = vmatprep.subr.bf16.mxu0 %v570
    %1543 = vmatpush2.bf16.msra.mxu0 %v569
    %1544 = vmatprep.subr.bf16.mxu0 %v564
    %1545 = vmatpush2.bf16.msra.mxu0 %v563
    %1546 = vmatprep.subr.bf16.mxu0 %v558
    %1547 = vmatpush2.bf16.msra.mxu0 %v557
    %1548 = vmatprep.subr.bf16.mxu0 %v552
    %1549 = vmatpush2.bf16.msra.mxu0 %v551
    %1550 = vmatprep.mubr.bf16.mxu0 %v1419
    %1551 = vmatmul.mubr.bf16.gmra.mxu0 %v1416
    %v1552 = vpop.f32.mrf.mxu0
    %v1553 = vadd.f32 0.0, %v1552
    %v1554 = vpop.f32.mrf.mxu0
    %v1555 = vadd.f32 0.0, %v1554
    %v1556 = vpop.f32.mrf.mxu0
    %v1557 = vpop.f32.mrf.mxu0
    %1558 = vdwg.mxu0
    %v1559 = vadd.f32 %v1426, %v1471
    %v1560 = vxor.u32 %v1559, 2147483648
    %v1561 = vmul.f32 %v1560, 1.442695
    %v1562 = vpow.pop %v1561
    %v1563 = vadd.f32 %v1562, 1.0
    %v1564 = vrcp.pop %v1563
    %v1565 = vmul.f32 1.0, %v1564
    %v1566 = vadd.f32 %v1427, %v1473
    %v1567 = vxor.u32 %v1566, 2147483648
    %v1568 = vmul.f32 %v1567, 1.442695
    %v1569 = vpow.pop %v1568
    %v1570 = vadd.f32 %v1569, 1.0
    %v1571 = vrcp.pop %v1570
    %v1572 = vmul.f32 1.0, %v1571
    %v1573 = vadd.f32 %v1512, %v182
    %v1574 = vmul.f32 %v1565, %v1573
    %v1575 = vadd.f32 %v1428, %v1574
    %v1576 = vtanh.pop %v1575
    %v1577 = vsub.f32 %v1394, %v1576
    %v1578 = vmul.f32 %v1572, %v1577
    %v1579 = vadd.f32 %v1576, %v1578
    %v1580 = vadd.f32 %v1433, %v1514
    %v1581 = vxor.u32 %v1580, 2147483648
    %v1582 = vmul.f32 %v1581, 1.442695
    %v1583 = vpow.pop %v1582
    %v1584 = vadd.f32 %v1583, 1.0
    %v1585 = vrcp.pop %v1584
    %v1586 = vmul.f32 1.0, %v1585
    %v1587 = vadd.f32 %v1434, %v1553
    %v1588 = vxor.u32 %v1587, 2147483648
    %v1589 = vmul.f32 %v1588, 1.442695
    %v1590 = vpow.pop %v1589
    %v1591 = vadd.f32 %v1590, 1.0
    %v1592 = vrcp.pop %v1591
    %v1593 = vmul.f32 1.0, %v1592
    %v1594 = vadd.f32 %v1555, %v189
    %v1595 = vmul.f32 %v1586, %v1594
    %v1596 = vadd.f32 %v1435, %v1595
    %v1597 = vtanh.pop %v1596
    %v1598 = vsub.f32 %v1415, %v1597
    %v1599 = vmul.f32 %v1593, %v1598
    %v1600 = vadd.f32 %v1597, %v1599
    %v1601 = vpack.c.bf16 %v1579, %v1579
    %s1602 = scalar_lea.vmem %s5, 16
    %1603 = vst [vmem:[%s1602] sm:$0xf] %v1601
    %v1604 = vpack.c.bf16 %v1600, %v1600
    %s1605 = scalar_lea.vmem %s72, 12
    %1606 = vst [vmem:[%s1605] sm:$0xf] %v1604
    %s1607 = smul.addr %s1056, 4
    %s1608 = scalar_lea.vmem %s0, %s1607
    %v1609 = vld [vmem:[%s1608] sm:$0xff]
    %v1610 = vld [vmem:[%s1608 + $0x8] sm:$0xf]
    %v1611 = vunpack.c.l.bf16 %v1609
    %v1612 = vunpack.c.h.bf16 %v1609
    %v1613 = vunpack.c.l.bf16 %v1610
    %s1614 = smul.addr %s1048, 4
    %s1615 = scalar_lea.vmem %s64, %s1614
    %v1616 = vld [vmem:[%s1615] sm:$0xff]
    %v1617 = vld [vmem:[%s1615 + $0x8] sm:$0xf]
    %v1618 = vunpack.c.l.bf16 %v1616
    %v1619 = vunpack.c.h.bf16 %v1616
    %v1620 = vunpack.c.l.bf16 %v1617
    %1621 = vmatprep.subr.bf16.mxu0 %v542
    %1622 = vmatpush1.bf16.msra.mxu0 %v541
    %1623 = vmatprep.subr.bf16.mxu0 %v536
    %1624 = vmatpush1.bf16.msra.mxu0 %v535
    %1625 = vmatprep.subr.bf16.mxu0 %v530
    %1626 = vmatpush1.bf16.msra.mxu0 %v529
    %1627 = vmatprep.subr.bf16.mxu0 %v524
    %1628 = vmatpush1.bf16.msra.mxu0 %v523
    %1629 = vmatprep.subr.bf16.mxu0 %v518
    %1630 = vmatpush1.bf16.msra.mxu0 %v517
    %1631 = vmatprep.subr.bf16.mxu0 %v512
    %1632 = vmatpush1.bf16.msra.mxu0 %v511
    %1633 = vmatprep.subr.bf16.mxu0 %v506
    %1634 = vmatpush1.bf16.msra.mxu0 %v505
    %1635 = vmatprep.subr.bf16.mxu0 %v500
    %1636 = vmatpush1.bf16.msra.mxu0 %v499
    %1637 = vmatprep.subr.bf16.mxu0 %v590
    %1638 = vmatpush2.bf16.msra.mxu0 %v589
    %1639 = vmatprep.subr.bf16.mxu0 %v584
    %1640 = vmatpush2.bf16.msra.mxu0 %v583
    %1641 = vmatprep.subr.bf16.mxu0 %v578
    %1642 = vmatpush2.bf16.msra.mxu0 %v577
    %1643 = vmatprep.subr.bf16.mxu0 %v572
    %1644 = vmatpush2.bf16.msra.mxu0 %v571
    %1645 = vmatprep.subr.bf16.mxu0 %v566
    %1646 = vmatpush2.bf16.msra.mxu0 %v565
    %1647 = vmatprep.subr.bf16.mxu0 %v560
    %1648 = vmatpush2.bf16.msra.mxu0 %v559
    %1649 = vmatprep.subr.bf16.mxu0 %v554
    %1650 = vmatpush2.bf16.msra.mxu0 %v553
    %1651 = vmatprep.subr.bf16.mxu0 %v548
    %1652 = vmatpush2.bf16.msra.mxu0 %v547
    %1653 = vmatprep.mubr.bf16.mxu0 %v1604
    %1654 = vmatmul.mubr.bf16.gmra.mxu0 %v1601
    %v1655 = vpop.f32.mrf.mxu0
    %v1656 = vadd.f32 0.0, %v1655
    %v1657 = vpop.f32.mrf.mxu0
    %v1658 = vadd.f32 0.0, %v1657
    %v1659 = vpop.f32.mrf.mxu0
    %v1660 = vpop.f32.mrf.mxu0
    %1661 = vdwg.mxu0
    %1662 = vmatprep.subr.bf16.mxu0 %v544
    %1663 = vmatpush1.bf16.msra.mxu0 %v543
    %1664 = vmatprep.subr.bf16.mxu0 %v538
    %1665 = vmatpush1.bf16.msra.mxu0 %v537
    %1666 = vmatprep.subr.bf16.mxu0 %v532
    %1667 = vmatpush1.bf16.msra.mxu0 %v531
    %1668 = vmatprep.subr.bf16.mxu0 %v526
    %1669 = vmatpush1.bf16.msra.mxu0 %v525
    %1670 = vmatprep.subr.bf16.mxu0 %v520
    %1671 = vmatpush1.bf16.msra.mxu0 %v519
    %1672 = vmatprep.subr.bf16.mxu0 %v514
    %1673 = vmatpush1.bf16.msra.mxu0 %v513
    %1674 = vmatprep.subr.bf16.mxu0 %v508
    %1675 = vmatpush1.bf16.msra.mxu0 %v507
    %1676 = vmatprep.subr.bf16.mxu0 %v502
    %1677 = vmatpush1.bf16.msra.mxu0 %v501
    %1678 = vmatprep.subr.bf16.mxu0 %v592
    %1679 = vmatpush2.bf16.msra.mxu0 %v591
    %1680 = vmatprep.subr.bf16.mxu0 %v586
    %1681 = vmatpush2.bf16.msra.mxu0 %v585
    %1682 = vmatprep.subr.bf16.mxu0 %v580
    %1683 = vmatpush2.bf16.msra.mxu0 %v579
    %1684 = vmatprep.subr.bf16.mxu0 %v574
    %1685 = vmatpush2.bf16.msra.mxu0 %v573
    %1686 = vmatprep.subr.bf16.mxu0 %v568
    %1687 = vmatpush2.bf16.msra.mxu0 %v567
    %1688 = vmatprep.subr.bf16.mxu0 %v562
    %1689 = vmatpush2.bf16.msra.mxu0 %v561
    %1690 = vmatprep.subr.bf16.mxu0 %v556
    %1691 = vmatpush2.bf16.msra.mxu0 %v555
    %1692 = vmatprep.subr.bf16.mxu0 %v550
    %1693 = vmatpush2.bf16.msra.mxu0 %v549
    %1694 = vmatprep.mubr.bf16.mxu0 %v1604
    %1695 = vmatmul.mubr.bf16.gmra.mxu0 %v1601
    %v1696 = vpop.f32.mrf.mxu0
    %v1697 = vadd.f32 0.0, %v1696
    %v1698 = vpop.f32.mrf.mxu0
    %v1699 = vadd.f32 0.0, %v1698
    %v1700 = vpop.f32.mrf.mxu0
    %v1701 = vpop.f32.mrf.mxu0
    %1702 = vdwg.mxu0
    %1703 = vmatprep.subr.bf16.mxu0 %v546
    %1704 = vmatpush1.bf16.msra.mxu0 %v545
    %1705 = vmatprep.subr.bf16.mxu0 %v540
    %1706 = vmatpush1.bf16.msra.mxu0 %v539
    %1707 = vmatprep.subr.bf16.mxu0 %v534
    %1708 = vmatpush1.bf16.msra.mxu0 %v533
    %1709 = vmatprep.subr.bf16.mxu0 %v528
    %1710 = vmatpush1.bf16.msra.mxu0 %v527
    %1711 = vmatprep.subr.bf16.mxu0 %v522
    %1712 = vmatpush1.bf16.msra.mxu0 %v521
    %1713 = vmatprep.subr.bf16.mxu0 %v516
    %1714 = vmatpush1.bf16.msra.mxu0 %v515
    %1715 = vmatprep.subr.bf16.mxu0 %v510
    %1716 = vmatpush1.bf16.msra.mxu0 %v509
    %1717 = vmatprep.subr.bf16.mxu0 %v504
    %1718 = vmatpush1.bf16.msra.mxu0 %v503
    %1719 = vmatprep.subr.bf16.mxu0 %v594
    %1720 = vmatpush2.bf16.msra.mxu0 %v593
    %1721 = vmatprep.subr.bf16.mxu0 %v588
    %1722 = vmatpush2.bf16.msra.mxu0 %v587
    %1723 = vmatprep.subr.bf16.mxu0 %v582
    %1724 = vmatpush2.bf16.msra.mxu0 %v581
    %1725 = vmatprep.subr.bf16.mxu0 %v576
    %1726 = vmatpush2.bf16.msra.mxu0 %v575
    %1727 = vmatprep.subr.bf16.mxu0 %v570
    %1728 = vmatpush2.bf16.msra.mxu0 %v569
    %1729 = vmatprep.subr.bf16.mxu0 %v564
    %1730 = vmatpush2.bf16.msra.mxu0 %v563
    %1731 = vmatprep.subr.bf16.mxu0 %v558
    %1732 = vmatpush2.bf16.msra.mxu0 %v557
    %1733 = vmatprep.subr.bf16.mxu0 %v552
    %1734 = vmatpush2.bf16.msra.mxu0 %v551
    %1735 = vmatprep.mubr.bf16.mxu0 %v1604
    %1736 = vmatmul.mubr.bf16.gmra.mxu0 %v1601
    %v1737 = vpop.f32.mrf.mxu0
    %v1738 = vadd.f32 0.0, %v1737
    %v1739 = vpop.f32.mrf.mxu0
    %v1740 = vadd.f32 0.0, %v1739
    %v1741 = vpop.f32.mrf.mxu0
    %v1742 = vpop.f32.mrf.mxu0
    %1743 = vdwg.mxu0
    %v1744 = vadd.f32 %v1611, %v1656
    %v1745 = vxor.u32 %v1744, 2147483648
    %v1746 = vmul.f32 %v1745, 1.442695
    %v1747 = vpow.pop %v1746
    %v1748 = vadd.f32 %v1747, 1.0
    %v1749 = vrcp.pop %v1748
    %v1750 = vmul.f32 1.0, %v1749
    %v1751 = vadd.f32 %v1612, %v1658
    %v1752 = vxor.u32 %v1751, 2147483648
    %v1753 = vmul.f32 %v1752, 1.442695
    %v1754 = vpow.pop %v1753
    %v1755 = vadd.f32 %v1754, 1.0
    %v1756 = vrcp.pop %v1755
    %v1757 = vmul.f32 1.0, %v1756
    %v1758 = vadd.f32 %v1697, %v182
    %v1759 = vmul.f32 %v1750, %v1758
    %v1760 = vadd.f32 %v1613, %v1759
    %v1761 = vtanh.pop %v1760
    %v1762 = vsub.f32 %v1579, %v1761
    %v1763 = vmul.f32 %v1757, %v1762
    %v1764 = vadd.f32 %v1761, %v1763
    %v1765 = vadd.f32 %v1618, %v1699
    %v1766 = vxor.u32 %v1765, 2147483648
    %v1767 = vmul.f32 %v1766, 1.442695
    %v1768 = vpow.pop %v1767
    %v1769 = vadd.f32 %v1768, 1.0
    %v1770 = vrcp.pop %v1769
    %v1771 = vmul.f32 1.0, %v1770
    %v1772 = vadd.f32 %v1619, %v1738
    %v1773 = vxor.u32 %v1772, 2147483648
    %v1774 = vmul.f32 %v1773, 1.442695
    %v1775 = vpow.pop %v1774
    %v1776 = vadd.f32 %v1775, 1.0
    %v1777 = vrcp.pop %v1776
    %v1778 = vmul.f32 1.0, %v1777
    %v1779 = vadd.f32 %v1740, %v189
    %v1780 = vmul.f32 %v1771, %v1779
    %v1781 = vadd.f32 %v1620, %v1780
    %v1782 = vtanh.pop %v1781
    %v1783 = vsub.f32 %v1600, %v1782
    %v1784 = vmul.f32 %v1778, %v1783
    %v1785 = vadd.f32 %v1782, %v1784
    %v1786 = vpack.c.bf16 %v1764, %v1764
    %s1787 = scalar_lea.vmem %s5, 20
    %1788 = vst [vmem:[%s1787] sm:$0xf] %v1786
    %v1789 = vpack.c.bf16 %v1785, %v1785
    %s1790 = scalar_lea.vmem %s72, 8
    %1791 = vst [vmem:[%s1790] sm:$0xf] %v1789
    %s1792 = smul.addr %s869, 4
    %s1793 = scalar_lea.vmem %s0, %s1792
    %v1794 = vld [vmem:[%s1793] sm:$0xff]
    %v1795 = vld [vmem:[%s1793 + $0x8] sm:$0xf]
    %v1796 = vunpack.c.l.bf16 %v1794
    %v1797 = vunpack.c.h.bf16 %v1794
    %v1798 = vunpack.c.l.bf16 %v1795
    %s1799 = smul.addr %s861, 4
    %s1800 = scalar_lea.vmem %s64, %s1799
    %v1801 = vld [vmem:[%s1800] sm:$0xff]
    %v1802 = vld [vmem:[%s1800 + $0x8] sm:$0xf]
    %v1803 = vunpack.c.l.bf16 %v1801
    %v1804 = vunpack.c.h.bf16 %v1801
    %v1805 = vunpack.c.l.bf16 %v1802
    %1806 = vmatprep.subr.bf16.mxu0 %v542
    %1807 = vmatpush1.bf16.msra.mxu0 %v541
    %1808 = vmatprep.subr.bf16.mxu0 %v536
    %1809 = vmatpush1.bf16.msra.mxu0 %v535
    %1810 = vmatprep.subr.bf16.mxu0 %v530
    %1811 = vmatpush1.bf16.msra.mxu0 %v529
    %1812 = vmatprep.subr.bf16.mxu0 %v524
    %1813 = vmatpush1.bf16.msra.mxu0 %v523
    %1814 = vmatprep.subr.bf16.mxu0 %v518
    %1815 = vmatpush1.bf16.msra.mxu0 %v517
    %1816 = vmatprep.subr.bf16.mxu0 %v512
    %1817 = vmatpush1.bf16.msra.mxu0 %v511
    %1818 = vmatprep.subr.bf16.mxu0 %v506
    %1819 = vmatpush1.bf16.msra.mxu0 %v505
    %1820 = vmatprep.subr.bf16.mxu0 %v500
    %1821 = vmatpush1.bf16.msra.mxu0 %v499
    %1822 = vmatprep.subr.bf16.mxu0 %v590
    %1823 = vmatpush2.bf16.msra.mxu0 %v589
    %1824 = vmatprep.subr.bf16.mxu0 %v584
    %1825 = vmatpush2.bf16.msra.mxu0 %v583
    %1826 = vmatprep.subr.bf16.mxu0 %v578
    %1827 = vmatpush2.bf16.msra.mxu0 %v577
    %1828 = vmatprep.subr.bf16.mxu0 %v572
    %1829 = vmatpush2.bf16.msra.mxu0 %v571
    %1830 = vmatprep.subr.bf16.mxu0 %v566
    %1831 = vmatpush2.bf16.msra.mxu0 %v565
    %1832 = vmatprep.subr.bf16.mxu0 %v560
    %1833 = vmatpush2.bf16.msra.mxu0 %v559
    %1834 = vmatprep.subr.bf16.mxu0 %v554
    %1835 = vmatpush2.bf16.msra.mxu0 %v553
    %1836 = vmatprep.subr.bf16.mxu0 %v548
    %1837 = vmatpush2.bf16.msra.mxu0 %v547
    %1838 = vmatprep.mubr.bf16.mxu0 %v1789
    %1839 = vmatmul.mubr.bf16.gmra.mxu0 %v1786
    %v1840 = vpop.f32.mrf.mxu0
    %v1841 = vadd.f32 0.0, %v1840
    %v1842 = vpop.f32.mrf.mxu0
    %v1843 = vadd.f32 0.0, %v1842
    %v1844 = vpop.f32.mrf.mxu0
    %v1845 = vpop.f32.mrf.mxu0
    %1846 = vdwg.mxu0
    %1847 = vmatprep.subr.bf16.mxu0 %v544
    %1848 = vmatpush1.bf16.msra.mxu0 %v543
    %1849 = vmatprep.subr.bf16.mxu0 %v538
    %1850 = vmatpush1.bf16.msra.mxu0 %v537
    %1851 = vmatprep.subr.bf16.mxu0 %v532
    %1852 = vmatpush1.bf16.msra.mxu0 %v531
    %1853 = vmatprep.subr.bf16.mxu0 %v526
    %1854 = vmatpush1.bf16.msra.mxu0 %v525
    %1855 = vmatprep.subr.bf16.mxu0 %v520
    %1856 = vmatpush1.bf16.msra.mxu0 %v519
    %1857 = vmatprep.subr.bf16.mxu0 %v514
    %1858 = vmatpush1.bf16.msra.mxu0 %v513
    %1859 = vmatprep.subr.bf16.mxu0 %v508
    %1860 = vmatpush1.bf16.msra.mxu0 %v507
    %1861 = vmatprep.subr.bf16.mxu0 %v502
    %1862 = vmatpush1.bf16.msra.mxu0 %v501
    %1863 = vmatprep.subr.bf16.mxu0 %v592
    %1864 = vmatpush2.bf16.msra.mxu0 %v591
    %1865 = vmatprep.subr.bf16.mxu0 %v586
    %1866 = vmatpush2.bf16.msra.mxu0 %v585
    %1867 = vmatprep.subr.bf16.mxu0 %v580
    %1868 = vmatpush2.bf16.msra.mxu0 %v579
    %1869 = vmatprep.subr.bf16.mxu0 %v574
    %1870 = vmatpush2.bf16.msra.mxu0 %v573
    %1871 = vmatprep.subr.bf16.mxu0 %v568
    %1872 = vmatpush2.bf16.msra.mxu0 %v567
    %1873 = vmatprep.subr.bf16.mxu0 %v562
    %1874 = vmatpush2.bf16.msra.mxu0 %v561
    %1875 = vmatprep.subr.bf16.mxu0 %v556
    %1876 = vmatpush2.bf16.msra.mxu0 %v555
    %1877 = vmatprep.subr.bf16.mxu0 %v550
    %1878 = vmatpush2.bf16.msra.mxu0 %v549
    %1879 = vmatprep.mubr.bf16.mxu0 %v1789
    %1880 = vmatmul.mubr.bf16.gmra.mxu0 %v1786
    %v1881 = vpop.f32.mrf.mxu0
    %v1882 = vadd.f32 0.0, %v1881
    %v1883 = vpop.f32.mrf.mxu0
    %v1884 = vadd.f32 0.0, %v1883
    %v1885 = vpop.f32.mrf.mxu0
    %v1886 = vpop.f32.mrf.mxu0
    %1887 = vdwg.mxu0
    %1888 = vmatprep.subr.bf16.mxu0 %v546
    %1889 = vmatpush1.bf16.msra.mxu0 %v545
    %1890 = vmatprep.subr.bf16.mxu0 %v540
    %1891 = vmatpush1.bf16.msra.mxu0 %v539
    %1892 = vmatprep.subr.bf16.mxu0 %v534
    %1893 = vmatpush1.bf16.msra.mxu0 %v533
    %1894 = vmatprep.subr.bf16.mxu0 %v528
    %1895 = vmatpush1.bf16.msra.mxu0 %v527
    %1896 = vmatprep.subr.bf16.mxu0 %v522
    %1897 = vmatpush1.bf16.msra.mxu0 %v521
    %1898 = vmatprep.subr.bf16.mxu0 %v516
    %1899 = vmatpush1.bf16.msra.mxu0 %v515
    %1900 = vmatprep.subr.bf16.mxu0 %v510
    %1901 = vmatpush1.bf16.msra.mxu0 %v509
    %1902 = vmatprep.subr.bf16.mxu0 %v504
    %1903 = vmatpush1.bf16.msra.mxu0 %v503
    %1904 = vmatprep.subr.bf16.mxu0 %v594
    %1905 = vmatpush2.bf16.msra.mxu0 %v593
    %1906 = vmatprep.subr.bf16.mxu0 %v588
    %1907 = vmatpush2.bf16.msra.mxu0 %v587
    %1908 = vmatprep.subr.bf16.mxu0 %v582
    %1909 = vmatpush2.bf16.msra.mxu0 %v581
    %1910 = vmatprep.subr.bf16.mxu0 %v576
    %1911 = vmatpush2.bf16.msra.mxu0 %v575
    %1912 = vmatprep.subr.bf16.mxu0 %v570
    %1913 = vmatpush2.bf16.msra.mxu0 %v569
    %1914 = vmatprep.subr.bf16.mxu0 %v564
    %1915 = vmatpush2.bf16.msra.mxu0 %v563
    %1916 = vmatprep.subr.bf16.mxu0 %v558
    %1917 = vmatpush2.bf16.msra.mxu0 %v557
    %1918 = vmatprep.subr.bf16.mxu0 %v552
    %1919 = vmatpush2.bf16.msra.mxu0 %v551
    %1920 = vmatprep.mubr.bf16.mxu0 %v1789
    %1921 = vmatmul.mubr.bf16.gmra.mxu0 %v1786
    %v1922 = vpop.f32.mrf.mxu0
    %v1923 = vadd.f32 0.0, %v1922
    %v1924 = vpop.f32.mrf.mxu0
    %v1925 = vadd.f32 0.0, %v1924
    %v1926 = vpop.f32.mrf.mxu0
    %v1927 = vpop.f32.mrf.mxu0
    %1928 = vdwg.mxu0
    %v1929 = vadd.f32 %v1796, %v1841
    %v1930 = vxor.u32 %v1929, 2147483648
    %v1931 = vmul.f32 %v1930, 1.442695
    %v1932 = vpow.pop %v1931
    %v1933 = vadd.f32 %v1932, 1.0
    %v1934 = vrcp.pop %v1933
    %v1935 = vmul.f32 1.0, %v1934
    %v1936 = vadd.f32 %v1797, %v1843
    %v1937 = vxor.u32 %v1936, 2147483648
    %v1938 = vmul.f32 %v1937, 1.442695
    %v1939 = vpow.pop %v1938
    %v1940 = vadd.f32 %v1939, 1.0
    %v1941 = vrcp.pop %v1940
    %v1942 = vmul.f32 1.0, %v1941
    %v1943 = vadd.f32 %v1882, %v182
    %v1944 = vmul.f32 %v1935, %v1943
    %v1945 = vadd.f32 %v1798, %v1944
    %v1946 = vtanh.pop %v1945
    %v1947 = vsub.f32 %v1764, %v1946
    %v1948 = vmul.f32 %v1942, %v1947
    %v1949 = vadd.f32 %v1946, %v1948
    %v1950 = vadd.f32 %v1803, %v1884
    %v1951 = vxor.u32 %v1950, 2147483648
    %v1952 = vmul.f32 %v1951, 1.442695
    %v1953 = vpow.pop %v1952
    %v1954 = vadd.f32 %v1953, 1.0
    %v1955 = vrcp.pop %v1954
    %v1956 = vmul.f32 1.0, %v1955
    %v1957 = vadd.f32 %v1804, %v1923
    %v1958 = vxor.u32 %v1957, 2147483648
    %v1959 = vmul.f32 %v1958, 1.442695
    %v1960 = vpow.pop %v1959
    %v1961 = vadd.f32 %v1960, 1.0
    %v1962 = vrcp.pop %v1961
    %v1963 = vmul.f32 1.0, %v1962
    %v1964 = vadd.f32 %v1925, %v189
    %v1965 = vmul.f32 %v1956, %v1964
    %v1966 = vadd.f32 %v1805, %v1965
    %v1967 = vtanh.pop %v1966
    %v1968 = vsub.f32 %v1785, %v1967
    %v1969 = vmul.f32 %v1963, %v1968
    %v1970 = vadd.f32 %v1967, %v1969
    %v1971 = vpack.c.bf16 %v1949, %v1949
    %s1972 = scalar_lea.vmem %s5, 24
    %1973 = vst [vmem:[%s1972] sm:$0xf] %v1971
    %v1974 = vpack.c.bf16 %v1970, %v1970
    %s1975 = scalar_lea.vmem %s72, 4
    %1976 = vst [vmem:[%s1975] sm:$0xf] %v1974
    %s1977 = smul.addr %s201, 4
    %s1978 = scalar_lea.vmem %s0, %s1977
    %v1979 = vld [vmem:[%s1978] sm:$0xff]
    %v1980 = vld [vmem:[%s1978 + $0x8] sm:$0xf]
    %v1981 = vunpack.c.l.bf16 %v1979
    %v1982 = vunpack.c.h.bf16 %v1979
    %v1983 = vunpack.c.l.bf16 %v1980
    %s1984 = smul.addr %s193, 4
    %s1985 = scalar_lea.vmem %s64, %s1984
    %v1986 = vld [vmem:[%s1985] sm:$0xff]
    %v1987 = vld [vmem:[%s1985 + $0x8] sm:$0xf]
    %v1988 = vunpack.c.l.bf16 %v1986
    %v1989 = vunpack.c.h.bf16 %v1986
    %v1990 = vunpack.c.l.bf16 %v1987
    %1991 = vmatprep.subr.bf16.mxu0 %v542
    %1992 = vmatpush1.bf16.msra.mxu0 %v541
    %1993 = vmatprep.subr.bf16.mxu0 %v536
    %1994 = vmatpush1.bf16.msra.mxu0 %v535
    %1995 = vmatprep.subr.bf16.mxu0 %v530
    %1996 = vmatpush1.bf16.msra.mxu0 %v529
    %1997 = vmatprep.subr.bf16.mxu0 %v524
    %1998 = vmatpush1.bf16.msra.mxu0 %v523
    %1999 = vmatprep.subr.bf16.mxu0 %v518
    %2000 = vmatpush1.bf16.msra.mxu0 %v517
    %2001 = vmatprep.subr.bf16.mxu0 %v512
    %2002 = vmatpush1.bf16.msra.mxu0 %v511
    %2003 = vmatprep.subr.bf16.mxu0 %v506
    %2004 = vmatpush1.bf16.msra.mxu0 %v505
    %2005 = vmatprep.subr.bf16.mxu0 %v500
    %2006 = vmatpush1.bf16.msra.mxu0 %v499
    %2007 = vmatprep.subr.bf16.mxu0 %v590
    %2008 = vmatpush2.bf16.msra.mxu0 %v589
    %2009 = vmatprep.subr.bf16.mxu0 %v584
    %2010 = vmatpush2.bf16.msra.mxu0 %v583
    %2011 = vmatprep.subr.bf16.mxu0 %v578
    %2012 = vmatpush2.bf16.msra.mxu0 %v577
    %2013 = vmatprep.subr.bf16.mxu0 %v572
    %2014 = vmatpush2.bf16.msra.mxu0 %v571
    %2015 = vmatprep.subr.bf16.mxu0 %v566
    %2016 = vmatpush2.bf16.msra.mxu0 %v565
    %2017 = vmatprep.subr.bf16.mxu0 %v560
    %2018 = vmatpush2.bf16.msra.mxu0 %v559
    %2019 = vmatprep.subr.bf16.mxu0 %v554
    %2020 = vmatpush2.bf16.msra.mxu0 %v553
    %2021 = vmatprep.subr.bf16.mxu0 %v548
    %2022 = vmatpush2.bf16.msra.mxu0 %v547
    %2023 = vmatprep.mubr.bf16.mxu0 %v1974
    %2024 = vmatmul.mubr.bf16.gmra.mxu0 %v1971
    %v2025 = vpop.f32.mrf.mxu0
    %v2026 = vadd.f32 0.0, %v2025
    %v2027 = vpop.f32.mrf.mxu0
    %v2028 = vadd.f32 0.0, %v2027
    %v2029 = vpop.f32.mrf.mxu0
    %v2030 = vpop.f32.mrf.mxu0
    %2031 = vdwg.mxu0
    %2032 = vmatprep.subr.bf16.mxu0 %v544
    %2033 = vmatpush1.bf16.msra.mxu0 %v543
    %2034 = vmatprep.subr.bf16.mxu0 %v538
    %2035 = vmatpush1.bf16.msra.mxu0 %v537
    %2036 = vmatprep.subr.bf16.mxu0 %v532
    %2037 = vmatpush1.bf16.msra.mxu0 %v531
    %2038 = vmatprep.subr.bf16.mxu0 %v526
    %2039 = vmatpush1.bf16.msra.mxu0 %v525
    %2040 = vmatprep.subr.bf16.mxu0 %v520
    %2041 = vmatpush1.bf16.msra.mxu0 %v519
    %2042 = vmatprep.subr.bf16.mxu0 %v514
    %2043 = vmatpush1.bf16.msra.mxu0 %v513
    %2044 = vmatprep.subr.bf16.mxu0 %v508
    %2045 = vmatpush1.bf16.msra.mxu0 %v507
    %2046 = vmatprep.subr.bf16.mxu0 %v502
    %2047 = vmatpush1.bf16.msra.mxu0 %v501
    %2048 = vmatprep.subr.bf16.mxu0 %v592
    %2049 = vmatpush2.bf16.msra.mxu0 %v591
    %2050 = vmatprep.subr.bf16.mxu0 %v586
    %2051 = vmatpush2.bf16.msra.mxu0 %v585
    %2052 = vmatprep.subr.bf16.mxu0 %v580
    %2053 = vmatpush2.bf16.msra.mxu0 %v579
    %2054 = vmatprep.subr.bf16.mxu0 %v574
    %2055 = vmatpush2.bf16.msra.mxu0 %v573
    %2056 = vmatprep.subr.bf16.mxu0 %v568
    %2057 = vmatpush2.bf16.msra.mxu0 %v567
    %2058 = vmatprep.subr.bf16.mxu0 %v562
    %2059 = vmatpush2.bf16.msra.mxu0 %v561
    %2060 = vmatprep.subr.bf16.mxu0 %v556
    %2061 = vmatpush2.bf16.msra.mxu0 %v555
    %2062 = vmatprep.subr.bf16.mxu0 %v550
    %2063 = vmatpush2.bf16.msra.mxu0 %v549
    %2064 = vmatprep.mubr.bf16.mxu0 %v1974
    %2065 = vmatmul.mubr.bf16.gmra.mxu0 %v1971
    %v2066 = vpop.f32.mrf.mxu0
    %v2067 = vadd.f32 0.0, %v2066
    %v2068 = vpop.f32.mrf.mxu0
    %v2069 = vadd.f32 0.0, %v2068
    %v2070 = vpop.f32.mrf.mxu0
    %v2071 = vpop.f32.mrf.mxu0
    %2072 = vdwg.mxu0
    %2073 = vmatprep.subr.bf16.mxu0 %v546
    %2074 = vmatpush1.bf16.msra.mxu0 %v545
    %2075 = vmatprep.subr.bf16.mxu0 %v540
    %2076 = vmatpush1.bf16.msra.mxu0 %v539
    %2077 = vmatprep.subr.bf16.mxu0 %v534
    %2078 = vmatpush1.bf16.msra.mxu0 %v533
    %2079 = vmatprep.subr.bf16.mxu0 %v528
    %2080 = vmatpush1.bf16.msra.mxu0 %v527
    %2081 = vmatprep.subr.bf16.mxu0 %v522
    %2082 = vmatpush1.bf16.msra.mxu0 %v521
    %2083 = vmatprep.subr.bf16.mxu0 %v516
    %2084 = vmatpush1.bf16.msra.mxu0 %v515
    %2085 = vmatprep.subr.bf16.mxu0 %v510
    %2086 = vmatpush1.bf16.msra.mxu0 %v509
    %2087 = vmatprep.subr.bf16.mxu0 %v504
    %2088 = vmatpush1.bf16.msra.mxu0 %v503
    %2089 = vmatprep.subr.bf16.mxu0 %v594
    %2090 = vmatpush2.bf16.msra.mxu0 %v593
    %2091 = vmatprep.subr.bf16.mxu0 %v588
    %2092 = vmatpush2.bf16.msra.mxu0 %v587
    %2093 = vmatprep.subr.bf16.mxu0 %v582
    %2094 = vmatpush2.bf16.msra.mxu0 %v581
    %2095 = vmatprep.subr.bf16.mxu0 %v576
    %2096 = vmatpush2.bf16.msra.mxu0 %v575
    %2097 = vmatprep.subr.bf16.mxu0 %v570
    %2098 = vmatpush2.bf16.msra.mxu0 %v569
    %2099 = vmatprep.subr.bf16.mxu0 %v564
    %2100 = vmatpush2.bf16.msra.mxu0 %v563
    %2101 = vmatprep.subr.bf16.mxu0 %v558
    %2102 = vmatpush2.bf16.msra.mxu0 %v557
    %2103 = vmatprep.subr.bf16.mxu0 %v552
    %2104 = vmatpush2.bf16.msra.mxu0 %v551
    %2105 = vmatprep.mubr.bf16.mxu0 %v1974
    %2106 = vmatmul.mubr.bf16.gmra.mxu0 %v1971
    %v2107 = vpop.f32.mrf.mxu0
    %v2108 = vadd.f32 0.0, %v2107
    %v2109 = vpop.f32.mrf.mxu0
    %v2110 = vadd.f32 0.0, %v2109
    %v2111 = vpop.f32.mrf.mxu0
    %v2112 = vpop.f32.mrf.mxu0
    %2113 = vdwg.mxu0
    %v2114 = vadd.f32 %v1981, %v2026
    %v2115 = vxor.u32 %v2114, 2147483648
    %v2116 = vmul.f32 %v2115, 1.442695
    %v2117 = vpow.pop %v2116
    %v2118 = vadd.f32 %v2117, 1.0
    %v2119 = vrcp.pop %v2118
    %v2120 = vmul.f32 1.0, %v2119
    %v2121 = vadd.f32 %v1982, %v2028
    %v2122 = vxor.u32 %v2121, 2147483648
    %v2123 = vmul.f32 %v2122, 1.442695
    %v2124 = vpow.pop %v2123
    %v2125 = vadd.f32 %v2124, 1.0
    %v2126 = vrcp.pop %v2125
    %v2127 = vmul.f32 1.0, %v2126
    %v2128 = vadd.f32 %v2067, %v182
    %v2129 = vmul.f32 %v2120, %v2128
    %v2130 = vadd.f32 %v1983, %v2129
    %v2131 = vtanh.pop %v2130
    %v2132 = vsub.f32 %v1949, %v2131
    %v2133 = vmul.f32 %v2127, %v2132
    %v2134 = vadd.f32 %v2131, %v2133
    %v2135 = vadd.f32 %v1988, %v2069
    %v2136 = vxor.u32 %v2135, 2147483648
    %v2137 = vmul.f32 %v2136, 1.442695
    %v2138 = vpow.pop %v2137
    %v2139 = vadd.f32 %v2138, 1.0
    %v2140 = vrcp.pop %v2139
    %v2141 = vmul.f32 1.0, %v2140
    %v2142 = vadd.f32 %v1989, %v2108
    %v2143 = vxor.u32 %v2142, 2147483648
    %v2144 = vmul.f32 %v2143, 1.442695
    %v2145 = vpow.pop %v2144
    %v2146 = vadd.f32 %v2145, 1.0
    %v2147 = vrcp.pop %v2146
    %v2148 = vmul.f32 1.0, %v2147
    %v2149 = vadd.f32 %v2110, %v189
    %v2150 = vmul.f32 %v2141, %v2149
    %v2151 = vadd.f32 %v1990, %v2150
    %v2152 = vtanh.pop %v2151
    %v2153 = vsub.f32 %v1970, %v2152
    %v2154 = vmul.f32 %v2148, %v2153
    %v2155 = vadd.f32 %v2152, %v2154
    %v2156 = vpack.c.bf16 %v2134, %v2134
    %s2157 = scalar_lea.vmem %s5, 28
    %2158 = vst [vmem:[%s2157] sm:$0xf] %v2156
    %v2159 = vpack.c.bf16 %v2155, %v2155
    %2160 = vst [vmem:[%s72] sm:$0xf] %v2159
    %2161 = vst [vmem:[#allocation2] sm:$0xff] %v2134
    %2162 = vst [vmem:[#allocation2 + $0x8] sm:$0xff] %v2155
    %s2163 = ssub.s32 0, 0
    %s2164 = smul.u32 8, %s2163
    %p2165 = scmp.lt.s32.totalorder %s2164, 7
    %s2166 = scalar_select %p2165, %s2164, 7
    %s2167 = smul.addr %s2166, 4
    %s2168 = scalar_lea.vmem %s6, %s2167
    // Predicated region
    $region30: #{ctctop_r_forward.6} parent=1 // pred_check
      _
    $region31: #{ctctop_r_forward.6} parent=1 // pred_check_branch
      %2170 = sbr.rel (0) target = $region33
    $region32: #{ctctop_r_forward.6} parent=1 // pred_region
      _
    $region33: #{ctctop_r_forward.6} parent=1 // pred_fallthru
      _
    // Predicated region
    $region34: #{ctctop_r_forward.6} parent=1 // pred_check
      _
    $region35: #{ctctop_r_forward.6} parent=1 // pred_check_branch
      %2172 = sbr.rel (0) target = $region37
    $region36: #{ctctop_r_forward.6} parent=1 // pred_region
      %s2173 = ssub.s32 0, 0
      %s2174 = smul.u32 8, %s2173
    $region37: #{ctctop_r_forward.6} parent=1 // pred_fallthru
      _
    // Predicated region
    $region38: #{ctctop_r_forward.6} parent=1 // pred_check
      _
    $region39: #{ctctop_r_forward.6} parent=1 // pred_check_branch
      %2176 = sbr.rel (0) target = $region41
    $region40: #{ctctop_r_forward.6} parent=1 // pred_region
      _
    $region41: #{ctctop_r_forward.6} parent=1 // pred_fallthru
      _
    // Predicated region
    $region42: #{ctctop_r_forward.6} parent=1 // pred_check
      _
    $region43: #{ctctop_r_forward.6} parent=1 // pred_check_branch
      %2178 = sbr.rel (0) target = $region45
    $region44: #{ctctop_r_forward.6} parent=1 // pred_region
      %s2179 = ssub.s32 0, 0
      %s2180 = smul.u32 8, %s2179
      %p2181 = scmp.lt.s32.totalorder %s2180, 7
      %s2182 = scalar_select %p2181, %s2180, 7
      %s2183 = smul.addr %s2182, 4
      %s2184 = scalar_lea.vmem %s6, %s2183
    $region45: #{ctctop_r_forward.6} parent=1 // pred_fallthru
      _
    %2185 = vsyncpa [#allocation4], 1

</llo_original>
